<compile_context>
chip_gen: v7x
topology: tpu7x:2x2x1
jax: 0.10.0
libtpu: 0.0.40
codegen_flags: <defaults>
</compile_context>

<pallas_src>
import functools

import jax
import jax.numpy as jnp
from jax.experimental import pallas as pl
from jax.experimental.pallas import tpu as pltpu

LANE = 128                      # lane padding granularity
TM_MAX = 1024                   # max output-row tile
BN_EPS = 1e-5
VMEM_LIMIT = 32 * 1024 * 1024


def _round_up(x, m):
    return (x + m - 1) // m * m


def _next_pow2(x):
    return 1 << (x - 1).bit_length()


def _slot_width(cout, n_groups):
    """Lane width of one kernel-position / parity column slot.  Power of two and
    >= 128//n_groups so n_groups*cs is always a multiple of 128 lanes."""
    if cout >= LANE:
        return _round_up(cout, LANE)
    return max(_next_pow2(cout), LANE // n_groups)


def _choose_tiles(m):
    """Row tile (multiple of 16 for bf16 sublanes) and padded row count."""
    mp = _round_up(m, 16)
    if mp <= TM_MAX:
        return mp, mp
    return TM_MAX, _round_up(m, TM_MAX)


# --------------------------- in-kernel helpers --------------------------------

def _fold_groups(vec, n_groups, cs):
    """(1, n_groups*cs) per-column sums -> (1, cs) per-channel sums."""
    out = vec[:, :cs]
    for g in range(1, n_groups):
        out = out + vec[:, g * cs:(g + 1) * cs]
    return out


def _bn_scale_shift(s, q, gamma, beta, inv_count):
    mean = s * inv_count
    var = jnp.maximum(q * inv_count - mean * mean, 0.0)      # clamp >= 0
    scale = gamma * jax.lax.rsqrt(var + BN_EPS)
    shift = beta - mean * scale
    return scale, shift


# --------------------------- Pallas kernels ----------------------------------

def _convt_bn_relu_single_kernel(n_groups, cs, inv_ref, a_ref, b_ref,
                                 gamma_ref, beta_ref, o_ref):
    """Whole-layer fused ConvTranspose-as-matmul + BatchNorm(batch stats) + ReLU.

    Single M tile: the matmul runs exactly once; batch statistics are reduced
    from the f32 result kept on-chip (no recompute, no HBM round trip).
    Padded A rows are exactly zero so they contribute nothing to sum / sumsq;
    inv_ref holds 1/(n_groups * m_valid).
    """
    y = jnp.dot(a_ref[...], b_ref[...], preferred_element_type=jnp.float32)
    inv_count = inv_ref[0, 0]

    col_s = jnp.sum(y, axis=0, keepdims=True)                # (1, G)
    col_q = jnp.sum(y * y, axis=0, keepdims=True)
    s = _fold_groups(col_s, n_groups, cs)                    # (1, cs) per channel
    q = _fold_groups(col_q, n_groups, cs)

    scale, shift = _bn_scale_shift(s, q, gamma_ref[...], beta_ref[...], inv_count)
    scale_f = jnp.concatenate([scale] * n_groups, axis=1)    # (1, G)
    shift_f = jnp.concatenate([shift] * n_groups, axis=1)
    o_ref[...] = jnp.maximum(y * scale_f + shift_f, 0.0).astype(o_ref.dtype)


def _convt_stats_kernel(n_groups, cs, a_ref, b_ref, y_ref, s_ref, q_ref,
                        acc_s, acc_q):
    """Large-M pass: y = A@B stored as bf16 + per-channel sum / sum-of-squares."""
    i = pl.program_id(0)

    @pl.when(i == 0)
    def _():
        acc_s[...] = jnp.zeros_like(acc_s)
        acc_q[...] = jnp.zeros_like(acc_q)

    y = jnp.dot(a_ref[...], b_ref[...], preferred_element_type=jnp.float32)
    acc_s[...] += _fold_groups(jnp.sum(y, axis=0, keepdims=True), n_groups, cs)
    acc_q[...] += _fold_groups(jnp.sum(y * y, axis=0, keepdims=True), n_groups, cs)
    y_ref[...] = y.astype(y_ref.dtype)

    @pl.when(i == pl.num_programs(0) - 1)
    def _():
        s_ref[...] = acc_s[...]
        q_ref[...] = acc_q[...]


def _bn_relu_apply_kernel(n_groups, cs, inv_ref, y_ref, s_ref, q_ref,
                          gamma_ref, beta_ref, o_ref):
    """Large-M pass 2: apply scale/shift + ReLU to the stored pre-BN y."""
    scale, shift = _bn_scale_shift(s_ref[...], q_ref[...], gamma_ref[...],
                                   beta_ref[...], inv_ref[0, 0])
    scale_f = jnp.concatenate([scale] * n_groups, axis=1)
    shift_f = jnp.concatenate([shift] * n_groups, axis=1)
    y = y_ref[...].astype(jnp.float32)
    o_ref[...] = jnp.maximum(y * scale_f + shift_f, 0.0).astype(o_ref.dtype)


def _convt_bias_tanh_kernel(a_ref, b_ref, bias_ref, o_ref):
    """Final ConvTranspose-as-matmul + bias + tanh (bf16 tanh, bf16 output)."""
    y = jnp.dot(a_ref[...], b_ref[...], preferred_element_type=jnp.float32)
    o_ref[...] = jnp.tanh((y + bias_ref[...]).astype(jnp.bfloat16)).astype(o_ref.dtype)


# --------------------------- pallas_call wrappers -----------------------------

def _fused_convt_bn_relu_single(a, b, gamma, beta, inv_count, *, n_groups, cs):
    mp, kp = a.shape
    g_total = b.shape[1]
    kernel = functools.partial(_convt_bn_relu_single_kernel, n_groups, cs)
    return pl.pallas_call(
        kernel,
        out_shape=jax.ShapeDtypeStruct((mp, g_total), jnp.bfloat16),
        grid=(1,),
        in_specs=[
            pl.BlockSpec(memory_space=pltpu.MemorySpace.SMEM),   # inv_count (1,1)
            pl.BlockSpec((mp, kp), lambda i: (0, 0)),
            pl.BlockSpec((kp, g_total), lambda i: (0, 0)),
            pl.BlockSpec((1, cs), lambda i: (0, 0)),
            pl.BlockSpec((1, cs), lambda i: (0, 0)),
        ],
        out_specs=pl.BlockSpec((mp, g_total), lambda i: (0, 0)),
        compiler_params=pltpu.CompilerParams(
            dimension_semantics=("arbitrary",),
            vmem_limit_bytes=VMEM_LIMIT),
    )(inv_count, a, b, gamma, beta)


def _convt_stats(a, b, *, n_groups, cs, tm):
    mp, kp = a.shape
    g_total = b.shape[1]
    kernel = functools.partial(_convt_stats_kernel, n_groups, cs)
    return pl.pallas_call(
        kernel,
        out_shape=(jax.ShapeDtypeStruct((mp, g_total), jnp.bfloat16),
                   jax.ShapeDtypeStruct((1, cs), jnp.float32),
                   jax.ShapeDtypeStruct((1, cs), jnp.float32)),
        grid=(mp // tm,),
        in_specs=[pl.BlockSpec((tm, kp), lambda i: (i, 0)),
                  pl.BlockSpec((kp, g_total), lambda i: (0, 0))],
        out_specs=(pl.BlockSpec((tm, g_total), lambda i: (i, 0)),
                   pl.BlockSpec((1, cs), lambda i: (0, 0)),
                   pl.BlockSpec((1, cs), lambda i: (0, 0))),
        scratch_shapes=[pltpu.VMEM((1, cs), jnp.float32),
                        pltpu.VMEM((1, cs), jnp.float32)],
        compiler_params=pltpu.CompilerParams(
            dimension_semantics=("arbitrary",),
            vmem_limit_bytes=VMEM_LIMIT),
    )(a, b)


def _bn_relu_apply(y, s, q, gamma, beta, inv_count, *, n_groups, cs, tm):
    mp, g_total = y.shape
    kernel = functools.partial(_bn_relu_apply_kernel, n_groups, cs)
    return pl.pallas_call(
        kernel,
        out_shape=jax.ShapeDtypeStruct((mp, g_total), jnp.bfloat16),
        grid=(mp // tm,),
        in_specs=[pl.BlockSpec(memory_space=pltpu.MemorySpace.SMEM),
                  pl.BlockSpec((tm, g_total), lambda i: (i, 0)),
                  pl.BlockSpec((1, cs), lambda i: (0, 0)),
                  pl.BlockSpec((1, cs), lambda i: (0, 0)),
                  pl.BlockSpec((1, cs), lambda i: (0, 0)),
                  pl.BlockSpec((1, cs), lambda i: (0, 0))],
        out_specs=pl.BlockSpec((tm, g_total), lambda i: (i, 0)),
        compiler_params=pltpu.CompilerParams(
            dimension_semantics=("parallel",),
            vmem_limit_bytes=VMEM_LIMIT),
    )(inv_count, y, s, q, gamma, beta)


def _convt_bias_tanh(a, b, bias, *, tm):
    mp, kp = a.shape
    g_total = b.shape[1]
    return pl.pallas_call(
        _convt_bias_tanh_kernel,
        out_shape=jax.ShapeDtypeStruct((mp, g_total), jnp.bfloat16),
        grid=(mp // tm,),
        in_specs=[pl.BlockSpec((tm, kp), lambda i: (i, 0)),
                  pl.BlockSpec((kp, g_total), lambda i: (0, 0)),
                  pl.BlockSpec((1, g_total), lambda i: (0, 0))],
        out_specs=pl.BlockSpec((tm, g_total), lambda i: (i, 0)),
        compiler_params=pltpu.CompilerParams(
            dimension_semantics=("parallel",),
            vmem_limit_bytes=VMEM_LIMIT),
    )(a, b, bias)


# --------------------------- weight packing (done once) ----------------------

# (output-row parity, 3x3-window row) -> ConvTranspose kernel row index.
_TAP_TO_K = {(0, 0): 3, (0, 1): 1, (1, 1): 2, (1, 2): 0}


def _pad_vec(v, cs):
    return jnp.pad(v.astype(jnp.float32), (0, cs - v.shape[0])).reshape(1, cs)


def _pack_w_dense(w, cs):
    """Layer-1 weight (Cin, Cout, 4, 4) -> (Kp, 16*cs); column slot = kh*4+kw."""
    cin, cout = w.shape[0], w.shape[1]
    b = jnp.transpose(w, (0, 2, 3, 1))                       # (Cin, kh, kw, Cout)
    b = jnp.pad(b, ((0, 0), (0, 0), (0, 0), (0, cs - cout)))
    b = b.reshape(cin, 16 * cs)
    kp = _round_up(cin, LANE)
    return jnp.pad(b, ((0, kp - cin), (0, 0))).astype(jnp.bfloat16)


def _pack_w_subpixel(w, cs):
    """Stride-2 / pad-1 ConvTranspose weight (Cin, Cout, 4, 4) -> (Kp, 4*cs)
    for the sub-pixel (parity) decomposition.  Row = (3x3 tap)*Cin + ci,
    column slot = output-pixel parity a*2+b, channel-minor within a slot."""
    cin, cout = w.shape[0], w.shape[1]
    zero = jnp.zeros((cin, cs), w.dtype)

    def sub(ph, pw, r, s):
        kh = _TAP_TO_K.get((ph, r))
        kw = _TAP_TO_K.get((pw, s))
        if kh is None or kw is None:
            return zero
        return jnp.pad(w[:, :, kh, kw], ((0, 0), (0, cs - cout)))

    rows = []
    for r in range(3):
        for s in range(3):
            groups = [sub(ph, pw, r, s) for ph in range(2) for pw in range(2)]
            rows.append(jnp.concatenate(groups, axis=1))      # (Cin, 4*cs)
    b = jnp.concatenate(rows, axis=0)                         # (9*Cin, 4*cs)
    kp = _round_up(9 * cin, LANE)
    return jnp.pad(b, ((0, kp - 9 * cin), (0, 0))).astype(jnp.bfloat16)


# --------------------------- wrapper-side glue --------------------------------

def _im2col_3x3(x_nhwc):
    """(N, H, W, C) -> (N*H*W, 9*C): 3x3 windows of the 1-padded input,
    tap-major / channel-minor (matches _pack_w_subpixel row order)."""
    n, h, w, c = x_nhwc.shape
    xp = jnp.pad(x_nhwc, ((0, 0), (1, 1), (1, 1), (0, 0)))
    taps = [xp[:, r:r + h, s:s + w, :] for r in range(3) for s in range(3)]
    return jnp.stack(taps, axis=3).reshape(n * h * w, 9 * c)


def _subpixel_to_image(y, n, h, w, cs, cout):
    """(M_pad, 4*cs) parity-grouped matmul output -> (N, 2H, 2W, Cout)."""
    y = y[:n * h * w].reshape(n, h, w, 2, 2, cs)[..., :cout]
    y = jnp.transpose(y, (0, 1, 3, 2, 4, 5))                  # (N, H, 2, W, 2, C)
    return y.reshape(n, 2 * h, 2 * w, cout)


def _pad_rows_cols(a, mp, kp):
    # Pad rows/cols with exact zeros: padded rows contribute 0 to the BN
    # sum/sumsq, so dividing by n_groups*m_valid stays exact.
    m, k = a.shape
    return jnp.pad(a, ((0, mp - m), (0, kp - k)))


# --------------------------- layers -------------------------------------------

def _run_convt_bn_relu(a, pk, m_valid):
    """a: (M, K_valid) bf16 rows -> (M_pad, n_groups*cs) bf16 post-BN/ReLU."""
    kp = pk["b"].shape[0]
    tm, mp = _choose_tiles(a.shape[0])
    a = _pad_rows_cols(a, mp, kp)
    inv = jnp.full((1, 1), 1.0 / float(pk["n_groups"] * m_valid), jnp.float32)
    if mp == tm:
        return _fused_convt_bn_relu_single(
            a, pk["b"], pk["gamma"], pk["beta"], inv,
            n_groups=pk["n_groups"], cs=pk["cs"])
    # Large-M fallback: one pass producing bf16 y + stats, one normalizing pass.
    y, s, q = _convt_stats(a, pk["b"], n_groups=pk["n_groups"], cs=pk["cs"], tm=tm)
    return _bn_relu_apply(y, s, q, pk["gamma"], pk["beta"], inv,
                          n_groups=pk["n_groups"], cs=pk["cs"], tm=tm)


def _first_block(z, pk):
    """(N, z_dim) -> (N, 4, 4, Cout): ConvTranspose(4, s=1, p=0) + BN + ReLU."""
    n = z.shape[0]
    y = _run_convt_bn_relu(z.astype(jnp.bfloat16), pk, m_valid=n)
    return y[:n].reshape(n, 4, 4, pk["cs"])[..., :pk["cout"]]


def _up_block(x_nhwc, pk):
    """(N, H, W, Cin) -> (N, 2H, 2W, Cout): ConvTranspose(4, s=2, p=1) + BN + ReLU."""
    n, h, w, _ = x_nhwc.shape
    a = _im2col_3x3(x_nhwc.astype(jnp.bfloat16))
    y = _run_convt_bn_relu(a, pk, m_valid=n * h * w)
    return _subpixel_to_image(y, n, h, w, pk["cs"], pk["cout"])


def _final_block(x_nhwc, pk):
    """(N, H, W, Cin) -> (N, 2H, 2W, Cout): ConvTranspose(4, s=2, p=1, bias) + tanh."""
    n, h, w, _ = x_nhwc.shape
    m = n * h * w
    kp = pk["b"].shape[0]
    tm, mp = _choose_tiles(m)
    a = _pad_rows_cols(_im2col_3x3(x_nhwc.astype(jnp.bfloat16)), mp, kp)
    y = _convt_bias_tanh(a, pk["b"], pk["bias"], tm=tm)
    return _subpixel_to_image(y, n, h, w, pk["cs"], pk["cout"])


# --------------------------- Generator ----------------------------------------

def generator_init(key, z_dim, channels_img, features_g):
    """Deterministic synthetic params matching the PyTorch module's shapes."""
    ks = jax.random.split(key, 6)
    fg = features_g

    def wconv(k, cin, cout):
        return 0.02 * jax.random.normal(k, (cin, cout, 4, 4), jnp.float32)

    return {
        "w1": wconv(ks[0], z_dim, fg * 16),
        "g1": jnp.ones((fg * 16,), jnp.float32), "b1": jnp.zeros((fg * 16,), jnp.float32),
        "w2": wconv(ks[1], fg * 16, fg * 8),
        "g2": jnp.ones((fg * 8,), jnp.float32), "b2": jnp.zeros((fg * 8,), jnp.float32),
        "w3": wconv(ks[2], fg * 8, fg * 4),
        "g3": jnp.ones((fg * 4,), jnp.float32), "b3": jnp.zeros((fg * 4,), jnp.float32),
        "w4": wconv(ks[3], fg * 4, fg * 2),
        "g4": jnp.ones((fg * 2,), jnp.float32), "b4": jnp.zeros((fg * 2,), jnp.float32),
        "w5": wconv(ks[4], fg * 2, channels_img),
        "bias5": 0.02 * jax.random.normal(ks[5], (channels_img,), jnp.float32),
    }


def generator_pack_params(params):
    """One-time packing: padded bf16 weight matrices + padded f32 BN/bias vecs."""
    packed = {}

    def bn_layer(w, gamma, beta, n_groups, dense):
        cout = w.shape[1]
        cs = _slot_width(cout, n_groups)
        b = _pack_w_dense(w, cs) if dense else _pack_w_subpixel(w, cs)
        return dict(b=b, gamma=_pad_vec(gamma, cs), beta=_pad_vec(beta, cs),
                    cs=cs, cout=cout, n_groups=n_groups)

    packed["l1"] = bn_layer(params["w1"], params["g1"], params["b1"], 16, True)
    packed["l2"] = bn_layer(params["w2"], params["g2"], params["b2"], 4, False)
    packed["l3"] = bn_layer(params["w3"], params["g3"], params["b3"], 4, False)
    packed["l4"] = bn_layer(params["w4"], params["g4"], params["b4"], 4, False)

    w = params["w5"]
    cs = _slot_width(w.shape[1], 4)
    packed["l5"] = dict(b=_pack_w_subpixel(w, cs),
                        bias=jnp.tile(_pad_vec(params["bias5"], cs), (1, 4)),
                        cs=cs, cout=w.shape[1])
    return packed


def generator_forward(packed, x_nchw):
    """x_nchw: (N, z_dim, 1, 1) -> (N, channels_img, 64, 64), matching PyTorch."""
    n = x_nchw.shape[0]
    x = _first_block(x_nchw.reshape(n, -1), packed["l1"])    # (N, 4, 4, fg*16)
    x = _up_block(x, packed["l2"])                           # (N, 8, 8, fg*8)
    x = _up_block(x, packed["l3"])                           # (N, 16, 16, fg*4)
    x = _up_block(x, packed["l4"])                           # (N, 32, 32, fg*2)
    x = _final_block(x, packed["l5"])                        # (N, 64, 64, ch)
    return jnp.transpose(x, (0, 3, 1, 2)).astype(jnp.float32)


# --------------------------- pure-jnp f32 reference ---------------------------

def _reference_forward(params, x_nchw):
    def convt(x, w, stride, padding):
        n, h, wd, c = x.shape
        k = w.shape[2]
        if stride > 1:
            xd = jnp.zeros((n, (h - 1) * stride + 1, (wd - 1) * stride + 1, c), x.dtype)
            xd = xd.at[:, ::stride, ::stride, :].set(x)
        else:
            xd = x
        pad = k - 1 - padding
        xp = jnp.pad(xd, ((0, 0), (pad, pad), (pad, pad), (0, 0)))
        oh, ow = xp.shape[1] - k + 1, xp.shape[2] - k + 1
        cols = [xp[:, i:i + oh, j:j + ow, :] for i in range(k) for j in range(k)]
        patches = jnp.stack(cols, axis=3).reshape(n * oh * ow, k * k * c)
        wmat = jnp.transpose(w[:, :, ::-1, ::-1], (2, 3, 0, 1)).reshape(k * k * c, w.shape[1])
        return (patches @ wmat).reshape(n, oh, ow, w.shape[1])

    def bn_relu(y, gamma, beta):
        mean = y.mean(axis=(0, 1, 2))
        var = ((y - mean) ** 2).mean(axis=(0, 1, 2))
        return jnp.maximum((y - mean) * jax.lax.rsqrt(var + BN_EPS) * gamma + beta, 0.0)

    x = jnp.transpose(x_nchw, (0, 2, 3, 1)).astype(jnp.float32)
    x = bn_relu(convt(x, params["w1"], 1, 0), params["g1"], params["b1"])
    x = bn_relu(convt(x, params["w2"], 2, 1), params["g2"], params["b2"])
    x = bn_relu(convt(x, params["w3"], 2, 1), params["g3"], params["b3"])
    x = bn_relu(convt(x, params["w4"], 2, 1), params["g4"], params["b4"])
    x = jnp.tanh(convt(x, params["w5"], 2, 1) + params["bias5"])
    return jnp.transpose(x, (0, 3, 1, 2))


if __name__ == "__main__":
    key = jax.random.PRNGKey(0)
    k_params, k_x = jax.random.split(key)

    N, Z_DIM, CH_IMG, FEAT_G = 2, 32, 3, 8
    params = generator_init(k_params, Z_DIM, CH_IMG, FEAT_G)
    packed = generator_pack_params(params)          # done once, outside forward
    x = jax.random.normal(k_x, (N, Z_DIM, 1, 1), jnp.float32)

    fwd = jax.jit(lambda inp: generator_forward(packed, inp))
    out = jax.block_until_ready(fwd(x))

    assert out.shape == (N, CH_IMG, 64, 64), out.shape
    assert bool(jnp.all(jnp.isfinite(out)))
    assert bool(jnp.all(jnp.abs(out) <= 1.0))       # tanh range

    ref = jax.jit(_reference_forward)(params, x)
    max_err = float(jnp.max(jnp.abs(out - ref)))
    assert max_err < 0.1, max_err                   # bf16-matmul tolerance vs f32 ref

    print("KERNEL_OK")
</pallas_src>

<mosaic_0001>
module attributes {stable_mosaic.version = 11 : i64} {
  func.func @_convt_bn_relu_single_kernel(%arg0: i32, %arg1: memref<1x1xf32, #tpu.memory_space<smem>>, %arg2: memref<16x128xbf16, #tpu.memory_space<vmem>>, %arg3: memref<128x2048xbf16, #tpu.memory_space<vmem>>, %arg4: memref<1x128xf32, #tpu.memory_space<vmem>>, %arg5: memref<1x128xf32, #tpu.memory_space<vmem>>, %arg6: memref<16x2048xbf16, #tpu.memory_space<vmem>>) attributes {dimension_semantics = [#tpu.dimension_semantics<arbitrary>], iteration_bounds = array<i64: 1>, scalar_prefetch = 0 : i64, scratch_operands = 0 : i64, tpu.core_type = #tpu.core_type<tc>, window_params = [{transform_indices = @transform_0, window_bounds = array<i64: 1, 1>}, {pipeline_mode = #tpu.pipeline_mode<synchronous>, transform_indices = @transform_1, window_bounds = array<i64: 16, 128>}, {pipeline_mode = #tpu.pipeline_mode<synchronous>, transform_indices = @transform_2, window_bounds = array<i64: 128, 2048>}, {pipeline_mode = #tpu.pipeline_mode<synchronous>, transform_indices = @transform_3, window_bounds = array<i64: 1, 128>}, {pipeline_mode = #tpu.pipeline_mode<synchronous>, transform_indices = @transform_4, window_bounds = array<i64: 1, 128>}, {pipeline_mode = #tpu.pipeline_mode<synchronous>, transform_indices = @transform_5, window_bounds = array<i64: 16, 2048>}]} {
    %c0 = arith.constant 0 : index
    %c0_0 = arith.constant 0 : index
    %0 = vector.load %arg2[%c0, %c0_0] : memref<16x128xbf16, #tpu.memory_space<vmem>>, vector<16x128xbf16>
    %c0_1 = arith.constant 0 : index
    %c0_2 = arith.constant 0 : index
    %1 = vector.load %arg3[%c0_1, %c0_2] : memref<128x2048xbf16, #tpu.memory_space<vmem>>, vector<128x2048xbf16>
    %cst = arith.constant dense<0.000000e+00> : vector<16x2048xf32>
    %2 = tpu.matmul %0, %1, %cst {dimension_numbers = #tpu.dot_dimension_numbers<[1], [0], [0], [1], [0, 0, 1, 1], [], []>} : vector<16x128xbf16>, vector<128x2048xbf16>, vector<16x2048xf32> -> vector<16x2048xf32>
    %c0_3 = arith.constant 0 : index
    %c0_4 = arith.constant 0 : index
    %3 = memref.load %arg1[%c0_3, %c0_4] : memref<1x1xf32, #tpu.memory_space<smem>>
    %cst_5 = arith.constant dense<0.000000e+00> : vector<2048xf32>
    %4 = vector.multi_reduction <add>, %2, %cst_5 [0] : vector<16x2048xf32> to vector<2048xf32>
    %5 = vector.shape_cast %4 : vector<2048xf32> to vector<1x2048xf32>
    %6 = arith.mulf %2, %2 : vector<16x2048xf32>
    %cst_6 = arith.constant dense<0.000000e+00> : vector<2048xf32>
    %7 = vector.multi_reduction <add>, %6, %cst_6 [0] : vector<16x2048xf32> to vector<2048xf32>
    %8 = vector.shape_cast %7 : vector<2048xf32> to vector<1x2048xf32>
    %9 = vector.extract_strided_slice %5 {offsets = [0, 0], sizes = [1, 128], strides = [1, 1]} : vector<1x2048xf32> to vector<1x128xf32>
    %10 = vector.extract_strided_slice %5 {offsets = [0, 128], sizes = [1, 128], strides = [1, 1]} : vector<1x2048xf32> to vector<1x128xf32>
    %11 = arith.addf %9, %10 : vector<1x128xf32>
    %12 = vector.extract_strided_slice %5 {offsets = [0, 256], sizes = [1, 128], strides = [1, 1]} : vector<1x2048xf32> to vector<1x128xf32>
    %13 = arith.addf %11, %12 : vector<1x128xf32>
    %14 = vector.extract_strided_slice %5 {offsets = [0, 384], sizes = [1, 128], strides = [1, 1]} : vector<1x2048xf32> to vector<1x128xf32>
    %15 = arith.addf %13, %14 : vector<1x128xf32>
    %16 = vector.extract_strided_slice %5 {offsets = [0, 512], sizes = [1, 128], strides = [1, 1]} : vector<1x2048xf32> to vector<1x128xf32>
    %17 = arith.addf %15, %16 : vector<1x128xf32>
    %18 = vector.extract_strided_slice %5 {offsets = [0, 640], sizes = [1, 128], strides = [1, 1]} : vector<1x2048xf32> to vector<1x128xf32>
    %19 = arith.addf %17, %18 : vector<1x128xf32>
    %20 = vector.extract_strided_slice %5 {offsets = [0, 768], sizes = [1, 128], strides = [1, 1]} : vector<1x2048xf32> to vector<1x128xf32>
    %21 = arith.addf %19, %20 : vector<1x128xf32>
    %22 = vector.extract_strided_slice %5 {offsets = [0, 896], sizes = [1, 128], strides = [1, 1]} : vector<1x2048xf32> to vector<1x128xf32>
    %23 = arith.addf %21, %22 : vector<1x128xf32>
    %24 = vector.extract_strided_slice %5 {offsets = [0, 1024], sizes = [1, 128], strides = [1, 1]} : vector<1x2048xf32> to vector<1x128xf32>
    %25 = arith.addf %23, %24 : vector<1x128xf32>
    %26 = vector.extract_strided_slice %5 {offsets = [0, 1152], sizes = [1, 128], strides = [1, 1]} : vector<1x2048xf32> to vector<1x128xf32>
    %27 = arith.addf %25, %26 : vector<1x128xf32>
    %28 = vector.extract_strided_slice %5 {offsets = [0, 1280], sizes = [1, 128], strides = [1, 1]} : vector<1x2048xf32> to vector<1x128xf32>
    %29 = arith.addf %27, %28 : vector<1x128xf32>
    %30 = vector.extract_strided_slice %5 {offsets = [0, 1408], sizes = [1, 128], strides = [1, 1]} : vector<1x2048xf32> to vector<1x128xf32>
    %31 = arith.addf %29, %30 : vector<1x128xf32>
    %32 = vector.extract_strided_slice %5 {offsets = [0, 1536], sizes = [1, 128], strides = [1, 1]} : vector<1x2048xf32> to vector<1x128xf32>
    %33 = arith.addf %31, %32 : vector<1x128xf32>
    %34 = vector.extract_strided_slice %5 {offsets = [0, 1664], sizes = [1, 128], strides = [1, 1]} : vector<1x2048xf32> to vector<1x128xf32>
    %35 = arith.addf %33, %34 : vector<1x128xf32>
    %36 = vector.extract_strided_slice %5 {offsets = [0, 1792], sizes = [1, 128], strides = [1, 1]} : vector<1x2048xf32> to vector<1x128xf32>
    %37 = arith.addf %35, %36 : vector<1x128xf32>
    %38 = vector.extract_strided_slice %5 {offsets = [0, 1920], sizes = [1, 128], strides = [1, 1]} : vector<1x2048xf32> to vector<1x128xf32>
    %39 = arith.addf %37, %38 : vector<1x128xf32>
    %40 = vector.extract_strided_slice %8 {offsets = [0, 0], sizes = [1, 128], strides = [1, 1]} : vector<1x2048xf32> to vector<1x128xf32>
    %41 = vector.extract_strided_slice %8 {offsets = [0, 128], sizes = [1, 128], strides = [1, 1]} : vector<1x2048xf32> to vector<1x128xf32>
    %42 = arith.addf %40, %41 : vector<1x128xf32>
    %43 = vector.extract_strided_slice %8 {offsets = [0, 256], sizes = [1, 128], strides = [1, 1]} : vector<1x2048xf32> to vector<1x128xf32>
    %44 = arith.addf %42, %43 : vector<1x128xf32>
    %45 = vector.extract_strided_slice %8 {offsets = [0, 384], sizes = [1, 128], strides = [1, 1]} : vector<1x2048xf32> to vector<1x128xf32>
    %46 = arith.addf %44, %45 : vector<1x128xf32>
    %47 = vector.extract_strided_slice %8 {offsets = [0, 512], sizes = [1, 128], strides = [1, 1]} : vector<1x2048xf32> to vector<1x128xf32>
    %48 = arith.addf %46, %47 : vector<1x128xf32>
    %49 = vector.extract_strided_slice %8 {offsets = [0, 640], sizes = [1, 128], strides = [1, 1]} : vector<1x2048xf32> to vector<1x128xf32>
    %50 = arith.addf %48, %49 : vector<1x128xf32>
    %51 = vector.extract_strided_slice %8 {offsets = [0, 768], sizes = [1, 128], strides = [1, 1]} : vector<1x2048xf32> to vector<1x128xf32>
    %52 = arith.addf %50, %51 : vector<1x128xf32>
    %53 = vector.extract_strided_slice %8 {offsets = [0, 896], sizes = [1, 128], strides = [1, 1]} : vector<1x2048xf32> to vector<1x128xf32>
    %54 = arith.addf %52, %53 : vector<1x128xf32>
    %55 = vector.extract_strided_slice %8 {offsets = [0, 1024], sizes = [1, 128], strides = [1, 1]} : vector<1x2048xf32> to vector<1x128xf32>
    %56 = arith.addf %54, %55 : vector<1x128xf32>
    %57 = vector.extract_strided_slice %8 {offsets = [0, 1152], sizes = [1, 128], strides = [1, 1]} : vector<1x2048xf32> to vector<1x128xf32>
    %58 = arith.addf %56, %57 : vector<1x128xf32>
    %59 = vector.extract_strided_slice %8 {offsets = [0, 1280], sizes = [1, 128], strides = [1, 1]} : vector<1x2048xf32> to vector<1x128xf32>
    %60 = arith.addf %58, %59 : vector<1x128xf32>
    %61 = vector.extract_strided_slice %8 {offsets = [0, 1408], sizes = [1, 128], strides = [1, 1]} : vector<1x2048xf32> to vector<1x128xf32>
    %62 = arith.addf %60, %61 : vector<1x128xf32>
    %63 = vector.extract_strided_slice %8 {offsets = [0, 1536], sizes = [1, 128], strides = [1, 1]} : vector<1x2048xf32> to vector<1x128xf32>
    %64 = arith.addf %62, %63 : vector<1x128xf32>
    %65 = vector.extract_strided_slice %8 {offsets = [0, 1664], sizes = [1, 128], strides = [1, 1]} : vector<1x2048xf32> to vector<1x128xf32>
    %66 = arith.addf %64, %65 : vector<1x128xf32>
    %67 = vector.extract_strided_slice %8 {offsets = [0, 1792], sizes = [1, 128], strides = [1, 1]} : vector<1x2048xf32> to vector<1x128xf32>
    %68 = arith.addf %66, %67 : vector<1x128xf32>
    %69 = vector.extract_strided_slice %8 {offsets = [0, 1920], sizes = [1, 128], strides = [1, 1]} : vector<1x2048xf32> to vector<1x128xf32>
    %70 = arith.addf %68, %69 : vector<1x128xf32>
    %c0_7 = arith.constant 0 : index
    %c0_8 = arith.constant 0 : index
    %71 = vector.load %arg4[%c0_7, %c0_8] : memref<1x128xf32, #tpu.memory_space<vmem>>, vector<1x128xf32>
    %c0_9 = arith.constant 0 : index
    %c0_10 = arith.constant 0 : index
    %72 = vector.load %arg5[%c0_9, %c0_10] : memref<1x128xf32, #tpu.memory_space<vmem>>, vector<1x128xf32>
    %73 = vector.broadcast %3 : f32 to vector<1x128xf32>
    %74 = arith.mulf %39, %73 : vector<1x128xf32>
    %75 = vector.broadcast %3 : f32 to vector<1x128xf32>
    %76 = arith.mulf %70, %75 : vector<1x128xf32>
    %77 = arith.mulf %74, %74 : vector<1x128xf32>
    %78 = arith.subf %76, %77 : vector<1x128xf32>
    %cst_11 = arith.constant 0.000000e+00 : f32
    %79 = vector.broadcast %cst_11 : f32 to vector<1x128xf32>
    %80 = arith.maximumf %78, %79 : vector<1x128xf32>
    %cst_12 = arith.constant 9.99999974E-6 : f32
    %81 = vector.broadcast %cst_12 : f32 to vector<1x128xf32>
    %82 = arith.addf %80, %81 : vector<1x128xf32>
    %83 = math.rsqrt %82 : vector<1x128xf32>
    %84 = arith.mulf %71, %83 : vector<1x128xf32>
    %85 = arith.mulf %74, %84 : vector<1x128xf32>
    %86 = arith.subf %72, %85 : vector<1x128xf32>
    %87 = tpu.concatenate %84, %84, %84, %84, %84, %84, %84, %84, %84, %84, %84, %84, %84, %84, %84, %84 in 1 : vector<1x128xf32>, vector<1x128xf32>, vector<1x128xf32>, vector<1x128xf32>, vector<1x128xf32>, vector<1x128xf32>, vector<1x128xf32>, vector<1x128xf32>, vector<1x128xf32>, vector<1x128xf32>, vector<1x128xf32>, vector<1x128xf32>, vector<1x128xf32>, vector<1x128xf32>, vector<1x128xf32>, vector<1x128xf32> -> vector<1x2048xf32>
    %88 = tpu.concatenate %86, %86, %86, %86, %86, %86, %86, %86, %86, %86, %86, %86, %86, %86, %86, %86 in 1 : vector<1x128xf32>, vector<1x128xf32>, vector<1x128xf32>, vector<1x128xf32>, vector<1x128xf32>, vector<1x128xf32>, vector<1x128xf32>, vector<1x128xf32>, vector<1x128xf32>, vector<1x128xf32>, vector<1x128xf32>, vector<1x128xf32>, vector<1x128xf32>, vector<1x128xf32>, vector<1x128xf32>, vector<1x128xf32> -> vector<1x2048xf32>
    %89 = vector.broadcast %87 : vector<1x2048xf32> to vector<16x2048xf32>
    %90 = arith.mulf %2, %89 : vector<16x2048xf32>
    %91 = vector.broadcast %88 : vector<1x2048xf32> to vector<16x2048xf32>
    %92 = arith.addf %90, %91 : vector<16x2048xf32>
    %cst_13 = arith.constant 0.000000e+00 : f32
    %93 = vector.broadcast %cst_13 : f32 to vector<16x2048xf32>
    %94 = arith.maximumf %92, %93 : vector<16x2048xf32>
    %95 = arith.truncf %94 : vector<16x2048xf32> to vector<16x2048xbf16>
    %c0_14 = arith.constant 0 : index
    %c0_15 = arith.constant 0 : index
    %96 = vector.load %arg6[%c0_14, %c0_15] : memref<16x2048xbf16, #tpu.memory_space<vmem>>, vector<16x2048xbf16>
    tpu.vector_store %arg6[%c0_14, %c0_15], %95 {strides = array<i32>} : memref<16x2048xbf16, #tpu.memory_space<vmem>>, vector<16x2048xbf16>,
    return
  }
  func.func @transform_0(%arg0: i32) -> (i32, i32) {
    %c0_i32 = arith.constant 0 : i32
    %c0_i32_0 = arith.constant 0 : i32
    %c0_i32_1 = arith.constant 0 : i32
    return %c0_i32, %c0_i32_0 : i32, i32
  }
  func.func @transform_1(%arg0: i32) -> (i32, i32) {
    %c0_i32 = arith.constant 0 : i32
    %c0_i32_0 = arith.constant 0 : i32
    %c0_i32_1 = arith.constant 0 : i32
    return %c0_i32, %c0_i32_0 : i32, i32
  }
  func.func @transform_2(%arg0: i32) -> (i32, i32) {
    %c0_i32 = arith.constant 0 : i32
    %c0_i32_0 = arith.constant 0 : i32
    %c0_i32_1 = arith.constant 0 : i32
    return %c0_i32, %c0_i32_0 : i32, i32
  }
  func.func @transform_3(%arg0: i32) -> (i32, i32) {
    %c0_i32 = arith.constant 0 : i32
    %c0_i32_0 = arith.constant 0 : i32
    %c0_i32_1 = arith.constant 0 : i32
    return %c0_i32, %c0_i32_0 : i32, i32
  }
  func.func @transform_4(%arg0: i32) -> (i32, i32) {
    %c0_i32 = arith.constant 0 : i32
    %c0_i32_0 = arith.constant 0 : i32
    %c0_i32_1 = arith.constant 0 : i32
    return %c0_i32, %c0_i32_0 : i32, i32
  }
  func.func @transform_5(%arg0: i32) -> (i32, i32) {
    %c0_i32 = arith.constant 0 : i32
    %c0_i32_0 = arith.constant 0 : i32
    %c0_i32_1 = arith.constant 0 : i32
    return %c0_i32, %c0_i32_0 : i32, i32
  }
}

module attributes {stable_mosaic.version = 11 : i64} {
  func.func @_convt_bn_relu_single_kernel(%arg0: i32, %arg1: memref<1x1xf32, #tpu.memory_space<smem>>, %arg2: memref<32x1152xbf16, #tpu.memory_space<vmem>>, %arg3: memref<1152x256xbf16, #tpu.memory_space<vmem>>, %arg4: memref<1x64xf32, #tpu.memory_space<vmem>>, %arg5: memref<1x64xf32, #tpu.memory_space<vmem>>, %arg6: memref<32x256xbf16, #tpu.memory_space<vmem>>) attributes {dimension_semantics = [#tpu.dimension_semantics<arbitrary>], iteration_bounds = array<i64: 1>, scalar_prefetch = 0 : i64, scratch_operands = 0 : i64, tpu.core_type = #tpu.core_type<tc>, window_params = [{transform_indices = @transform_0, window_bounds = array<i64: 1, 1>}, {pipeline_mode = #tpu.pipeline_mode<synchronous>, transform_indices = @transform_1, window_bounds = array<i64: 32, 1152>}, {pipeline_mode = #tpu.pipeline_mode<synchronous>, transform_indices = @transform_2, window_bounds = array<i64: 1152, 256>}, {pipeline_mode = #tpu.pipeline_mode<synchronous>, transform_indices = @transform_3, window_bounds = array<i64: 1, 64>}, {pipeline_mode = #tpu.pipeline_mode<synchronous>, transform_indices = @transform_4, window_bounds = array<i64: 1, 64>}, {pipeline_mode = #tpu.pipeline_mode<synchronous>, transform_indices = @transform_5, window_bounds = array<i64: 32, 256>}]} {
    %c0 = arith.constant 0 : index
    %c0_0 = arith.constant 0 : index
    %0 = vector.load %arg2[%c0, %c0_0] : memref<32x1152xbf16, #tpu.memory_space<vmem>>, vector<32x1152xbf16>
    %c0_1 = arith.constant 0 : index
    %c0_2 = arith.constant 0 : index
    %1 = vector.load %arg3[%c0_1, %c0_2] : memref<1152x256xbf16, #tpu.memory_space<vmem>>, vector<1152x256xbf16>
    %cst = arith.constant dense<0.000000e+00> : vector<32x256xf32>
    %2 = tpu.matmul %0, %1, %cst {dimension_numbers = #tpu.dot_dimension_numbers<[1], [0], [0], [1], [0, 0, 1, 1], [], []>} : vector<32x1152xbf16>, vector<1152x256xbf16>, vector<32x256xf32> -> vector<32x256xf32>
    %c0_3 = arith.constant 0 : index
    %c0_4 = arith.constant 0 : index
    %3 = memref.load %arg1[%c0_3, %c0_4] : memref<1x1xf32, #tpu.memory_space<smem>>
    %cst_5 = arith.constant dense<0.000000e+00> : vector<256xf32>
    %4 = vector.multi_reduction <add>, %2, %cst_5 [0] : vector<32x256xf32> to vector<256xf32>
    %5 = vector.shape_cast %4 : vector<256xf32> to vector<1x256xf32>
    %6 = arith.mulf %2, %2 : vector<32x256xf32>
    %cst_6 = arith.constant dense<0.000000e+00> : vector<256xf32>
    %7 = vector.multi_reduction <add>, %6, %cst_6 [0] : vector<32x256xf32> to vector<256xf32>
    %8 = vector.shape_cast %7 : vector<256xf32> to vector<1x256xf32>
    %9 = vector.extract_strided_slice %5 {offsets = [0, 0], sizes = [1, 64], strides = [1, 1]} : vector<1x256xf32> to vector<1x64xf32>
    %10 = vector.extract_strided_slice %5 {offsets = [0, 64], sizes = [1, 64], strides = [1, 1]} : vector<1x256xf32> to vector<1x64xf32>
    %11 = arith.addf %9, %10 : vector<1x64xf32>
    %12 = vector.extract_strided_slice %5 {offsets = [0, 128], sizes = [1, 64], strides = [1, 1]} : vector<1x256xf32> to vector<1x64xf32>
    %13 = arith.addf %11, %12 : vector<1x64xf32>
    %14 = vector.extract_strided_slice %5 {offsets = [0, 192], sizes = [1, 64], strides = [1, 1]} : vector<1x256xf32> to vector<1x64xf32>
    %15 = arith.addf %13, %14 : vector<1x64xf32>
    %16 = vector.extract_strided_slice %8 {offsets = [0, 0], sizes = [1, 64], strides = [1, 1]} : vector<1x256xf32> to vector<1x64xf32>
    %17 = vector.extract_strided_slice %8 {offsets = [0, 64], sizes = [1, 64], strides = [1, 1]} : vector<1x256xf32> to vector<1x64xf32>
    %18 = arith.addf %16, %17 : vector<1x64xf32>
    %19 = vector.extract_strided_slice %8 {offsets = [0, 128], sizes = [1, 64], strides = [1, 1]} : vector<1x256xf32> to vector<1x64xf32>
    %20 = arith.addf %18, %19 : vector<1x64xf32>
    %21 = vector.extract_strided_slice %8 {offsets = [0, 192], sizes = [1, 64], strides = [1, 1]} : vector<1x256xf32> to vector<1x64xf32>
    %22 = arith.addf %20, %21 : vector<1x64xf32>
    %c0_7 = arith.constant 0 : index
    %c0_8 = arith.constant 0 : index
    %23 = vector.load %arg4[%c0_7, %c0_8] : memref<1x64xf32, #tpu.memory_space<vmem>>, vector<1x64xf32>
    %c0_9 = arith.constant 0 : index
    %c0_10 = arith.constant 0 : index
    %24 = vector.load %arg5[%c0_9, %c0_10] : memref<1x64xf32, #tpu.memory_space<vmem>>, vector<1x64xf32>
    %25 = vector.broadcast %3 : f32 to vector<1x64xf32>
    %26 = arith.mulf %15, %25 : vector<1x64xf32>
    %27 = vector.broadcast %3 : f32 to vector<1x64xf32>
    %28 = arith.mulf %22, %27 : vector<1x64xf32>
    %29 = arith.mulf %26, %26 : vector<1x64xf32>
    %30 = arith.subf %28, %29 : vector<1x64xf32>
    %cst_11 = arith.constant 0.000000e+00 : f32
    %31 = vector.broadcast %cst_11 : f32 to vector<1x64xf32>
    %32 = arith.maximumf %30, %31 : vector<1x64xf32>
    %cst_12 = arith.constant 9.99999974E-6 : f32
    %33 = vector.broadcast %cst_12 : f32 to vector<1x64xf32>
    %34 = arith.addf %32, %33 : vector<1x64xf32>
    %35 = math.rsqrt %34 : vector<1x64xf32>
    %36 = arith.mulf %23, %35 : vector<1x64xf32>
    %37 = arith.mulf %26, %36 : vector<1x64xf32>
    %38 = arith.subf %24, %37 : vector<1x64xf32>
    %39 = tpu.concatenate %36, %36, %36, %36 in 1 : vector<1x64xf32>, vector<1x64xf32>, vector<1x64xf32>, vector<1x64xf32> -> vector<1x256xf32>
    %40 = tpu.concatenate %38, %38, %38, %38 in 1 : vector<1x64xf32>, vector<1x64xf32>, vector<1x64xf32>, vector<1x64xf32> -> vector<1x256xf32>
    %41 = vector.broadcast %39 : vector<1x256xf32> to vector<32x256xf32>
    %42 = arith.mulf %2, %41 : vector<32x256xf32>
    %43 = vector.broadcast %40 : vector<1x256xf32> to vector<32x256xf32>
    %44 = arith.addf %42, %43 : vector<32x256xf32>
    %cst_13 = arith.constant 0.000000e+00 : f32
    %45 = vector.broadcast %cst_13 : f32 to vector<32x256xf32>
    %46 = arith.maximumf %44, %45 : vector<32x256xf32>
    %47 = arith.truncf %46 : vector<32x256xf32> to vector<32x256xbf16>
    %c0_14 = arith.constant 0 : index
    %c0_15 = arith.constant 0 : index
    %48 = vector.load %arg6[%c0_14, %c0_15] : memref<32x256xbf16, #tpu.memory_space<vmem>>, vector<32x256xbf16>
    tpu.vector_store %arg6[%c0_14, %c0_15], %47 {strides = array<i32>} : memref<32x256xbf16, #tpu.memory_space<vmem>>, vector<32x256xbf16>,
    return
  }
  func.func @transform_0(%arg0: i32) -> (i32, i32) {
    %c0_i32 = arith.constant 0 : i32
    %c0_i32_0 = arith.constant 0 : i32
    %c0_i32_1 = arith.constant 0 : i32
    return %c0_i32, %c0_i32_0 : i32, i32
  }
  func.func @transform_1(%arg0: i32) -> (i32, i32) {
    %c0_i32 = arith.constant 0 : i32
    %c0_i32_0 = arith.constant 0 : i32
    %c0_i32_1 = arith.constant 0 : i32
    return %c0_i32, %c0_i32_0 : i32, i32
  }
  func.func @transform_2(%arg0: i32) -> (i32, i32) {
    %c0_i32 = arith.constant 0 : i32
    %c0_i32_0 = arith.constant 0 : i32
    %c0_i32_1 = arith.constant 0 : i32
    return %c0_i32, %c0_i32_0 : i32, i32
  }
  func.func @transform_3(%arg0: i32) -> (i32, i32) {
    %c0_i32 = arith.constant 0 : i32
    %c0_i32_0 = arith.constant 0 : i32
    %c0_i32_1 = arith.constant 0 : i32
    return %c0_i32, %c0_i32_0 : i32, i32
  }
  func.func @transform_4(%arg0: i32) -> (i32, i32) {
    %c0_i32 = arith.constant 0 : i32
    %c0_i32_0 = arith.constant 0 : i32
    %c0_i32_1 = arith.constant 0 : i32
    return %c0_i32, %c0_i32_0 : i32, i32
  }
  func.func @transform_5(%arg0: i32) -> (i32, i32) {
    %c0_i32 = arith.constant 0 : i32
    %c0_i32_0 = arith.constant 0 : i32
    %c0_i32_1 = arith.constant 0 : i32
    return %c0_i32, %c0_i32_0 : i32, i32
  }
}

module attributes {stable_mosaic.version = 11 : i64} {
  func.func @_convt_bn_relu_single_kernel(%arg0: i32, %arg1: memref<1x1xf32, #tpu.memory_space<smem>>, %arg2: memref<128x640xbf16, #tpu.memory_space<vmem>>, %arg3: memref<640x128xbf16, #tpu.memory_space<vmem>>, %arg4: memref<1x32xf32, #tpu.memory_space<vmem>>, %arg5: memref<1x32xf32, #tpu.memory_space<vmem>>, %arg6: memref<128x128xbf16, #tpu.memory_space<vmem>>) attributes {dimension_semantics = [#tpu.dimension_semantics<arbitrary>], iteration_bounds = array<i64: 1>, scalar_prefetch = 0 : i64, scratch_operands = 0 : i64, tpu.core_type = #tpu.core_type<tc>, window_params = [{transform_indices = @transform_0, window_bounds = array<i64: 1, 1>}, {pipeline_mode = #tpu.pipeline_mode<synchronous>, transform_indices = @transform_1, window_bounds = array<i64: 128, 640>}, {pipeline_mode = #tpu.pipeline_mode<synchronous>, transform_indices = @transform_2, window_bounds = array<i64: 640, 128>}, {pipeline_mode = #tpu.pipeline_mode<synchronous>, transform_indices = @transform_3, window_bounds = array<i64: 1, 32>}, {pipeline_mode = #tpu.pipeline_mode<synchronous>, transform_indices = @transform_4, window_bounds = array<i64: 1, 32>}, {pipeline_mode = #tpu.pipeline_mode<synchronous>, transform_indices = @transform_5, window_bounds = array<i64: 128, 128>}]} {
    %c0 = arith.constant 0 : index
    %c0_0 = arith.constant 0 : index
    %0 = vector.load %arg2[%c0, %c0_0] : memref<128x640xbf16, #tpu.memory_space<vmem>>, vector<128x640xbf16>
    %c0_1 = arith.constant 0 : index
    %c0_2 = arith.constant 0 : index
    %1 = vector.load %arg3[%c0_1, %c0_2] : memref<640x128xbf16, #tpu.memory_space<vmem>>, vector<640x128xbf16>
    %cst = arith.constant dense<0.000000e+00> : vector<128x128xf32>
    %2 = tpu.matmul %0, %1, %cst {dimension_numbers = #tpu.dot_dimension_numbers<[1], [0], [0], [1], [0, 0, 1, 1], [], []>} : vector<128x640xbf16>, vector<640x128xbf16>, vector<128x128xf32> -> vector<128x128xf32>
    %c0_3 = arith.constant 0 : index
    %c0_4 = arith.constant 0 : index
    %3 = memref.load %arg1[%c0_3, %c0_4] : memref<1x1xf32, #tpu.memory_space<smem>>
    %cst_5 = arith.constant dense<0.000000e+00> : vector<128xf32>
    %4 = vector.multi_reduction <add>, %2, %cst_5 [0] : vector<128x128xf32> to vector<128xf32>
    %5 = vector.shape_cast %4 : vector<128xf32> to vector<1x128xf32>
    %6 = arith.mulf %2, %2 : vector<128x128xf32>
    %cst_6 = arith.constant dense<0.000000e+00> : vector<128xf32>
    %7 = vector.multi_reduction <add>, %6, %cst_6 [0] : vector<128x128xf32> to vector<128xf32>
    %8 = vector.shape_cast %7 : vector<128xf32> to vector<1x128xf32>
    %9 = vector.extract_strided_slice %5 {offsets = [0, 0], sizes = [1, 32], strides = [1, 1]} : vector<1x128xf32> to vector<1x32xf32>
    %10 = vector.extract_strided_slice %5 {offsets = [0, 32], sizes = [1, 32], strides = [1, 1]} : vector<1x128xf32> to vector<1x32xf32>
    %11 = arith.addf %9, %10 : vector<1x32xf32>
    %12 = vector.extract_strided_slice %5 {offsets = [0, 64], sizes = [1, 32], strides = [1, 1]} : vector<1x128xf32> to vector<1x32xf32>
    %13 = arith.addf %11, %12 : vector<1x32xf32>
    %14 = vector.extract_strided_slice %5 {offsets = [0, 96], sizes = [1, 32], strides = [1, 1]} : vector<1x128xf32> to vector<1x32xf32>
    %15 = arith.addf %13, %14 : vector<1x32xf32>
    %16 = vector.extract_strided_slice %8 {offsets = [0, 0], sizes = [1, 32], strides = [1, 1]} : vector<1x128xf32> to vector<1x32xf32>
    %17 = vector.extract_strided_slice %8 {offsets = [0, 32], sizes = [1, 32], strides = [1, 1]} : vector<1x128xf32> to vector<1x32xf32>
    %18 = arith.addf %16, %17 : vector<1x32xf32>
    %19 = vector.extract_strided_slice %8 {offsets = [0, 64], sizes = [1, 32], strides = [1, 1]} : vector<1x128xf32> to vector<1x32xf32>
    %20 = arith.addf %18, %19 : vector<1x32xf32>
    %21 = vector.extract_strided_slice %8 {offsets = [0, 96], sizes = [1, 32], strides = [1, 1]} : vector<1x128xf32> to vector<1x32xf32>
    %22 = arith.addf %20, %21 : vector<1x32xf32>
    %c0_7 = arith.constant 0 : index
    %c0_8 = arith.constant 0 : index
    %23 = vector.load %arg4[%c0_7, %c0_8] : memref<1x32xf32, #tpu.memory_space<vmem>>, vector<1x32xf32>
    %c0_9 = arith.constant 0 : index
    %c0_10 = arith.constant 0 : index
    %24 = vector.load %arg5[%c0_9, %c0_10] : memref<1x32xf32, #tpu.memory_space<vmem>>, vector<1x32xf32>
    %25 = vector.broadcast %3 : f32 to vector<1x32xf32>
    %26 = arith.mulf %15, %25 : vector<1x32xf32>
    %27 = vector.broadcast %3 : f32 to vector<1x32xf32>
    %28 = arith.mulf %22, %27 : vector<1x32xf32>
    %29 = arith.mulf %26, %26 : vector<1x32xf32>
    %30 = arith.subf %28, %29 : vector<1x32xf32>
    %cst_11 = arith.constant 0.000000e+00 : f32
    %31 = vector.broadcast %cst_11 : f32 to vector<1x32xf32>
    %32 = arith.maximumf %30, %31 : vector<1x32xf32>
    %cst_12 = arith.constant 9.99999974E-6 : f32
    %33 = vector.broadcast %cst_12 : f32 to vector<1x32xf32>
    %34 = arith.addf %32, %33 : vector<1x32xf32>
    %35 = math.rsqrt %34 : vector<1x32xf32>
    %36 = arith.mulf %23, %35 : vector<1x32xf32>
    %37 = arith.mulf %26, %36 : vector<1x32xf32>
    %38 = arith.subf %24, %37 : vector<1x32xf32>
    %39 = tpu.concatenate %36, %36, %36, %36 in 1 : vector<1x32xf32>, vector<1x32xf32>, vector<1x32xf32>, vector<1x32xf32> -> vector<1x128xf32>
    %40 = tpu.concatenate %38, %38, %38, %38 in 1 : vector<1x32xf32>, vector<1x32xf32>, vector<1x32xf32>, vector<1x32xf32> -> vector<1x128xf32>
    %41 = vector.broadcast %39 : vector<1x128xf32> to vector<128x128xf32>
    %42 = arith.mulf %2, %41 : vector<128x128xf32>
    %43 = vector.broadcast %40 : vector<1x128xf32> to vector<128x128xf32>
    %44 = arith.addf %42, %43 : vector<128x128xf32>
    %cst_13 = arith.constant 0.000000e+00 : f32
    %45 = vector.broadcast %cst_13 : f32 to vector<128x128xf32>
    %46 = arith.maximumf %44, %45 : vector<128x128xf32>
    %47 = arith.truncf %46 : vector<128x128xf32> to vector<128x128xbf16>
    %c0_14 = arith.constant 0 : index
    %c0_15 = arith.constant 0 : index
    %48 = vector.load %arg6[%c0_14, %c0_15] : memref<128x128xbf16, #tpu.memory_space<vmem>>, vector<128x128xbf16>
    tpu.vector_store %arg6[%c0_14, %c0_15], %47 {strides = array<i32>} : memref<128x128xbf16, #tpu.memory_space<vmem>>, vector<128x128xbf16>,
    return
  }
  func.func @transform_0(%arg0: i32) -> (i32, i32) {
    %c0_i32 = arith.constant 0 : i32
    %c0_i32_0 = arith.constant 0 : i32
    %c0_i32_1 = arith.constant 0 : i32
    return %c0_i32, %c0_i32_0 : i32, i32
  }
  func.func @transform_1(%arg0: i32) -> (i32, i32) {
    %c0_i32 = arith.constant 0 : i32
    %c0_i32_0 = arith.constant 0 : i32
    %c0_i32_1 = arith.constant 0 : i32
    return %c0_i32, %c0_i32_0 : i32, i32
  }
  func.func @transform_2(%arg0: i32) -> (i32, i32) {
    %c0_i32 = arith.constant 0 : i32
    %c0_i32_0 = arith.constant 0 : i32
    %c0_i32_1 = arith.constant 0 : i32
    return %c0_i32, %c0_i32_0 : i32, i32
  }
  func.func @transform_3(%arg0: i32) -> (i32, i32) {
    %c0_i32 = arith.constant 0 : i32
    %c0_i32_0 = arith.constant 0 : i32
    %c0_i32_1 = arith.constant 0 : i32
    return %c0_i32, %c0_i32_0 : i32, i32
  }
  func.func @transform_4(%arg0: i32) -> (i32, i32) {
    %c0_i32 = arith.constant 0 : i32
    %c0_i32_0 = arith.constant 0 : i32
    %c0_i32_1 = arith.constant 0 : i32
    return %c0_i32, %c0_i32_0 : i32, i32
  }
  func.func @transform_5(%arg0: i32) -> (i32, i32) {
    %c0_i32 = arith.constant 0 : i32
    %c0_i32_0 = arith.constant 0 : i32
    %c0_i32_1 = arith.constant 0 : i32
    return %c0_i32, %c0_i32_0 : i32, i32
  }
}

module attributes {stable_mosaic.version = 11 : i64} {
  func.func @_convt_bn_relu_single_kernel(%arg0: i32, %arg1: memref<1x1xf32, #tpu.memory_space<smem>>, %arg2: memref<512x384xbf16, #tpu.memory_space<vmem>>, %arg3: memref<384x128xbf16, #tpu.memory_space<vmem>>, %arg4: memref<1x32xf32, #tpu.memory_space<vmem>>, %arg5: memref<1x32xf32, #tpu.memory_space<vmem>>, %arg6: memref<512x128xbf16, #tpu.memory_space<vmem>>) attributes {dimension_semantics = [#tpu.dimension_semantics<arbitrary>], iteration_bounds = array<i64: 1>, scalar_prefetch = 0 : i64, scratch_operands = 0 : i64, tpu.core_type = #tpu.core_type<tc>, window_params = [{transform_indices = @transform_0, window_bounds = array<i64: 1, 1>}, {pipeline_mode = #tpu.pipeline_mode<synchronous>, transform_indices = @transform_1, window_bounds = array<i64: 512, 384>}, {pipeline_mode = #tpu.pipeline_mode<synchronous>, transform_indices = @transform_2, window_bounds = array<i64: 384, 128>}, {pipeline_mode = #tpu.pipeline_mode<synchronous>, transform_indices = @transform_3, window_bounds = array<i64: 1, 32>}, {pipeline_mode = #tpu.pipeline_mode<synchronous>, transform_indices = @transform_4, window_bounds = array<i64: 1, 32>}, {pipeline_mode = #tpu.pipeline_mode<synchronous>, transform_indices = @transform_5, window_bounds = array<i64: 512, 128>}]} {
    %c0 = arith.constant 0 : index
    %c0_0 = arith.constant 0 : index
    %0 = vector.load %arg2[%c0, %c0_0] : memref<512x384xbf16, #tpu.memory_space<vmem>>, vector<512x384xbf16>
    %c0_1 = arith.constant 0 : index
    %c0_2 = arith.constant 0 : index
    %1 = vector.load %arg3[%c0_1, %c0_2] : memref<384x128xbf16, #tpu.memory_space<vmem>>, vector<384x128xbf16>
    %cst = arith.constant dense<0.000000e+00> : vector<512x128xf32>
    %2 = tpu.matmul %0, %1, %cst {dimension_numbers = #tpu.dot_dimension_numbers<[1], [0], [0], [1], [0, 0, 1, 1], [], []>} : vector<512x384xbf16>, vector<384x128xbf16>, vector<512x128xf32> -> vector<512x128xf32>
    %c0_3 = arith.constant 0 : index
    %c0_4 = arith.constant 0 : index
    %3 = memref.load %arg1[%c0_3, %c0_4] : memref<1x1xf32, #tpu.memory_space<smem>>
    %cst_5 = arith.constant dense<0.000000e+00> : vector<128xf32>
    %4 = vector.multi_reduction <add>, %2, %cst_5 [0] : vector<512x128xf32> to vector<128xf32>
    %5 = vector.shape_cast %4 : vector<128xf32> to vector<1x128xf32>
    %6 = arith.mulf %2, %2 : vector<512x128xf32>
    %cst_6 = arith.constant dense<0.000000e+00> : vector<128xf32>
    %7 = vector.multi_reduction <add>, %6, %cst_6 [0] : vector<512x128xf32> to vector<128xf32>
    %8 = vector.shape_cast %7 : vector<128xf32> to vector<1x128xf32>
    %9 = vector.extract_strided_slice %5 {offsets = [0, 0], sizes = [1, 32], strides = [1, 1]} : vector<1x128xf32> to vector<1x32xf32>
    %10 = vector.extract_strided_slice %5 {offsets = [0, 32], sizes = [1, 32], strides = [1, 1]} : vector<1x128xf32> to vector<1x32xf32>
    %11 = arith.addf %9, %10 : vector<1x32xf32>
    %12 = vector.extract_strided_slice %5 {offsets = [0, 64], sizes = [1, 32], strides = [1, 1]} : vector<1x128xf32> to vector<1x32xf32>
    %13 = arith.addf %11, %12 : vector<1x32xf32>
    %14 = vector.extract_strided_slice %5 {offsets = [0, 96], sizes = [1, 32], strides = [1, 1]} : vector<1x128xf32> to vector<1x32xf32>
    %15 = arith.addf %13, %14 : vector<1x32xf32>
    %16 = vector.extract_strided_slice %8 {offsets = [0, 0], sizes = [1, 32], strides = [1, 1]} : vector<1x128xf32> to vector<1x32xf32>
    %17 = vector.extract_strided_slice %8 {offsets = [0, 32], sizes = [1, 32], strides = [1, 1]} : vector<1x128xf32> to vector<1x32xf32>
    %18 = arith.addf %16, %17 : vector<1x32xf32>
    %19 = vector.extract_strided_slice %8 {offsets = [0, 64], sizes = [1, 32], strides = [1, 1]} : vector<1x128xf32> to vector<1x32xf32>
    %20 = arith.addf %18, %19 : vector<1x32xf32>
    %21 = vector.extract_strided_slice %8 {offsets = [0, 96], sizes = [1, 32], strides = [1, 1]} : vector<1x128xf32> to vector<1x32xf32>
    %22 = arith.addf %20, %21 : vector<1x32xf32>
    %c0_7 = arith.constant 0 : index
    %c0_8 = arith.constant 0 : index
    %23 = vector.load %arg4[%c0_7, %c0_8] : memref<1x32xf32, #tpu.memory_space<vmem>>, vector<1x32xf32>
    %c0_9 = arith.constant 0 : index
    %c0_10 = arith.constant 0 : index
    %24 = vector.load %arg5[%c0_9, %c0_10] : memref<1x32xf32, #tpu.memory_space<vmem>>, vector<1x32xf32>
    %25 = vector.broadcast %3 : f32 to vector<1x32xf32>
    %26 = arith.mulf %15, %25 : vector<1x32xf32>
    %27 = vector.broadcast %3 : f32 to vector<1x32xf32>
    %28 = arith.mulf %22, %27 : vector<1x32xf32>
    %29 = arith.mulf %26, %26 : vector<1x32xf32>
    %30 = arith.subf %28, %29 : vector<1x32xf32>
    %cst_11 = arith.constant 0.000000e+00 : f32
    %31 = vector.broadcast %cst_11 : f32 to vector<1x32xf32>
    %32 = arith.maximumf %30, %31 : vector<1x32xf32>
    %cst_12 = arith.constant 9.99999974E-6 : f32
    %33 = vector.broadcast %cst_12 : f32 to vector<1x32xf32>
    %34 = arith.addf %32, %33 : vector<1x32xf32>
    %35 = math.rsqrt %34 : vector<1x32xf32>
    %36 = arith.mulf %23, %35 : vector<1x32xf32>
    %37 = arith.mulf %26, %36 : vector<1x32xf32>
    %38 = arith.subf %24, %37 : vector<1x32xf32>
    %39 = tpu.concatenate %36, %36, %36, %36 in 1 : vector<1x32xf32>, vector<1x32xf32>, vector<1x32xf32>, vector<1x32xf32> -> vector<1x128xf32>
    %40 = tpu.concatenate %38, %38, %38, %38 in 1 : vector<1x32xf32>, vector<1x32xf32>, vector<1x32xf32>, vector<1x32xf32> -> vector<1x128xf32>
    %41 = vector.broadcast %39 : vector<1x128xf32> to vector<512x128xf32>
    %42 = arith.mulf %2, %41 : vector<512x128xf32>
    %43 = vector.broadcast %40 : vector<1x128xf32> to vector<512x128xf32>
    %44 = arith.addf %42, %43 : vector<512x128xf32>
    %cst_13 = arith.constant 0.000000e+00 : f32
    %45 = vector.broadcast %cst_13 : f32 to vector<512x128xf32>
    %46 = arith.maximumf %44, %45 : vector<512x128xf32>
    %47 = arith.truncf %46 : vector<512x128xf32> to vector<512x128xbf16>
    %c0_14 = arith.constant 0 : index
    %c0_15 = arith.constant 0 : index
    %48 = vector.load %arg6[%c0_14, %c0_15] : memref<512x128xbf16, #tpu.memory_space<vmem>>, vector<512x128xbf16>
    tpu.vector_store %arg6[%c0_14, %c0_15], %47 {strides = array<i32>} : memref<512x128xbf16, #tpu.memory_space<vmem>>, vector<512x128xbf16>,
    return
  }
  func.func @transform_0(%arg0: i32) -> (i32, i32) {
    %c0_i32 = arith.constant 0 : i32
    %c0_i32_0 = arith.constant 0 : i32
    %c0_i32_1 = arith.constant 0 : i32
    return %c0_i32, %c0_i32_0 : i32, i32
  }
  func.func @transform_1(%arg0: i32) -> (i32, i32) {
    %c0_i32 = arith.constant 0 : i32
    %c0_i32_0 = arith.constant 0 : i32
    %c0_i32_1 = arith.constant 0 : i32
    return %c0_i32, %c0_i32_0 : i32, i32
  }
  func.func @transform_2(%arg0: i32) -> (i32, i32) {
    %c0_i32 = arith.constant 0 : i32
    %c0_i32_0 = arith.constant 0 : i32
    %c0_i32_1 = arith.constant 0 : i32
    return %c0_i32, %c0_i32_0 : i32, i32
  }
  func.func @transform_3(%arg0: i32) -> (i32, i32) {
    %c0_i32 = arith.constant 0 : i32
    %c0_i32_0 = arith.constant 0 : i32
    %c0_i32_1 = arith.constant 0 : i32
    return %c0_i32, %c0_i32_0 : i32, i32
  }
  func.func @transform_4(%arg0: i32) -> (i32, i32) {
    %c0_i32 = arith.constant 0 : i32
    %c0_i32_0 = arith.constant 0 : i32
    %c0_i32_1 = arith.constant 0 : i32
    return %c0_i32, %c0_i32_0 : i32, i32
  }
  func.func @transform_5(%arg0: i32) -> (i32, i32) {
    %c0_i32 = arith.constant 0 : i32
    %c0_i32_0 = arith.constant 0 : i32
    %c0_i32_1 = arith.constant 0 : i32
    return %c0_i32, %c0_i32_0 : i32, i32
  }
}

module attributes {stable_mosaic.version = 11 : i64} {
  func.func @_convt_bias_tanh_kernel(%arg0: i32, %arg1: memref<1024x256xbf16, #tpu.memory_space<vmem>>, %arg2: memref<256x128xbf16, #tpu.memory_space<vmem>>, %arg3: memref<1x128xf32, #tpu.memory_space<vmem>>, %arg4: memref<1024x128xbf16, #tpu.memory_space<vmem>>) attributes {dimension_semantics = [#tpu.dimension_semantics<parallel>], iteration_bounds = array<i64: 2>, scalar_prefetch = 0 : i64, scratch_operands = 0 : i64, tpu.core_type = #tpu.core_type<tc>, window_params = [{transform_indices = @transform_0, window_bounds = array<i64: 1024, 256>}, {pipeline_mode = #tpu.pipeline_mode<synchronous>, transform_indices = @transform_1, window_bounds = array<i64: 256, 128>}, {pipeline_mode = #tpu.pipeline_mode<synchronous>, transform_indices = @transform_2, window_bounds = array<i64: 1, 128>}, {transform_indices = @transform_3, window_bounds = array<i64: 1024, 128>}]} {
    %c0 = arith.constant 0 : index
    %c0_0 = arith.constant 0 : index
    %0 = vector.load %arg1[%c0, %c0_0] : memref<1024x256xbf16, #tpu.memory_space<vmem>>, vector<1024x256xbf16>
    %c0_1 = arith.constant 0 : index
    %c0_2 = arith.constant 0 : index
    %1 = vector.load %arg2[%c0_1, %c0_2] : memref<256x128xbf16, #tpu.memory_space<vmem>>, vector<256x128xbf16>
    %cst = arith.constant dense<0.000000e+00> : vector<1024x128xf32>
    %2 = tpu.matmul %0, %1, %cst {dimension_numbers = #tpu.dot_dimension_numbers<[1], [0], [0], [1], [0, 0, 1, 1], [], []>} : vector<1024x256xbf16>, vector<256x128xbf16>, vector<1024x128xf32> -> vector<1024x128xf32>
    %c0_3 = arith.constant 0 : index
    %c0_4 = arith.constant 0 : index
    %3 = vector.load %arg3[%c0_3, %c0_4] : memref<1x128xf32, #tpu.memory_space<vmem>>, vector<1x128xf32>
    %4 = vector.broadcast %3 : vector<1x128xf32> to vector<1024x128xf32>
    %5 = arith.addf %2, %4 : vector<1024x128xf32>
    %6 = arith.truncf %5 : vector<1024x128xf32> to vector<1024x128xbf16>
    %7 = math.tanh %6 : vector<1024x128xbf16>
    %c0_5 = arith.constant 0 : index
    %c0_6 = arith.constant 0 : index
    %8 = vector.load %arg4[%c0_5, %c0_6] : memref<1024x128xbf16, #tpu.memory_space<vmem>>, vector<1024x128xbf16>
    tpu.vector_store %arg4[%c0_5, %c0_6], %7 {strides = array<i32>} : memref<1024x128xbf16, #tpu.memory_space<vmem>>, vector<1024x128xbf16>,
    return
  }
  func.func @transform_0(%arg0: i32) -> (i32, i32) {
    %c0_i32 = arith.constant 0 : i32
    %c0_i32_0 = arith.constant 0 : i32
    return %arg0, %c0_i32 : i32, i32
  }
  func.func @transform_1(%arg0: i32) -> (i32, i32) {
    %c0_i32 = arith.constant 0 : i32
    %c0_i32_0 = arith.constant 0 : i32
    %c0_i32_1 = arith.constant 0 : i32
    return %c0_i32, %c0_i32_0 : i32, i32
  }
  func.func @transform_2(%arg0: i32) -> (i32, i32) {
    %c0_i32 = arith.constant 0 : i32
    %c0_i32_0 = arith.constant 0 : i32
    %c0_i32_1 = arith.constant 0 : i32
    return %c0_i32, %c0_i32_0 : i32, i32
  }
  func.func @transform_3(%arg0: i32) -> (i32, i32) {
    %c0_i32 = arith.constant 0 : i32
    %c0_i32_0 = arith.constant 0 : i32
    return %arg0, %c0_i32 : i32, i32
  }
}

</mosaic_0001>

<llo_original>
// kernel: _lambda_.5
$region0: #{_lambda_.5}
  #allocation0 [shape = 'u32[]', space=smem, size = 0x4, offset = 0x4, fixed_abs, tag = 'smem constant byte address 0x4 - core index']
  #allocation1 [shape = 'u32[144,128]{1,0:T(1,128)}', space=vmem, size = 0x12000, scoped, tag = 'internal scratch']
  #allocation2 [shape = 'f32[1,1]{1,0:T(1,128)S(6)}', space=smem, size = 0x200, scoped, tag = 'scoped memory for _lambda_.5']
  %s0 = inlined_call_operand.<no memory space> [shape: f32[1,1], index: 0, kind: input, shape index: {}]
  %s1 = inlined_call_operand.vmem [shape: bf16[16,128], index: 1, kind: input, shape index: {}]
  %s2 = inlined_call_operand.vmem [shape: bf16[128,2048], index: 2, kind: input, shape index: {}]
  %s3 = inlined_call_operand.vmem [shape: f32[1,128], index: 3, kind: input, shape index: {}]
  %s4 = inlined_call_operand.vmem [shape: f32[1,128], index: 4, kind: input, shape index: {}]
  %s5 = inlined_call_operand.vmem [shape: bf16[16,2048], index: 5, kind: output, shape index: {}]
  %s6 = sld [smem:[#allocation0]]
  $region30: #{_lambda_.5} parent=0
    _
  %s8 = ssub.s32 1, %s6
  %s9 = scalar_select 0, %s8, %s6
  %10 = sst [smem:[#allocation2]] %s0
  // Predicated region
  $region2: #{_lambda_.5} parent=0 // pred_check
    _
  $region3: #{_lambda_.5} parent=0 // pred_check_branch
    %12 = sbr.rel (0) target = $region5
  $region4: #{_lambda_.5} parent=0 // pred_region
    _
  $region5: #{_lambda_.5} parent=0 // pred_fallthru
    _
  // Predicated region
  $region6: #{_lambda_.5} parent=0 // pred_check
    _
  $region7: #{_lambda_.5} parent=0 // pred_check_branch
    %14 = sbr.rel (0) target = $region9
  $region8: #{_lambda_.5} parent=0 // pred_region
    _
  $region9: #{_lambda_.5} parent=0 // pred_fallthru
    _
  // Predicated region
  $region10: #{_lambda_.5} parent=0 // pred_check
    _
  $region11: #{_lambda_.5} parent=0 // pred_check_branch
    %16 = sbr.rel (0) target = $region13
  $region12: #{_lambda_.5} parent=0 // pred_region
    _
  $region13: #{_lambda_.5} parent=0 // pred_fallthru
    _
  // Predicated region
  $region14: #{_lambda_.5} parent=0 // pred_check
    _
  $region15: #{_lambda_.5} parent=0 // pred_check_branch
    %18 = sbr.rel (0) target = $region17
  $region16: #{_lambda_.5} parent=0 // pred_region
    _
  $region17: #{_lambda_.5} parent=0 // pred_fallthru
    _
  // Predicated region
  $region18: #{_lambda_.5} parent=0 // pred_check
    _
  $region19: #{_lambda_.5} parent=0 // pred_check_branch
    %20 = sbr.rel (0) target = $region21
  $region20: #{_lambda_.5} parent=0 // pred_region
    _
  $region21: #{_lambda_.5} parent=0 // pred_fallthru
    _
  %v22 = vld [vmem:[%s1] sm:$0xf]
  %v23 = vld [vmem:[%s1 + $0x4] sm:$0xf]
  %v24 = vld [vmem:[%s2] sm:$0xff]
  %v25 = vld [vmem:[%s2 + $0x8] sm:$0xff]
  %v26 = vld [vmem:[%s2 + $0x10] sm:$0xff]
  %v27 = vld [vmem:[%s2 + $0x18] sm:$0xff]
  %v28 = vld [vmem:[%s2 + $0x20] sm:$0xff]
  %v29 = vld [vmem:[%s2 + $0x28] sm:$0xff]
  %v30 = vld [vmem:[%s2 + $0x30] sm:$0xff]
  %v31 = vld [vmem:[%s2 + $0x38] sm:$0xff]
  %v32 = vld [vmem:[%s2 + $0x40] sm:$0xff]
  %v33 = vld [vmem:[%s2 + $0x48] sm:$0xff]
  %v34 = vld [vmem:[%s2 + $0x50] sm:$0xff]
  %v35 = vld [vmem:[%s2 + $0x58] sm:$0xff]
  %v36 = vld [vmem:[%s2 + $0x60] sm:$0xff]
  %v37 = vld [vmem:[%s2 + $0x68] sm:$0xff]
  %v38 = vld [vmem:[%s2 + $0x70] sm:$0xff]
  %v39 = vld [vmem:[%s2 + $0x78] sm:$0xff]
  %v40 = vld [vmem:[%s2 + $0x80] sm:$0xff]
  %v41 = vld [vmem:[%s2 + $0x88] sm:$0xff]
  %v42 = vld [vmem:[%s2 + $0x90] sm:$0xff]
  %v43 = vld [vmem:[%s2 + $0x98] sm:$0xff]
  %v44 = vld [vmem:[%s2 + $0xa0] sm:$0xff]
  %v45 = vld [vmem:[%s2 + $0xa8] sm:$0xff]
  %v46 = vld [vmem:[%s2 + $0xb0] sm:$0xff]
  %v47 = vld [vmem:[%s2 + $0xb8] sm:$0xff]
  %v48 = vld [vmem:[%s2 + $0xc0] sm:$0xff]
  %v49 = vld [vmem:[%s2 + $0xc8] sm:$0xff]
  %v50 = vld [vmem:[%s2 + $0xd0] sm:$0xff]
  %v51 = vld [vmem:[%s2 + $0xd8] sm:$0xff]
  %v52 = vld [vmem:[%s2 + $0xe0] sm:$0xff]
  %v53 = vld [vmem:[%s2 + $0xe8] sm:$0xff]
  %v54 = vld [vmem:[%s2 + $0xf0] sm:$0xff]
  %v55 = vld [vmem:[%s2 + $0xf8] sm:$0xff]
  %v56 = vld [vmem:[%s2 + $0x100] sm:$0xff]
  %v57 = vld [vmem:[%s2 + $0x108] sm:$0xff]
  %v58 = vld [vmem:[%s2 + $0x110] sm:$0xff]
  %v59 = vld [vmem:[%s2 + $0x118] sm:$0xff]
  %v60 = vld [vmem:[%s2 + $0x120] sm:$0xff]
  %v61 = vld [vmem:[%s2 + $0x128] sm:$0xff]
  %v62 = vld [vmem:[%s2 + $0x130] sm:$0xff]
  %v63 = vld [vmem:[%s2 + $0x138] sm:$0xff]
  %v64 = vld [vmem:[%s2 + $0x140] sm:$0xff]
  %v65 = vld [vmem:[%s2 + $0x148] sm:$0xff]
  %v66 = vld [vmem:[%s2 + $0x150] sm:$0xff]
  %v67 = vld [vmem:[%s2 + $0x158] sm:$0xff]
  %v68 = vld [vmem:[%s2 + $0x160] sm:$0xff]
  %v69 = vld [vmem:[%s2 + $0x168] sm:$0xff]
  %v70 = vld [vmem:[%s2 + $0x170] sm:$0xff]
  %v71 = vld [vmem:[%s2 + $0x178] sm:$0xff]
  %v72 = vld [vmem:[%s2 + $0x180] sm:$0xff]
  %v73 = vld [vmem:[%s2 + $0x188] sm:$0xff]
  %v74 = vld [vmem:[%s2 + $0x190] sm:$0xff]
  %v75 = vld [vmem:[%s2 + $0x198] sm:$0xff]
  %v76 = vld [vmem:[%s2 + $0x1a0] sm:$0xff]
  %v77 = vld [vmem:[%s2 + $0x1a8] sm:$0xff]
  %v78 = vld [vmem:[%s2 + $0x1b0] sm:$0xff]
  %v79 = vld [vmem:[%s2 + $0x1b8] sm:$0xff]
  %v80 = vld [vmem:[%s2 + $0x1c0] sm:$0xff]
  %v81 = vld [vmem:[%s2 + $0x1c8] sm:$0xff]
  %v82 = vld [vmem:[%s2 + $0x1d0] sm:$0xff]
  %v83 = vld [vmem:[%s2 + $0x1d8] sm:$0xff]
  %v84 = vld [vmem:[%s2 + $0x1e0] sm:$0xff]
  %v85 = vld [vmem:[%s2 + $0x1e8] sm:$0xff]
  %v86 = vld [vmem:[%s2 + $0x1f0] sm:$0xff]
  %v87 = vld [vmem:[%s2 + $0x1f8] sm:$0xff]
  %v88 = vld [vmem:[%s2 + $0x200] sm:$0xff]
  %v89 = vld [vmem:[%s2 + $0x208] sm:$0xff]
  %v90 = vld [vmem:[%s2 + $0x210] sm:$0xff]
  %v91 = vld [vmem:[%s2 + $0x218] sm:$0xff]
  %v92 = vld [vmem:[%s2 + $0x220] sm:$0xff]
  %v93 = vld [vmem:[%s2 + $0x228] sm:$0xff]
  %v94 = vld [vmem:[%s2 + $0x230] sm:$0xff]
  %v95 = vld [vmem:[%s2 + $0x238] sm:$0xff]
  %v96 = vld [vmem:[%s2 + $0x240] sm:$0xff]
  %v97 = vld [vmem:[%s2 + $0x248] sm:$0xff]
  %v98 = vld [vmem:[%s2 + $0x250] sm:$0xff]
  %v99 = vld [vmem:[%s2 + $0x258] sm:$0xff]
  %v100 = vld [vmem:[%s2 + $0x260] sm:$0xff]
  %v101 = vld [vmem:[%s2 + $0x268] sm:$0xff]
  %v102 = vld [vmem:[%s2 + $0x270] sm:$0xff]
  %v103 = vld [vmem:[%s2 + $0x278] sm:$0xff]
  %v104 = vld [vmem:[%s2 + $0x280] sm:$0xff]
  %v105 = vld [vmem:[%s2 + $0x288] sm:$0xff]
  %v106 = vld [vmem:[%s2 + $0x290] sm:$0xff]
  %v107 = vld [vmem:[%s2 + $0x298] sm:$0xff]
  %v108 = vld [vmem:[%s2 + $0x2a0] sm:$0xff]
  %v109 = vld [vmem:[%s2 + $0x2a8] sm:$0xff]
  %v110 = vld [vmem:[%s2 + $0x2b0] sm:$0xff]
  %v111 = vld [vmem:[%s2 + $0x2b8] sm:$0xff]
  %v112 = vld [vmem:[%s2 + $0x2c0] sm:$0xff]
  %v113 = vld [vmem:[%s2 + $0x2c8] sm:$0xff]
  %v114 = vld [vmem:[%s2 + $0x2d0] sm:$0xff]
  %v115 = vld [vmem:[%s2 + $0x2d8] sm:$0xff]
  %v116 = vld [vmem:[%s2 + $0x2e0] sm:$0xff]
  %v117 = vld [vmem:[%s2 + $0x2e8] sm:$0xff]
  %v118 = vld [vmem:[%s2 + $0x2f0] sm:$0xff]
  %v119 = vld [vmem:[%s2 + $0x2f8] sm:$0xff]
  %v120 = vld [vmem:[%s2 + $0x300] sm:$0xff]
  %v121 = vld [vmem:[%s2 + $0x308] sm:$0xff]
  %v122 = vld [vmem:[%s2 + $0x310] sm:$0xff]
  %v123 = vld [vmem:[%s2 + $0x318] sm:$0xff]
  %v124 = vld [vmem:[%s2 + $0x320] sm:$0xff]
  %v125 = vld [vmem:[%s2 + $0x328] sm:$0xff]
  %v126 = vld [vmem:[%s2 + $0x330] sm:$0xff]
  %v127 = vld [vmem:[%s2 + $0x338] sm:$0xff]
  %v128 = vld [vmem:[%s2 + $0x340] sm:$0xff]
  %v129 = vld [vmem:[%s2 + $0x348] sm:$0xff]
  %v130 = vld [vmem:[%s2 + $0x350] sm:$0xff]
  %v131 = vld [vmem:[%s2 + $0x358] sm:$0xff]
  %v132 = vld [vmem:[%s2 + $0x360] sm:$0xff]
  %v133 = vld [vmem:[%s2 + $0x368] sm:$0xff]
  %v134 = vld [vmem:[%s2 + $0x370] sm:$0xff]
  %v135 = vld [vmem:[%s2 + $0x378] sm:$0xff]
  %v136 = vld [vmem:[%s2 + $0x380] sm:$0xff]
  %v137 = vld [vmem:[%s2 + $0x388] sm:$0xff]
  %v138 = vld [vmem:[%s2 + $0x390] sm:$0xff]
  %v139 = vld [vmem:[%s2 + $0x398] sm:$0xff]
  %v140 = vld [vmem:[%s2 + $0x3a0] sm:$0xff]
  %v141 = vld [vmem:[%s2 + $0x3a8] sm:$0xff]
  %v142 = vld [vmem:[%s2 + $0x3b0] sm:$0xff]
  %v143 = vld [vmem:[%s2 + $0x3b8] sm:$0xff]
  %v144 = vld [vmem:[%s2 + $0x3c0] sm:$0xff]
  %v145 = vld [vmem:[%s2 + $0x3c8] sm:$0xff]
  %v146 = vld [vmem:[%s2 + $0x3d0] sm:$0xff]
  %v147 = vld [vmem:[%s2 + $0x3d8] sm:$0xff]
  %v148 = vld [vmem:[%s2 + $0x3e0] sm:$0xff]
  %v149 = vld [vmem:[%s2 + $0x3e8] sm:$0xff]
  %v150 = vld [vmem:[%s2 + $0x3f0] sm:$0xff]
  %v151 = vld [vmem:[%s2 + $0x3f8] sm:$0xff]
  %v154 = vunpack.c.l.b16 %v22
  %v155 = vunpack.c.l.b16 %v23
  %v156 = vpack.c.b16 %v155, %v154
  %v286 = vunpack.c.l.b16 %v24
  %v287 = vunpack.c.h.b16 %v24
  %v288 = vunpack.c.l.b16 %v25
  %v289 = vunpack.c.h.b16 %v25
  %v290 = vunpack.c.l.b16 %v26
  %v291 = vunpack.c.h.b16 %v26
  %v292 = vunpack.c.l.b16 %v27
  %v293 = vunpack.c.h.b16 %v27
  %v294 = vunpack.c.l.b16 %v28
  %v295 = vunpack.c.h.b16 %v28
  %v296 = vunpack.c.l.b16 %v29
  %v297 = vunpack.c.h.b16 %v29
  %v298 = vunpack.c.l.b16 %v30
  %v299 = vunpack.c.h.b16 %v30
  %v300 = vunpack.c.l.b16 %v31
  %v301 = vunpack.c.h.b16 %v31
  %v302 = vunpack.c.l.b16 %v32
  %v303 = vunpack.c.h.b16 %v32
  %v304 = vunpack.c.l.b16 %v33
  %v305 = vunpack.c.h.b16 %v33
  %v306 = vunpack.c.l.b16 %v34
  %v307 = vunpack.c.h.b16 %v34
  %v308 = vunpack.c.l.b16 %v35
  %v309 = vunpack.c.h.b16 %v35
  %v310 = vunpack.c.l.b16 %v36
  %v311 = vunpack.c.h.b16 %v36
  %v312 = vunpack.c.l.b16 %v37
  %v313 = vunpack.c.h.b16 %v37
  %v314 = vunpack.c.l.b16 %v38
  %v315 = vunpack.c.h.b16 %v38
  %v316 = vunpack.c.l.b16 %v39
  %v317 = vunpack.c.h.b16 %v39
  %v318 = vunpack.c.l.b16 %v40
  %v319 = vunpack.c.h.b16 %v40
  %v320 = vunpack.c.l.b16 %v41
  %v321 = vunpack.c.h.b16 %v41
  %v322 = vunpack.c.l.b16 %v42
  %v323 = vunpack.c.h.b16 %v42
  %v324 = vunpack.c.l.b16 %v43
  %v325 = vunpack.c.h.b16 %v43
  %v326 = vunpack.c.l.b16 %v44
  %v327 = vunpack.c.h.b16 %v44
  %v328 = vunpack.c.l.b16 %v45
  %v329 = vunpack.c.h.b16 %v45
  %v330 = vunpack.c.l.b16 %v46
  %v331 = vunpack.c.h.b16 %v46
  %v332 = vunpack.c.l.b16 %v47
  %v333 = vunpack.c.h.b16 %v47
  %v334 = vunpack.c.l.b16 %v48
  %v335 = vunpack.c.h.b16 %v48
  %v336 = vunpack.c.l.b16 %v49
  %v337 = vunpack.c.h.b16 %v49
  %v338 = vunpack.c.l.b16 %v50
  %v339 = vunpack.c.h.b16 %v50
  %v340 = vunpack.c.l.b16 %v51
  %v341 = vunpack.c.h.b16 %v51
  %v342 = vunpack.c.l.b16 %v52
  %v343 = vunpack.c.h.b16 %v52
  %v344 = vunpack.c.l.b16 %v53
  %v345 = vunpack.c.h.b16 %v53
  %v346 = vunpack.c.l.b16 %v54
  %v347 = vunpack.c.h.b16 %v54
  %v348 = vunpack.c.l.b16 %v55
  %v349 = vunpack.c.h.b16 %v55
  %v350 = vunpack.c.l.b16 %v56
  %v351 = vunpack.c.h.b16 %v56
  %v352 = vunpack.c.l.b16 %v57
  %v353 = vunpack.c.h.b16 %v57
  %v354 = vunpack.c.l.b16 %v58
  %v355 = vunpack.c.h.b16 %v58
  %v356 = vunpack.c.l.b16 %v59
  %v357 = vunpack.c.h.b16 %v59
  %v358 = vunpack.c.l.b16 %v60
  %v359 = vunpack.c.h.b16 %v60
  %v360 = vunpack.c.l.b16 %v61
  %v361 = vunpack.c.h.b16 %v61
  %v362 = vunpack.c.l.b16 %v62
  %v363 = vunpack.c.h.b16 %v62
  %v364 = vunpack.c.l.b16 %v63
  %v365 = vunpack.c.h.b16 %v63
  %v366 = vunpack.c.l.b16 %v64
  %v367 = vunpack.c.h.b16 %v64
  %v368 = vunpack.c.l.b16 %v65
  %v369 = vunpack.c.h.b16 %v65
  %v370 = vunpack.c.l.b16 %v66
  %v371 = vunpack.c.h.b16 %v66
  %v372 = vunpack.c.l.b16 %v67
  %v373 = vunpack.c.h.b16 %v67
  %v374 = vunpack.c.l.b16 %v68
  %v375 = vunpack.c.h.b16 %v68
  %v376 = vunpack.c.l.b16 %v69
  %v377 = vunpack.c.h.b16 %v69
  %v378 = vunpack.c.l.b16 %v70
  %v379 = vunpack.c.h.b16 %v70
  %v380 = vunpack.c.l.b16 %v71
  %v381 = vunpack.c.h.b16 %v71
  %v382 = vunpack.c.l.b16 %v72
  %v383 = vunpack.c.h.b16 %v72
  %v384 = vunpack.c.l.b16 %v73
  %v385 = vunpack.c.h.b16 %v73
  %v386 = vunpack.c.l.b16 %v74
  %v387 = vunpack.c.h.b16 %v74
  %v388 = vunpack.c.l.b16 %v75
  %v389 = vunpack.c.h.b16 %v75
  %v390 = vunpack.c.l.b16 %v76
  %v391 = vunpack.c.h.b16 %v76
  %v392 = vunpack.c.l.b16 %v77
  %v393 = vunpack.c.h.b16 %v77
  %v394 = vunpack.c.l.b16 %v78
  %v395 = vunpack.c.h.b16 %v78
  %v396 = vunpack.c.l.b16 %v79
  %v397 = vunpack.c.h.b16 %v79
  %v398 = vunpack.c.l.b16 %v80
  %v399 = vunpack.c.h.b16 %v80
  %v400 = vunpack.c.l.b16 %v81
  %v401 = vunpack.c.h.b16 %v81
  %v402 = vunpack.c.l.b16 %v82
  %v403 = vunpack.c.h.b16 %v82
  %v404 = vunpack.c.l.b16 %v83
  %v405 = vunpack.c.h.b16 %v83
  %v406 = vunpack.c.l.b16 %v84
  %v407 = vunpack.c.h.b16 %v84
  %v408 = vunpack.c.l.b16 %v85
  %v409 = vunpack.c.h.b16 %v85
  %v410 = vunpack.c.l.b16 %v86
  %v411 = vunpack.c.h.b16 %v86
  %v412 = vunpack.c.l.b16 %v87
  %v413 = vunpack.c.h.b16 %v87
  %v414 = vunpack.c.l.b16 %v88
  %v415 = vunpack.c.h.b16 %v88
  %v416 = vunpack.c.l.b16 %v89
  %v417 = vunpack.c.h.b16 %v89
  %v418 = vunpack.c.l.b16 %v90
  %v419 = vunpack.c.h.b16 %v90
  %v420 = vunpack.c.l.b16 %v91
  %v421 = vunpack.c.h.b16 %v91
  %v422 = vunpack.c.l.b16 %v92
  %v423 = vunpack.c.h.b16 %v92
  %v424 = vunpack.c.l.b16 %v93
  %v425 = vunpack.c.h.b16 %v93
  %v426 = vunpack.c.l.b16 %v94
  %v427 = vunpack.c.h.b16 %v94
  %v428 = vunpack.c.l.b16 %v95
  %v429 = vunpack.c.h.b16 %v95
  %v430 = vunpack.c.l.b16 %v96
  %v431 = vunpack.c.h.b16 %v96
  %v432 = vunpack.c.l.b16 %v97
  %v433 = vunpack.c.h.b16 %v97
  %v434 = vunpack.c.l.b16 %v98
  %v435 = vunpack.c.h.b16 %v98
  %v436 = vunpack.c.l.b16 %v99
  %v437 = vunpack.c.h.b16 %v99
  %v438 = vunpack.c.l.b16 %v100
  %v439 = vunpack.c.h.b16 %v100
  %v440 = vunpack.c.l.b16 %v101
  %v441 = vunpack.c.h.b16 %v101
  %v442 = vunpack.c.l.b16 %v102
  %v443 = vunpack.c.h.b16 %v102
  %v444 = vunpack.c.l.b16 %v103
  %v445 = vunpack.c.h.b16 %v103
  %v446 = vunpack.c.l.b16 %v104
  %v447 = vunpack.c.h.b16 %v104
  %v448 = vunpack.c.l.b16 %v105
  %v449 = vunpack.c.h.b16 %v105
  %v450 = vunpack.c.l.b16 %v106
  %v451 = vunpack.c.h.b16 %v106
  %v452 = vunpack.c.l.b16 %v107
  %v453 = vunpack.c.h.b16 %v107
  %v454 = vunpack.c.l.b16 %v108
  %v455 = vunpack.c.h.b16 %v108
  %v456 = vunpack.c.l.b16 %v109
  %v457 = vunpack.c.h.b16 %v109
  %v458 = vunpack.c.l.b16 %v110
  %v459 = vunpack.c.h.b16 %v110
  %v460 = vunpack.c.l.b16 %v111
  %v461 = vunpack.c.h.b16 %v111
  %v462 = vunpack.c.l.b16 %v112
  %v463 = vunpack.c.h.b16 %v112
  %v464 = vunpack.c.l.b16 %v113
  %v465 = vunpack.c.h.b16 %v113
  %v466 = vunpack.c.l.b16 %v114
  %v467 = vunpack.c.h.b16 %v114
  %v468 = vunpack.c.l.b16 %v115
  %v469 = vunpack.c.h.b16 %v115
  %v470 = vunpack.c.l.b16 %v116
  %v471 = vunpack.c.h.b16 %v116
  %v472 = vunpack.c.l.b16 %v117
  %v473 = vunpack.c.h.b16 %v117
  %v474 = vunpack.c.l.b16 %v118
  %v475 = vunpack.c.h.b16 %v118
  %v476 = vunpack.c.l.b16 %v119
  %v477 = vunpack.c.h.b16 %v119
  %v478 = vunpack.c.l.b16 %v120
  %v479 = vunpack.c.h.b16 %v120
  %v480 = vunpack.c.l.b16 %v121
  %v481 = vunpack.c.h.b16 %v121
  %v482 = vunpack.c.l.b16 %v122
  %v483 = vunpack.c.h.b16 %v122
  %v484 = vunpack.c.l.b16 %v123
  %v485 = vunpack.c.h.b16 %v123
  %v486 = vunpack.c.l.b16 %v124
  %v487 = vunpack.c.h.b16 %v124
  %v488 = vunpack.c.l.b16 %v125
  %v489 = vunpack.c.h.b16 %v125
  %v490 = vunpack.c.l.b16 %v126
  %v491 = vunpack.c.h.b16 %v126
  %v492 = vunpack.c.l.b16 %v127
  %v493 = vunpack.c.h.b16 %v127
  %v494 = vunpack.c.l.b16 %v128
  %v495 = vunpack.c.h.b16 %v128
  %v496 = vunpack.c.l.b16 %v129
  %v497 = vunpack.c.h.b16 %v129
  %v498 = vunpack.c.l.b16 %v130
  %v499 = vunpack.c.h.b16 %v130
  %v500 = vunpack.c.l.b16 %v131
  %v501 = vunpack.c.h.b16 %v131
  %v502 = vunpack.c.l.b16 %v132
  %v503 = vunpack.c.h.b16 %v132
  %v504 = vunpack.c.l.b16 %v133
  %v505 = vunpack.c.h.b16 %v133
  %v506 = vunpack.c.l.b16 %v134
  %v507 = vunpack.c.h.b16 %v134
  %v508 = vunpack.c.l.b16 %v135
  %v509 = vunpack.c.h.b16 %v135
  %v510 = vunpack.c.l.b16 %v136
  %v511 = vunpack.c.h.b16 %v136
  %v512 = vunpack.c.l.b16 %v137
  %v513 = vunpack.c.h.b16 %v137
  %v514 = vunpack.c.l.b16 %v138
  %v515 = vunpack.c.h.b16 %v138
  %v516 = vunpack.c.l.b16 %v139
  %v517 = vunpack.c.h.b16 %v139
  %v518 = vunpack.c.l.b16 %v140
  %v519 = vunpack.c.h.b16 %v140
  %v520 = vunpack.c.l.b16 %v141
  %v521 = vunpack.c.h.b16 %v141
  %v522 = vunpack.c.l.b16 %v142
  %v523 = vunpack.c.h.b16 %v142
  %v524 = vunpack.c.l.b16 %v143
  %v525 = vunpack.c.h.b16 %v143
  %v526 = vunpack.c.l.b16 %v144
  %v527 = vunpack.c.h.b16 %v144
  %v528 = vunpack.c.l.b16 %v145
  %v529 = vunpack.c.h.b16 %v145
  %v530 = vunpack.c.l.b16 %v146
  %v531 = vunpack.c.h.b16 %v146
  %v532 = vunpack.c.l.b16 %v147
  %v533 = vunpack.c.h.b16 %v147
  %v534 = vunpack.c.l.b16 %v148
  %v535 = vunpack.c.h.b16 %v148
  %v536 = vunpack.c.l.b16 %v149
  %v537 = vunpack.c.h.b16 %v149
  %v538 = vunpack.c.l.b16 %v150
  %v539 = vunpack.c.h.b16 %v150
  %v540 = vunpack.c.l.b16 %v151
  %v541 = vunpack.c.h.b16 %v151
  %v542 = vpack.c.b16 %v302, %v286
  %v543 = vpack.c.b16 %v303, %v287
  %v544 = vpack.c.b16 %v304, %v288
  %v545 = vpack.c.b16 %v305, %v289
  %v546 = vpack.c.b16 %v306, %v290
  %v547 = vpack.c.b16 %v307, %v291
  %v548 = vpack.c.b16 %v308, %v292
  %v549 = vpack.c.b16 %v309, %v293
  %v550 = vpack.c.b16 %v310, %v294
  %v551 = vpack.c.b16 %v311, %v295
  %v552 = vpack.c.b16 %v312, %v296
  %v553 = vpack.c.b16 %v313, %v297
  %v554 = vpack.c.b16 %v314, %v298
  %v555 = vpack.c.b16 %v315, %v299
  %v556 = vpack.c.b16 %v316, %v300
  %v557 = vpack.c.b16 %v317, %v301
  %v558 = vpack.c.b16 %v334, %v318
  %v559 = vpack.c.b16 %v335, %v319
  %v560 = vpack.c.b16 %v336, %v320
  %v561 = vpack.c.b16 %v337, %v321
  %v562 = vpack.c.b16 %v338, %v322
  %v563 = vpack.c.b16 %v339, %v323
  %v564 = vpack.c.b16 %v340, %v324
  %v565 = vpack.c.b16 %v341, %v325
  %v566 = vpack.c.b16 %v342, %v326
  %v567 = vpack.c.b16 %v343, %v327
  %v568 = vpack.c.b16 %v344, %v328
  %v569 = vpack.c.b16 %v345, %v329
  %v570 = vpack.c.b16 %v346, %v330
  %v571 = vpack.c.b16 %v347, %v331
  %v572 = vpack.c.b16 %v348, %v332
  %v573 = vpack.c.b16 %v349, %v333
  %v574 = vpack.c.b16 %v366, %v350
  %v575 = vpack.c.b16 %v367, %v351
  %v576 = vpack.c.b16 %v368, %v352
  %v577 = vpack.c.b16 %v369, %v353
  %v578 = vpack.c.b16 %v370, %v354
  %v579 = vpack.c.b16 %v371, %v355
  %v580 = vpack.c.b16 %v372, %v356
  %v581 = vpack.c.b16 %v373, %v357
  %v582 = vpack.c.b16 %v374, %v358
  %v583 = vpack.c.b16 %v375, %v359
  %v584 = vpack.c.b16 %v376, %v360
  %v585 = vpack.c.b16 %v377, %v361
  %v586 = vpack.c.b16 %v378, %v362
  %v587 = vpack.c.b16 %v379, %v363
  %v588 = vpack.c.b16 %v380, %v364
  %v589 = vpack.c.b16 %v381, %v365
  %v590 = vpack.c.b16 %v398, %v382
  %v591 = vpack.c.b16 %v399, %v383
  %v592 = vpack.c.b16 %v400, %v384
  %v593 = vpack.c.b16 %v401, %v385
  %v594 = vpack.c.b16 %v402, %v386
  %v595 = vpack.c.b16 %v403, %v387
  %v596 = vpack.c.b16 %v404, %v388
  %v597 = vpack.c.b16 %v405, %v389
  %v598 = vpack.c.b16 %v406, %v390
  %v599 = vpack.c.b16 %v407, %v391
  %v600 = vpack.c.b16 %v408, %v392
  %v601 = vpack.c.b16 %v409, %v393
  %v602 = vpack.c.b16 %v410, %v394
  %v603 = vpack.c.b16 %v411, %v395
  %v604 = vpack.c.b16 %v412, %v396
  %v605 = vpack.c.b16 %v413, %v397
  %v606 = vpack.c.b16 %v430, %v414
  %v607 = vpack.c.b16 %v431, %v415
  %v608 = vpack.c.b16 %v432, %v416
  %v609 = vpack.c.b16 %v433, %v417
  %v610 = vpack.c.b16 %v434, %v418
  %v611 = vpack.c.b16 %v435, %v419
  %v612 = vpack.c.b16 %v436, %v420
  %v613 = vpack.c.b16 %v437, %v421
  %v614 = vpack.c.b16 %v438, %v422
  %v615 = vpack.c.b16 %v439, %v423
  %v616 = vpack.c.b16 %v440, %v424
  %v617 = vpack.c.b16 %v441, %v425
  %v618 = vpack.c.b16 %v442, %v426
  %v619 = vpack.c.b16 %v443, %v427
  %v620 = vpack.c.b16 %v444, %v428
  %v621 = vpack.c.b16 %v445, %v429
  %v622 = vpack.c.b16 %v462, %v446
  %v623 = vpack.c.b16 %v463, %v447
  %v624 = vpack.c.b16 %v464, %v448
  %v625 = vpack.c.b16 %v465, %v449
  %v626 = vpack.c.b16 %v466, %v450
  %v627 = vpack.c.b16 %v467, %v451
  %v628 = vpack.c.b16 %v468, %v452
  %v629 = vpack.c.b16 %v469, %v453
  %v630 = vpack.c.b16 %v470, %v454
  %v631 = vpack.c.b16 %v471, %v455
  %v632 = vpack.c.b16 %v472, %v456
  %v633 = vpack.c.b16 %v473, %v457
  %v634 = vpack.c.b16 %v474, %v458
  %v635 = vpack.c.b16 %v475, %v459
  %v636 = vpack.c.b16 %v476, %v460
  %v637 = vpack.c.b16 %v477, %v461
  %v638 = vpack.c.b16 %v494, %v478
  %v639 = vpack.c.b16 %v495, %v479
  %v640 = vpack.c.b16 %v496, %v480
  %v641 = vpack.c.b16 %v497, %v481
  %v642 = vpack.c.b16 %v498, %v482
  %v643 = vpack.c.b16 %v499, %v483
  %v644 = vpack.c.b16 %v500, %v484
  %v645 = vpack.c.b16 %v501, %v485
  %v646 = vpack.c.b16 %v502, %v486
  %v647 = vpack.c.b16 %v503, %v487
  %v648 = vpack.c.b16 %v504, %v488
  %v649 = vpack.c.b16 %v505, %v489
  %v650 = vpack.c.b16 %v506, %v490
  %v651 = vpack.c.b16 %v507, %v491
  %v652 = vpack.c.b16 %v508, %v492
  %v653 = vpack.c.b16 %v509, %v493
  %v654 = vpack.c.b16 %v526, %v510
  %v655 = vpack.c.b16 %v527, %v511
  %v656 = vpack.c.b16 %v528, %v512
  %v657 = vpack.c.b16 %v529, %v513
  %v658 = vpack.c.b16 %v530, %v514
  %v659 = vpack.c.b16 %v531, %v515
  %v660 = vpack.c.b16 %v532, %v516
  %v661 = vpack.c.b16 %v533, %v517
  %v662 = vpack.c.b16 %v534, %v518
  %v663 = vpack.c.b16 %v535, %v519
  %v664 = vpack.c.b16 %v536, %v520
  %v665 = vpack.c.b16 %v537, %v521
  %v666 = vpack.c.b16 %v538, %v522
  %v667 = vpack.c.b16 %v539, %v523
  %v668 = vpack.c.b16 %v540, %v524
  %v669 = vpack.c.b16 %v541, %v525
  %798 = vmatprep.subr.bf16.mxu0 %v543
  %799 = vmatpush1.bf16.msra.mxu0 %v542
  %800 = vmatprep.subr.bf16.mxu0 %v559
  %801 = vmatpush1.bf16.msra.mxu0 %v558
  %802 = vmatprep.subr.bf16.mxu0 %v575
  %803 = vmatpush1.bf16.msra.mxu0 %v574
  %804 = vmatprep.subr.bf16.mxu0 %v591
  %805 = vmatpush1.bf16.msra.mxu0 %v590
  %806 = vmatprep.subr.bf16.mxu0 %v607
  %807 = vmatpush1.bf16.msra.mxu0 %v606
  %808 = vmatprep.subr.bf16.mxu0 %v623
  %809 = vmatpush1.bf16.msra.mxu0 %v622
  %810 = vmatprep.subr.bf16.mxu0 %v639
  %811 = vmatpush1.bf16.msra.mxu0 %v638
  %812 = vmatprep.subr.bf16.mxu0 %v655
  %813 = vmatpush1.bf16.msra.mxu0 %v654
  %814 = vmatprep.subr.bf16.mxu0 0
  %815 = vmatpush1.bf16.msra.mxu0 0
  %816 = vmatprep.subr.bf16.mxu0 0
  %817 = vmatpush1.bf16.msra.mxu0 0
  %818 = vmatprep.subr.bf16.mxu0 0
  %819 = vmatpush1.bf16.msra.mxu0 0
  %820 = vmatprep.subr.bf16.mxu0 0
  %821 = vmatpush1.bf16.msra.mxu0 0
  %822 = vmatprep.subr.bf16.mxu0 0
  %823 = vmatpush1.bf16.msra.mxu0 0
  %824 = vmatprep.subr.bf16.mxu0 0
  %825 = vmatpush1.bf16.msra.mxu0 0
  %826 = vmatprep.subr.bf16.mxu0 0
  %827 = vmatpush1.bf16.msra.mxu0 0
  %828 = vmatprep.subr.bf16.mxu0 0
  %829 = vmatpush1.bf16.msra.mxu0 0
  %830 = vmatprep.mubr.bf16.mxu0 0
  %831 = vmatmul.mubr.bf16.gmra.mrb[0].mxu0 %v156
  %v832 = vpop.f32.mrb[0].mxu0
  %v833 = vadd.f32 0.0, %v832
  %v834 = vpop.f32.mrb[0].mxu0
  %v835 = vadd.f32 0.0, %v834
  %v836 = vpop.f32.mrb[0].mxu0
  %v837 = vadd.f32 0.0, %v836
  %v838 = vpop.f32.mrb[0].mxu0
  %v839 = vadd.f32 0.0, %v838
  %840 = vdwg.mxu0
  %841 = vmatprep.subr.bf16.mxu0 %v545
  %842 = vmatpush1.bf16.msra.mxu0 %v544
  %843 = vmatprep.subr.bf16.mxu0 %v561
  %844 = vmatpush1.bf16.msra.mxu0 %v560
  %845 = vmatprep.subr.bf16.mxu0 %v577
  %846 = vmatpush1.bf16.msra.mxu0 %v576
  %847 = vmatprep.subr.bf16.mxu0 %v593
  %848 = vmatpush1.bf16.msra.mxu0 %v592
  %849 = vmatprep.subr.bf16.mxu0 %v609
  %850 = vmatpush1.bf16.msra.mxu0 %v608
  %851 = vmatprep.subr.bf16.mxu0 %v625
  %852 = vmatpush1.bf16.msra.mxu0 %v624
  %853 = vmatprep.subr.bf16.mxu0 %v641
  %854 = vmatpush1.bf16.msra.mxu0 %v640
  %855 = vmatprep.subr.bf16.mxu0 %v657
  %856 = vmatpush1.bf16.msra.mxu0 %v656
  %857 = vmatprep.subr.bf16.mxu0 0
  %858 = vmatpush1.bf16.msra.mxu0 0
  %859 = vmatprep.subr.bf16.mxu0 0
  %860 = vmatpush1.bf16.msra.mxu0 0
  %861 = vmatprep.subr.bf16.mxu0 0
  %862 = vmatpush1.bf16.msra.mxu0 0
  %863 = vmatprep.subr.bf16.mxu0 0
  %864 = vmatpush1.bf16.msra.mxu0 0
  %865 = vmatprep.subr.bf16.mxu0 0
  %866 = vmatpush1.bf16.msra.mxu0 0
  %867 = vmatprep.subr.bf16.mxu0 0
  %868 = vmatpush1.bf16.msra.mxu0 0
  %869 = vmatprep.subr.bf16.mxu0 0
  %870 = vmatpush1.bf16.msra.mxu0 0
  %871 = vmatprep.subr.bf16.mxu0 0
  %872 = vmatpush1.bf16.msra.mxu0 0
  %873 = vmatprep.mubr.bf16.mxu0 0
  %874 = vmatmul.mubr.bf16.gmra.mrb[0].mxu0 %v156
  %v875 = vpop.f32.mrb[0].mxu0
  %v876 = vadd.f32 0.0, %v875
  %v877 = vpop.f32.mrb[0].mxu0
  %v878 = vadd.f32 0.0, %v877
  %v879 = vpop.f32.mrb[0].mxu0
  %v880 = vadd.f32 0.0, %v879
  %v881 = vpop.f32.mrb[0].mxu0
  %v882 = vadd.f32 0.0, %v881
  %883 = vdwg.mxu0
  %884 = vmatprep.subr.bf16.mxu0 %v547
  %885 = vmatpush1.bf16.msra.mxu0 %v546
  %886 = vmatprep.subr.bf16.mxu0 %v563
  %887 = vmatpush1.bf16.msra.mxu0 %v562
  %888 = vmatprep.subr.bf16.mxu0 %v579
  %889 = vmatpush1.bf16.msra.mxu0 %v578
  %890 = vmatprep.subr.bf16.mxu0 %v595
  %891 = vmatpush1.bf16.msra.mxu0 %v594
  %892 = vmatprep.subr.bf16.mxu0 %v611
  %893 = vmatpush1.bf16.msra.mxu0 %v610
  %894 = vmatprep.subr.bf16.mxu0 %v627
  %895 = vmatpush1.bf16.msra.mxu0 %v626
  %896 = vmatprep.subr.bf16.mxu0 %v643
  %897 = vmatpush1.bf16.msra.mxu0 %v642
  %898 = vmatprep.subr.bf16.mxu0 %v659
  %899 = vmatpush1.bf16.msra.mxu0 %v658
  %900 = vmatprep.subr.bf16.mxu0 0
  %901 = vmatpush1.bf16.msra.mxu0 0
  %902 = vmatprep.subr.bf16.mxu0 0
  %903 = vmatpush1.bf16.msra.mxu0 0
  %904 = vmatprep.subr.bf16.mxu0 0
  %905 = vmatpush1.bf16.msra.mxu0 0
  %906 = vmatprep.subr.bf16.mxu0 0
  %907 = vmatpush1.bf16.msra.mxu0 0
  %908 = vmatprep.subr.bf16.mxu0 0
  %909 = vmatpush1.bf16.msra.mxu0 0
  %910 = vmatprep.subr.bf16.mxu0 0
  %911 = vmatpush1.bf16.msra.mxu0 0
  %912 = vmatprep.subr.bf16.mxu0 0
  %913 = vmatpush1.bf16.msra.mxu0 0
  %914 = vmatprep.subr.bf16.mxu0 0
  %915 = vmatpush1.bf16.msra.mxu0 0
  %916 = vmatprep.mubr.bf16.mxu0 0
  %917 = vmatmul.mubr.bf16.gmra.mrb[0].mxu0 %v156
  %v918 = vpop.f32.mrb[0].mxu0
  %v919 = vadd.f32 0.0, %v918
  %v920 = vpop.f32.mrb[0].mxu0
  %v921 = vadd.f32 0.0, %v920
  %v922 = vpop.f32.mrb[0].mxu0
  %v923 = vadd.f32 0.0, %v922
  %v924 = vpop.f32.mrb[0].mxu0
  %v925 = vadd.f32 0.0, %v924
  %926 = vdwg.mxu0
  %927 = vmatprep.subr.bf16.mxu0 %v549
  %928 = vmatpush1.bf16.msra.mxu0 %v548
  %929 = vmatprep.subr.bf16.mxu0 %v565
  %930 = vmatpush1.bf16.msra.mxu0 %v564
  %931 = vmatprep.subr.bf16.mxu0 %v581
  %932 = vmatpush1.bf16.msra.mxu0 %v580
  %933 = vmatprep.subr.bf16.mxu0 %v597
  %934 = vmatpush1.bf16.msra.mxu0 %v596
  %935 = vmatprep.subr.bf16.mxu0 %v613
  %936 = vmatpush1.bf16.msra.mxu0 %v612
  %937 = vmatprep.subr.bf16.mxu0 %v629
  %938 = vmatpush1.bf16.msra.mxu0 %v628
  %939 = vmatprep.subr.bf16.mxu0 %v645
  %940 = vmatpush1.bf16.msra.mxu0 %v644
  %941 = vmatprep.subr.bf16.mxu0 %v661
  %942 = vmatpush1.bf16.msra.mxu0 %v660
  %943 = vmatprep.subr.bf16.mxu0 0
  %944 = vmatpush1.bf16.msra.mxu0 0
  %945 = vmatprep.subr.bf16.mxu0 0
  %946 = vmatpush1.bf16.msra.mxu0 0
  %947 = vmatprep.subr.bf16.mxu0 0
  %948 = vmatpush1.bf16.msra.mxu0 0
  %949 = vmatprep.subr.bf16.mxu0 0
  %950 = vmatpush1.bf16.msra.mxu0 0
  %951 = vmatprep.subr.bf16.mxu0 0
  %952 = vmatpush1.bf16.msra.mxu0 0
  %953 = vmatprep.subr.bf16.mxu0 0
  %954 = vmatpush1.bf16.msra.mxu0 0
  %955 = vmatprep.subr.bf16.mxu0 0
  %956 = vmatpush1.bf16.msra.mxu0 0
  %957 = vmatprep.subr.bf16.mxu0 0
  %958 = vmatpush1.bf16.msra.mxu0 0
  %959 = vmatprep.mubr.bf16.mxu0 0
  %960 = vmatmul.mubr.bf16.gmra.mrb[0].mxu0 %v156
  %v961 = vpop.f32.mrb[0].mxu0
  %v962 = vadd.f32 0.0, %v961
  %v963 = vpop.f32.mrb[0].mxu0
  %v964 = vadd.f32 0.0, %v963
  %v965 = vpop.f32.mrb[0].mxu0
  %v966 = vadd.f32 0.0, %v965
  %v967 = vpop.f32.mrb[0].mxu0
  %v968 = vadd.f32 0.0, %v967
  %969 = vdwg.mxu0
  %970 = vmatprep.subr.bf16.mxu0 %v551
  %971 = vmatpush1.bf16.msra.mxu0 %v550
  %972 = vmatprep.subr.bf16.mxu0 %v567
  %973 = vmatpush1.bf16.msra.mxu0 %v566
  %974 = vmatprep.subr.bf16.mxu0 %v583
  %975 = vmatpush1.bf16.msra.mxu0 %v582
  %976 = vmatprep.subr.bf16.mxu0 %v599
  %977 = vmatpush1.bf16.msra.mxu0 %v598
  %978 = vmatprep.subr.bf16.mxu0 %v615
  %979 = vmatpush1.bf16.msra.mxu0 %v614
  %980 = vmatprep.subr.bf16.mxu0 %v631
  %981 = vmatpush1.bf16.msra.mxu0 %v630
  %982 = vmatprep.subr.bf16.mxu0 %v647
  %983 = vmatpush1.bf16.msra.mxu0 %v646
  %984 = vmatprep.subr.bf16.mxu0 %v663
  %985 = vmatpush1.bf16.msra.mxu0 %v662
  %986 = vmatprep.subr.bf16.mxu0 0
  %987 = vmatpush1.bf16.msra.mxu0 0
  %988 = vmatprep.subr.bf16.mxu0 0
  %989 = vmatpush1.bf16.msra.mxu0 0
  %990 = vmatprep.subr.bf16.mxu0 0
  %991 = vmatpush1.bf16.msra.mxu0 0
  %992 = vmatprep.subr.bf16.mxu0 0
  %993 = vmatpush1.bf16.msra.mxu0 0
  %994 = vmatprep.subr.bf16.mxu0 0
  %995 = vmatpush1.bf16.msra.mxu0 0
  %996 = vmatprep.subr.bf16.mxu0 0
  %997 = vmatpush1.bf16.msra.mxu0 0
  %998 = vmatprep.subr.bf16.mxu0 0
  %999 = vmatpush1.bf16.msra.mxu0 0
  %1000 = vmatprep.subr.bf16.mxu0 0
  %1001 = vmatpush1.bf16.msra.mxu0 0
  %1002 = vmatprep.mubr.bf16.mxu0 0
  %1003 = vmatmul.mubr.bf16.gmra.mrb[0].mxu0 %v156
  %v1004 = vpop.f32.mrb[0].mxu0
  %v1005 = vadd.f32 0.0, %v1004
  %v1006 = vpop.f32.mrb[0].mxu0
  %v1007 = vadd.f32 0.0, %v1006
  %v1008 = vpop.f32.mrb[0].mxu0
  %v1009 = vadd.f32 0.0, %v1008
  %v1010 = vpop.f32.mrb[0].mxu0
  %v1011 = vadd.f32 0.0, %v1010
  %1012 = vdwg.mxu0
  %1013 = vmatprep.subr.bf16.mxu0 %v553
  %1014 = vmatpush1.bf16.msra.mxu0 %v552
  %1015 = vmatprep.subr.bf16.mxu0 %v569
  %1016 = vmatpush1.bf16.msra.mxu0 %v568
  %1017 = vmatprep.subr.bf16.mxu0 %v585
  %1018 = vmatpush1.bf16.msra.mxu0 %v584
  %1019 = vmatprep.subr.bf16.mxu0 %v601
  %1020 = vmatpush1.bf16.msra.mxu0 %v600
  %1021 = vmatprep.subr.bf16.mxu0 %v617
  %1022 = vmatpush1.bf16.msra.mxu0 %v616
  %1023 = vmatprep.subr.bf16.mxu0 %v633
  %1024 = vmatpush1.bf16.msra.mxu0 %v632
  %1025 = vmatprep.subr.bf16.mxu0 %v649
  %1026 = vmatpush1.bf16.msra.mxu0 %v648
  %1027 = vmatprep.subr.bf16.mxu0 %v665
  %1028 = vmatpush1.bf16.msra.mxu0 %v664
  %1029 = vmatprep.subr.bf16.mxu0 0
  %1030 = vmatpush1.bf16.msra.mxu0 0
  %1031 = vmatprep.subr.bf16.mxu0 0
  %1032 = vmatpush1.bf16.msra.mxu0 0
  %1033 = vmatprep.subr.bf16.mxu0 0
  %1034 = vmatpush1.bf16.msra.mxu0 0
  %1035 = vmatprep.subr.bf16.mxu0 0
  %1036 = vmatpush1.bf16.msra.mxu0 0
  %1037 = vmatprep.subr.bf16.mxu0 0
  %1038 = vmatpush1.bf16.msra.mxu0 0
  %1039 = vmatprep.subr.bf16.mxu0 0
  %1040 = vmatpush1.bf16.msra.mxu0 0
  %1041 = vmatprep.subr.bf16.mxu0 0
  %1042 = vmatpush1.bf16.msra.mxu0 0
  %1043 = vmatprep.subr.bf16.mxu0 0
  %1044 = vmatpush1.bf16.msra.mxu0 0
  %1045 = vmatprep.mubr.bf16.mxu0 0
  %1046 = vmatmul.mubr.bf16.gmra.mrb[0].mxu0 %v156
  %v1047 = vpop.f32.mrb[0].mxu0
  %v1048 = vadd.f32 0.0, %v1047
  %v1049 = vpop.f32.mrb[0].mxu0
  %v1050 = vadd.f32 0.0, %v1049
  %v1051 = vpop.f32.mrb[0].mxu0
  %v1052 = vadd.f32 0.0, %v1051
  %v1053 = vpop.f32.mrb[0].mxu0
  %v1054 = vadd.f32 0.0, %v1053
  %1055 = vdwg.mxu0
  %1056 = vmatprep.subr.bf16.mxu0 %v555
  %1057 = vmatpush1.bf16.msra.mxu0 %v554
  %1058 = vmatprep.subr.bf16.mxu0 %v571
  %1059 = vmatpush1.bf16.msra.mxu0 %v570
  %1060 = vmatprep.subr.bf16.mxu0 %v587
  %1061 = vmatpush1.bf16.msra.mxu0 %v586
  %1062 = vmatprep.subr.bf16.mxu0 %v603
  %1063 = vmatpush1.bf16.msra.mxu0 %v602
  %1064 = vmatprep.subr.bf16.mxu0 %v619
  %1065 = vmatpush1.bf16.msra.mxu0 %v618
  %1066 = vmatprep.subr.bf16.mxu0 %v635
  %1067 = vmatpush1.bf16.msra.mxu0 %v634
  %1068 = vmatprep.subr.bf16.mxu0 %v651
  %1069 = vmatpush1.bf16.msra.mxu0 %v650
  %1070 = vmatprep.subr.bf16.mxu0 %v667
  %1071 = vmatpush1.bf16.msra.mxu0 %v666
  %1072 = vmatprep.subr.bf16.mxu0 0
  %1073 = vmatpush1.bf16.msra.mxu0 0
  %1074 = vmatprep.subr.bf16.mxu0 0
  %1075 = vmatpush1.bf16.msra.mxu0 0
  %1076 = vmatprep.subr.bf16.mxu0 0
  %1077 = vmatpush1.bf16.msra.mxu0 0
  %1078 = vmatprep.subr.bf16.mxu0 0
  %1079 = vmatpush1.bf16.msra.mxu0 0
  %1080 = vmatprep.subr.bf16.mxu0 0
  %1081 = vmatpush1.bf16.msra.mxu0 0
  %1082 = vmatprep.subr.bf16.mxu0 0
  %1083 = vmatpush1.bf16.msra.mxu0 0
  %1084 = vmatprep.subr.bf16.mxu0 0
  %1085 = vmatpush1.bf16.msra.mxu0 0
  %1086 = vmatprep.subr.bf16.mxu0 0
  %1087 = vmatpush1.bf16.msra.mxu0 0
  %1088 = vmatprep.mubr.bf16.mxu0 0
  %1089 = vmatmul.mubr.bf16.gmra.mrb[0].mxu0 %v156
  %v1090 = vpop.f32.mrb[0].mxu0
  %v1091 = vadd.f32 0.0, %v1090
  %v1092 = vpop.f32.mrb[0].mxu0
  %v1093 = vadd.f32 0.0, %v1092
  %v1094 = vpop.f32.mrb[0].mxu0
  %v1095 = vadd.f32 0.0, %v1094
  %v1096 = vpop.f32.mrb[0].mxu0
  %v1097 = vadd.f32 0.0, %v1096
  %1098 = vdwg.mxu0
  %1099 = vmatprep.subr.bf16.mxu0 %v557
  %1100 = vmatpush1.bf16.msra.mxu0 %v556
  %1101 = vmatprep.subr.bf16.mxu0 %v573
  %1102 = vmatpush1.bf16.msra.mxu0 %v572
  %1103 = vmatprep.subr.bf16.mxu0 %v589
  %1104 = vmatpush1.bf16.msra.mxu0 %v588
  %1105 = vmatprep.subr.bf16.mxu0 %v605
  %1106 = vmatpush1.bf16.msra.mxu0 %v604
  %1107 = vmatprep.subr.bf16.mxu0 %v621
  %1108 = vmatpush1.bf16.msra.mxu0 %v620
  %1109 = vmatprep.subr.bf16.mxu0 %v637
  %1110 = vmatpush1.bf16.msra.mxu0 %v636
  %1111 = vmatprep.subr.bf16.mxu0 %v653
  %1112 = vmatpush1.bf16.msra.mxu0 %v652
  %1113 = vmatprep.subr.bf16.mxu0 %v669
  %1114 = vmatpush1.bf16.msra.mxu0 %v668
  %1115 = vmatprep.subr.bf16.mxu0 0
  %1116 = vmatpush1.bf16.msra.mxu0 0
  %1117 = vmatprep.subr.bf16.mxu0 0
  %1118 = vmatpush1.bf16.msra.mxu0 0
  %1119 = vmatprep.subr.bf16.mxu0 0
  %1120 = vmatpush1.bf16.msra.mxu0 0
  %1121 = vmatprep.subr.bf16.mxu0 0
  %1122 = vmatpush1.bf16.msra.mxu0 0
  %1123 = vmatprep.subr.bf16.mxu0 0
  %1124 = vmatpush1.bf16.msra.mxu0 0
  %1125 = vmatprep.subr.bf16.mxu0 0
  %1126 = vmatpush1.bf16.msra.mxu0 0
  %1127 = vmatprep.subr.bf16.mxu0 0
  %1128 = vmatpush1.bf16.msra.mxu0 0
  %1129 = vmatprep.subr.bf16.mxu0 0
  %1130 = vmatpush1.bf16.msra.mxu0 0
  %1131 = vmatprep.mubr.bf16.mxu0 0
  %1132 = vmatmul.mubr.bf16.gmra.mrb[0].mxu0 %v156
  %v1133 = vpop.f32.mrb[0].mxu0
  %v1134 = vadd.f32 0.0, %v1133
  %v1135 = vpop.f32.mrb[0].mxu0
  %v1136 = vadd.f32 0.0, %v1135
  %v1137 = vpop.f32.mrb[0].mxu0
  %v1138 = vadd.f32 0.0, %v1137
  %v1139 = vpop.f32.mrb[0].mxu0
  %v1140 = vadd.f32 0.0, %v1139
  %1141 = vdwg.mxu0
  %s1142 = sld [smem:[#allocation2]]
  %v1143 = vadd.f32 %v833, %v837
  %v1144 = vrot.slane %v1143, 4
  %v1145 = vadd.f32 %v1143, %v1144
  %v1146 = vrot.slane %v1145, 2
  %v1147 = vadd.f32 %v1145, %v1146
  %v1148 = vrot.slane %v1147, 1
  %v1149 = vadd.f32 %v1147, %v1148
  %v1150 = vadd.f32 %v835, %v839
  %v1151 = vrot.slane %v1150, 4
  %v1152 = vadd.f32 %v1150, %v1151
  %v1153 = vrot.slane %v1152, 2
  %v1154 = vadd.f32 %v1152, %v1153
  %v1155 = vrot.slane %v1154, 1
  %v1156 = vadd.f32 %v1154, %v1155
  %v1157 = vadd.f32 %v876, %v880
  %v1158 = vrot.slane %v1157, 4
  %v1159 = vadd.f32 %v1157, %v1158
  %v1160 = vrot.slane %v1159, 2
  %v1161 = vadd.f32 %v1159, %v1160
  %v1162 = vrot.slane %v1161, 1
  %v1163 = vadd.f32 %v1161, %v1162
  %v1164 = vadd.f32 %v878, %v882
  %v1165 = vrot.slane %v1164, 4
  %v1166 = vadd.f32 %v1164, %v1165
  %v1167 = vrot.slane %v1166, 2
  %v1168 = vadd.f32 %v1166, %v1167
  %v1169 = vrot.slane %v1168, 1
  %v1170 = vadd.f32 %v1168, %v1169
  %v1171 = vadd.f32 %v919, %v923
  %v1172 = vrot.slane %v1171, 4
  %v1173 = vadd.f32 %v1171, %v1172
  %v1174 = vrot.slane %v1173, 2
  %v1175 = vadd.f32 %v1173, %v1174
  %v1176 = vrot.slane %v1175, 1
  %v1177 = vadd.f32 %v1175, %v1176
  %v1178 = vadd.f32 %v921, %v925
  %v1179 = vrot.slane %v1178, 4
  %v1180 = vadd.f32 %v1178, %v1179
  %v1181 = vrot.slane %v1180, 2
  %v1182 = vadd.f32 %v1180, %v1181
  %v1183 = vrot.slane %v1182, 1
  %v1184 = vadd.f32 %v1182, %v1183
  %v1185 = vadd.f32 %v962, %v966
  %v1186 = vrot.slane %v1185, 4
  %v1187 = vadd.f32 %v1185, %v1186
  %v1188 = vrot.slane %v1187, 2
  %v1189 = vadd.f32 %v1187, %v1188
  %v1190 = vrot.slane %v1189, 1
  %v1191 = vadd.f32 %v1189, %v1190
  %v1192 = vadd.f32 %v964, %v968
  %v1193 = vrot.slane %v1192, 4
  %v1194 = vadd.f32 %v1192, %v1193
  %v1195 = vrot.slane %v1194, 2
  %v1196 = vadd.f32 %v1194, %v1195
  %v1197 = vrot.slane %v1196, 1
  %v1198 = vadd.f32 %v1196, %v1197
  %v1199 = vadd.f32 %v1005, %v1009
  %v1200 = vrot.slane %v1199, 4
  %v1201 = vadd.f32 %v1199, %v1200
  %v1202 = vrot.slane %v1201, 2
  %v1203 = vadd.f32 %v1201, %v1202
  %v1204 = vrot.slane %v1203, 1
  %v1205 = vadd.f32 %v1203, %v1204
  %v1206 = vadd.f32 %v1007, %v1011
  %v1207 = vrot.slane %v1206, 4
  %v1208 = vadd.f32 %v1206, %v1207
  %v1209 = vrot.slane %v1208, 2
  %v1210 = vadd.f32 %v1208, %v1209
  %v1211 = vrot.slane %v1210, 1
  %v1212 = vadd.f32 %v1210, %v1211
  %v1213 = vadd.f32 %v1048, %v1052
  %v1214 = vrot.slane %v1213, 4
  %v1215 = vadd.f32 %v1213, %v1214
  %v1216 = vrot.slane %v1215, 2
  %v1217 = vadd.f32 %v1215, %v1216
  %v1218 = vrot.slane %v1217, 1
  %v1219 = vadd.f32 %v1217, %v1218
  %v1220 = vadd.f32 %v1050, %v1054
  %v1221 = vrot.slane %v1220, 4
  %v1222 = vadd.f32 %v1220, %v1221
  %v1223 = vrot.slane %v1222, 2
  %v1224 = vadd.f32 %v1222, %v1223
  %v1225 = vrot.slane %v1224, 1
  %v1226 = vadd.f32 %v1224, %v1225
  %v1227 = vadd.f32 %v1091, %v1095
  %v1228 = vrot.slane %v1227, 4
  %v1229 = vadd.f32 %v1227, %v1228
  %v1230 = vrot.slane %v1229, 2
  %v1231 = vadd.f32 %v1229, %v1230
  %v1232 = vrot.slane %v1231, 1
  %v1233 = vadd.f32 %v1231, %v1232
  %v1234 = vadd.f32 %v1093, %v1097
  %v1235 = vrot.slane %v1234, 4
  %v1236 = vadd.f32 %v1234, %v1235
  %v1237 = vrot.slane %v1236, 2
  %v1238 = vadd.f32 %v1236, %v1237
  %v1239 = vrot.slane %v1238, 1
  %v1240 = vadd.f32 %v1238, %v1239
  %v1241 = vadd.f32 %v1134, %v1138
  %v1242 = vrot.slane %v1241, 4
  %v1243 = vadd.f32 %v1241, %v1242
  %v1244 = vrot.slane %v1243, 2
  %v1245 = vadd.f32 %v1243, %v1244
  %v1246 = vrot.slane %v1245, 1
  %v1247 = vadd.f32 %v1245, %v1246
  %v1248 = vadd.f32 %v1136, %v1140
  %v1249 = vrot.slane %v1248, 4
  %v1250 = vadd.f32 %v1248, %v1249
  %v1251 = vrot.slane %v1250, 2
  %v1252 = vadd.f32 %v1250, %v1251
  %v1253 = vrot.slane %v1252, 1
  %v1254 = vadd.f32 %v1252, %v1253
  %v1255 = vmul.f32 %v833, %v833
  %v1256 = vmul.f32 %v835, %v835
  %v1257 = vmul.f32 %v876, %v876
  %v1258 = vmul.f32 %v878, %v878
  %v1259 = vmul.f32 %v919, %v919
  %v1260 = vmul.f32 %v921, %v921
  %v1261 = vmul.f32 %v962, %v962
  %v1262 = vmul.f32 %v964, %v964
  %v1263 = vmul.f32 %v1005, %v1005
  %v1264 = vmul.f32 %v1007, %v1007
  %v1265 = vmul.f32 %v1048, %v1048
  %v1266 = vmul.f32 %v1050, %v1050
  %v1267 = vmul.f32 %v1091, %v1091
  %v1268 = vmul.f32 %v1093, %v1093
  %v1269 = vmul.f32 %v1134, %v1134
  %v1270 = vmul.f32 %v1136, %v1136
  %v1271 = vmul.f32 %v837, %v837
  %v1272 = vmul.f32 %v839, %v839
  %v1273 = vmul.f32 %v880, %v880
  %v1274 = vmul.f32 %v882, %v882
  %v1275 = vmul.f32 %v923, %v923
  %v1276 = vmul.f32 %v925, %v925
  %v1277 = vmul.f32 %v966, %v966
  %v1278 = vmul.f32 %v968, %v968
  %v1279 = vmul.f32 %v1009, %v1009
  %v1280 = vmul.f32 %v1011, %v1011
  %v1281 = vmul.f32 %v1052, %v1052
  %v1282 = vmul.f32 %v1054, %v1054
  %v1283 = vmul.f32 %v1095, %v1095
  %v1284 = vmul.f32 %v1097, %v1097
  %v1285 = vmul.f32 %v1138, %v1138
  %v1286 = vmul.f32 %v1140, %v1140
  %v1287 = vadd.f32 %v1255, %v1271
  %v1288 = vrot.slane %v1287, 4
  %v1289 = vadd.f32 %v1287, %v1288
  %v1290 = vrot.slane %v1289, 2
  %v1291 = vadd.f32 %v1289, %v1290
  %v1292 = vrot.slane %v1291, 1
  %v1293 = vadd.f32 %v1291, %v1292
  %v1294 = vadd.f32 %v1256, %v1272
  %v1295 = vrot.slane %v1294, 4
  %v1296 = vadd.f32 %v1294, %v1295
  %v1297 = vrot.slane %v1296, 2
  %v1298 = vadd.f32 %v1296, %v1297
  %v1299 = vrot.slane %v1298, 1
  %v1300 = vadd.f32 %v1298, %v1299
  %v1301 = vadd.f32 %v1257, %v1273
  %v1302 = vrot.slane %v1301, 4
  %v1303 = vadd.f32 %v1301, %v1302
  %v1304 = vrot.slane %v1303, 2
  %v1305 = vadd.f32 %v1303, %v1304
  %v1306 = vrot.slane %v1305, 1
  %v1307 = vadd.f32 %v1305, %v1306
  %v1308 = vadd.f32 %v1258, %v1274
  %v1309 = vrot.slane %v1308, 4
  %v1310 = vadd.f32 %v1308, %v1309
  %v1311 = vrot.slane %v1310, 2
  %v1312 = vadd.f32 %v1310, %v1311
  %v1313 = vrot.slane %v1312, 1
  %v1314 = vadd.f32 %v1312, %v1313
  %v1315 = vadd.f32 %v1259, %v1275
  %v1316 = vrot.slane %v1315, 4
  %v1317 = vadd.f32 %v1315, %v1316
  %v1318 = vrot.slane %v1317, 2
  %v1319 = vadd.f32 %v1317, %v1318
  %v1320 = vrot.slane %v1319, 1
  %v1321 = vadd.f32 %v1319, %v1320
  %v1322 = vadd.f32 %v1260, %v1276
  %v1323 = vrot.slane %v1322, 4
  %v1324 = vadd.f32 %v1322, %v1323
  %v1325 = vrot.slane %v1324, 2
  %v1326 = vadd.f32 %v1324, %v1325
  %v1327 = vrot.slane %v1326, 1
  %v1328 = vadd.f32 %v1326, %v1327
  %v1329 = vadd.f32 %v1261, %v1277
  %v1330 = vrot.slane %v1329, 4
  %v1331 = vadd.f32 %v1329, %v1330
  %v1332 = vrot.slane %v1331, 2
  %v1333 = vadd.f32 %v1331, %v1332
  %v1334 = vrot.slane %v1333, 1
  %v1335 = vadd.f32 %v1333, %v1334
  %v1336 = vadd.f32 %v1262, %v1278
  %v1337 = vrot.slane %v1336, 4
  %v1338 = vadd.f32 %v1336, %v1337
  %v1339 = vrot.slane %v1338, 2
  %v1340 = vadd.f32 %v1338, %v1339
  %v1341 = vrot.slane %v1340, 1
  %v1342 = vadd.f32 %v1340, %v1341
  %v1343 = vadd.f32 %v1263, %v1279
  %v1344 = vrot.slane %v1343, 4
  %v1345 = vadd.f32 %v1343, %v1344
  %v1346 = vrot.slane %v1345, 2
  %v1347 = vadd.f32 %v1345, %v1346
  %v1348 = vrot.slane %v1347, 1
  %v1349 = vadd.f32 %v1347, %v1348
  %v1350 = vadd.f32 %v1264, %v1280
  %v1351 = vrot.slane %v1350, 4
  %v1352 = vadd.f32 %v1350, %v1351
  %v1353 = vrot.slane %v1352, 2
  %v1354 = vadd.f32 %v1352, %v1353
  %v1355 = vrot.slane %v1354, 1
  %v1356 = vadd.f32 %v1354, %v1355
  %v1357 = vadd.f32 %v1265, %v1281
  %v1358 = vrot.slane %v1357, 4
  %v1359 = vadd.f32 %v1357, %v1358
  %v1360 = vrot.slane %v1359, 2
  %v1361 = vadd.f32 %v1359, %v1360
  %v1362 = vrot.slane %v1361, 1
  %v1363 = vadd.f32 %v1361, %v1362
  %v1364 = vadd.f32 %v1266, %v1282
  %v1365 = vrot.slane %v1364, 4
  %v1366 = vadd.f32 %v1364, %v1365
  %v1367 = vrot.slane %v1366, 2
  %v1368 = vadd.f32 %v1366, %v1367
  %v1369 = vrot.slane %v1368, 1
  %v1370 = vadd.f32 %v1368, %v1369
  %v1371 = vadd.f32 %v1267, %v1283
  %v1372 = vrot.slane %v1371, 4
  %v1373 = vadd.f32 %v1371, %v1372
  %v1374 = vrot.slane %v1373, 2
  %v1375 = vadd.f32 %v1373, %v1374
  %v1376 = vrot.slane %v1375, 1
  %v1377 = vadd.f32 %v1375, %v1376
  %v1378 = vadd.f32 %v1268, %v1284
  %v1379 = vrot.slane %v1378, 4
  %v1380 = vadd.f32 %v1378, %v1379
  %v1381 = vrot.slane %v1380, 2
  %v1382 = vadd.f32 %v1380, %v1381
  %v1383 = vrot.slane %v1382, 1
  %v1384 = vadd.f32 %v1382, %v1383
  %v1385 = vadd.f32 %v1269, %v1285
  %v1386 = vrot.slane %v1385, 4
  %v1387 = vadd.f32 %v1385, %v1386
  %v1388 = vrot.slane %v1387, 2
  %v1389 = vadd.f32 %v1387, %v1388
  %v1390 = vrot.slane %v1389, 1
  %v1391 = vadd.f32 %v1389, %v1390
  %v1392 = vadd.f32 %v1270, %v1286
  %v1393 = vrot.slane %v1392, 4
  %v1394 = vadd.f32 %v1392, %v1393
  %v1395 = vrot.slane %v1394, 2
  %v1396 = vadd.f32 %v1394, %v1395
  %v1397 = vrot.slane %v1396, 1
  %v1398 = vadd.f32 %v1396, %v1397
  %v1399 = vadd.f32 %v1149, %v1156
  %v1400 = vadd.f32 %v1399, %v1163
  %v1401 = vadd.f32 %v1400, %v1170
  %v1402 = vadd.f32 %v1401, %v1177
  %v1403 = vadd.f32 %v1402, %v1184
  %v1404 = vadd.f32 %v1403, %v1191
  %v1405 = vadd.f32 %v1404, %v1198
  %v1406 = vadd.f32 %v1405, %v1205
  %v1407 = vadd.f32 %v1406, %v1212
  %v1408 = vadd.f32 %v1407, %v1219
  %v1409 = vadd.f32 %v1408, %v1226
  %v1410 = vadd.f32 %v1409, %v1233
  %v1411 = vadd.f32 %v1410, %v1240
  %v1412 = vadd.f32 %v1411, %v1247
  %v1413 = vadd.f32 %v1412, %v1254
  %v1414 = vadd.f32 %v1293, %v1300
  %v1415 = vadd.f32 %v1414, %v1307
  %v1416 = vadd.f32 %v1415, %v1314
  %v1417 = vadd.f32 %v1416, %v1321
  %v1418 = vadd.f32 %v1417, %v1328
  %v1419 = vadd.f32 %v1418, %v1335
  %v1420 = vadd.f32 %v1419, %v1342
  %v1421 = vadd.f32 %v1420, %v1349
  %v1422 = vadd.f32 %v1421, %v1356
  %v1423 = vadd.f32 %v1422, %v1363
  %v1424 = vadd.f32 %v1423, %v1370
  %v1425 = vadd.f32 %v1424, %v1377
  %v1426 = vadd.f32 %v1425, %v1384
  %v1427 = vadd.f32 %v1426, %v1391
  %v1428 = vadd.f32 %v1427, %v1398
  %v1429 = vld [vmem:[%s3] sm:$0x1]
  %v1430 = vld [vmem:[%s4] sm:$0x1]
  %v1431 = vstv %s1142
  %v1432 = vmul.f32 %v1413, %v1431
  %v1433 = vmul.f32 %v1428, %v1431
  %v1434 = vmul.f32 %v1432, %v1432
  %v1435 = vsub.f32 %v1433, %v1434
  %v1436 = vmax.f32 %v1435, 0.0
  %v1437 = vadd.f32 %v1436, 1e-05
  %v1438 = vrsqrt.pop %v1437
  %v1439 = vmul.f32 %v1429, %v1438
  %v1440 = vmul.f32 %v1432, %v1439
  %v1441 = vsub.f32 %v1430, %v1440
  %v1442 = vlaneseq
  %v1443 = vshrl.u32 %v1442, 7
  %v1444 = vsub.s32 0, %v1443
  %v1445 = vrot.slane %v1439, %v1444
  %v1446 = vmul.f32 %v833, %v1445
  %v1447 = vmul.f32 %v835, %v1445
  %v1448 = vmul.f32 %v876, %v1445
  %v1449 = vmul.f32 %v878, %v1445
  %v1450 = vmul.f32 %v919, %v1445
  %v1451 = vmul.f32 %v921, %v1445
  %v1452 = vmul.f32 %v962, %v1445
  %v1453 = vmul.f32 %v964, %v1445
  %v1454 = vmul.f32 %v1005, %v1445
  %v1455 = vmul.f32 %v1007, %v1445
  %v1456 = vmul.f32 %v1048, %v1445
  %v1457 = vmul.f32 %v1050, %v1445
  %v1458 = vmul.f32 %v1091, %v1445
  %v1459 = vmul.f32 %v1093, %v1445
  %v1460 = vmul.f32 %v1134, %v1445
  %v1461 = vmul.f32 %v1136, %v1445
  %v1462 = vmul.f32 %v837, %v1445
  %v1463 = vmul.f32 %v839, %v1445
  %v1464 = vmul.f32 %v880, %v1445
  %v1465 = vmul.f32 %v882, %v1445
  %v1466 = vmul.f32 %v923, %v1445
  %v1467 = vmul.f32 %v925, %v1445
  %v1468 = vmul.f32 %v966, %v1445
  %v1469 = vmul.f32 %v968, %v1445
  %v1470 = vmul.f32 %v1009, %v1445
  %v1471 = vmul.f32 %v1011, %v1445
  %v1472 = vmul.f32 %v1052, %v1445
  %v1473 = vmul.f32 %v1054, %v1445
  %v1474 = vmul.f32 %v1095, %v1445
  %v1475 = vmul.f32 %v1097, %v1445
  %v1476 = vmul.f32 %v1138, %v1445
  %v1477 = vmul.f32 %v1140, %v1445
  %v1478 = vlaneseq
  %v1479 = vshrl.u32 %v1478, 7
  %v1480 = vsub.s32 0, %v1479
  %v1481 = vrot.slane %v1441, %v1480
  %v1482 = vadd.f32 %v1446, %v1481
  %v1483 = vadd.f32 %v1447, %v1481
  %v1484 = vadd.f32 %v1448, %v1481
  %v1485 = vadd.f32 %v1449, %v1481
  %v1486 = vadd.f32 %v1450, %v1481
  %v1487 = vadd.f32 %v1451, %v1481
  %v1488 = vadd.f32 %v1452, %v1481
  %v1489 = vadd.f32 %v1453, %v1481
  %v1490 = vadd.f32 %v1454, %v1481
  %v1491 = vadd.f32 %v1455, %v1481
  %v1492 = vadd.f32 %v1456, %v1481
  %v1493 = vadd.f32 %v1457, %v1481
  %v1494 = vadd.f32 %v1458, %v1481
  %v1495 = vadd.f32 %v1459, %v1481
  %v1496 = vadd.f32 %v1460, %v1481
  %v1497 = vadd.f32 %v1461, %v1481
  %v1498 = vadd.f32 %v1462, %v1481
  %v1499 = vadd.f32 %v1463, %v1481
  %v1500 = vadd.f32 %v1464, %v1481
  %v1501 = vadd.f32 %v1465, %v1481
  %v1502 = vadd.f32 %v1466, %v1481
  %v1503 = vadd.f32 %v1467, %v1481
  %v1504 = vadd.f32 %v1468, %v1481
  %v1505 = vadd.f32 %v1469, %v1481
  %v1506 = vadd.f32 %v1470, %v1481
  %v1507 = vadd.f32 %v1471, %v1481
  %v1508 = vadd.f32 %v1472, %v1481
  %v1509 = vadd.f32 %v1473, %v1481
  %v1510 = vadd.f32 %v1474, %v1481
  %v1511 = vadd.f32 %v1475, %v1481
  %v1512 = vadd.f32 %v1476, %v1481
  %v1513 = vadd.f32 %v1477, %v1481
  %v1514 = vmax.f32 %v1482, 0.0
  %v1515 = vmax.f32 %v1483, 0.0
  %v1516 = vmax.f32 %v1484, 0.0
  %v1517 = vmax.f32 %v1485, 0.0
  %v1518 = vmax.f32 %v1486, 0.0
  %v1519 = vmax.f32 %v1487, 0.0
  %v1520 = vmax.f32 %v1488, 0.0
  %v1521 = vmax.f32 %v1489, 0.0
  %v1522 = vmax.f32 %v1490, 0.0
  %v1523 = vmax.f32 %v1491, 0.0
  %v1524 = vmax.f32 %v1492, 0.0
  %v1525 = vmax.f32 %v1493, 0.0
  %v1526 = vmax.f32 %v1494, 0.0
  %v1527 = vmax.f32 %v1495, 0.0
  %v1528 = vmax.f32 %v1496, 0.0
  %v1529 = vmax.f32 %v1497, 0.0
  %v1530 = vmax.f32 %v1498, 0.0
  %v1531 = vmax.f32 %v1499, 0.0
  %v1532 = vmax.f32 %v1500, 0.0
  %v1533 = vmax.f32 %v1501, 0.0
  %v1534 = vmax.f32 %v1502, 0.0
  %v1535 = vmax.f32 %v1503, 0.0
  %v1536 = vmax.f32 %v1504, 0.0
  %v1537 = vmax.f32 %v1505, 0.0
  %v1538 = vmax.f32 %v1506, 0.0
  %v1539 = vmax.f32 %v1507, 0.0
  %v1540 = vmax.f32 %v1508, 0.0
  %v1541 = vmax.f32 %v1509, 0.0
  %v1542 = vmax.f32 %v1510, 0.0
  %v1543 = vmax.f32 %v1511, 0.0
  %v1544 = vmax.f32 %v1512, 0.0
  %v1545 = vmax.f32 %v1513, 0.0
  %v1546 = vpack.c.bf16 %v1530, %v1514
  %v1547 = vpack.c.bf16 %v1531, %v1515
  %v1548 = vpack.c.bf16 %v1532, %v1516
  %v1549 = vpack.c.bf16 %v1533, %v1517
  %v1550 = vpack.c.bf16 %v1534, %v1518
  %v1551 = vpack.c.bf16 %v1535, %v1519
  %v1552 = vpack.c.bf16 %v1536, %v1520
  %v1553 = vpack.c.bf16 %v1537, %v1521
  %v1554 = vpack.c.bf16 %v1538, %v1522
  %v1555 = vpack.c.bf16 %v1539, %v1523
  %v1556 = vpack.c.bf16 %v1540, %v1524
  %v1557 = vpack.c.bf16 %v1541, %v1525
  %v1558 = vpack.c.bf16 %v1542, %v1526
  %v1559 = vpack.c.bf16 %v1543, %v1527
  %v1560 = vpack.c.bf16 %v1544, %v1528
  %v1561 = vpack.c.bf16 %v1545, %v1529
  %v1578 = vunpack.c.l.b16 %v1546
  %v1579 = vunpack.c.l.b16 %v1547
  %v1580 = vunpack.c.l.b16 %v1548
  %v1581 = vunpack.c.l.b16 %v1549
  %v1582 = vunpack.c.l.b16 %v1550
  %v1583 = vunpack.c.l.b16 %v1551
  %v1584 = vunpack.c.l.b16 %v1552
  %v1585 = vunpack.c.l.b16 %v1553
  %v1586 = vunpack.c.l.b16 %v1554
  %v1587 = vunpack.c.l.b16 %v1555
  %v1588 = vunpack.c.l.b16 %v1556
  %v1589 = vunpack.c.l.b16 %v1557
  %v1590 = vunpack.c.l.b16 %v1558
  %v1591 = vunpack.c.l.b16 %v1559
  %v1592 = vunpack.c.l.b16 %v1560
  %v1593 = vunpack.c.l.b16 %v1561
  %v1594 = vunpack.c.h.b16 %v1546
  %v1595 = vunpack.c.h.b16 %v1547
  %v1596 = vunpack.c.h.b16 %v1548
  %v1597 = vunpack.c.h.b16 %v1549
  %v1598 = vunpack.c.h.b16 %v1550
  %v1599 = vunpack.c.h.b16 %v1551
  %v1600 = vunpack.c.h.b16 %v1552
  %v1601 = vunpack.c.h.b16 %v1553
  %v1602 = vunpack.c.h.b16 %v1554
  %v1603 = vunpack.c.h.b16 %v1555
  %v1604 = vunpack.c.h.b16 %v1556
  %v1605 = vunpack.c.h.b16 %v1557
  %v1606 = vunpack.c.h.b16 %v1558
  %v1607 = vunpack.c.h.b16 %v1559
  %v1608 = vunpack.c.h.b16 %v1560
  %v1609 = vunpack.c.h.b16 %v1561
  %v1610 = vpack.c.b16 %v1579, %v1578
  %v1611 = vpack.c.b16 %v1581, %v1580
  %v1612 = vpack.c.b16 %v1583, %v1582
  %v1613 = vpack.c.b16 %v1585, %v1584
  %v1614 = vpack.c.b16 %v1587, %v1586
  %v1615 = vpack.c.b16 %v1589, %v1588
  %v1616 = vpack.c.b16 %v1591, %v1590
  %v1617 = vpack.c.b16 %v1593, %v1592
  %v1618 = vpack.c.b16 %v1595, %v1594
  %v1619 = vpack.c.b16 %v1597, %v1596
  %v1620 = vpack.c.b16 %v1599, %v1598
  %v1621 = vpack.c.b16 %v1601, %v1600
  %v1622 = vpack.c.b16 %v1603, %v1602
  %v1623 = vpack.c.b16 %v1605, %v1604
  %v1624 = vpack.c.b16 %v1607, %v1606
  %v1625 = vpack.c.b16 %v1609, %v1608
  %1642 = vst [vmem:[%s5] sm:$0xff] %v1610
  %1643 = vst [vmem:[%s5 + $0x8] sm:$0xff] %v1611
  %1644 = vst [vmem:[%s5 + $0x10] sm:$0xff] %v1612
  %1645 = vst [vmem:[%s5 + $0x18] sm:$0xff] %v1613
  %1646 = vst [vmem:[%s5 + $0x20] sm:$0xff] %v1614
  %1647 = vst [vmem:[%s5 + $0x28] sm:$0xff] %v1615
  %1648 = vst [vmem:[%s5 + $0x30] sm:$0xff] %v1616
  %1649 = vst [vmem:[%s5 + $0x38] sm:$0xff] %v1617
  %1650 = vst [vmem:[%s5 + $0x40] sm:$0xff] %v1618
  %1651 = vst [vmem:[%s5 + $0x48] sm:$0xff] %v1619
  %1652 = vst [vmem:[%s5 + $0x50] sm:$0xff] %v1620
  %1653 = vst [vmem:[%s5 + $0x58] sm:$0xff] %v1621
  %1654 = vst [vmem:[%s5 + $0x60] sm:$0xff] %v1622
  %1655 = vst [vmem:[%s5 + $0x68] sm:$0xff] %v1623
  %1656 = vst [vmem:[%s5 + $0x70] sm:$0xff] %v1624
  %1657 = vst [vmem:[%s5 + $0x78] sm:$0xff] %v1625
  // Predicated region
  $region22: #{_lambda_.5} parent=0 // pred_check
    _
  $region23: #{_lambda_.5} parent=0 // pred_check_branch
    %1659 = sbr.rel (0) target = $region25
  $region24: #{_lambda_.5} parent=0 // pred_region
    _
  $region25: #{_lambda_.5} parent=0 // pred_fallthru
    _
  // Predicated region
  $region26: #{_lambda_.5} parent=0 // pred_check
    _
  $region27: #{_lambda_.5} parent=0 // pred_check_branch
    %1661 = sbr.rel (0) target = $region29
  $region28: #{_lambda_.5} parent=0 // pred_region
    _
  $region29: #{_lambda_.5} parent=0 // pred_fallthru
    _

// kernel: _lambda_.6
$region0: #{_lambda_.6}
  #allocation0 [shape = 'u32[]', space=smem, size = 0x4, offset = 0x4, fixed_abs, tag = 'smem constant byte address 0x4 - core index']
  #allocation1 [shape = 'u32[144,128]{1,0:T(1,128)}', space=vmem, size = 0x12000, scoped, tag = 'internal scratch']
  #allocation2 [shape = 'f32[1,1]{1,0:T(1,128)S(6)}', space=smem, size = 0x200, scoped, tag = 'scoped memory for _lambda_.6']
  %s0 = inlined_call_operand.<no memory space> [shape: f32[1,1], index: 0, kind: input, shape index: {}]
  %s1 = inlined_call_operand.vmem [shape: bf16[32,1152], index: 1, kind: input, shape index: {}]
  %s2 = inlined_call_operand.vmem [shape: bf16[1152,256], index: 2, kind: input, shape index: {}]
  %s3 = inlined_call_operand.vmem [shape: f32[1,64], index: 3, kind: input, shape index: {}]
  %s4 = inlined_call_operand.vmem [shape: f32[1,64], index: 4, kind: input, shape index: {}]
  %s5 = inlined_call_operand.vmem [shape: bf16[32,256], index: 5, kind: output, shape index: {}]
  %s6 = sld [smem:[#allocation0]]
  $region30: #{_lambda_.6} parent=0
    _
  %s8 = ssub.s32 1, %s6
  %s9 = scalar_select 0, %s8, %s6
  %10 = sst [smem:[#allocation2]] %s0
  // Predicated region
  $region2: #{_lambda_.6} parent=0 // pred_check
    _
  $region3: #{_lambda_.6} parent=0 // pred_check_branch
    %12 = sbr.rel (0) target = $region5
  $region4: #{_lambda_.6} parent=0 // pred_region
    _
  $region5: #{_lambda_.6} parent=0 // pred_fallthru
    _
  // Predicated region
  $region6: #{_lambda_.6} parent=0 // pred_check
    _
  $region7: #{_lambda_.6} parent=0 // pred_check_branch
    %14 = sbr.rel (0) target = $region9
  $region8: #{_lambda_.6} parent=0 // pred_region
    _
  $region9: #{_lambda_.6} parent=0 // pred_fallthru
    _
  // Predicated region
  $region10: #{_lambda_.6} parent=0 // pred_check
    _
  $region11: #{_lambda_.6} parent=0 // pred_check_branch
    %16 = sbr.rel (0) target = $region13
  $region12: #{_lambda_.6} parent=0 // pred_region
    _
  $region13: #{_lambda_.6} parent=0 // pred_fallthru
    _
  // Predicated region
  $region14: #{_lambda_.6} parent=0 // pred_check
    _
  $region15: #{_lambda_.6} parent=0 // pred_check_branch
    %18 = sbr.rel (0) target = $region17
  $region16: #{_lambda_.6} parent=0 // pred_region
    _
  $region17: #{_lambda_.6} parent=0 // pred_fallthru
    _
  // Predicated region
  $region18: #{_lambda_.6} parent=0 // pred_check
    _
  $region19: #{_lambda_.6} parent=0 // pred_check_branch
    %20 = sbr.rel (0) target = $region21
  $region20: #{_lambda_.6} parent=0 // pred_region
    _
  $region21: #{_lambda_.6} parent=0 // pred_fallthru
    _
  %v22 = vld [vmem:[%s1] sm:$0xff]
  %v23 = vld [vmem:[%s1 + $0x8] sm:$0xff]
  %v24 = vld [vmem:[%s1 + $0x10] sm:$0xff]
  %v25 = vld [vmem:[%s1 + $0x18] sm:$0xff]
  %v26 = vld [vmem:[%s1 + $0x20] sm:$0xf]
  %v27 = vld [vmem:[%s1 + $0x24] sm:$0xff]
  %v28 = vld [vmem:[%s1 + $0x2c] sm:$0xff]
  %v29 = vld [vmem:[%s1 + $0x34] sm:$0xff]
  %v30 = vld [vmem:[%s1 + $0x3c] sm:$0xff]
  %v31 = vld [vmem:[%s1 + $0x44] sm:$0xf]
  %v32 = vld [vmem:[%s1 + $0x48] sm:$0xff]
  %v33 = vld [vmem:[%s1 + $0x50] sm:$0xff]
  %v34 = vld [vmem:[%s1 + $0x58] sm:$0xff]
  %v35 = vld [vmem:[%s1 + $0x60] sm:$0xff]
  %v36 = vld [vmem:[%s1 + $0x68] sm:$0xf]
  %v37 = vld [vmem:[%s1 + $0x6c] sm:$0xff]
  %v38 = vld [vmem:[%s1 + $0x74] sm:$0xff]
  %v39 = vld [vmem:[%s1 + $0x7c] sm:$0xff]
  %v40 = vld [vmem:[%s1 + $0x84] sm:$0xff]
  %v41 = vld [vmem:[%s1 + $0x8c] sm:$0xf]
  %v42 = vld [vmem:[%s2] sm:$0xff]
  %v43 = vld [vmem:[%s2 + $0x8] sm:$0xff]
  %v44 = vld [vmem:[%s2 + $0x10] sm:$0xff]
  %v45 = vld [vmem:[%s2 + $0x18] sm:$0xff]
  %v46 = vld [vmem:[%s2 + $0x20] sm:$0xff]
  %v47 = vld [vmem:[%s2 + $0x28] sm:$0xff]
  %v48 = vld [vmem:[%s2 + $0x30] sm:$0xff]
  %v49 = vld [vmem:[%s2 + $0x38] sm:$0xff]
  %v50 = vld [vmem:[%s2 + $0x40] sm:$0xff]
  %v51 = vld [vmem:[%s2 + $0x48] sm:$0xff]
  %v52 = vld [vmem:[%s2 + $0x50] sm:$0xff]
  %v53 = vld [vmem:[%s2 + $0x58] sm:$0xff]
  %v54 = vld [vmem:[%s2 + $0x60] sm:$0xff]
  %v55 = vld [vmem:[%s2 + $0x68] sm:$0xff]
  %v56 = vld [vmem:[%s2 + $0x70] sm:$0xff]
  %v57 = vld [vmem:[%s2 + $0x78] sm:$0xff]
  %v58 = vld [vmem:[%s2 + $0x80] sm:$0xff]
  %v59 = vld [vmem:[%s2 + $0x88] sm:$0xff]
  %v60 = vld [vmem:[%s2 + $0x90] sm:$0xff]
  %v61 = vld [vmem:[%s2 + $0x98] sm:$0xff]
  %v62 = vld [vmem:[%s2 + $0xa0] sm:$0xff]
  %v63 = vld [vmem:[%s2 + $0xa8] sm:$0xff]
  %v64 = vld [vmem:[%s2 + $0xb0] sm:$0xff]
  %v65 = vld [vmem:[%s2 + $0xb8] sm:$0xff]
  %v66 = vld [vmem:[%s2 + $0xc0] sm:$0xff]
  %v67 = vld [vmem:[%s2 + $0xc8] sm:$0xff]
  %v68 = vld [vmem:[%s2 + $0xd0] sm:$0xff]
  %v69 = vld [vmem:[%s2 + $0xd8] sm:$0xff]
  %v70 = vld [vmem:[%s2 + $0xe0] sm:$0xff]
  %v71 = vld [vmem:[%s2 + $0xe8] sm:$0xff]
  %v72 = vld [vmem:[%s2 + $0xf0] sm:$0xff]
  %v73 = vld [vmem:[%s2 + $0xf8] sm:$0xff]
  %v74 = vld [vmem:[%s2 + $0x100] sm:$0xff]
  %v75 = vld [vmem:[%s2 + $0x108] sm:$0xff]
  %v76 = vld [vmem:[%s2 + $0x110] sm:$0xff]
  %v77 = vld [vmem:[%s2 + $0x118] sm:$0xff]
  %v78 = vld [vmem:[%s2 + $0x120] sm:$0xff]
  %v79 = vld [vmem:[%s2 + $0x128] sm:$0xff]
  %v80 = vld [vmem:[%s2 + $0x130] sm:$0xff]
  %v81 = vld [vmem:[%s2 + $0x138] sm:$0xff]
  %v82 = vld [vmem:[%s2 + $0x140] sm:$0xff]
  %v83 = vld [vmem:[%s2 + $0x148] sm:$0xff]
  %v84 = vld [vmem:[%s2 + $0x150] sm:$0xff]
  %v85 = vld [vmem:[%s2 + $0x158] sm:$0xff]
  %v86 = vld [vmem:[%s2 + $0x160] sm:$0xff]
  %v87 = vld [vmem:[%s2 + $0x168] sm:$0xff]
  %v88 = vld [vmem:[%s2 + $0x170] sm:$0xff]
  %v89 = vld [vmem:[%s2 + $0x178] sm:$0xff]
  %v90 = vld [vmem:[%s2 + $0x180] sm:$0xff]
  %v91 = vld [vmem:[%s2 + $0x188] sm:$0xff]
  %v92 = vld [vmem:[%s2 + $0x190] sm:$0xff]
  %v93 = vld [vmem:[%s2 + $0x198] sm:$0xff]
  %v94 = vld [vmem:[%s2 + $0x1a0] sm:$0xff]
  %v95 = vld [vmem:[%s2 + $0x1a8] sm:$0xff]
  %v96 = vld [vmem:[%s2 + $0x1b0] sm:$0xff]
  %v97 = vld [vmem:[%s2 + $0x1b8] sm:$0xff]
  %v98 = vld [vmem:[%s2 + $0x1c0] sm:$0xff]
  %v99 = vld [vmem:[%s2 + $0x1c8] sm:$0xff]
  %v100 = vld [vmem:[%s2 + $0x1d0] sm:$0xff]
  %v101 = vld [vmem:[%s2 + $0x1d8] sm:$0xff]
  %v102 = vld [vmem:[%s2 + $0x1e0] sm:$0xff]
  %v103 = vld [vmem:[%s2 + $0x1e8] sm:$0xff]
  %v104 = vld [vmem:[%s2 + $0x1f0] sm:$0xff]
  %v105 = vld [vmem:[%s2 + $0x1f8] sm:$0xff]
  %v106 = vld [vmem:[%s2 + $0x200] sm:$0xff]
  %v107 = vld [vmem:[%s2 + $0x208] sm:$0xff]
  %v108 = vld [vmem:[%s2 + $0x210] sm:$0xff]
  %v109 = vld [vmem:[%s2 + $0x218] sm:$0xff]
  %v110 = vld [vmem:[%s2 + $0x220] sm:$0xff]
  %v111 = vld [vmem:[%s2 + $0x228] sm:$0xff]
  %v112 = vld [vmem:[%s2 + $0x230] sm:$0xff]
  %v113 = vld [vmem:[%s2 + $0x238] sm:$0xff]
  %v114 = vld [vmem:[%s2 + $0x240] sm:$0xff]
  %v115 = vld [vmem:[%s2 + $0x248] sm:$0xff]
  %v116 = vld [vmem:[%s2 + $0x250] sm:$0xff]
  %v117 = vld [vmem:[%s2 + $0x258] sm:$0xff]
  %v118 = vld [vmem:[%s2 + $0x260] sm:$0xff]
  %v119 = vld [vmem:[%s2 + $0x268] sm:$0xff]
  %v120 = vld [vmem:[%s2 + $0x270] sm:$0xff]
  %v121 = vld [vmem:[%s2 + $0x278] sm:$0xff]
  %v122 = vld [vmem:[%s2 + $0x280] sm:$0xff]
  %v123 = vld [vmem:[%s2 + $0x288] sm:$0xff]
  %v124 = vld [vmem:[%s2 + $0x290] sm:$0xff]
  %v125 = vld [vmem:[%s2 + $0x298] sm:$0xff]
  %v126 = vld [vmem:[%s2 + $0x2a0] sm:$0xff]
  %v127 = vld [vmem:[%s2 + $0x2a8] sm:$0xff]
  %v128 = vld [vmem:[%s2 + $0x2b0] sm:$0xff]
  %v129 = vld [vmem:[%s2 + $0x2b8] sm:$0xff]
  %v130 = vld [vmem:[%s2 + $0x2c0] sm:$0xff]
  %v131 = vld [vmem:[%s2 + $0x2c8] sm:$0xff]
  %v132 = vld [vmem:[%s2 + $0x2d0] sm:$0xff]
  %v133 = vld [vmem:[%s2 + $0x2d8] sm:$0xff]
  %v134 = vld [vmem:[%s2 + $0x2e0] sm:$0xff]
  %v135 = vld [vmem:[%s2 + $0x2e8] sm:$0xff]
  %v136 = vld [vmem:[%s2 + $0x2f0] sm:$0xff]
  %v137 = vld [vmem:[%s2 + $0x2f8] sm:$0xff]
  %v138 = vld [vmem:[%s2 + $0x300] sm:$0xff]
  %v139 = vld [vmem:[%s2 + $0x308] sm:$0xff]
  %v140 = vld [vmem:[%s2 + $0x310] sm:$0xff]
  %v141 = vld [vmem:[%s2 + $0x318] sm:$0xff]
  %v142 = vld [vmem:[%s2 + $0x320] sm:$0xff]
  %v143 = vld [vmem:[%s2 + $0x328] sm:$0xff]
  %v144 = vld [vmem:[%s2 + $0x330] sm:$0xff]
  %v145 = vld [vmem:[%s2 + $0x338] sm:$0xff]
  %v146 = vld [vmem:[%s2 + $0x340] sm:$0xff]
  %v147 = vld [vmem:[%s2 + $0x348] sm:$0xff]
  %v148 = vld [vmem:[%s2 + $0x350] sm:$0xff]
  %v149 = vld [vmem:[%s2 + $0x358] sm:$0xff]
  %v150 = vld [vmem:[%s2 + $0x360] sm:$0xff]
  %v151 = vld [vmem:[%s2 + $0x368] sm:$0xff]
  %v152 = vld [vmem:[%s2 + $0x370] sm:$0xff]
  %v153 = vld [vmem:[%s2 + $0x378] sm:$0xff]
  %v154 = vld [vmem:[%s2 + $0x380] sm:$0xff]
  %v155 = vld [vmem:[%s2 + $0x388] sm:$0xff]
  %v156 = vld [vmem:[%s2 + $0x390] sm:$0xff]
  %v157 = vld [vmem:[%s2 + $0x398] sm:$0xff]
  %v158 = vld [vmem:[%s2 + $0x3a0] sm:$0xff]
  %v159 = vld [vmem:[%s2 + $0x3a8] sm:$0xff]
  %v160 = vld [vmem:[%s2 + $0x3b0] sm:$0xff]
  %v161 = vld [vmem:[%s2 + $0x3b8] sm:$0xff]
  %v162 = vld [vmem:[%s2 + $0x3c0] sm:$0xff]
  %v163 = vld [vmem:[%s2 + $0x3c8] sm:$0xff]
  %v164 = vld [vmem:[%s2 + $0x3d0] sm:$0xff]
  %v165 = vld [vmem:[%s2 + $0x3d8] sm:$0xff]
  %v166 = vld [vmem:[%s2 + $0x3e0] sm:$0xff]
  %v167 = vld [vmem:[%s2 + $0x3e8] sm:$0xff]
  %v168 = vld [vmem:[%s2 + $0x3f0] sm:$0xff]
  %v169 = vld [vmem:[%s2 + $0x3f8] sm:$0xff]
  %v170 = vld [vmem:[%s2 + $0x400] sm:$0xff]
  %v171 = vld [vmem:[%s2 + $0x408] sm:$0xff]
  %v172 = vld [vmem:[%s2 + $0x410] sm:$0xff]
  %v173 = vld [vmem:[%s2 + $0x418] sm:$0xff]
  %v174 = vld [vmem:[%s2 + $0x420] sm:$0xff]
  %v175 = vld [vmem:[%s2 + $0x428] sm:$0xff]
  %v176 = vld [vmem:[%s2 + $0x430] sm:$0xff]
  %v177 = vld [vmem:[%s2 + $0x438] sm:$0xff]
  %v178 = vld [vmem:[%s2 + $0x440] sm:$0xff]
  %v179 = vld [vmem:[%s2 + $0x448] sm:$0xff]
  %v180 = vld [vmem:[%s2 + $0x450] sm:$0xff]
  %v181 = vld [vmem:[%s2 + $0x458] sm:$0xff]
  %v182 = vld [vmem:[%s2 + $0x460] sm:$0xff]
  %v183 = vld [vmem:[%s2 + $0x468] sm:$0xff]
  %v184 = vld [vmem:[%s2 + $0x470] sm:$0xff]
  %v185 = vld [vmem:[%s2 + $0x478] sm:$0xff]
  %v206 = vunpack.c.l.b16 %v22
  %v207 = vunpack.c.h.b16 %v22
  %v208 = vunpack.c.l.b16 %v23
  %v209 = vunpack.c.h.b16 %v23
  %v210 = vunpack.c.l.b16 %v24
  %v211 = vunpack.c.h.b16 %v24
  %v212 = vunpack.c.l.b16 %v25
  %v213 = vunpack.c.h.b16 %v25
  %v214 = vunpack.c.l.b16 %v26
  %v215 = vunpack.c.l.b16 %v27
  %v216 = vunpack.c.h.b16 %v27
  %v217 = vunpack.c.l.b16 %v28
  %v218 = vunpack.c.h.b16 %v28
  %v219 = vunpack.c.l.b16 %v29
  %v220 = vunpack.c.h.b16 %v29
  %v221 = vunpack.c.l.b16 %v30
  %v222 = vunpack.c.h.b16 %v30
  %v223 = vunpack.c.l.b16 %v31
  %v224 = vunpack.c.l.b16 %v32
  %v225 = vunpack.c.h.b16 %v32
  %v226 = vunpack.c.l.b16 %v33
  %v227 = vunpack.c.h.b16 %v33
  %v228 = vunpack.c.l.b16 %v34
  %v229 = vunpack.c.h.b16 %v34
  %v230 = vunpack.c.l.b16 %v35
  %v231 = vunpack.c.h.b16 %v35
  %v232 = vunpack.c.l.b16 %v36
  %v233 = vunpack.c.l.b16 %v37
  %v234 = vunpack.c.h.b16 %v37
  %v235 = vunpack.c.l.b16 %v38
  %v236 = vunpack.c.h.b16 %v38
  %v237 = vunpack.c.l.b16 %v39
  %v238 = vunpack.c.h.b16 %v39
  %v239 = vunpack.c.l.b16 %v40
  %v240 = vunpack.c.h.b16 %v40
  %v241 = vunpack.c.l.b16 %v41
  %v242 = vpack.c.b16 %v215, %v206
  %v243 = vpack.c.b16 %v216, %v207
  %v244 = vpack.c.b16 %v217, %v208
  %v245 = vpack.c.b16 %v218, %v209
  %v246 = vpack.c.b16 %v219, %v210
  %v247 = vpack.c.b16 %v220, %v211
  %v248 = vpack.c.b16 %v221, %v212
  %v249 = vpack.c.b16 %v222, %v213
  %v250 = vpack.c.b16 %v223, %v214
  %v251 = vpack.c.b16 %v233, %v224
  %v252 = vpack.c.b16 %v234, %v225
  %v253 = vpack.c.b16 %v235, %v226
  %v254 = vpack.c.b16 %v236, %v227
  %v255 = vpack.c.b16 %v237, %v228
  %v256 = vpack.c.b16 %v238, %v229
  %v257 = vpack.c.b16 %v239, %v230
  %v258 = vpack.c.b16 %v240, %v231
  %v259 = vpack.c.b16 %v241, %v232
  %v422 = vunpack.c.l.b16 %v42
  %v423 = vunpack.c.h.b16 %v42
  %v424 = vunpack.c.l.b16 %v43
  %v425 = vunpack.c.h.b16 %v43
  %v426 = vunpack.c.l.b16 %v44
  %v427 = vunpack.c.h.b16 %v44
  %v428 = vunpack.c.l.b16 %v45
  %v429 = vunpack.c.h.b16 %v45
  %v430 = vunpack.c.l.b16 %v46
  %v431 = vunpack.c.h.b16 %v46
  %v432 = vunpack.c.l.b16 %v47
  %v433 = vunpack.c.h.b16 %v47
  %v434 = vunpack.c.l.b16 %v48
  %v435 = vunpack.c.h.b16 %v48
  %v436 = vunpack.c.l.b16 %v49
  %v437 = vunpack.c.h.b16 %v49
  %v438 = vunpack.c.l.b16 %v50
  %v439 = vunpack.c.h.b16 %v50
  %v440 = vunpack.c.l.b16 %v51
  %v441 = vunpack.c.h.b16 %v51
  %v442 = vunpack.c.l.b16 %v52
  %v443 = vunpack.c.h.b16 %v52
  %v444 = vunpack.c.l.b16 %v53
  %v445 = vunpack.c.h.b16 %v53
  %v446 = vunpack.c.l.b16 %v54
  %v447 = vunpack.c.h.b16 %v54
  %v448 = vunpack.c.l.b16 %v55
  %v449 = vunpack.c.h.b16 %v55
  %v450 = vunpack.c.l.b16 %v56
  %v451 = vunpack.c.h.b16 %v56
  %v452 = vunpack.c.l.b16 %v57
  %v453 = vunpack.c.h.b16 %v57
  %v454 = vunpack.c.l.b16 %v58
  %v455 = vunpack.c.h.b16 %v58
  %v456 = vunpack.c.l.b16 %v59
  %v457 = vunpack.c.h.b16 %v59
  %v458 = vunpack.c.l.b16 %v60
  %v459 = vunpack.c.h.b16 %v60
  %v460 = vunpack.c.l.b16 %v61
  %v461 = vunpack.c.h.b16 %v61
  %v462 = vunpack.c.l.b16 %v62
  %v463 = vunpack.c.h.b16 %v62
  %v464 = vunpack.c.l.b16 %v63
  %v465 = vunpack.c.h.b16 %v63
  %v466 = vunpack.c.l.b16 %v64
  %v467 = vunpack.c.h.b16 %v64
  %v468 = vunpack.c.l.b16 %v65
  %v469 = vunpack.c.h.b16 %v65
  %v470 = vunpack.c.l.b16 %v66
  %v471 = vunpack.c.h.b16 %v66
  %v472 = vunpack.c.l.b16 %v67
  %v473 = vunpack.c.h.b16 %v67
  %v474 = vunpack.c.l.b16 %v68
  %v475 = vunpack.c.h.b16 %v68
  %v476 = vunpack.c.l.b16 %v69
  %v477 = vunpack.c.h.b16 %v69
  %v478 = vunpack.c.l.b16 %v70
  %v479 = vunpack.c.h.b16 %v70
  %v480 = vunpack.c.l.b16 %v71
  %v481 = vunpack.c.h.b16 %v71
  %v482 = vunpack.c.l.b16 %v72
  %v483 = vunpack.c.h.b16 %v72
  %v484 = vunpack.c.l.b16 %v73
  %v485 = vunpack.c.h.b16 %v73
  %v486 = vunpack.c.l.b16 %v74
  %v487 = vunpack.c.h.b16 %v74
  %v488 = vunpack.c.l.b16 %v75
  %v489 = vunpack.c.h.b16 %v75
  %v490 = vunpack.c.l.b16 %v76
  %v491 = vunpack.c.h.b16 %v76
  %v492 = vunpack.c.l.b16 %v77
  %v493 = vunpack.c.h.b16 %v77
  %v494 = vunpack.c.l.b16 %v78
  %v495 = vunpack.c.h.b16 %v78
  %v496 = vunpack.c.l.b16 %v79
  %v497 = vunpack.c.h.b16 %v79
  %v498 = vunpack.c.l.b16 %v80
  %v499 = vunpack.c.h.b16 %v80
  %v500 = vunpack.c.l.b16 %v81
  %v501 = vunpack.c.h.b16 %v81
  %v502 = vunpack.c.l.b16 %v82
  %v503 = vunpack.c.h.b16 %v82
  %v504 = vunpack.c.l.b16 %v83
  %v505 = vunpack.c.h.b16 %v83
  %v506 = vunpack.c.l.b16 %v84
  %v507 = vunpack.c.h.b16 %v84
  %v508 = vunpack.c.l.b16 %v85
  %v509 = vunpack.c.h.b16 %v85
  %v510 = vunpack.c.l.b16 %v86
  %v511 = vunpack.c.h.b16 %v86
  %v512 = vunpack.c.l.b16 %v87
  %v513 = vunpack.c.h.b16 %v87
  %v514 = vunpack.c.l.b16 %v88
  %v515 = vunpack.c.h.b16 %v88
  %v516 = vunpack.c.l.b16 %v89
  %v517 = vunpack.c.h.b16 %v89
  %v518 = vunpack.c.l.b16 %v90
  %v519 = vunpack.c.h.b16 %v90
  %v520 = vunpack.c.l.b16 %v91
  %v521 = vunpack.c.h.b16 %v91
  %v522 = vunpack.c.l.b16 %v92
  %v523 = vunpack.c.h.b16 %v92
  %v524 = vunpack.c.l.b16 %v93
  %v525 = vunpack.c.h.b16 %v93
  %v526 = vunpack.c.l.b16 %v94
  %v527 = vunpack.c.h.b16 %v94
  %v528 = vunpack.c.l.b16 %v95
  %v529 = vunpack.c.h.b16 %v95
  %v530 = vunpack.c.l.b16 %v96
  %v531 = vunpack.c.h.b16 %v96
  %v532 = vunpack.c.l.b16 %v97
  %v533 = vunpack.c.h.b16 %v97
  %v534 = vunpack.c.l.b16 %v98
  %v535 = vunpack.c.h.b16 %v98
  %v536 = vunpack.c.l.b16 %v99
  %v537 = vunpack.c.h.b16 %v99
  %v538 = vunpack.c.l.b16 %v100
  %v539 = vunpack.c.h.b16 %v100
  %v540 = vunpack.c.l.b16 %v101
  %v541 = vunpack.c.h.b16 %v101
  %v542 = vunpack.c.l.b16 %v102
  %v543 = vunpack.c.h.b16 %v102
  %v544 = vunpack.c.l.b16 %v103
  %v545 = vunpack.c.h.b16 %v103
  %v546 = vunpack.c.l.b16 %v104
  %v547 = vunpack.c.h.b16 %v104
  %v548 = vunpack.c.l.b16 %v105
  %v549 = vunpack.c.h.b16 %v105
  %v550 = vunpack.c.l.b16 %v106
  %v551 = vunpack.c.h.b16 %v106
  %v552 = vunpack.c.l.b16 %v107
  %v553 = vunpack.c.h.b16 %v107
  %v554 = vunpack.c.l.b16 %v108
  %v555 = vunpack.c.h.b16 %v108
  %v556 = vunpack.c.l.b16 %v109
  %v557 = vunpack.c.h.b16 %v109
  %v558 = vunpack.c.l.b16 %v110
  %v559 = vunpack.c.h.b16 %v110
  %v560 = vunpack.c.l.b16 %v111
  %v561 = vunpack.c.h.b16 %v111
  %v562 = vunpack.c.l.b16 %v112
  %v563 = vunpack.c.h.b16 %v112
  %v564 = vunpack.c.l.b16 %v113
  %v565 = vunpack.c.h.b16 %v113
  %v566 = vunpack.c.l.b16 %v114
  %v567 = vunpack.c.h.b16 %v114
  %v568 = vunpack.c.l.b16 %v115
  %v569 = vunpack.c.h.b16 %v115
  %v570 = vunpack.c.l.b16 %v116
  %v571 = vunpack.c.h.b16 %v116
  %v572 = vunpack.c.l.b16 %v117
  %v573 = vunpack.c.h.b16 %v117
  %v574 = vunpack.c.l.b16 %v118
  %v575 = vunpack.c.h.b16 %v118
  %v576 = vunpack.c.l.b16 %v119
  %v577 = vunpack.c.h.b16 %v119
  %v578 = vunpack.c.l.b16 %v120
  %v579 = vunpack.c.h.b16 %v120
  %v580 = vunpack.c.l.b16 %v121
  %v581 = vunpack.c.h.b16 %v121
  %v582 = vunpack.c.l.b16 %v122
  %v583 = vunpack.c.h.b16 %v122
  %v584 = vunpack.c.l.b16 %v123
  %v585 = vunpack.c.h.b16 %v123
  %v586 = vunpack.c.l.b16 %v124
  %v587 = vunpack.c.h.b16 %v124
  %v588 = vunpack.c.l.b16 %v125
  %v589 = vunpack.c.h.b16 %v125
  %v590 = vunpack.c.l.b16 %v126
  %v591 = vunpack.c.h.b16 %v126
  %v592 = vunpack.c.l.b16 %v127
  %v593 = vunpack.c.h.b16 %v127
  %v594 = vunpack.c.l.b16 %v128
  %v595 = vunpack.c.h.b16 %v128
  %v596 = vunpack.c.l.b16 %v129
  %v597 = vunpack.c.h.b16 %v129
  %v598 = vunpack.c.l.b16 %v130
  %v599 = vunpack.c.h.b16 %v130
  %v600 = vunpack.c.l.b16 %v131
  %v601 = vunpack.c.h.b16 %v131
  %v602 = vunpack.c.l.b16 %v132
  %v603 = vunpack.c.h.b16 %v132
  %v604 = vunpack.c.l.b16 %v133
  %v605 = vunpack.c.h.b16 %v133
  %v606 = vunpack.c.l.b16 %v134
  %v607 = vunpack.c.h.b16 %v134
  %v608 = vunpack.c.l.b16 %v135
  %v609 = vunpack.c.h.b16 %v135
  %v610 = vunpack.c.l.b16 %v136
  %v611 = vunpack.c.h.b16 %v136
  %v612 = vunpack.c.l.b16 %v137
  %v613 = vunpack.c.h.b16 %v137
  %v614 = vunpack.c.l.b16 %v138
  %v615 = vunpack.c.h.b16 %v138
  %v616 = vunpack.c.l.b16 %v139
  %v617 = vunpack.c.h.b16 %v139
  %v618 = vunpack.c.l.b16 %v140
  %v619 = vunpack.c.h.b16 %v140
  %v620 = vunpack.c.l.b16 %v141
  %v621 = vunpack.c.h.b16 %v141
  %v622 = vunpack.c.l.b16 %v142
  %v623 = vunpack.c.h.b16 %v142
  %v624 = vunpack.c.l.b16 %v143
  %v625 = vunpack.c.h.b16 %v143
  %v626 = vunpack.c.l.b16 %v144
  %v627 = vunpack.c.h.b16 %v144
  %v628 = vunpack.c.l.b16 %v145
  %v629 = vunpack.c.h.b16 %v145
  %v630 = vunpack.c.l.b16 %v146
  %v631 = vunpack.c.h.b16 %v146
  %v632 = vunpack.c.l.b16 %v147
  %v633 = vunpack.c.h.b16 %v147
  %v634 = vunpack.c.l.b16 %v148
  %v635 = vunpack.c.h.b16 %v148
  %v636 = vunpack.c.l.b16 %v149
  %v637 = vunpack.c.h.b16 %v149
  %v638 = vunpack.c.l.b16 %v150
  %v639 = vunpack.c.h.b16 %v150
  %v640 = vunpack.c.l.b16 %v151
  %v641 = vunpack.c.h.b16 %v151
  %v642 = vunpack.c.l.b16 %v152
  %v643 = vunpack.c.h.b16 %v152
  %v644 = vunpack.c.l.b16 %v153
  %v645 = vunpack.c.h.b16 %v153
  %v646 = vunpack.c.l.b16 %v154
  %v647 = vunpack.c.h.b16 %v154
  %v648 = vunpack.c.l.b16 %v155
  %v649 = vunpack.c.h.b16 %v155
  %v650 = vunpack.c.l.b16 %v156
  %v651 = vunpack.c.h.b16 %v156
  %v652 = vunpack.c.l.b16 %v157
  %v653 = vunpack.c.h.b16 %v157
  %v654 = vunpack.c.l.b16 %v158
  %v655 = vunpack.c.h.b16 %v158
  %v656 = vunpack.c.l.b16 %v159
  %v657 = vunpack.c.h.b16 %v159
  %v658 = vunpack.c.l.b16 %v160
  %v659 = vunpack.c.h.b16 %v160
  %v660 = vunpack.c.l.b16 %v161
  %v661 = vunpack.c.h.b16 %v161
  %v662 = vunpack.c.l.b16 %v162
  %v663 = vunpack.c.h.b16 %v162
  %v664 = vunpack.c.l.b16 %v163
  %v665 = vunpack.c.h.b16 %v163
  %v666 = vunpack.c.l.b16 %v164
  %v667 = vunpack.c.h.b16 %v164
  %v668 = vunpack.c.l.b16 %v165
  %v669 = vunpack.c.h.b16 %v165
  %v670 = vunpack.c.l.b16 %v166
  %v671 = vunpack.c.h.b16 %v166
  %v672 = vunpack.c.l.b16 %v167
  %v673 = vunpack.c.h.b16 %v167
  %v674 = vunpack.c.l.b16 %v168
  %v675 = vunpack.c.h.b16 %v168
  %v676 = vunpack.c.l.b16 %v169
  %v677 = vunpack.c.h.b16 %v169
  %v678 = vunpack.c.l.b16 %v170
  %v679 = vunpack.c.h.b16 %v170
  %v680 = vunpack.c.l.b16 %v171
  %v681 = vunpack.c.h.b16 %v171
  %v682 = vunpack.c.l.b16 %v172
  %v683 = vunpack.c.h.b16 %v172
  %v684 = vunpack.c.l.b16 %v173
  %v685 = vunpack.c.h.b16 %v173
  %v686 = vunpack.c.l.b16 %v174
  %v687 = vunpack.c.h.b16 %v174
  %v688 = vunpack.c.l.b16 %v175
  %v689 = vunpack.c.h.b16 %v175
  %v690 = vunpack.c.l.b16 %v176
  %v691 = vunpack.c.h.b16 %v176
  %v692 = vunpack.c.l.b16 %v177
  %v693 = vunpack.c.h.b16 %v177
  %v694 = vunpack.c.l.b16 %v178
  %v695 = vunpack.c.h.b16 %v178
  %v696 = vunpack.c.l.b16 %v179
  %v697 = vunpack.c.h.b16 %v179
  %v698 = vunpack.c.l.b16 %v180
  %v699 = vunpack.c.h.b16 %v180
  %v700 = vunpack.c.l.b16 %v181
  %v701 = vunpack.c.h.b16 %v181
  %v702 = vunpack.c.l.b16 %v182
  %v703 = vunpack.c.h.b16 %v182
  %v704 = vunpack.c.l.b16 %v183
  %v705 = vunpack.c.h.b16 %v183
  %v706 = vunpack.c.l.b16 %v184
  %v707 = vunpack.c.h.b16 %v184
  %v708 = vunpack.c.l.b16 %v185
  %v709 = vunpack.c.h.b16 %v185
  %v710 = vpack.c.b16 %v424, %v422
  %v711 = vpack.c.b16 %v425, %v423
  %v712 = vpack.c.b16 %v428, %v426
  %v713 = vpack.c.b16 %v429, %v427
  %v714 = vpack.c.b16 %v432, %v430
  %v715 = vpack.c.b16 %v433, %v431
  %v716 = vpack.c.b16 %v436, %v434
  %v717 = vpack.c.b16 %v437, %v435
  %v718 = vpack.c.b16 %v440, %v438
  %v719 = vpack.c.b16 %v441, %v439
  %v720 = vpack.c.b16 %v444, %v442
  %v721 = vpack.c.b16 %v445, %v443
  %v722 = vpack.c.b16 %v448, %v446
  %v723 = vpack.c.b16 %v449, %v447
  %v724 = vpack.c.b16 %v452, %v450
  %v725 = vpack.c.b16 %v453, %v451
  %v726 = vpack.c.b16 %v456, %v454
  %v727 = vpack.c.b16 %v457, %v455
  %v728 = vpack.c.b16 %v460, %v458
  %v729 = vpack.c.b16 %v461, %v459
  %v730 = vpack.c.b16 %v464, %v462
  %v731 = vpack.c.b16 %v465, %v463
  %v732 = vpack.c.b16 %v468, %v466
  %v733 = vpack.c.b16 %v469, %v467
  %v734 = vpack.c.b16 %v472, %v470
  %v735 = vpack.c.b16 %v473, %v471
  %v736 = vpack.c.b16 %v476, %v474
  %v737 = vpack.c.b16 %v477, %v475
  %v738 = vpack.c.b16 %v480, %v478
  %v739 = vpack.c.b16 %v481, %v479
  %v740 = vpack.c.b16 %v484, %v482
  %v741 = vpack.c.b16 %v485, %v483
  %v742 = vpack.c.b16 %v488, %v486
  %v743 = vpack.c.b16 %v489, %v487
  %v744 = vpack.c.b16 %v492, %v490
  %v745 = vpack.c.b16 %v493, %v491
  %v746 = vpack.c.b16 %v496, %v494
  %v747 = vpack.c.b16 %v497, %v495
  %v748 = vpack.c.b16 %v500, %v498
  %v749 = vpack.c.b16 %v501, %v499
  %v750 = vpack.c.b16 %v504, %v502
  %v751 = vpack.c.b16 %v505, %v503
  %v752 = vpack.c.b16 %v508, %v506
  %v753 = vpack.c.b16 %v509, %v507
  %v754 = vpack.c.b16 %v512, %v510
  %v755 = vpack.c.b16 %v513, %v511
  %v756 = vpack.c.b16 %v516, %v514
  %v757 = vpack.c.b16 %v517, %v515
  %v758 = vpack.c.b16 %v520, %v518
  %v759 = vpack.c.b16 %v521, %v519
  %v760 = vpack.c.b16 %v524, %v522
  %v761 = vpack.c.b16 %v525, %v523
  %v762 = vpack.c.b16 %v528, %v526
  %v763 = vpack.c.b16 %v529, %v527
  %v764 = vpack.c.b16 %v532, %v530
  %v765 = vpack.c.b16 %v533, %v531
  %v766 = vpack.c.b16 %v536, %v534
  %v767 = vpack.c.b16 %v537, %v535
  %v768 = vpack.c.b16 %v540, %v538
  %v769 = vpack.c.b16 %v541, %v539
  %v770 = vpack.c.b16 %v544, %v542
  %v771 = vpack.c.b16 %v545, %v543
  %v772 = vpack.c.b16 %v548, %v546
  %v773 = vpack.c.b16 %v549, %v547
  %v774 = vpack.c.b16 %v552, %v550
  %v775 = vpack.c.b16 %v553, %v551
  %v776 = vpack.c.b16 %v556, %v554
  %v777 = vpack.c.b16 %v557, %v555
  %v778 = vpack.c.b16 %v560, %v558
  %v779 = vpack.c.b16 %v561, %v559
  %v780 = vpack.c.b16 %v564, %v562
  %v781 = vpack.c.b16 %v565, %v563
  %v782 = vpack.c.b16 %v568, %v566
  %v783 = vpack.c.b16 %v569, %v567
  %v784 = vpack.c.b16 %v572, %v570
  %v785 = vpack.c.b16 %v573, %v571
  %v786 = vpack.c.b16 %v576, %v574
  %v787 = vpack.c.b16 %v577, %v575
  %v788 = vpack.c.b16 %v580, %v578
  %v789 = vpack.c.b16 %v581, %v579
  %v790 = vpack.c.b16 %v584, %v582
  %v791 = vpack.c.b16 %v585, %v583
  %v792 = vpack.c.b16 %v588, %v586
  %v793 = vpack.c.b16 %v589, %v587
  %v794 = vpack.c.b16 %v592, %v590
  %v795 = vpack.c.b16 %v593, %v591
  %v796 = vpack.c.b16 %v596, %v594
  %v797 = vpack.c.b16 %v597, %v595
  %v798 = vpack.c.b16 %v600, %v598
  %v799 = vpack.c.b16 %v601, %v599
  %v800 = vpack.c.b16 %v604, %v602
  %v801 = vpack.c.b16 %v605, %v603
  %v802 = vpack.c.b16 %v608, %v606
  %v803 = vpack.c.b16 %v609, %v607
  %v804 = vpack.c.b16 %v612, %v610
  %v805 = vpack.c.b16 %v613, %v611
  %v806 = vpack.c.b16 %v616, %v614
  %v807 = vpack.c.b16 %v617, %v615
  %v808 = vpack.c.b16 %v620, %v618
  %v809 = vpack.c.b16 %v621, %v619
  %v810 = vpack.c.b16 %v624, %v622
  %v811 = vpack.c.b16 %v625, %v623
  %v812 = vpack.c.b16 %v628, %v626
  %v813 = vpack.c.b16 %v629, %v627
  %v814 = vpack.c.b16 %v632, %v630
  %v815 = vpack.c.b16 %v633, %v631
  %v816 = vpack.c.b16 %v636, %v634
  %v817 = vpack.c.b16 %v637, %v635
  %v818 = vpack.c.b16 %v640, %v638
  %v819 = vpack.c.b16 %v641, %v639
  %v820 = vpack.c.b16 %v644, %v642
  %v821 = vpack.c.b16 %v645, %v643
  %v822 = vpack.c.b16 %v648, %v646
  %v823 = vpack.c.b16 %v649, %v647
  %v824 = vpack.c.b16 %v652, %v650
  %v825 = vpack.c.b16 %v653, %v651
  %v826 = vpack.c.b16 %v656, %v654
  %v827 = vpack.c.b16 %v657, %v655
  %v828 = vpack.c.b16 %v660, %v658
  %v829 = vpack.c.b16 %v661, %v659
  %v830 = vpack.c.b16 %v664, %v662
  %v831 = vpack.c.b16 %v665, %v663
  %v832 = vpack.c.b16 %v668, %v666
  %v833 = vpack.c.b16 %v669, %v667
  %v834 = vpack.c.b16 %v672, %v670
  %v835 = vpack.c.b16 %v673, %v671
  %v836 = vpack.c.b16 %v676, %v674
  %v837 = vpack.c.b16 %v677, %v675
  %v838 = vpack.c.b16 %v680, %v678
  %v839 = vpack.c.b16 %v681, %v679
  %v840 = vpack.c.b16 %v684, %v682
  %v841 = vpack.c.b16 %v685, %v683
  %v842 = vpack.c.b16 %v688, %v686
  %v843 = vpack.c.b16 %v689, %v687
  %v844 = vpack.c.b16 %v692, %v690
  %v845 = vpack.c.b16 %v693, %v691
  %v846 = vpack.c.b16 %v696, %v694
  %v847 = vpack.c.b16 %v697, %v695
  %v848 = vpack.c.b16 %v700, %v698
  %v849 = vpack.c.b16 %v701, %v699
  %v850 = vpack.c.b16 %v704, %v702
  %v851 = vpack.c.b16 %v705, %v703
  %v852 = vpack.c.b16 %v708, %v706
  %v853 = vpack.c.b16 %v709, %v707
  %998 = vmatprep.subr.bf16.mxu0 %v711
  %999 = vmatpush1.bf16.msra.mxu0 %v710
  %1000 = vmatprep.subr.bf16.mxu0 %v713
  %1001 = vmatpush1.bf16.msra.mxu0 %v712
  %1002 = vmatprep.subr.bf16.mxu0 %v715
  %1003 = vmatpush1.bf16.msra.mxu0 %v714
  %1004 = vmatprep.subr.bf16.mxu0 %v717
  %1005 = vmatpush1.bf16.msra.mxu0 %v716
  %1006 = vmatprep.subr.bf16.mxu0 %v719
  %1007 = vmatpush1.bf16.msra.mxu0 %v718
  %1008 = vmatprep.subr.bf16.mxu0 %v721
  %1009 = vmatpush1.bf16.msra.mxu0 %v720
  %1010 = vmatprep.subr.bf16.mxu0 %v723
  %1011 = vmatpush1.bf16.msra.mxu0 %v722
  %1012 = vmatprep.subr.bf16.mxu0 %v725
  %1013 = vmatpush1.bf16.msra.mxu0 %v724
  %1014 = vmatprep.subr.bf16.mxu0 %v727
  %1015 = vmatpush1.bf16.msra.mxu0 %v726
  %1016 = vmatprep.subr.bf16.mxu0 %v729
  %1017 = vmatpush1.bf16.msra.mxu0 %v728
  %1018 = vmatprep.subr.bf16.mxu0 %v731
  %1019 = vmatpush1.bf16.msra.mxu0 %v730
  %1020 = vmatprep.subr.bf16.mxu0 %v733
  %1021 = vmatpush1.bf16.msra.mxu0 %v732
  %1022 = vmatprep.subr.bf16.mxu0 %v735
  %1023 = vmatpush1.bf16.msra.mxu0 %v734
  %1024 = vmatprep.subr.bf16.mxu0 %v737
  %1025 = vmatpush1.bf16.msra.mxu0 %v736
  %1026 = vmatprep.subr.bf16.mxu0 %v739
  %1027 = vmatpush1.bf16.msra.mxu0 %v738
  %1028 = vmatprep.subr.bf16.mxu0 %v741
  %1029 = vmatpush1.bf16.msra.mxu0 %v740
  %1030 = vmatprep.mubr.bf16.mxu0 %v243
  %1031 = vmatmul.mubr.bf16.gmra.mrb[0].mxu0 %v242
  %v1032 = vpop.f32.mrb[0].mxu0
  %v1033 = vadd.f32 0.0, %v1032
  %v1034 = vpop.f32.mrb[0].mxu0
  %v1035 = vadd.f32 0.0, %v1034
  %v1036 = vpop.f32.mrb[0].mxu0
  %v1037 = vadd.f32 0.0, %v1036
  %v1038 = vpop.f32.mrb[0].mxu0
  %v1039 = vadd.f32 0.0, %v1038
  %1040 = vmatprep.mubr.bf16.mxu0 %v252
  %1041 = vmatmul.mubr.bf16.gmra.mrb[0].mxu0 %v251
  %v1042 = vpop.f32.mrb[0].mxu0
  %v1043 = vadd.f32 0.0, %v1042
  %v1044 = vpop.f32.mrb[0].mxu0
  %v1045 = vadd.f32 0.0, %v1044
  %v1046 = vpop.f32.mrb[0].mxu0
  %v1047 = vadd.f32 0.0, %v1046
  %v1048 = vpop.f32.mrb[0].mxu0
  %v1049 = vadd.f32 0.0, %v1048
  %1050 = vdwg.mxu0
  %1051 = vmatprep.subr.bf16.mxu0 %v743
  %1052 = vmatpush1.bf16.msra.mxu0 %v742
  %1053 = vmatprep.subr.bf16.mxu0 %v745
  %1054 = vmatpush1.bf16.msra.mxu0 %v744
  %1055 = vmatprep.subr.bf16.mxu0 %v747
  %1056 = vmatpush1.bf16.msra.mxu0 %v746
  %1057 = vmatprep.subr.bf16.mxu0 %v749
  %1058 = vmatpush1.bf16.msra.mxu0 %v748
  %1059 = vmatprep.subr.bf16.mxu0 %v751
  %1060 = vmatpush1.bf16.msra.mxu0 %v750
  %1061 = vmatprep.subr.bf16.mxu0 %v753
  %1062 = vmatpush1.bf16.msra.mxu0 %v752
  %1063 = vmatprep.subr.bf16.mxu0 %v755
  %1064 = vmatpush1.bf16.msra.mxu0 %v754
  %1065 = vmatprep.subr.bf16.mxu0 %v757
  %1066 = vmatpush1.bf16.msra.mxu0 %v756
  %1067 = vmatprep.subr.bf16.mxu0 %v759
  %1068 = vmatpush1.bf16.msra.mxu0 %v758
  %1069 = vmatprep.subr.bf16.mxu0 %v761
  %1070 = vmatpush1.bf16.msra.mxu0 %v760
  %1071 = vmatprep.subr.bf16.mxu0 %v763
  %1072 = vmatpush1.bf16.msra.mxu0 %v762
  %1073 = vmatprep.subr.bf16.mxu0 %v765
  %1074 = vmatpush1.bf16.msra.mxu0 %v764
  %1075 = vmatprep.subr.bf16.mxu0 %v767
  %1076 = vmatpush1.bf16.msra.mxu0 %v766
  %1077 = vmatprep.subr.bf16.mxu0 %v769
  %1078 = vmatpush1.bf16.msra.mxu0 %v768
  %1079 = vmatprep.subr.bf16.mxu0 %v771
  %1080 = vmatpush1.bf16.msra.mxu0 %v770
  %1081 = vmatprep.subr.bf16.mxu0 %v773
  %1082 = vmatpush1.bf16.msra.mxu0 %v772
  %1083 = vmatprep.mubr.bf16.mxu0 %v245
  %1084 = vmatmul.mubr.bf16.gmra.mrb[0].mxu0 %v244
  %v1085 = vpop.f32.mrb[0].mxu0
  %v1086 = vadd.f32 %v1033, %v1085
  %v1087 = vpop.f32.mrb[0].mxu0
  %v1088 = vadd.f32 %v1035, %v1087
  %v1089 = vpop.f32.mrb[0].mxu0
  %v1090 = vadd.f32 %v1037, %v1089
  %v1091 = vpop.f32.mrb[0].mxu0
  %v1092 = vadd.f32 %v1039, %v1091
  %1093 = vmatprep.mubr.bf16.mxu0 %v254
  %1094 = vmatmul.mubr.bf16.gmra.mrb[0].mxu0 %v253
  %v1095 = vpop.f32.mrb[0].mxu0
  %v1096 = vadd.f32 %v1043, %v1095
  %v1097 = vpop.f32.mrb[0].mxu0
  %v1098 = vadd.f32 %v1045, %v1097
  %v1099 = vpop.f32.mrb[0].mxu0
  %v1100 = vadd.f32 %v1047, %v1099
  %v1101 = vpop.f32.mrb[0].mxu0
  %v1102 = vadd.f32 %v1049, %v1101
  %1103 = vdwg.mxu0
  %1104 = vmatprep.subr.bf16.mxu0 %v775
  %1105 = vmatpush1.bf16.msra.mxu0 %v774
  %1106 = vmatprep.subr.bf16.mxu0 %v777
  %1107 = vmatpush1.bf16.msra.mxu0 %v776
  %1108 = vmatprep.subr.bf16.mxu0 %v779
  %1109 = vmatpush1.bf16.msra.mxu0 %v778
  %1110 = vmatprep.subr.bf16.mxu0 %v781
  %1111 = vmatpush1.bf16.msra.mxu0 %v780
  %1112 = vmatprep.subr.bf16.mxu0 %v783
  %1113 = vmatpush1.bf16.msra.mxu0 %v782
  %1114 = vmatprep.subr.bf16.mxu0 %v785
  %1115 = vmatpush1.bf16.msra.mxu0 %v784
  %1116 = vmatprep.subr.bf16.mxu0 %v787
  %1117 = vmatpush1.bf16.msra.mxu0 %v786
  %1118 = vmatprep.subr.bf16.mxu0 %v789
  %1119 = vmatpush1.bf16.msra.mxu0 %v788
  %1120 = vmatprep.subr.bf16.mxu0 %v791
  %1121 = vmatpush1.bf16.msra.mxu0 %v790
  %1122 = vmatprep.subr.bf16.mxu0 %v793
  %1123 = vmatpush1.bf16.msra.mxu0 %v792
  %1124 = vmatprep.subr.bf16.mxu0 %v795
  %1125 = vmatpush1.bf16.msra.mxu0 %v794
  %1126 = vmatprep.subr.bf16.mxu0 %v797
  %1127 = vmatpush1.bf16.msra.mxu0 %v796
  %1128 = vmatprep.subr.bf16.mxu0 %v799
  %1129 = vmatpush1.bf16.msra.mxu0 %v798
  %1130 = vmatprep.subr.bf16.mxu0 %v801
  %1131 = vmatpush1.bf16.msra.mxu0 %v800
  %1132 = vmatprep.subr.bf16.mxu0 %v803
  %1133 = vmatpush1.bf16.msra.mxu0 %v802
  %1134 = vmatprep.subr.bf16.mxu0 %v805
  %1135 = vmatpush1.bf16.msra.mxu0 %v804
  %1136 = vmatprep.mubr.bf16.mxu0 %v247
  %1137 = vmatmul.mubr.bf16.gmra.mrb[0].mxu0 %v246
  %v1138 = vpop.f32.mrb[0].mxu0
  %v1139 = vadd.f32 %v1086, %v1138
  %v1140 = vpop.f32.mrb[0].mxu0
  %v1141 = vadd.f32 %v1088, %v1140
  %v1142 = vpop.f32.mrb[0].mxu0
  %v1143 = vadd.f32 %v1090, %v1142
  %v1144 = vpop.f32.mrb[0].mxu0
  %v1145 = vadd.f32 %v1092, %v1144
  %1146 = vmatprep.mubr.bf16.mxu0 %v256
  %1147 = vmatmul.mubr.bf16.gmra.mrb[0].mxu0 %v255
  %v1148 = vpop.f32.mrb[0].mxu0
  %v1149 = vadd.f32 %v1096, %v1148
  %v1150 = vpop.f32.mrb[0].mxu0
  %v1151 = vadd.f32 %v1098, %v1150
  %v1152 = vpop.f32.mrb[0].mxu0
  %v1153 = vadd.f32 %v1100, %v1152
  %v1154 = vpop.f32.mrb[0].mxu0
  %v1155 = vadd.f32 %v1102, %v1154
  %1156 = vdwg.mxu0
  %1157 = vmatprep.subr.bf16.mxu0 %v807
  %1158 = vmatpush1.bf16.msra.mxu0 %v806
  %1159 = vmatprep.subr.bf16.mxu0 %v809
  %1160 = vmatpush1.bf16.msra.mxu0 %v808
  %1161 = vmatprep.subr.bf16.mxu0 %v811
  %1162 = vmatpush1.bf16.msra.mxu0 %v810
  %1163 = vmatprep.subr.bf16.mxu0 %v813
  %1164 = vmatpush1.bf16.msra.mxu0 %v812
  %1165 = vmatprep.subr.bf16.mxu0 %v815
  %1166 = vmatpush1.bf16.msra.mxu0 %v814
  %1167 = vmatprep.subr.bf16.mxu0 %v817
  %1168 = vmatpush1.bf16.msra.mxu0 %v816
  %1169 = vmatprep.subr.bf16.mxu0 %v819
  %1170 = vmatpush1.bf16.msra.mxu0 %v818
  %1171 = vmatprep.subr.bf16.mxu0 %v821
  %1172 = vmatpush1.bf16.msra.mxu0 %v820
  %1173 = vmatprep.subr.bf16.mxu0 %v823
  %1174 = vmatpush1.bf16.msra.mxu0 %v822
  %1175 = vmatprep.subr.bf16.mxu0 %v825
  %1176 = vmatpush1.bf16.msra.mxu0 %v824
  %1177 = vmatprep.subr.bf16.mxu0 %v827
  %1178 = vmatpush1.bf16.msra.mxu0 %v826
  %1179 = vmatprep.subr.bf16.mxu0 %v829
  %1180 = vmatpush1.bf16.msra.mxu0 %v828
  %1181 = vmatprep.subr.bf16.mxu0 %v831
  %1182 = vmatpush1.bf16.msra.mxu0 %v830
  %1183 = vmatprep.subr.bf16.mxu0 %v833
  %1184 = vmatpush1.bf16.msra.mxu0 %v832
  %1185 = vmatprep.subr.bf16.mxu0 %v835
  %1186 = vmatpush1.bf16.msra.mxu0 %v834
  %1187 = vmatprep.subr.bf16.mxu0 %v837
  %1188 = vmatpush1.bf16.msra.mxu0 %v836
  %1189 = vmatprep.mubr.bf16.mxu0 %v249
  %1190 = vmatmul.mubr.bf16.gmra.mrb[0].mxu0 %v248
  %v1191 = vpop.f32.mrb[0].mxu0
  %v1192 = vadd.f32 %v1139, %v1191
  %v1193 = vpop.f32.mrb[0].mxu0
  %v1194 = vadd.f32 %v1141, %v1193
  %v1195 = vpop.f32.mrb[0].mxu0
  %v1196 = vadd.f32 %v1143, %v1195
  %v1197 = vpop.f32.mrb[0].mxu0
  %v1198 = vadd.f32 %v1145, %v1197
  %1199 = vmatprep.mubr.bf16.mxu0 %v258
  %1200 = vmatmul.mubr.bf16.gmra.mrb[0].mxu0 %v257
  %v1201 = vpop.f32.mrb[0].mxu0
  %v1202 = vadd.f32 %v1149, %v1201
  %v1203 = vpop.f32.mrb[0].mxu0
  %v1204 = vadd.f32 %v1151, %v1203
  %v1205 = vpop.f32.mrb[0].mxu0
  %v1206 = vadd.f32 %v1153, %v1205
  %v1207 = vpop.f32.mrb[0].mxu0
  %v1208 = vadd.f32 %v1155, %v1207
  %1209 = vdwg.mxu0
  %1210 = vmatprep.subr.bf16.mxu0 %v839
  %1211 = vmatpush1.bf16.msra.mxu0 %v838
  %1212 = vmatprep.subr.bf16.mxu0 %v841
  %1213 = vmatpush1.bf16.msra.mxu0 %v840
  %1214 = vmatprep.subr.bf16.mxu0 %v843
  %1215 = vmatpush1.bf16.msra.mxu0 %v842
  %1216 = vmatprep.subr.bf16.mxu0 %v845
  %1217 = vmatpush1.bf16.msra.mxu0 %v844
  %1218 = vmatprep.subr.bf16.mxu0 %v847
  %1219 = vmatpush1.bf16.msra.mxu0 %v846
  %1220 = vmatprep.subr.bf16.mxu0 %v849
  %1221 = vmatpush1.bf16.msra.mxu0 %v848
  %1222 = vmatprep.subr.bf16.mxu0 %v851
  %1223 = vmatpush1.bf16.msra.mxu0 %v850
  %1224 = vmatprep.subr.bf16.mxu0 %v853
  %1225 = vmatpush1.bf16.msra.mxu0 %v852
  %1226 = vmatprep.subr.bf16.mxu0 0
  %1227 = vmatpush1.bf16.msra.mxu0 0
  %1228 = vmatprep.subr.bf16.mxu0 0
  %1229 = vmatpush1.bf16.msra.mxu0 0
  %1230 = vmatprep.subr.bf16.mxu0 0
  %1231 = vmatpush1.bf16.msra.mxu0 0
  %1232 = vmatprep.subr.bf16.mxu0 0
  %1233 = vmatpush1.bf16.msra.mxu0 0
  %1234 = vmatprep.subr.bf16.mxu0 0
  %1235 = vmatpush1.bf16.msra.mxu0 0
  %1236 = vmatprep.subr.bf16.mxu0 0
  %1237 = vmatpush1.bf16.msra.mxu0 0
  %1238 = vmatprep.subr.bf16.mxu0 0
  %1239 = vmatpush1.bf16.msra.mxu0 0
  %1240 = vmatprep.subr.bf16.mxu0 0
  %1241 = vmatpush1.bf16.msra.mxu0 0
  %1242 = vmatprep.mubr.bf16.mxu0 0
  %1243 = vmatmul.mubr.bf16.gmra.mrb[0].mxu0 %v250
  %v1244 = vpop.f32.mrb[0].mxu0
  %v1245 = vadd.f32 %v1192, %v1244
  %v1246 = vpop.f32.mrb[0].mxu0
  %v1247 = vadd.f32 %v1194, %v1246
  %v1248 = vpop.f32.mrb[0].mxu0
  %v1249 = vadd.f32 %v1196, %v1248
  %v1250 = vpop.f32.mrb[0].mxu0
  %v1251 = vadd.f32 %v1198, %v1250
  %1252 = vmatprep.mubr.bf16.mxu0 0
  %1253 = vmatmul.mubr.bf16.gmra.mrb[0].mxu0 %v259
  %v1254 = vpop.f32.mrb[0].mxu0
  %v1255 = vadd.f32 %v1202, %v1254
  %v1256 = vpop.f32.mrb[0].mxu0
  %v1257 = vadd.f32 %v1204, %v1256
  %v1258 = vpop.f32.mrb[0].mxu0
  %v1259 = vadd.f32 %v1206, %v1258
  %v1260 = vpop.f32.mrb[0].mxu0
  %v1261 = vadd.f32 %v1208, %v1260
  %1262 = vdwg.mxu0
  %s1263 = sld [smem:[#allocation2]]
  %v1264 = vadd.f32 %v1245, %v1249
  %v1265 = vadd.f32 %v1264, %v1255
  %v1266 = vadd.f32 %v1265, %v1259
  %v1267 = vrot.slane %v1266, 4
  %v1268 = vadd.f32 %v1266, %v1267
  %v1269 = vrot.slane %v1268, 2
  %v1270 = vadd.f32 %v1268, %v1269
  %v1271 = vrot.slane %v1270, 1
  %v1272 = vadd.f32 %v1270, %v1271
  %v1273 = vadd.f32 %v1247, %v1251
  %v1274 = vadd.f32 %v1273, %v1257
  %v1275 = vadd.f32 %v1274, %v1261
  %v1276 = vrot.slane %v1275, 4
  %v1277 = vadd.f32 %v1275, %v1276
  %v1278 = vrot.slane %v1277, 2
  %v1279 = vadd.f32 %v1277, %v1278
  %v1280 = vrot.slane %v1279, 1
  %v1281 = vadd.f32 %v1279, %v1280
  %v1282 = vmul.f32 %v1245, %v1245
  %v1283 = vmul.f32 %v1247, %v1247
  %v1284 = vmul.f32 %v1249, %v1249
  %v1285 = vmul.f32 %v1251, %v1251
  %v1286 = vmul.f32 %v1255, %v1255
  %v1287 = vmul.f32 %v1257, %v1257
  %v1288 = vmul.f32 %v1259, %v1259
  %v1289 = vmul.f32 %v1261, %v1261
  %v1290 = vadd.f32 %v1282, %v1284
  %v1291 = vadd.f32 %v1290, %v1286
  %v1292 = vadd.f32 %v1291, %v1288
  %v1293 = vrot.slane %v1292, 4
  %v1294 = vadd.f32 %v1292, %v1293
  %v1295 = vrot.slane %v1294, 2
  %v1296 = vadd.f32 %v1294, %v1295
  %v1297 = vrot.slane %v1296, 1
  %v1298 = vadd.f32 %v1296, %v1297
  %v1299 = vadd.f32 %v1283, %v1285
  %v1300 = vadd.f32 %v1299, %v1287
  %v1301 = vadd.f32 %v1300, %v1289
  %v1302 = vrot.slane %v1301, 4
  %v1303 = vadd.f32 %v1301, %v1302
  %v1304 = vrot.slane %v1303, 2
  %v1305 = vadd.f32 %v1303, %v1304
  %v1306 = vrot.slane %v1305, 1
  %v1307 = vadd.f32 %v1305, %v1306
  %1309 = vrot.lane.b32.xlu0 %v1272, 64
  %v1310 = vpop.permute.xlu0 %1309
  %v1312 = vadd.f32 %v1272, %v1310
  %v1313 = vadd.f32 %v1312, %v1281
  %1315 = vrot.lane.b32.xlu0 %v1281, 64
  %v1316 = vpop.permute.xlu0 %1315
  %v1318 = vadd.f32 %v1313, %v1316
  %1320 = vrot.lane.b32.xlu0 %v1298, 64
  %v1321 = vpop.permute.xlu0 %1320
  %v1323 = vadd.f32 %v1298, %v1321
  %v1324 = vadd.f32 %v1323, %v1307
  %1326 = vrot.lane.b32.xlu0 %v1307, 64
  %v1327 = vpop.permute.xlu0 %1326
  %v1329 = vadd.f32 %v1324, %v1327
  %v1330 = vld [vmem:[%s3] sm:$0x1]
  %v1331 = vld [vmem:[%s4] sm:$0x1]
  %v1332 = vstv %s1263
  %v1333 = vmul.f32 %v1318, %v1332
  %v1334 = vmul.f32 %v1329, %v1332
  %v1335 = vmul.f32 %v1333, %v1333
  %v1336 = vsub.f32 %v1334, %v1335
  %v1337 = vmax.f32 %v1336, 0.0
  %v1338 = vadd.f32 %v1337, 1e-05
  %v1339 = vrsqrt.pop %v1338
  %v1340 = vmul.f32 %v1330, %v1339
  %v1341 = vmul.f32 %v1333, %v1340
  %v1342 = vsub.f32 %v1331, %v1341
  %v1344 = vlaneseq
  %v1345 = vshrl.u32 %v1344, 7
  %v1346 = vsub.s32 0, %v1345
  %v1347 = vrot.slane %v1340, %v1346
  %1348 = vrot.lane.b32.xlu0 %v1347, 64
  %v1349 = vpop.permute.xlu0 %1348
  %vm1351 = vcmask 523264
  %v1352 = vsel %vm1351, %v1340, %v1349
  %v1354 = vlaneseq
  %v1355 = vshrl.u32 %v1354, 7
  %v1356 = vsub.s32 0, %v1355
  %v1357 = vrot.slane %v1342, %v1356
  %1358 = vrot.lane.b32.xlu0 %v1357, 64
  %v1359 = vpop.permute.xlu0 %1358
  %v1361 = vsel %vm1351, %v1342, %v1359
  %v1362 = vlaneseq
  %v1363 = vshrl.u32 %v1362, 7
  %v1364 = vsub.s32 0, %v1363
  %v1365 = vrot.slane %v1352, %v1364
  %v1366 = vmul.f32 %v1245, %v1365
  %v1367 = vmul.f32 %v1247, %v1365
  %v1368 = vmul.f32 %v1249, %v1365
  %v1369 = vmul.f32 %v1251, %v1365
  %v1370 = vmul.f32 %v1255, %v1365
  %v1371 = vmul.f32 %v1257, %v1365
  %v1372 = vmul.f32 %v1259, %v1365
  %v1373 = vmul.f32 %v1261, %v1365
  %v1374 = vlaneseq
  %v1375 = vshrl.u32 %v1374, 7
  %v1376 = vsub.s32 0, %v1375
  %v1377 = vrot.slane %v1361, %v1376
  %v1378 = vadd.f32 %v1366, %v1377
  %v1379 = vadd.f32 %v1367, %v1377
  %v1380 = vadd.f32 %v1368, %v1377
  %v1381 = vadd.f32 %v1369, %v1377
  %v1382 = vadd.f32 %v1370, %v1377
  %v1383 = vadd.f32 %v1371, %v1377
  %v1384 = vadd.f32 %v1372, %v1377
  %v1385 = vadd.f32 %v1373, %v1377
  %v1386 = vmax.f32 %v1378, 0.0
  %v1387 = vmax.f32 %v1379, 0.0
  %v1388 = vmax.f32 %v1380, 0.0
  %v1389 = vmax.f32 %v1381, 0.0
  %v1390 = vmax.f32 %v1382, 0.0
  %v1391 = vmax.f32 %v1383, 0.0
  %v1392 = vmax.f32 %v1384, 0.0
  %v1393 = vmax.f32 %v1385, 0.0
  %v1394 = vpack.c.bf16 %v1388, %v1386
  %v1395 = vpack.c.bf16 %v1389, %v1387
  %v1396 = vpack.c.bf16 %v1392, %v1390
  %v1397 = vpack.c.bf16 %v1393, %v1391
  %v1402 = vunpack.c.l.b16 %v1394
  %v1403 = vunpack.c.l.b16 %v1395
  %v1404 = vunpack.c.h.b16 %v1394
  %v1405 = vunpack.c.h.b16 %v1395
  %v1406 = vunpack.c.l.b16 %v1396
  %v1407 = vunpack.c.l.b16 %v1397
  %v1408 = vunpack.c.h.b16 %v1396
  %v1409 = vunpack.c.h.b16 %v1397
  %v1410 = vpack.c.b16 %v1403, %v1402
  %v1411 = vpack.c.b16 %v1405, %v1404
  %v1412 = vpack.c.b16 %v1407, %v1406
  %v1413 = vpack.c.b16 %v1409, %v1408
  %1418 = vst [vmem:[%s5] sm:$0xff] %v1410
  %1419 = vst [vmem:[%s5 + $0x8] sm:$0xff] %v1411
  %1420 = vst [vmem:[%s5 + $0x10] sm:$0xff] %v1412
  %1421 = vst [vmem:[%s5 + $0x18] sm:$0xff] %v1413
  // Predicated region
  $region22: #{_lambda_.6} parent=0 // pred_check
    _
  $region23: #{_lambda_.6} parent=0 // pred_check_branch
    %1423 = sbr.rel (0) target = $region25
  $region24: #{_lambda_.6} parent=0 // pred_region
    _
  $region25: #{_lambda_.6} parent=0 // pred_fallthru
    _
  // Predicated region
  $region26: #{_lambda_.6} parent=0 // pred_check
    _
  $region27: #{_lambda_.6} parent=0 // pred_check_branch
    %1425 = sbr.rel (0) target = $region29
  $region28: #{_lambda_.6} parent=0 // pred_region
    _
  $region29: #{_lambda_.6} parent=0 // pred_fallthru
    _

// kernel: _lambda_.7
$region0: #{_lambda_.7}
  #allocation0 [shape = 'u32[]', space=smem, size = 0x4, offset = 0x4, fixed_abs, tag = 'smem constant byte address 0x4 - core index']
  #allocation1 [shape = 'u32[144,128]{1,0:T(1,128)}', space=vmem, size = 0x12000, scoped, tag = 'internal scratch']
  #allocation2 [shape = 'f32[1,1]{1,0:T(1,128)S(6)}', space=smem, size = 0x200, scoped, tag = 'scoped memory for _lambda_.7']
  %s0 = inlined_call_operand.<no memory space> [shape: f32[1,1], index: 0, kind: input, shape index: {}]
  %s1 = inlined_call_operand.vmem [shape: bf16[128,640], index: 1, kind: input, shape index: {}]
  %s2 = inlined_call_operand.vmem [shape: bf16[640,128], index: 2, kind: input, shape index: {}]
  %s3 = inlined_call_operand.vmem [shape: f32[1,32], index: 3, kind: input, shape index: {}]
  %s4 = inlined_call_operand.vmem [shape: f32[1,32], index: 4, kind: input, shape index: {}]
  %s5 = inlined_call_operand.vmem [shape: bf16[128,128], index: 5, kind: output, shape index: {}]
  %s6 = sld [smem:[#allocation0]]
  $region30: #{_lambda_.7} parent=0
    _
  %s8 = ssub.s32 1, %s6
  %s9 = scalar_select 0, %s8, %s6
  %10 = sst [smem:[#allocation2]] %s0
  // Predicated region
  $region2: #{_lambda_.7} parent=0 // pred_check
    _
  $region3: #{_lambda_.7} parent=0 // pred_check_branch
    %12 = sbr.rel (0) target = $region5
  $region4: #{_lambda_.7} parent=0 // pred_region
    _
  $region5: #{_lambda_.7} parent=0 // pred_fallthru
    _
  // Predicated region
  $region6: #{_lambda_.7} parent=0 // pred_check
    _
  $region7: #{_lambda_.7} parent=0 // pred_check_branch
    %14 = sbr.rel (0) target = $region9
  $region8: #{_lambda_.7} parent=0 // pred_region
    _
  $region9: #{_lambda_.7} parent=0 // pred_fallthru
    _
  // Predicated region
  $region10: #{_lambda_.7} parent=0 // pred_check
    _
  $region11: #{_lambda_.7} parent=0 // pred_check_branch
    %16 = sbr.rel (0) target = $region13
  $region12: #{_lambda_.7} parent=0 // pred_region
    _
  $region13: #{_lambda_.7} parent=0 // pred_fallthru
    _
  // Predicated region
  $region14: #{_lambda_.7} parent=0 // pred_check
    _
  $region15: #{_lambda_.7} parent=0 // pred_check_branch
    %18 = sbr.rel (0) target = $region17
  $region16: #{_lambda_.7} parent=0 // pred_region
    _
  $region17: #{_lambda_.7} parent=0 // pred_fallthru
    _
  // Predicated region
  $region18: #{_lambda_.7} parent=0 // pred_check
    _
  $region19: #{_lambda_.7} parent=0 // pred_check_branch
    %20 = sbr.rel (0) target = $region21
  $region20: #{_lambda_.7} parent=0 // pred_region
    _
  $region21: #{_lambda_.7} parent=0 // pred_fallthru
    _
  %v22 = vld [vmem:[%s1] sm:$0xff]
  %v23 = vld [vmem:[%s1 + $0x8] sm:$0xff]
  %v24 = vld [vmem:[%s1 + $0x10] sm:$0xf]
  %v25 = vld [vmem:[%s1 + $0x14] sm:$0xff]
  %v26 = vld [vmem:[%s1 + $0x1c] sm:$0xff]
  %v27 = vld [vmem:[%s1 + $0x24] sm:$0xf]
  %v28 = vld [vmem:[%s1 + $0x28] sm:$0xff]
  %v29 = vld [vmem:[%s1 + $0x30] sm:$0xff]
  %v30 = vld [vmem:[%s1 + $0x38] sm:$0xf]
  %v31 = vld [vmem:[%s1 + $0x3c] sm:$0xff]
  %v32 = vld [vmem:[%s1 + $0x44] sm:$0xff]
  %v33 = vld [vmem:[%s1 + $0x4c] sm:$0xf]
  %v34 = vld [vmem:[%s1 + $0x50] sm:$0xff]
  %v35 = vld [vmem:[%s1 + $0x58] sm:$0xff]
  %v36 = vld [vmem:[%s1 + $0x60] sm:$0xf]
  %v37 = vld [vmem:[%s1 + $0x64] sm:$0xff]
  %v38 = vld [vmem:[%s1 + $0x6c] sm:$0xff]
  %v39 = vld [vmem:[%s1 + $0x74] sm:$0xf]
  %v40 = vld [vmem:[%s1 + $0x78] sm:$0xff]
  %v41 = vld [vmem:[%s1 + $0x80] sm:$0xff]
  %v42 = vld [vmem:[%s1 + $0x88] sm:$0xf]
  %v43 = vld [vmem:[%s1 + $0x8c] sm:$0xff]
  %v44 = vld [vmem:[%s1 + $0x94] sm:$0xff]
  %v45 = vld [vmem:[%s1 + $0x9c] sm:$0xf]
  %v46 = vld [vmem:[%s1 + $0xa0] sm:$0xff]
  %v47 = vld [vmem:[%s1 + $0xa8] sm:$0xff]
  %v48 = vld [vmem:[%s1 + $0xb0] sm:$0xf]
  %v49 = vld [vmem:[%s1 + $0xb4] sm:$0xff]
  %v50 = vld [vmem:[%s1 + $0xbc] sm:$0xff]
  %v51 = vld [vmem:[%s1 + $0xc4] sm:$0xf]
  %v52 = vld [vmem:[%s1 + $0xc8] sm:$0xff]
  %v53 = vld [vmem:[%s1 + $0xd0] sm:$0xff]
  %v54 = vld [vmem:[%s1 + $0xd8] sm:$0xf]
  %v55 = vld [vmem:[%s1 + $0xdc] sm:$0xff]
  %v56 = vld [vmem:[%s1 + $0xe4] sm:$0xff]
  %v57 = vld [vmem:[%s1 + $0xec] sm:$0xf]
  %v58 = vld [vmem:[%s1 + $0xf0] sm:$0xff]
  %v59 = vld [vmem:[%s1 + $0xf8] sm:$0xff]
  %v60 = vld [vmem:[%s1 + $0x100] sm:$0xf]
  %v61 = vld [vmem:[%s1 + $0x104] sm:$0xff]
  %v62 = vld [vmem:[%s1 + $0x10c] sm:$0xff]
  %v63 = vld [vmem:[%s1 + $0x114] sm:$0xf]
  %v64 = vld [vmem:[%s1 + $0x118] sm:$0xff]
  %v65 = vld [vmem:[%s1 + $0x120] sm:$0xff]
  %v66 = vld [vmem:[%s1 + $0x128] sm:$0xf]
  %v67 = vld [vmem:[%s1 + $0x12c] sm:$0xff]
  %v68 = vld [vmem:[%s1 + $0x134] sm:$0xff]
  %v69 = vld [vmem:[%s1 + $0x13c] sm:$0xf]
  %v70 = vld [vmem:[%s2] sm:$0xf]
  %v71 = vld [vmem:[%s2 + $0x4] sm:$0xf]
  %v72 = vld [vmem:[%s2 + $0x8] sm:$0xf]
  %v73 = vld [vmem:[%s2 + $0xc] sm:$0xf]
  %v74 = vld [vmem:[%s2 + $0x10] sm:$0xf]
  %v75 = vld [vmem:[%s2 + $0x14] sm:$0xf]
  %v76 = vld [vmem:[%s2 + $0x18] sm:$0xf]
  %v77 = vld [vmem:[%s2 + $0x1c] sm:$0xf]
  %v78 = vld [vmem:[%s2 + $0x20] sm:$0xf]
  %v79 = vld [vmem:[%s2 + $0x24] sm:$0xf]
  %v80 = vld [vmem:[%s2 + $0x28] sm:$0xf]
  %v81 = vld [vmem:[%s2 + $0x2c] sm:$0xf]
  %v82 = vld [vmem:[%s2 + $0x30] sm:$0xf]
  %v83 = vld [vmem:[%s2 + $0x34] sm:$0xf]
  %v84 = vld [vmem:[%s2 + $0x38] sm:$0xf]
  %v85 = vld [vmem:[%s2 + $0x3c] sm:$0xf]
  %v86 = vld [vmem:[%s2 + $0x40] sm:$0xf]
  %v87 = vld [vmem:[%s2 + $0x44] sm:$0xf]
  %v88 = vld [vmem:[%s2 + $0x48] sm:$0xf]
  %v89 = vld [vmem:[%s2 + $0x4c] sm:$0xf]
  %v90 = vld [vmem:[%s2 + $0x50] sm:$0xf]
  %v91 = vld [vmem:[%s2 + $0x54] sm:$0xf]
  %v92 = vld [vmem:[%s2 + $0x58] sm:$0xf]
  %v93 = vld [vmem:[%s2 + $0x5c] sm:$0xf]
  %v94 = vld [vmem:[%s2 + $0x60] sm:$0xf]
  %v95 = vld [vmem:[%s2 + $0x64] sm:$0xf]
  %v96 = vld [vmem:[%s2 + $0x68] sm:$0xf]
  %v97 = vld [vmem:[%s2 + $0x6c] sm:$0xf]
  %v98 = vld [vmem:[%s2 + $0x70] sm:$0xf]
  %v99 = vld [vmem:[%s2 + $0x74] sm:$0xf]
  %v100 = vld [vmem:[%s2 + $0x78] sm:$0xf]
  %v101 = vld [vmem:[%s2 + $0x7c] sm:$0xf]
  %v102 = vld [vmem:[%s2 + $0x80] sm:$0xf]
  %v103 = vld [vmem:[%s2 + $0x84] sm:$0xf]
  %v104 = vld [vmem:[%s2 + $0x88] sm:$0xf]
  %v105 = vld [vmem:[%s2 + $0x8c] sm:$0xf]
  %v106 = vld [vmem:[%s2 + $0x90] sm:$0xf]
  %v107 = vld [vmem:[%s2 + $0x94] sm:$0xf]
  %v108 = vld [vmem:[%s2 + $0x98] sm:$0xf]
  %v109 = vld [vmem:[%s2 + $0x9c] sm:$0xf]
  %v110 = vld [vmem:[%s2 + $0xa0] sm:$0xf]
  %v111 = vld [vmem:[%s2 + $0xa4] sm:$0xf]
  %v112 = vld [vmem:[%s2 + $0xa8] sm:$0xf]
  %v113 = vld [vmem:[%s2 + $0xac] sm:$0xf]
  %v114 = vld [vmem:[%s2 + $0xb0] sm:$0xf]
  %v115 = vld [vmem:[%s2 + $0xb4] sm:$0xf]
  %v116 = vld [vmem:[%s2 + $0xb8] sm:$0xf]
  %v117 = vld [vmem:[%s2 + $0xbc] sm:$0xf]
  %v118 = vld [vmem:[%s2 + $0xc0] sm:$0xf]
  %v119 = vld [vmem:[%s2 + $0xc4] sm:$0xf]
  %v120 = vld [vmem:[%s2 + $0xc8] sm:$0xf]
  %v121 = vld [vmem:[%s2 + $0xcc] sm:$0xf]
  %v122 = vld [vmem:[%s2 + $0xd0] sm:$0xf]
  %v123 = vld [vmem:[%s2 + $0xd4] sm:$0xf]
  %v124 = vld [vmem:[%s2 + $0xd8] sm:$0xf]
  %v125 = vld [vmem:[%s2 + $0xdc] sm:$0xf]
  %v126 = vld [vmem:[%s2 + $0xe0] sm:$0xf]
  %v127 = vld [vmem:[%s2 + $0xe4] sm:$0xf]
  %v128 = vld [vmem:[%s2 + $0xe8] sm:$0xf]
  %v129 = vld [vmem:[%s2 + $0xec] sm:$0xf]
  %v130 = vld [vmem:[%s2 + $0xf0] sm:$0xf]
  %v131 = vld [vmem:[%s2 + $0xf4] sm:$0xf]
  %v132 = vld [vmem:[%s2 + $0xf8] sm:$0xf]
  %v133 = vld [vmem:[%s2 + $0xfc] sm:$0xf]
  %v134 = vld [vmem:[%s2 + $0x100] sm:$0xf]
  %v135 = vld [vmem:[%s2 + $0x104] sm:$0xf]
  %v136 = vld [vmem:[%s2 + $0x108] sm:$0xf]
  %v137 = vld [vmem:[%s2 + $0x10c] sm:$0xf]
  %v138 = vld [vmem:[%s2 + $0x110] sm:$0xf]
  %v139 = vld [vmem:[%s2 + $0x114] sm:$0xf]
  %v140 = vld [vmem:[%s2 + $0x118] sm:$0xf]
  %v141 = vld [vmem:[%s2 + $0x11c] sm:$0xf]
  %v142 = vld [vmem:[%s2 + $0x120] sm:$0xf]
  %v143 = vld [vmem:[%s2 + $0x124] sm:$0xf]
  %v144 = vld [vmem:[%s2 + $0x128] sm:$0xf]
  %v145 = vld [vmem:[%s2 + $0x12c] sm:$0xf]
  %v146 = vld [vmem:[%s2 + $0x130] sm:$0xf]
  %v147 = vld [vmem:[%s2 + $0x134] sm:$0xf]
  %v148 = vld [vmem:[%s2 + $0x138] sm:$0xf]
  %v149 = vld [vmem:[%s2 + $0x13c] sm:$0xf]
  %v198 = vunpack.c.l.b16 %v22
  %v199 = vunpack.c.h.b16 %v22
  %v200 = vunpack.c.l.b16 %v23
  %v201 = vunpack.c.h.b16 %v23
  %v202 = vunpack.c.l.b16 %v24
  %v203 = vunpack.c.l.b16 %v25
  %v204 = vunpack.c.h.b16 %v25
  %v205 = vunpack.c.l.b16 %v26
  %v206 = vunpack.c.h.b16 %v26
  %v207 = vunpack.c.l.b16 %v27
  %v208 = vunpack.c.l.b16 %v28
  %v209 = vunpack.c.h.b16 %v28
  %v210 = vunpack.c.l.b16 %v29
  %v211 = vunpack.c.h.b16 %v29
  %v212 = vunpack.c.l.b16 %v30
  %v213 = vunpack.c.l.b16 %v31
  %v214 = vunpack.c.h.b16 %v31
  %v215 = vunpack.c.l.b16 %v32
  %v216 = vunpack.c.h.b16 %v32
  %v217 = vunpack.c.l.b16 %v33
  %v218 = vunpack.c.l.b16 %v34
  %v219 = vunpack.c.h.b16 %v34
  %v220 = vunpack.c.l.b16 %v35
  %v221 = vunpack.c.h.b16 %v35
  %v222 = vunpack.c.l.b16 %v36
  %v223 = vunpack.c.l.b16 %v37
  %v224 = vunpack.c.h.b16 %v37
  %v225 = vunpack.c.l.b16 %v38
  %v226 = vunpack.c.h.b16 %v38
  %v227 = vunpack.c.l.b16 %v39
  %v228 = vunpack.c.l.b16 %v40
  %v229 = vunpack.c.h.b16 %v40
  %v230 = vunpack.c.l.b16 %v41
  %v231 = vunpack.c.h.b16 %v41
  %v232 = vunpack.c.l.b16 %v42
  %v233 = vunpack.c.l.b16 %v43
  %v234 = vunpack.c.h.b16 %v43
  %v235 = vunpack.c.l.b16 %v44
  %v236 = vunpack.c.h.b16 %v44
  %v237 = vunpack.c.l.b16 %v45
  %v238 = vunpack.c.l.b16 %v46
  %v239 = vunpack.c.h.b16 %v46
  %v240 = vunpack.c.l.b16 %v47
  %v241 = vunpack.c.h.b16 %v47
  %v242 = vunpack.c.l.b16 %v48
  %v243 = vunpack.c.l.b16 %v49
  %v244 = vunpack.c.h.b16 %v49
  %v245 = vunpack.c.l.b16 %v50
  %v246 = vunpack.c.h.b16 %v50
  %v247 = vunpack.c.l.b16 %v51
  %v248 = vunpack.c.l.b16 %v52
  %v249 = vunpack.c.h.b16 %v52
  %v250 = vunpack.c.l.b16 %v53
  %v251 = vunpack.c.h.b16 %v53
  %v252 = vunpack.c.l.b16 %v54
  %v253 = vunpack.c.l.b16 %v55
  %v254 = vunpack.c.h.b16 %v55
  %v255 = vunpack.c.l.b16 %v56
  %v256 = vunpack.c.h.b16 %v56
  %v257 = vunpack.c.l.b16 %v57
  %v258 = vunpack.c.l.b16 %v58
  %v259 = vunpack.c.h.b16 %v58
  %v260 = vunpack.c.l.b16 %v59
  %v261 = vunpack.c.h.b16 %v59
  %v262 = vunpack.c.l.b16 %v60
  %v263 = vunpack.c.l.b16 %v61
  %v264 = vunpack.c.h.b16 %v61
  %v265 = vunpack.c.l.b16 %v62
  %v266 = vunpack.c.h.b16 %v62
  %v267 = vunpack.c.l.b16 %v63
  %v268 = vunpack.c.l.b16 %v64
  %v269 = vunpack.c.h.b16 %v64
  %v270 = vunpack.c.l.b16 %v65
  %v271 = vunpack.c.h.b16 %v65
  %v272 = vunpack.c.l.b16 %v66
  %v273 = vunpack.c.l.b16 %v67
  %v274 = vunpack.c.h.b16 %v67
  %v275 = vunpack.c.l.b16 %v68
  %v276 = vunpack.c.h.b16 %v68
  %v277 = vunpack.c.l.b16 %v69
  %v278 = vpack.c.b16 %v203, %v198
  %v279 = vpack.c.b16 %v204, %v199
  %v280 = vpack.c.b16 %v205, %v200
  %v281 = vpack.c.b16 %v206, %v201
  %v282 = vpack.c.b16 %v207, %v202
  %v283 = vpack.c.b16 %v213, %v208
  %v284 = vpack.c.b16 %v214, %v209
  %v285 = vpack.c.b16 %v215, %v210
  %v286 = vpack.c.b16 %v216, %v211
  %v287 = vpack.c.b16 %v217, %v212
  %v288 = vpack.c.b16 %v223, %v218
  %v289 = vpack.c.b16 %v224, %v219
  %v290 = vpack.c.b16 %v225, %v220
  %v291 = vpack.c.b16 %v226, %v221
  %v292 = vpack.c.b16 %v227, %v222
  %v293 = vpack.c.b16 %v233, %v228
  %v294 = vpack.c.b16 %v234, %v229
  %v295 = vpack.c.b16 %v235, %v230
  %v296 = vpack.c.b16 %v236, %v231
  %v297 = vpack.c.b16 %v237, %v232
  %v298 = vpack.c.b16 %v243, %v238
  %v299 = vpack.c.b16 %v244, %v239
  %v300 = vpack.c.b16 %v245, %v240
  %v301 = vpack.c.b16 %v246, %v241
  %v302 = vpack.c.b16 %v247, %v242
  %v303 = vpack.c.b16 %v253, %v248
  %v304 = vpack.c.b16 %v254, %v249
  %v305 = vpack.c.b16 %v255, %v250
  %v306 = vpack.c.b16 %v256, %v251
  %v307 = vpack.c.b16 %v257, %v252
  %v308 = vpack.c.b16 %v263, %v258
  %v309 = vpack.c.b16 %v264, %v259
  %v310 = vpack.c.b16 %v265, %v260
  %v311 = vpack.c.b16 %v266, %v261
  %v312 = vpack.c.b16 %v267, %v262
  %v313 = vpack.c.b16 %v273, %v268
  %v314 = vpack.c.b16 %v274, %v269
  %v315 = vpack.c.b16 %v275, %v270
  %v316 = vpack.c.b16 %v276, %v271
  %v317 = vpack.c.b16 %v277, %v272
  %v438 = vunpack.c.l.b16 %v70
  %v439 = vunpack.c.l.b16 %v71
  %v440 = vunpack.c.l.b16 %v72
  %v441 = vunpack.c.l.b16 %v73
  %v442 = vunpack.c.l.b16 %v74
  %v443 = vunpack.c.l.b16 %v75
  %v444 = vunpack.c.l.b16 %v76
  %v445 = vunpack.c.l.b16 %v77
  %v446 = vunpack.c.l.b16 %v78
  %v447 = vunpack.c.l.b16 %v79
  %v448 = vunpack.c.l.b16 %v80
  %v449 = vunpack.c.l.b16 %v81
  %v450 = vunpack.c.l.b16 %v82
  %v451 = vunpack.c.l.b16 %v83
  %v452 = vunpack.c.l.b16 %v84
  %v453 = vunpack.c.l.b16 %v85
  %v454 = vunpack.c.l.b16 %v86
  %v455 = vunpack.c.l.b16 %v87
  %v456 = vunpack.c.l.b16 %v88
  %v457 = vunpack.c.l.b16 %v89
  %v458 = vunpack.c.l.b16 %v90
  %v459 = vunpack.c.l.b16 %v91
  %v460 = vunpack.c.l.b16 %v92
  %v461 = vunpack.c.l.b16 %v93
  %v462 = vunpack.c.l.b16 %v94
  %v463 = vunpack.c.l.b16 %v95
  %v464 = vunpack.c.l.b16 %v96
  %v465 = vunpack.c.l.b16 %v97
  %v466 = vunpack.c.l.b16 %v98
  %v467 = vunpack.c.l.b16 %v99
  %v468 = vunpack.c.l.b16 %v100
  %v469 = vunpack.c.l.b16 %v101
  %v470 = vunpack.c.l.b16 %v102
  %v471 = vunpack.c.l.b16 %v103
  %v472 = vunpack.c.l.b16 %v104
  %v473 = vunpack.c.l.b16 %v105
  %v474 = vunpack.c.l.b16 %v106
  %v475 = vunpack.c.l.b16 %v107
  %v476 = vunpack.c.l.b16 %v108
  %v477 = vunpack.c.l.b16 %v109
  %v478 = vunpack.c.l.b16 %v110
  %v479 = vunpack.c.l.b16 %v111
  %v480 = vunpack.c.l.b16 %v112
  %v481 = vunpack.c.l.b16 %v113
  %v482 = vunpack.c.l.b16 %v114
  %v483 = vunpack.c.l.b16 %v115
  %v484 = vunpack.c.l.b16 %v116
  %v485 = vunpack.c.l.b16 %v117
  %v486 = vunpack.c.l.b16 %v118
  %v487 = vunpack.c.l.b16 %v119
  %v488 = vunpack.c.l.b16 %v120
  %v489 = vunpack.c.l.b16 %v121
  %v490 = vunpack.c.l.b16 %v122
  %v491 = vunpack.c.l.b16 %v123
  %v492 = vunpack.c.l.b16 %v124
  %v493 = vunpack.c.l.b16 %v125
  %v494 = vunpack.c.l.b16 %v126
  %v495 = vunpack.c.l.b16 %v127
  %v496 = vunpack.c.l.b16 %v128
  %v497 = vunpack.c.l.b16 %v129
  %v498 = vunpack.c.l.b16 %v130
  %v499 = vunpack.c.l.b16 %v131
  %v500 = vunpack.c.l.b16 %v132
  %v501 = vunpack.c.l.b16 %v133
  %v502 = vunpack.c.l.b16 %v134
  %v503 = vunpack.c.l.b16 %v135
  %v504 = vunpack.c.l.b16 %v136
  %v505 = vunpack.c.l.b16 %v137
  %v506 = vunpack.c.l.b16 %v138
  %v507 = vunpack.c.l.b16 %v139
  %v508 = vunpack.c.l.b16 %v140
  %v509 = vunpack.c.l.b16 %v141
  %v510 = vunpack.c.l.b16 %v142
  %v511 = vunpack.c.l.b16 %v143
  %v512 = vunpack.c.l.b16 %v144
  %v513 = vunpack.c.l.b16 %v145
  %v514 = vunpack.c.l.b16 %v146
  %v515 = vunpack.c.l.b16 %v147
  %v516 = vunpack.c.l.b16 %v148
  %v517 = vunpack.c.l.b16 %v149
  %v518 = vpack.c.b16 %v439, %v438
  %v519 = vpack.c.b16 %v441, %v440
  %v520 = vpack.c.b16 %v443, %v442
  %v521 = vpack.c.b16 %v445, %v444
  %v522 = vpack.c.b16 %v447, %v446
  %v523 = vpack.c.b16 %v449, %v448
  %v524 = vpack.c.b16 %v451, %v450
  %v525 = vpack.c.b16 %v453, %v452
  %v526 = vpack.c.b16 %v455, %v454
  %v527 = vpack.c.b16 %v457, %v456
  %v528 = vpack.c.b16 %v459, %v458
  %v529 = vpack.c.b16 %v461, %v460
  %v530 = vpack.c.b16 %v463, %v462
  %v531 = vpack.c.b16 %v465, %v464
  %v532 = vpack.c.b16 %v467, %v466
  %v533 = vpack.c.b16 %v469, %v468
  %v534 = vpack.c.b16 %v471, %v470
  %v535 = vpack.c.b16 %v473, %v472
  %v536 = vpack.c.b16 %v475, %v474
  %v537 = vpack.c.b16 %v477, %v476
  %v538 = vpack.c.b16 %v479, %v478
  %v539 = vpack.c.b16 %v481, %v480
  %v540 = vpack.c.b16 %v483, %v482
  %v541 = vpack.c.b16 %v485, %v484
  %v542 = vpack.c.b16 %v487, %v486
  %v543 = vpack.c.b16 %v489, %v488
  %v544 = vpack.c.b16 %v491, %v490
  %v545 = vpack.c.b16 %v493, %v492
  %v546 = vpack.c.b16 %v495, %v494
  %v547 = vpack.c.b16 %v497, %v496
  %v548 = vpack.c.b16 %v499, %v498
  %v549 = vpack.c.b16 %v501, %v500
  %v550 = vpack.c.b16 %v503, %v502
  %v551 = vpack.c.b16 %v505, %v504
  %v552 = vpack.c.b16 %v507, %v506
  %v553 = vpack.c.b16 %v509, %v508
  %v554 = vpack.c.b16 %v511, %v510
  %v555 = vpack.c.b16 %v513, %v512
  %v556 = vpack.c.b16 %v515, %v514
  %v557 = vpack.c.b16 %v517, %v516
  %598 = vmatprep.subr.bf16.mxu0 0
  %599 = vmatpush1.bf16.msra.mxu0 %v518
  %600 = vmatprep.subr.bf16.mxu0 0
  %601 = vmatpush1.bf16.msra.mxu0 %v519
  %602 = vmatprep.subr.bf16.mxu0 0
  %603 = vmatpush1.bf16.msra.mxu0 %v520
  %604 = vmatprep.subr.bf16.mxu0 0
  %605 = vmatpush1.bf16.msra.mxu0 %v521
  %606 = vmatprep.subr.bf16.mxu0 0
  %607 = vmatpush1.bf16.msra.mxu0 %v522
  %608 = vmatprep.subr.bf16.mxu0 0
  %609 = vmatpush1.bf16.msra.mxu0 %v523
  %610 = vmatprep.subr.bf16.mxu0 0
  %611 = vmatpush1.bf16.msra.mxu0 %v524
  %612 = vmatprep.subr.bf16.mxu0 0
  %613 = vmatpush1.bf16.msra.mxu0 %v525
  %614 = vmatprep.subr.bf16.mxu0 0
  %615 = vmatpush1.bf16.msra.mxu0 %v526
  %616 = vmatprep.subr.bf16.mxu0 0
  %617 = vmatpush1.bf16.msra.mxu0 %v527
  %618 = vmatprep.subr.bf16.mxu0 0
  %619 = vmatpush1.bf16.msra.mxu0 %v528
  %620 = vmatprep.subr.bf16.mxu0 0
  %621 = vmatpush1.bf16.msra.mxu0 %v529
  %622 = vmatprep.subr.bf16.mxu0 0
  %623 = vmatpush1.bf16.msra.mxu0 %v530
  %624 = vmatprep.subr.bf16.mxu0 0
  %625 = vmatpush1.bf16.msra.mxu0 %v531
  %626 = vmatprep.subr.bf16.mxu0 0
  %627 = vmatpush1.bf16.msra.mxu0 %v532
  %628 = vmatprep.subr.bf16.mxu0 0
  %629 = vmatpush1.bf16.msra.mxu0 %v533
  %630 = vmatprep.mubr.bf16.mxu0 %v279
  %631 = vmatmul.mubr.bf16.gmra.mrb[0].mxu0 %v278
  %v632 = vpop.f32.mrb[0].mxu0
  %v633 = vadd.f32 0.0, %v632
  %v634 = vpop.f32.mrb[0].mxu0
  %v635 = vpop.f32.mrb[0].mxu0
  %v636 = vadd.f32 0.0, %v635
  %v637 = vpop.f32.mrb[0].mxu0
  %638 = vmatprep.mubr.bf16.mxu0 %v284
  %639 = vmatmul.mubr.bf16.gmra.mrb[0].mxu0 %v283
  %v640 = vpop.f32.mrb[0].mxu0
  %v641 = vadd.f32 0.0, %v640
  %v642 = vpop.f32.mrb[0].mxu0
  %v643 = vpop.f32.mrb[0].mxu0
  %v644 = vadd.f32 0.0, %v643
  %v645 = vpop.f32.mrb[0].mxu0
  %646 = vmatprep.mubr.bf16.mxu0 %v289
  %647 = vmatmul.mubr.bf16.gmra.mrb[0].mxu0 %v288
  %v648 = vpop.f32.mrb[0].mxu0
  %v649 = vadd.f32 0.0, %v648
  %v650 = vpop.f32.mrb[0].mxu0
  %v651 = vpop.f32.mrb[0].mxu0
  %v652 = vadd.f32 0.0, %v651
  %v653 = vpop.f32.mrb[0].mxu0
  %654 = vmatprep.mubr.bf16.mxu0 %v294
  %655 = vmatmul.mubr.bf16.gmra.mrb[0].mxu0 %v293
  %v656 = vpop.f32.mrb[0].mxu0
  %v657 = vadd.f32 0.0, %v656
  %v658 = vpop.f32.mrb[0].mxu0
  %v659 = vpop.f32.mrb[0].mxu0
  %v660 = vadd.f32 0.0, %v659
  %v661 = vpop.f32.mrb[0].mxu0
  %662 = vmatprep.mubr.bf16.mxu0 %v299
  %663 = vmatmul.mubr.bf16.gmra.mrb[0].mxu0 %v298
  %v664 = vpop.f32.mrb[0].mxu0
  %v665 = vadd.f32 0.0, %v664
  %v666 = vpop.f32.mrb[0].mxu0
  %v667 = vpop.f32.mrb[0].mxu0
  %v668 = vadd.f32 0.0, %v667
  %v669 = vpop.f32.mrb[0].mxu0
  %670 = vmatprep.mubr.bf16.mxu0 %v304
  %671 = vmatmul.mubr.bf16.gmra.mrb[0].mxu0 %v303
  %v672 = vpop.f32.mrb[0].mxu0
  %v673 = vadd.f32 0.0, %v672
  %v674 = vpop.f32.mrb[0].mxu0
  %v675 = vpop.f32.mrb[0].mxu0
  %v676 = vadd.f32 0.0, %v675
  %v677 = vpop.f32.mrb[0].mxu0
  %678 = vmatprep.mubr.bf16.mxu0 %v309
  %679 = vmatmul.mubr.bf16.gmra.mrb[0].mxu0 %v308
  %v680 = vpop.f32.mrb[0].mxu0
  %v681 = vadd.f32 0.0, %v680
  %v682 = vpop.f32.mrb[0].mxu0
  %v683 = vpop.f32.mrb[0].mxu0
  %v684 = vadd.f32 0.0, %v683
  %v685 = vpop.f32.mrb[0].mxu0
  %686 = vmatprep.mubr.bf16.mxu0 %v314
  %687 = vmatmul.mubr.bf16.gmra.mrb[0].mxu0 %v313
  %v688 = vpop.f32.mrb[0].mxu0
  %v689 = vadd.f32 0.0, %v688
  %v690 = vpop.f32.mrb[0].mxu0
  %v691 = vpop.f32.mrb[0].mxu0
  %v692 = vadd.f32 0.0, %v691
  %v693 = vpop.f32.mrb[0].mxu0
  %694 = vdwg.mxu0
  %695 = vmatprep.subr.bf16.mxu0 0
  %696 = vmatpush1.bf16.msra.mxu0 %v534
  %697 = vmatprep.subr.bf16.mxu0 0
  %698 = vmatpush1.bf16.msra.mxu0 %v535
  %699 = vmatprep.subr.bf16.mxu0 0
  %700 = vmatpush1.bf16.msra.mxu0 %v536
  %701 = vmatprep.subr.bf16.mxu0 0
  %702 = vmatpush1.bf16.msra.mxu0 %v537
  %703 = vmatprep.subr.bf16.mxu0 0
  %704 = vmatpush1.bf16.msra.mxu0 %v538
  %705 = vmatprep.subr.bf16.mxu0 0
  %706 = vmatpush1.bf16.msra.mxu0 %v539
  %707 = vmatprep.subr.bf16.mxu0 0
  %708 = vmatpush1.bf16.msra.mxu0 %v540
  %709 = vmatprep.subr.bf16.mxu0 0
  %710 = vmatpush1.bf16.msra.mxu0 %v541
  %711 = vmatprep.subr.bf16.mxu0 0
  %712 = vmatpush1.bf16.msra.mxu0 %v542
  %713 = vmatprep.subr.bf16.mxu0 0
  %714 = vmatpush1.bf16.msra.mxu0 %v543
  %715 = vmatprep.subr.bf16.mxu0 0
  %716 = vmatpush1.bf16.msra.mxu0 %v544
  %717 = vmatprep.subr.bf16.mxu0 0
  %718 = vmatpush1.bf16.msra.mxu0 %v545
  %719 = vmatprep.subr.bf16.mxu0 0
  %720 = vmatpush1.bf16.msra.mxu0 %v546
  %721 = vmatprep.subr.bf16.mxu0 0
  %722 = vmatpush1.bf16.msra.mxu0 %v547
  %723 = vmatprep.subr.bf16.mxu0 0
  %724 = vmatpush1.bf16.msra.mxu0 %v548
  %725 = vmatprep.subr.bf16.mxu0 0
  %726 = vmatpush1.bf16.msra.mxu0 %v549
  %727 = vmatprep.mubr.bf16.mxu0 %v281
  %728 = vmatmul.mubr.bf16.gmra.mrb[0].mxu0 %v280
  %v729 = vpop.f32.mrb[0].mxu0
  %v730 = vadd.f32 %v633, %v729
  %v731 = vpop.f32.mrb[0].mxu0
  %v732 = vpop.f32.mrb[0].mxu0
  %v733 = vadd.f32 %v636, %v732
  %v734 = vpop.f32.mrb[0].mxu0
  %735 = vmatprep.mubr.bf16.mxu0 %v286
  %736 = vmatmul.mubr.bf16.gmra.mrb[0].mxu0 %v285
  %v737 = vpop.f32.mrb[0].mxu0
  %v738 = vadd.f32 %v641, %v737
  %v739 = vpop.f32.mrb[0].mxu0
  %v740 = vpop.f32.mrb[0].mxu0
  %v741 = vadd.f32 %v644, %v740
  %v742 = vpop.f32.mrb[0].mxu0
  %743 = vmatprep.mubr.bf16.mxu0 %v291
  %744 = vmatmul.mubr.bf16.gmra.mrb[0].mxu0 %v290
  %v745 = vpop.f32.mrb[0].mxu0
  %v746 = vadd.f32 %v649, %v745
  %v747 = vpop.f32.mrb[0].mxu0
  %v748 = vpop.f32.mrb[0].mxu0
  %v749 = vadd.f32 %v652, %v748
  %v750 = vpop.f32.mrb[0].mxu0
  %751 = vmatprep.mubr.bf16.mxu0 %v296
  %752 = vmatmul.mubr.bf16.gmra.mrb[0].mxu0 %v295
  %v753 = vpop.f32.mrb[0].mxu0
  %v754 = vadd.f32 %v657, %v753
  %v755 = vpop.f32.mrb[0].mxu0
  %v756 = vpop.f32.mrb[0].mxu0
  %v757 = vadd.f32 %v660, %v756
  %v758 = vpop.f32.mrb[0].mxu0
  %759 = vmatprep.mubr.bf16.mxu0 %v301
  %760 = vmatmul.mubr.bf16.gmra.mrb[0].mxu0 %v300
  %v761 = vpop.f32.mrb[0].mxu0
  %v762 = vadd.f32 %v665, %v761
  %v763 = vpop.f32.mrb[0].mxu0
  %v764 = vpop.f32.mrb[0].mxu0
  %v765 = vadd.f32 %v668, %v764
  %v766 = vpop.f32.mrb[0].mxu0
  %767 = vmatprep.mubr.bf16.mxu0 %v306
  %768 = vmatmul.mubr.bf16.gmra.mrb[0].mxu0 %v305
  %v769 = vpop.f32.mrb[0].mxu0
  %v770 = vadd.f32 %v673, %v769
  %v771 = vpop.f32.mrb[0].mxu0
  %v772 = vpop.f32.mrb[0].mxu0
  %v773 = vadd.f32 %v676, %v772
  %v774 = vpop.f32.mrb[0].mxu0
  %775 = vmatprep.mubr.bf16.mxu0 %v311
  %776 = vmatmul.mubr.bf16.gmra.mrb[0].mxu0 %v310
  %v777 = vpop.f32.mrb[0].mxu0
  %v778 = vadd.f32 %v681, %v777
  %v779 = vpop.f32.mrb[0].mxu0
  %v780 = vpop.f32.mrb[0].mxu0
  %v781 = vadd.f32 %v684, %v780
  %v782 = vpop.f32.mrb[0].mxu0
  %783 = vmatprep.mubr.bf16.mxu0 %v316
  %784 = vmatmul.mubr.bf16.gmra.mrb[0].mxu0 %v315
  %v785 = vpop.f32.mrb[0].mxu0
  %v786 = vadd.f32 %v689, %v785
  %v787 = vpop.f32.mrb[0].mxu0
  %v788 = vpop.f32.mrb[0].mxu0
  %v789 = vadd.f32 %v692, %v788
  %v790 = vpop.f32.mrb[0].mxu0
  %791 = vdwg.mxu0
  %792 = vmatprep.subr.bf16.mxu0 0
  %793 = vmatpush1.bf16.msra.mxu0 %v550
  %794 = vmatprep.subr.bf16.mxu0 0
  %795 = vmatpush1.bf16.msra.mxu0 %v551
  %796 = vmatprep.subr.bf16.mxu0 0
  %797 = vmatpush1.bf16.msra.mxu0 %v552
  %798 = vmatprep.subr.bf16.mxu0 0
  %799 = vmatpush1.bf16.msra.mxu0 %v553
  %800 = vmatprep.subr.bf16.mxu0 0
  %801 = vmatpush1.bf16.msra.mxu0 %v554
  %802 = vmatprep.subr.bf16.mxu0 0
  %803 = vmatpush1.bf16.msra.mxu0 %v555
  %804 = vmatprep.subr.bf16.mxu0 0
  %805 = vmatpush1.bf16.msra.mxu0 %v556
  %806 = vmatprep.subr.bf16.mxu0 0
  %807 = vmatpush1.bf16.msra.mxu0 %v557
  %808 = vmatprep.subr.bf16.mxu0 0
  %809 = vmatpush1.bf16.msra.mxu0 0
  %810 = vmatprep.subr.bf16.mxu0 0
  %811 = vmatpush1.bf16.msra.mxu0 0
  %812 = vmatprep.subr.bf16.mxu0 0
  %813 = vmatpush1.bf16.msra.mxu0 0
  %814 = vmatprep.subr.bf16.mxu0 0
  %815 = vmatpush1.bf16.msra.mxu0 0
  %816 = vmatprep.subr.bf16.mxu0 0
  %817 = vmatpush1.bf16.msra.mxu0 0
  %818 = vmatprep.subr.bf16.mxu0 0
  %819 = vmatpush1.bf16.msra.mxu0 0
  %820 = vmatprep.subr.bf16.mxu0 0
  %821 = vmatpush1.bf16.msra.mxu0 0
  %822 = vmatprep.subr.bf16.mxu0 0
  %823 = vmatpush1.bf16.msra.mxu0 0
  %824 = vmatprep.mubr.bf16.mxu0 0
  %825 = vmatmul.mubr.bf16.gmra.mrb[0].mxu0 %v282
  %v826 = vpop.f32.mrb[0].mxu0
  %v827 = vadd.f32 %v730, %v826
  %v828 = vpop.f32.mrb[0].mxu0
  %v829 = vpop.f32.mrb[0].mxu0
  %v830 = vadd.f32 %v733, %v829
  %v831 = vpop.f32.mrb[0].mxu0
  %832 = vmatprep.mubr.bf16.mxu0 0
  %833 = vmatmul.mubr.bf16.gmra.mrb[0].mxu0 %v287
  %v834 = vpop.f32.mrb[0].mxu0
  %v835 = vadd.f32 %v738, %v834
  %v836 = vpop.f32.mrb[0].mxu0
  %v837 = vpop.f32.mrb[0].mxu0
  %v838 = vadd.f32 %v741, %v837
  %v839 = vpop.f32.mrb[0].mxu0
  %840 = vmatprep.mubr.bf16.mxu0 0
  %841 = vmatmul.mubr.bf16.gmra.mrb[0].mxu0 %v292
  %v842 = vpop.f32.mrb[0].mxu0
  %v843 = vadd.f32 %v746, %v842
  %v844 = vpop.f32.mrb[0].mxu0
  %v845 = vpop.f32.mrb[0].mxu0
  %v846 = vadd.f32 %v749, %v845
  %v847 = vpop.f32.mrb[0].mxu0
  %848 = vmatprep.mubr.bf16.mxu0 0
  %849 = vmatmul.mubr.bf16.gmra.mrb[0].mxu0 %v297
  %v850 = vpop.f32.mrb[0].mxu0
  %v851 = vadd.f32 %v754, %v850
  %v852 = vpop.f32.mrb[0].mxu0
  %v853 = vpop.f32.mrb[0].mxu0
  %v854 = vadd.f32 %v757, %v853
  %v855 = vpop.f32.mrb[0].mxu0
  %856 = vmatprep.mubr.bf16.mxu0 0
  %857 = vmatmul.mubr.bf16.gmra.mrb[0].mxu0 %v302
  %v858 = vpop.f32.mrb[0].mxu0
  %v859 = vadd.f32 %v762, %v858
  %v860 = vpop.f32.mrb[0].mxu0
  %v861 = vpop.f32.mrb[0].mxu0
  %v862 = vadd.f32 %v765, %v861
  %v863 = vpop.f32.mrb[0].mxu0
  %864 = vmatprep.mubr.bf16.mxu0 0
  %865 = vmatmul.mubr.bf16.gmra.mrb[0].mxu0 %v307
  %v866 = vpop.f32.mrb[0].mxu0
  %v867 = vadd.f32 %v770, %v866
  %v868 = vpop.f32.mrb[0].mxu0
  %v869 = vpop.f32.mrb[0].mxu0
  %v870 = vadd.f32 %v773, %v869
  %v871 = vpop.f32.mrb[0].mxu0
  %872 = vmatprep.mubr.bf16.mxu0 0
  %873 = vmatmul.mubr.bf16.gmra.mrb[0].mxu0 %v312
  %v874 = vpop.f32.mrb[0].mxu0
  %v875 = vadd.f32 %v778, %v874
  %v876 = vpop.f32.mrb[0].mxu0
  %v877 = vpop.f32.mrb[0].mxu0
  %v878 = vadd.f32 %v781, %v877
  %v879 = vpop.f32.mrb[0].mxu0
  %880 = vmatprep.mubr.bf16.mxu0 0
  %881 = vmatmul.mubr.bf16.gmra.mrb[0].mxu0 %v317
  %v882 = vpop.f32.mrb[0].mxu0
  %v883 = vadd.f32 %v786, %v882
  %v884 = vpop.f32.mrb[0].mxu0
  %v885 = vpop.f32.mrb[0].mxu0
  %v886 = vadd.f32 %v789, %v885
  %v887 = vpop.f32.mrb[0].mxu0
  %888 = vdwg.mxu0
  %s889 = sld [smem:[#allocation2]]
  %v890 = vadd.f32 %v827, %v830
  %v891 = vadd.f32 %v890, %v835
  %v892 = vadd.f32 %v891, %v838
  %v893 = vadd.f32 %v892, %v843
  %v894 = vadd.f32 %v893, %v846
  %v895 = vadd.f32 %v894, %v851
  %v896 = vadd.f32 %v895, %v854
  %v897 = vadd.f32 %v896, %v859
  %v898 = vadd.f32 %v897, %v862
  %v899 = vadd.f32 %v898, %v867
  %v900 = vadd.f32 %v899, %v870
  %v901 = vadd.f32 %v900, %v875
  %v902 = vadd.f32 %v901, %v878
  %v903 = vadd.f32 %v902, %v883
  %v904 = vadd.f32 %v903, %v886
  %v905 = vrot.slane %v904, 4
  %v906 = vadd.f32 %v904, %v905
  %v907 = vrot.slane %v906, 2
  %v908 = vadd.f32 %v906, %v907
  %v909 = vrot.slane %v908, 1
  %v910 = vadd.f32 %v908, %v909
  %v911 = vmul.f32 %v827, %v827
  %v912 = vmul.f32 %v830, %v830
  %v913 = vmul.f32 %v835, %v835
  %v914 = vmul.f32 %v838, %v838
  %v915 = vmul.f32 %v843, %v843
  %v916 = vmul.f32 %v846, %v846
  %v917 = vmul.f32 %v851, %v851
  %v918 = vmul.f32 %v854, %v854
  %v919 = vmul.f32 %v859, %v859
  %v920 = vmul.f32 %v862, %v862
  %v921 = vmul.f32 %v867, %v867
  %v922 = vmul.f32 %v870, %v870
  %v923 = vmul.f32 %v875, %v875
  %v924 = vmul.f32 %v878, %v878
  %v925 = vmul.f32 %v883, %v883
  %v926 = vmul.f32 %v886, %v886
  %v927 = vadd.f32 %v911, %v912
  %v928 = vadd.f32 %v927, %v913
  %v929 = vadd.f32 %v928, %v914
  %v930 = vadd.f32 %v929, %v915
  %v931 = vadd.f32 %v930, %v916
  %v932 = vadd.f32 %v931, %v917
  %v933 = vadd.f32 %v932, %v918
  %v934 = vadd.f32 %v933, %v919
  %v935 = vadd.f32 %v934, %v920
  %v936 = vadd.f32 %v935, %v921
  %v937 = vadd.f32 %v936, %v922
  %v938 = vadd.f32 %v937, %v923
  %v939 = vadd.f32 %v938, %v924
  %v940 = vadd.f32 %v939, %v925
  %v941 = vadd.f32 %v940, %v926
  %v942 = vrot.slane %v941, 4
  %v943 = vadd.f32 %v941, %v942
  %v944 = vrot.slane %v943, 2
  %v945 = vadd.f32 %v943, %v944
  %v946 = vrot.slane %v945, 1
  %v947 = vadd.f32 %v945, %v946
  %949 = vrot.lane.b32.xlu0 %v910, 96
  %v950 = vpop.permute.xlu0 %949
  %v952 = vadd.f32 %v910, %v950
  %953 = vrot.lane.b32.xlu0 %v910, 64
  %v954 = vpop.permute.xlu0 %953
  %v956 = vadd.f32 %v952, %v954
  %957 = vrot.lane.b32.xlu0 %v910, 32
  %v958 = vpop.permute.xlu0 %957
  %v960 = vadd.f32 %v956, %v958
  %962 = vrot.lane.b32.xlu0 %v947, 96
  %v963 = vpop.permute.xlu0 %962
  %v965 = vadd.f32 %v947, %v963
  %966 = vrot.lane.b32.xlu0 %v947, 64
  %v967 = vpop.permute.xlu0 %966
  %v969 = vadd.f32 %v965, %v967
  %970 = vrot.lane.b32.xlu0 %v947, 32
  %v971 = vpop.permute.xlu0 %970
  %v973 = vadd.f32 %v969, %v971
  %v974 = vld [vmem:[%s3] sm:$0x1]
  %v975 = vld [vmem:[%s4] sm:$0x1]
  %v976 = vstv %s889
  %v977 = vmul.f32 %v960, %v976
  %v978 = vmul.f32 %v973, %v976
  %v979 = vmul.f32 %v977, %v977
  %v980 = vsub.f32 %v978, %v979
  %v981 = vmax.f32 %v980, 0.0
  %v982 = vadd.f32 %v981, 1e-05
  %v983 = vrsqrt.pop %v982
  %v984 = vmul.f32 %v974, %v983
  %v985 = vmul.f32 %v977, %v984
  %v986 = vsub.f32 %v975, %v985
  %v988 = vlaneseq
  %v989 = vshrl.u32 %v988, 7
  %v990 = vsub.s32 0, %v989
  %v991 = vrot.slane %v984, %v990
  %992 = vrot.lane.b32.xlu0 %v991, 32
  %v993 = vpop.permute.xlu0 %992
  %995 = vrot.lane.b32.xlu0 %v991, 64
  %v996 = vpop.permute.xlu0 %995
  %998 = vrot.lane.b32.xlu0 %v991, 96
  %v999 = vpop.permute.xlu0 %998
  %vm1001 = vcmask 261120
  %v1002 = vsel %vm1001, %v984, %v993
  %vm1003 = vcmask 523264
  %v1004 = vsel %vm1003, %v1002, %v996
  %vm1005 = vcmask 785408
  %v1006 = vsel %vm1005, %v1004, %v999
  %v1008 = vlaneseq
  %v1009 = vshrl.u32 %v1008, 7
  %v1010 = vsub.s32 0, %v1009
  %v1011 = vrot.slane %v986, %v1010
  %1012 = vrot.lane.b32.xlu0 %v1011, 32
  %v1013 = vpop.permute.xlu0 %1012
  %1015 = vrot.lane.b32.xlu0 %v1011, 64
  %v1016 = vpop.permute.xlu0 %1015
  %1018 = vrot.lane.b32.xlu0 %v1011, 96
  %v1019 = vpop.permute.xlu0 %1018
  %v1021 = vsel %vm1001, %v986, %v1013
  %v1022 = vsel %vm1003, %v1021, %v1016
  %v1023 = vsel %vm1005, %v1022, %v1019
  %v1024 = vlaneseq
  %v1025 = vshrl.u32 %v1024, 7
  %v1026 = vsub.s32 0, %v1025
  %v1027 = vrot.slane %v1006, %v1026
  %v1028 = vmul.f32 %v827, %v1027
  %v1029 = vmul.f32 %v830, %v1027
  %v1030 = vmul.f32 %v835, %v1027
  %v1031 = vmul.f32 %v838, %v1027
  %v1032 = vmul.f32 %v843, %v1027
  %v1033 = vmul.f32 %v846, %v1027
  %v1034 = vmul.f32 %v851, %v1027
  %v1035 = vmul.f32 %v854, %v1027
  %v1036 = vmul.f32 %v859, %v1027
  %v1037 = vmul.f32 %v862, %v1027
  %v1038 = vmul.f32 %v867, %v1027
  %v1039 = vmul.f32 %v870, %v1027
  %v1040 = vmul.f32 %v875, %v1027
  %v1041 = vmul.f32 %v878, %v1027
  %v1042 = vmul.f32 %v883, %v1027
  %v1043 = vmul.f32 %v886, %v1027
  %v1044 = vlaneseq
  %v1045 = vshrl.u32 %v1044, 7
  %v1046 = vsub.s32 0, %v1045
  %v1047 = vrot.slane %v1023, %v1046
  %v1048 = vadd.f32 %v1028, %v1047
  %v1049 = vadd.f32 %v1029, %v1047
  %v1050 = vadd.f32 %v1030, %v1047
  %v1051 = vadd.f32 %v1031, %v1047
  %v1052 = vadd.f32 %v1032, %v1047
  %v1053 = vadd.f32 %v1033, %v1047
  %v1054 = vadd.f32 %v1034, %v1047
  %v1055 = vadd.f32 %v1035, %v1047
  %v1056 = vadd.f32 %v1036, %v1047
  %v1057 = vadd.f32 %v1037, %v1047
  %v1058 = vadd.f32 %v1038, %v1047
  %v1059 = vadd.f32 %v1039, %v1047
  %v1060 = vadd.f32 %v1040, %v1047
  %v1061 = vadd.f32 %v1041, %v1047
  %v1062 = vadd.f32 %v1042, %v1047
  %v1063 = vadd.f32 %v1043, %v1047
  %v1064 = vmax.f32 %v1048, 0.0
  %v1065 = vmax.f32 %v1049, 0.0
  %v1066 = vmax.f32 %v1050, 0.0
  %v1067 = vmax.f32 %v1051, 0.0
  %v1068 = vmax.f32 %v1052, 0.0
  %v1069 = vmax.f32 %v1053, 0.0
  %v1070 = vmax.f32 %v1054, 0.0
  %v1071 = vmax.f32 %v1055, 0.0
  %v1072 = vmax.f32 %v1056, 0.0
  %v1073 = vmax.f32 %v1057, 0.0
  %v1074 = vmax.f32 %v1058, 0.0
  %v1075 = vmax.f32 %v1059, 0.0
  %v1076 = vmax.f32 %v1060, 0.0
  %v1077 = vmax.f32 %v1061, 0.0
  %v1078 = vmax.f32 %v1062, 0.0
  %v1079 = vmax.f32 %v1063, 0.0
  %v1080 = vpack.c.bf16 %v1065, %v1064
  %v1081 = vpack.c.bf16 %v1067, %v1066
  %v1082 = vpack.c.bf16 %v1069, %v1068
  %v1083 = vpack.c.bf16 %v1071, %v1070
  %v1084 = vpack.c.bf16 %v1073, %v1072
  %v1085 = vpack.c.bf16 %v1075, %v1074
  %v1086 = vpack.c.bf16 %v1077, %v1076
  %v1087 = vpack.c.bf16 %v1079, %v1078
  %v1096 = vunpack.c.l.b16 %v1080
  %v1097 = vunpack.c.h.b16 %v1080
  %v1098 = vunpack.c.l.b16 %v1081
  %v1099 = vunpack.c.h.b16 %v1081
  %v1100 = vunpack.c.l.b16 %v1082
  %v1101 = vunpack.c.h.b16 %v1082
  %v1102 = vunpack.c.l.b16 %v1083
  %v1103 = vunpack.c.h.b16 %v1083
  %v1104 = vunpack.c.l.b16 %v1084
  %v1105 = vunpack.c.h.b16 %v1084
  %v1106 = vunpack.c.l.b16 %v1085
  %v1107 = vunpack.c.h.b16 %v1085
  %v1108 = vunpack.c.l.b16 %v1086
  %v1109 = vunpack.c.h.b16 %v1086
  %v1110 = vunpack.c.l.b16 %v1087
  %v1111 = vunpack.c.h.b16 %v1087
  %v1112 = vpack.c.b16 %v1096, %v1096
  %v1113 = vpack.c.b16 %v1097, %v1097
  %v1114 = vpack.c.b16 %v1098, %v1098
  %v1115 = vpack.c.b16 %v1099, %v1099
  %v1116 = vpack.c.b16 %v1100, %v1100
  %v1117 = vpack.c.b16 %v1101, %v1101
  %v1118 = vpack.c.b16 %v1102, %v1102
  %v1119 = vpack.c.b16 %v1103, %v1103
  %v1120 = vpack.c.b16 %v1104, %v1104
  %v1121 = vpack.c.b16 %v1105, %v1105
  %v1122 = vpack.c.b16 %v1106, %v1106
  %v1123 = vpack.c.b16 %v1107, %v1107
  %v1124 = vpack.c.b16 %v1108, %v1108
  %v1125 = vpack.c.b16 %v1109, %v1109
  %v1126 = vpack.c.b16 %v1110, %v1110
  %v1127 = vpack.c.b16 %v1111, %v1111
  %1144 = vst [vmem:[%s5] sm:$0xf] %v1112
  %1145 = vst [vmem:[%s5 + $0x4] sm:$0xf] %v1113
  %1146 = vst [vmem:[%s5 + $0x8] sm:$0xf] %v1114
  %1147 = vst [vmem:[%s5 + $0xc] sm:$0xf] %v1115
  %1148 = vst [vmem:[%s5 + $0x10] sm:$0xf] %v1116
  %1149 = vst [vmem:[%s5 + $0x14] sm:$0xf] %v1117
  %1150 = vst [vmem:[%s5 + $0x18] sm:$0xf] %v1118
  %1151 = vst [vmem:[%s5 + $0x1c] sm:$0xf] %v1119
  %1152 = vst [vmem:[%s5 + $0x20] sm:$0xf] %v1120
  %1153 = vst [vmem:[%s5 + $0x24] sm:$0xf] %v1121
  %1154 = vst [vmem:[%s5 + $0x28] sm:$0xf] %v1122
  %1155 = vst [vmem:[%s5 + $0x2c] sm:$0xf] %v1123
  %1156 = vst [vmem:[%s5 + $0x30] sm:$0xf] %v1124
  %1157 = vst [vmem:[%s5 + $0x34] sm:$0xf] %v1125
  %1158 = vst [vmem:[%s5 + $0x38] sm:$0xf] %v1126
  %1159 = vst [vmem:[%s5 + $0x3c] sm:$0xf] %v1127
  // Predicated region
  $region22: #{_lambda_.7} parent=0 // pred_check
    _
  $region23: #{_lambda_.7} parent=0 // pred_check_branch
    %1161 = sbr.rel (0) target = $region25
  $region24: #{_lambda_.7} parent=0 // pred_region
    _
  $region25: #{_lambda_.7} parent=0 // pred_fallthru
    _
  // Predicated region
  $region26: #{_lambda_.7} parent=0 // pred_check
    _
  $region27: #{_lambda_.7} parent=0 // pred_check_branch
    %1163 = sbr.rel (0) target = $region29
  $region28: #{_lambda_.7} parent=0 // pred_region
    _
  $region29: #{_lambda_.7} parent=0 // pred_fallthru
    _

// kernel: _lambda_.8
$region0: #{_lambda_.8}
  #allocation0 [shape = 'u32[]', space=smem, size = 0x4, offset = 0x4, fixed_abs, tag = 'smem constant byte address 0x4 - core index']
  #allocation1 [shape = 'u32[144,128]{1,0:T(1,128)}', space=vmem, size = 0x12000, scoped, tag = 'internal scratch']
  #allocation2 [shape = 'f32[1,1]{1,0:T(1,128)S(6)}', space=smem, size = 0x200, scoped, tag = 'scoped memory for _lambda_.8']
  %s0 = inlined_call_operand.<no memory space> [shape: f32[1,1], index: 0, kind: input, shape index: {}]
  %s1 = inlined_call_operand.vmem [shape: bf16[512,384], index: 1, kind: input, shape index: {}]
  %s2 = inlined_call_operand.vmem [shape: bf16[384,128], index: 2, kind: input, shape index: {}]
  %s3 = inlined_call_operand.vmem [shape: f32[1,32], index: 3, kind: input, shape index: {}]
  %s4 = inlined_call_operand.vmem [shape: f32[1,32], index: 4, kind: input, shape index: {}]
  %s5 = inlined_call_operand.vmem [shape: bf16[512,128], index: 5, kind: output, shape index: {}]
  %s6 = sld [smem:[#allocation0]]
  $region30: #{_lambda_.8} parent=0
    _
  %s8 = ssub.s32 1, %s6
  %s9 = scalar_select 0, %s8, %s6
  %10 = sst [smem:[#allocation2]] %s0
  // Predicated region
  $region2: #{_lambda_.8} parent=0 // pred_check
    _
  $region3: #{_lambda_.8} parent=0 // pred_check_branch
    %12 = sbr.rel (0) target = $region5
  $region4: #{_lambda_.8} parent=0 // pred_region
    _
  $region5: #{_lambda_.8} parent=0 // pred_fallthru
    _
  // Predicated region
  $region6: #{_lambda_.8} parent=0 // pred_check
    _
  $region7: #{_lambda_.8} parent=0 // pred_check_branch
    %14 = sbr.rel (0) target = $region9
  $region8: #{_lambda_.8} parent=0 // pred_region
    _
  $region9: #{_lambda_.8} parent=0 // pred_fallthru
    _
  // Predicated region
  $region10: #{_lambda_.8} parent=0 // pred_check
    _
  $region11: #{_lambda_.8} parent=0 // pred_check_branch
    %16 = sbr.rel (0) target = $region13
  $region12: #{_lambda_.8} parent=0 // pred_region
    _
  $region13: #{_lambda_.8} parent=0 // pred_fallthru
    _
  // Predicated region
  $region14: #{_lambda_.8} parent=0 // pred_check
    _
  $region15: #{_lambda_.8} parent=0 // pred_check_branch
    %18 = sbr.rel (0) target = $region17
  $region16: #{_lambda_.8} parent=0 // pred_region
    _
  $region17: #{_lambda_.8} parent=0 // pred_fallthru
    _
  // Predicated region
  $region18: #{_lambda_.8} parent=0 // pred_check
    _
  $region19: #{_lambda_.8} parent=0 // pred_check_branch
    %20 = sbr.rel (0) target = $region21
  $region20: #{_lambda_.8} parent=0 // pred_region
    _
  $region21: #{_lambda_.8} parent=0 // pred_fallthru
    _
  %v22 = vld [vmem:[%s1] sm:$0xff]
  %v23 = vld [vmem:[%s1 + $0x8] sm:$0xf]
  %v24 = vld [vmem:[%s1 + $0xc] sm:$0xff]
  %v25 = vld [vmem:[%s1 + $0x14] sm:$0xf]
  %v26 = vld [vmem:[%s1 + $0x18] sm:$0xff]
  %v27 = vld [vmem:[%s1 + $0x20] sm:$0xf]
  %v28 = vld [vmem:[%s1 + $0x24] sm:$0xff]
  %v29 = vld [vmem:[%s1 + $0x2c] sm:$0xf]
  %v30 = vld [vmem:[%s1 + $0x30] sm:$0xff]
  %v31 = vld [vmem:[%s1 + $0x38] sm:$0xf]
  %v32 = vld [vmem:[%s1 + $0x3c] sm:$0xff]
  %v33 = vld [vmem:[%s1 + $0x44] sm:$0xf]
  %v34 = vld [vmem:[%s1 + $0x48] sm:$0xff]
  %v35 = vld [vmem:[%s1 + $0x50] sm:$0xf]
  %v36 = vld [vmem:[%s1 + $0x54] sm:$0xff]
  %v37 = vld [vmem:[%s1 + $0x5c] sm:$0xf]
  %v38 = vld [vmem:[%s1 + $0x60] sm:$0xff]
  %v39 = vld [vmem:[%s1 + $0x68] sm:$0xf]
  %v40 = vld [vmem:[%s1 + $0x6c] sm:$0xff]
  %v41 = vld [vmem:[%s1 + $0x74] sm:$0xf]
  %v42 = vld [vmem:[%s1 + $0x78] sm:$0xff]
  %v43 = vld [vmem:[%s1 + $0x80] sm:$0xf]
  %v44 = vld [vmem:[%s1 + $0x84] sm:$0xff]
  %v45 = vld [vmem:[%s1 + $0x8c] sm:$0xf]
  %v46 = vld [vmem:[%s1 + $0x90] sm:$0xff]
  %v47 = vld [vmem:[%s1 + $0x98] sm:$0xf]
  %v48 = vld [vmem:[%s1 + $0x9c] sm:$0xff]
  %v49 = vld [vmem:[%s1 + $0xa4] sm:$0xf]
  %v50 = vld [vmem:[%s1 + $0xa8] sm:$0xff]
  %v51 = vld [vmem:[%s1 + $0xb0] sm:$0xf]
  %v52 = vld [vmem:[%s1 + $0xb4] sm:$0xff]
  %v53 = vld [vmem:[%s1 + $0xbc] sm:$0xf]
  %v54 = vld [vmem:[%s1 + $0xc0] sm:$0xff]
  %v55 = vld [vmem:[%s1 + $0xc8] sm:$0xf]
  %v56 = vld [vmem:[%s1 + $0xcc] sm:$0xff]
  %v57 = vld [vmem:[%s1 + $0xd4] sm:$0xf]
  %v58 = vld [vmem:[%s1 + $0xd8] sm:$0xff]
  %v59 = vld [vmem:[%s1 + $0xe0] sm:$0xf]
  %v60 = vld [vmem:[%s1 + $0xe4] sm:$0xff]
  %v61 = vld [vmem:[%s1 + $0xec] sm:$0xf]
  %v62 = vld [vmem:[%s1 + $0xf0] sm:$0xff]
  %v63 = vld [vmem:[%s1 + $0xf8] sm:$0xf]
  %v64 = vld [vmem:[%s1 + $0xfc] sm:$0xff]
  %v65 = vld [vmem:[%s1 + $0x104] sm:$0xf]
  %v66 = vld [vmem:[%s1 + $0x108] sm:$0xff]
  %v67 = vld [vmem:[%s1 + $0x110] sm:$0xf]
  %v68 = vld [vmem:[%s1 + $0x114] sm:$0xff]
  %v69 = vld [vmem:[%s1 + $0x11c] sm:$0xf]
  %v70 = vld [vmem:[%s1 + $0x120] sm:$0xff]
  %v71 = vld [vmem:[%s1 + $0x128] sm:$0xf]
  %v72 = vld [vmem:[%s1 + $0x12c] sm:$0xff]
  %v73 = vld [vmem:[%s1 + $0x134] sm:$0xf]
  %v74 = vld [vmem:[%s1 + $0x138] sm:$0xff]
  %v75 = vld [vmem:[%s1 + $0x140] sm:$0xf]
  %v76 = vld [vmem:[%s1 + $0x144] sm:$0xff]
  %v77 = vld [vmem:[%s1 + $0x14c] sm:$0xf]
  %v78 = vld [vmem:[%s1 + $0x150] sm:$0xff]
  %v79 = vld [vmem:[%s1 + $0x158] sm:$0xf]
  %v80 = vld [vmem:[%s1 + $0x15c] sm:$0xff]
  %v81 = vld [vmem:[%s1 + $0x164] sm:$0xf]
  %v82 = vld [vmem:[%s1 + $0x168] sm:$0xff]
  %v83 = vld [vmem:[%s1 + $0x170] sm:$0xf]
  %v84 = vld [vmem:[%s1 + $0x174] sm:$0xff]
  %v85 = vld [vmem:[%s1 + $0x17c] sm:$0xf]
  %v86 = vld [vmem:[%s1 + $0x180] sm:$0xff]
  %v87 = vld [vmem:[%s1 + $0x188] sm:$0xf]
  %v88 = vld [vmem:[%s1 + $0x18c] sm:$0xff]
  %v89 = vld [vmem:[%s1 + $0x194] sm:$0xf]
  %v90 = vld [vmem:[%s1 + $0x198] sm:$0xff]
  %v91 = vld [vmem:[%s1 + $0x1a0] sm:$0xf]
  %v92 = vld [vmem:[%s1 + $0x1a4] sm:$0xff]
  %v93 = vld [vmem:[%s1 + $0x1ac] sm:$0xf]
  %v94 = vld [vmem:[%s1 + $0x1b0] sm:$0xff]
  %v95 = vld [vmem:[%s1 + $0x1b8] sm:$0xf]
  %v96 = vld [vmem:[%s1 + $0x1bc] sm:$0xff]
  %v97 = vld [vmem:[%s1 + $0x1c4] sm:$0xf]
  %v98 = vld [vmem:[%s1 + $0x1c8] sm:$0xff]
  %v99 = vld [vmem:[%s1 + $0x1d0] sm:$0xf]
  %v100 = vld [vmem:[%s1 + $0x1d4] sm:$0xff]
  %v101 = vld [vmem:[%s1 + $0x1dc] sm:$0xf]
  %v102 = vld [vmem:[%s1 + $0x1e0] sm:$0xff]
  %v103 = vld [vmem:[%s1 + $0x1e8] sm:$0xf]
  %v104 = vld [vmem:[%s1 + $0x1ec] sm:$0xff]
  %v105 = vld [vmem:[%s1 + $0x1f4] sm:$0xf]
  %v106 = vld [vmem:[%s1 + $0x1f8] sm:$0xff]
  %v107 = vld [vmem:[%s1 + $0x200] sm:$0xf]
  %v108 = vld [vmem:[%s1 + $0x204] sm:$0xff]
  %v109 = vld [vmem:[%s1 + $0x20c] sm:$0xf]
  %v110 = vld [vmem:[%s1 + $0x210] sm:$0xff]
  %v111 = vld [vmem:[%s1 + $0x218] sm:$0xf]
  %v112 = vld [vmem:[%s1 + $0x21c] sm:$0xff]
  %v113 = vld [vmem:[%s1 + $0x224] sm:$0xf]
  %v114 = vld [vmem:[%s1 + $0x228] sm:$0xff]
  %v115 = vld [vmem:[%s1 + $0x230] sm:$0xf]
  %v116 = vld [vmem:[%s1 + $0x234] sm:$0xff]
  %v117 = vld [vmem:[%s1 + $0x23c] sm:$0xf]
  %v118 = vld [vmem:[%s1 + $0x240] sm:$0xff]
  %v119 = vld [vmem:[%s1 + $0x248] sm:$0xf]
  %v120 = vld [vmem:[%s1 + $0x24c] sm:$0xff]
  %v121 = vld [vmem:[%s1 + $0x254] sm:$0xf]
  %v122 = vld [vmem:[%s1 + $0x258] sm:$0xff]
  %v123 = vld [vmem:[%s1 + $0x260] sm:$0xf]
  %v124 = vld [vmem:[%s1 + $0x264] sm:$0xff]
  %v125 = vld [vmem:[%s1 + $0x26c] sm:$0xf]
  %v126 = vld [vmem:[%s1 + $0x270] sm:$0xff]
  %v127 = vld [vmem:[%s1 + $0x278] sm:$0xf]
  %v128 = vld [vmem:[%s1 + $0x27c] sm:$0xff]
  %v129 = vld [vmem:[%s1 + $0x284] sm:$0xf]
  %v130 = vld [vmem:[%s1 + $0x288] sm:$0xff]
  %v131 = vld [vmem:[%s1 + $0x290] sm:$0xf]
  %v132 = vld [vmem:[%s1 + $0x294] sm:$0xff]
  %v133 = vld [vmem:[%s1 + $0x29c] sm:$0xf]
  %v134 = vld [vmem:[%s1 + $0x2a0] sm:$0xff]
  %v135 = vld [vmem:[%s1 + $0x2a8] sm:$0xf]
  %v136 = vld [vmem:[%s1 + $0x2ac] sm:$0xff]
  %v137 = vld [vmem:[%s1 + $0x2b4] sm:$0xf]
  %v138 = vld [vmem:[%s1 + $0x2b8] sm:$0xff]
  %v139 = vld [vmem:[%s1 + $0x2c0] sm:$0xf]
  %v140 = vld [vmem:[%s1 + $0x2c4] sm:$0xff]
  %v141 = vld [vmem:[%s1 + $0x2cc] sm:$0xf]
  %v142 = vld [vmem:[%s1 + $0x2d0] sm:$0xff]
  %v143 = vld [vmem:[%s1 + $0x2d8] sm:$0xf]
  %v144 = vld [vmem:[%s1 + $0x2dc] sm:$0xff]
  %v145 = vld [vmem:[%s1 + $0x2e4] sm:$0xf]
  %v146 = vld [vmem:[%s1 + $0x2e8] sm:$0xff]
  %v147 = vld [vmem:[%s1 + $0x2f0] sm:$0xf]
  %v148 = vld [vmem:[%s1 + $0x2f4] sm:$0xff]
  %v149 = vld [vmem:[%s1 + $0x2fc] sm:$0xf]
  %v150 = vld [vmem:[%s2] sm:$0xf]
  %v151 = vld [vmem:[%s2 + $0x4] sm:$0xf]
  %v152 = vld [vmem:[%s2 + $0x8] sm:$0xf]
  %v153 = vld [vmem:[%s2 + $0xc] sm:$0xf]
  %v154 = vld [vmem:[%s2 + $0x10] sm:$0xf]
  %v155 = vld [vmem:[%s2 + $0x14] sm:$0xf]
  %v156 = vld [vmem:[%s2 + $0x18] sm:$0xf]
  %v157 = vld [vmem:[%s2 + $0x1c] sm:$0xf]
  %v158 = vld [vmem:[%s2 + $0x20] sm:$0xf]
  %v159 = vld [vmem:[%s2 + $0x24] sm:$0xf]
  %v160 = vld [vmem:[%s2 + $0x28] sm:$0xf]
  %v161 = vld [vmem:[%s2 + $0x2c] sm:$0xf]
  %v162 = vld [vmem:[%s2 + $0x30] sm:$0xf]
  %v163 = vld [vmem:[%s2 + $0x34] sm:$0xf]
  %v164 = vld [vmem:[%s2 + $0x38] sm:$0xf]
  %v165 = vld [vmem:[%s2 + $0x3c] sm:$0xf]
  %v166 = vld [vmem:[%s2 + $0x40] sm:$0xf]
  %v167 = vld [vmem:[%s2 + $0x44] sm:$0xf]
  %v168 = vld [vmem:[%s2 + $0x48] sm:$0xf]
  %v169 = vld [vmem:[%s2 + $0x4c] sm:$0xf]
  %v170 = vld [vmem:[%s2 + $0x50] sm:$0xf]
  %v171 = vld [vmem:[%s2 + $0x54] sm:$0xf]
  %v172 = vld [vmem:[%s2 + $0x58] sm:$0xf]
  %v173 = vld [vmem:[%s2 + $0x5c] sm:$0xf]
  %v174 = vld [vmem:[%s2 + $0x60] sm:$0xf]
  %v175 = vld [vmem:[%s2 + $0x64] sm:$0xf]
  %v176 = vld [vmem:[%s2 + $0x68] sm:$0xf]
  %v177 = vld [vmem:[%s2 + $0x6c] sm:$0xf]
  %v178 = vld [vmem:[%s2 + $0x70] sm:$0xf]
  %v179 = vld [vmem:[%s2 + $0x74] sm:$0xf]
  %v180 = vld [vmem:[%s2 + $0x78] sm:$0xf]
  %v181 = vld [vmem:[%s2 + $0x7c] sm:$0xf]
  %v182 = vld [vmem:[%s2 + $0x80] sm:$0xf]
  %v183 = vld [vmem:[%s2 + $0x84] sm:$0xf]
  %v184 = vld [vmem:[%s2 + $0x88] sm:$0xf]
  %v185 = vld [vmem:[%s2 + $0x8c] sm:$0xf]
  %v186 = vld [vmem:[%s2 + $0x90] sm:$0xf]
  %v187 = vld [vmem:[%s2 + $0x94] sm:$0xf]
  %v188 = vld [vmem:[%s2 + $0x98] sm:$0xf]
  %v189 = vld [vmem:[%s2 + $0x9c] sm:$0xf]
  %v190 = vld [vmem:[%s2 + $0xa0] sm:$0xf]
  %v191 = vld [vmem:[%s2 + $0xa4] sm:$0xf]
  %v192 = vld [vmem:[%s2 + $0xa8] sm:$0xf]
  %v193 = vld [vmem:[%s2 + $0xac] sm:$0xf]
  %v194 = vld [vmem:[%s2 + $0xb0] sm:$0xf]
  %v195 = vld [vmem:[%s2 + $0xb4] sm:$0xf]
  %v196 = vld [vmem:[%s2 + $0xb8] sm:$0xf]
  %v197 = vld [vmem:[%s2 + $0xbc] sm:$0xf]
  %v326 = vunpack.c.l.b16 %v22
  %v327 = vunpack.c.h.b16 %v22
  %v328 = vunpack.c.l.b16 %v23
  %v329 = vunpack.c.l.b16 %v24
  %v330 = vunpack.c.h.b16 %v24
  %v331 = vunpack.c.l.b16 %v25
  %v332 = vunpack.c.l.b16 %v26
  %v333 = vunpack.c.h.b16 %v26
  %v334 = vunpack.c.l.b16 %v27
  %v335 = vunpack.c.l.b16 %v28
  %v336 = vunpack.c.h.b16 %v28
  %v337 = vunpack.c.l.b16 %v29
  %v338 = vunpack.c.l.b16 %v30
  %v339 = vunpack.c.h.b16 %v30
  %v340 = vunpack.c.l.b16 %v31
  %v341 = vunpack.c.l.b16 %v32
  %v342 = vunpack.c.h.b16 %v32
  %v343 = vunpack.c.l.b16 %v33
  %v344 = vunpack.c.l.b16 %v34
  %v345 = vunpack.c.h.b16 %v34
  %v346 = vunpack.c.l.b16 %v35
  %v347 = vunpack.c.l.b16 %v36
  %v348 = vunpack.c.h.b16 %v36
  %v349 = vunpack.c.l.b16 %v37
  %v350 = vunpack.c.l.b16 %v38
  %v351 = vunpack.c.h.b16 %v38
  %v352 = vunpack.c.l.b16 %v39
  %v353 = vunpack.c.l.b16 %v40
  %v354 = vunpack.c.h.b16 %v40
  %v355 = vunpack.c.l.b16 %v41
  %v356 = vunpack.c.l.b16 %v42
  %v357 = vunpack.c.h.b16 %v42
  %v358 = vunpack.c.l.b16 %v43
  %v359 = vunpack.c.l.b16 %v44
  %v360 = vunpack.c.h.b16 %v44
  %v361 = vunpack.c.l.b16 %v45
  %v362 = vunpack.c.l.b16 %v46
  %v363 = vunpack.c.h.b16 %v46
  %v364 = vunpack.c.l.b16 %v47
  %v365 = vunpack.c.l.b16 %v48
  %v366 = vunpack.c.h.b16 %v48
  %v367 = vunpack.c.l.b16 %v49
  %v368 = vunpack.c.l.b16 %v50
  %v369 = vunpack.c.h.b16 %v50
  %v370 = vunpack.c.l.b16 %v51
  %v371 = vunpack.c.l.b16 %v52
  %v372 = vunpack.c.h.b16 %v52
  %v373 = vunpack.c.l.b16 %v53
  %v374 = vunpack.c.l.b16 %v54
  %v375 = vunpack.c.h.b16 %v54
  %v376 = vunpack.c.l.b16 %v55
  %v377 = vunpack.c.l.b16 %v56
  %v378 = vunpack.c.h.b16 %v56
  %v379 = vunpack.c.l.b16 %v57
  %v380 = vunpack.c.l.b16 %v58
  %v381 = vunpack.c.h.b16 %v58
  %v382 = vunpack.c.l.b16 %v59
  %v383 = vunpack.c.l.b16 %v60
  %v384 = vunpack.c.h.b16 %v60
  %v385 = vunpack.c.l.b16 %v61
  %v386 = vunpack.c.l.b16 %v62
  %v387 = vunpack.c.h.b16 %v62
  %v388 = vunpack.c.l.b16 %v63
  %v389 = vunpack.c.l.b16 %v64
  %v390 = vunpack.c.h.b16 %v64
  %v391 = vunpack.c.l.b16 %v65
  %v392 = vunpack.c.l.b16 %v66
  %v393 = vunpack.c.h.b16 %v66
  %v394 = vunpack.c.l.b16 %v67
  %v395 = vunpack.c.l.b16 %v68
  %v396 = vunpack.c.h.b16 %v68
  %v397 = vunpack.c.l.b16 %v69
  %v398 = vunpack.c.l.b16 %v70
  %v399 = vunpack.c.h.b16 %v70
  %v400 = vunpack.c.l.b16 %v71
  %v401 = vunpack.c.l.b16 %v72
  %v402 = vunpack.c.h.b16 %v72
  %v403 = vunpack.c.l.b16 %v73
  %v404 = vunpack.c.l.b16 %v74
  %v405 = vunpack.c.h.b16 %v74
  %v406 = vunpack.c.l.b16 %v75
  %v407 = vunpack.c.l.b16 %v76
  %v408 = vunpack.c.h.b16 %v76
  %v409 = vunpack.c.l.b16 %v77
  %v410 = vunpack.c.l.b16 %v78
  %v411 = vunpack.c.h.b16 %v78
  %v412 = vunpack.c.l.b16 %v79
  %v413 = vunpack.c.l.b16 %v80
  %v414 = vunpack.c.h.b16 %v80
  %v415 = vunpack.c.l.b16 %v81
  %v416 = vunpack.c.l.b16 %v82
  %v417 = vunpack.c.h.b16 %v82
  %v418 = vunpack.c.l.b16 %v83
  %v419 = vunpack.c.l.b16 %v84
  %v420 = vunpack.c.h.b16 %v84
  %v421 = vunpack.c.l.b16 %v85
  %v422 = vunpack.c.l.b16 %v86
  %v423 = vunpack.c.h.b16 %v86
  %v424 = vunpack.c.l.b16 %v87
  %v425 = vunpack.c.l.b16 %v88
  %v426 = vunpack.c.h.b16 %v88
  %v427 = vunpack.c.l.b16 %v89
  %v428 = vunpack.c.l.b16 %v90
  %v429 = vunpack.c.h.b16 %v90
  %v430 = vunpack.c.l.b16 %v91
  %v431 = vunpack.c.l.b16 %v92
  %v432 = vunpack.c.h.b16 %v92
  %v433 = vunpack.c.l.b16 %v93
  %v434 = vunpack.c.l.b16 %v94
  %v435 = vunpack.c.h.b16 %v94
  %v436 = vunpack.c.l.b16 %v95
  %v437 = vunpack.c.l.b16 %v96
  %v438 = vunpack.c.h.b16 %v96
  %v439 = vunpack.c.l.b16 %v97
  %v440 = vunpack.c.l.b16 %v98
  %v441 = vunpack.c.h.b16 %v98
  %v442 = vunpack.c.l.b16 %v99
  %v443 = vunpack.c.l.b16 %v100
  %v444 = vunpack.c.h.b16 %v100
  %v445 = vunpack.c.l.b16 %v101
  %v446 = vunpack.c.l.b16 %v102
  %v447 = vunpack.c.h.b16 %v102
  %v448 = vunpack.c.l.b16 %v103
  %v449 = vunpack.c.l.b16 %v104
  %v450 = vunpack.c.h.b16 %v104
  %v451 = vunpack.c.l.b16 %v105
  %v452 = vunpack.c.l.b16 %v106
  %v453 = vunpack.c.h.b16 %v106
  %v454 = vunpack.c.l.b16 %v107
  %v455 = vunpack.c.l.b16 %v108
  %v456 = vunpack.c.h.b16 %v108
  %v457 = vunpack.c.l.b16 %v109
  %v458 = vunpack.c.l.b16 %v110
  %v459 = vunpack.c.h.b16 %v110
  %v460 = vunpack.c.l.b16 %v111
  %v461 = vunpack.c.l.b16 %v112
  %v462 = vunpack.c.h.b16 %v112
  %v463 = vunpack.c.l.b16 %v113
  %v464 = vunpack.c.l.b16 %v114
  %v465 = vunpack.c.h.b16 %v114
  %v466 = vunpack.c.l.b16 %v115
  %v467 = vunpack.c.l.b16 %v116
  %v468 = vunpack.c.h.b16 %v116
  %v469 = vunpack.c.l.b16 %v117
  %v470 = vunpack.c.l.b16 %v118
  %v471 = vunpack.c.h.b16 %v118
  %v472 = vunpack.c.l.b16 %v119
  %v473 = vunpack.c.l.b16 %v120
  %v474 = vunpack.c.h.b16 %v120
  %v475 = vunpack.c.l.b16 %v121
  %v476 = vunpack.c.l.b16 %v122
  %v477 = vunpack.c.h.b16 %v122
  %v478 = vunpack.c.l.b16 %v123
  %v479 = vunpack.c.l.b16 %v124
  %v480 = vunpack.c.h.b16 %v124
  %v481 = vunpack.c.l.b16 %v125
  %v482 = vunpack.c.l.b16 %v126
  %v483 = vunpack.c.h.b16 %v126
  %v484 = vunpack.c.l.b16 %v127
  %v485 = vunpack.c.l.b16 %v128
  %v486 = vunpack.c.h.b16 %v128
  %v487 = vunpack.c.l.b16 %v129
  %v488 = vunpack.c.l.b16 %v130
  %v489 = vunpack.c.h.b16 %v130
  %v490 = vunpack.c.l.b16 %v131
  %v491 = vunpack.c.l.b16 %v132
  %v492 = vunpack.c.h.b16 %v132
  %v493 = vunpack.c.l.b16 %v133
  %v494 = vunpack.c.l.b16 %v134
  %v495 = vunpack.c.h.b16 %v134
  %v496 = vunpack.c.l.b16 %v135
  %v497 = vunpack.c.l.b16 %v136
  %v498 = vunpack.c.h.b16 %v136
  %v499 = vunpack.c.l.b16 %v137
  %v500 = vunpack.c.l.b16 %v138
  %v501 = vunpack.c.h.b16 %v138
  %v502 = vunpack.c.l.b16 %v139
  %v503 = vunpack.c.l.b16 %v140
  %v504 = vunpack.c.h.b16 %v140
  %v505 = vunpack.c.l.b16 %v141
  %v506 = vunpack.c.l.b16 %v142
  %v507 = vunpack.c.h.b16 %v142
  %v508 = vunpack.c.l.b16 %v143
  %v509 = vunpack.c.l.b16 %v144
  %v510 = vunpack.c.h.b16 %v144
  %v511 = vunpack.c.l.b16 %v145
  %v512 = vunpack.c.l.b16 %v146
  %v513 = vunpack.c.h.b16 %v146
  %v514 = vunpack.c.l.b16 %v147
  %v515 = vunpack.c.l.b16 %v148
  %v516 = vunpack.c.h.b16 %v148
  %v517 = vunpack.c.l.b16 %v149
  %v518 = vpack.c.b16 %v329, %v326
  %v519 = vpack.c.b16 %v330, %v327
  %v520 = vpack.c.b16 %v331, %v328
  %v521 = vpack.c.b16 %v335, %v332
  %v522 = vpack.c.b16 %v336, %v333
  %v523 = vpack.c.b16 %v337, %v334
  %v524 = vpack.c.b16 %v341, %v338
  %v525 = vpack.c.b16 %v342, %v339
  %v526 = vpack.c.b16 %v343, %v340
  %v527 = vpack.c.b16 %v347, %v344
  %v528 = vpack.c.b16 %v348, %v345
  %v529 = vpack.c.b16 %v349, %v346
  %v530 = vpack.c.b16 %v353, %v350
  %v531 = vpack.c.b16 %v354, %v351
  %v532 = vpack.c.b16 %v355, %v352
  %v533 = vpack.c.b16 %v359, %v356
  %v534 = vpack.c.b16 %v360, %v357
  %v535 = vpack.c.b16 %v361, %v358
  %v536 = vpack.c.b16 %v365, %v362
  %v537 = vpack.c.b16 %v366, %v363
  %v538 = vpack.c.b16 %v367, %v364
  %v539 = vpack.c.b16 %v371, %v368
  %v540 = vpack.c.b16 %v372, %v369
  %v541 = vpack.c.b16 %v373, %v370
  %v542 = vpack.c.b16 %v377, %v374
  %v543 = vpack.c.b16 %v378, %v375
  %v544 = vpack.c.b16 %v379, %v376
  %v545 = vpack.c.b16 %v383, %v380
  %v546 = vpack.c.b16 %v384, %v381
  %v547 = vpack.c.b16 %v385, %v382
  %v548 = vpack.c.b16 %v389, %v386
  %v549 = vpack.c.b16 %v390, %v387
  %v550 = vpack.c.b16 %v391, %v388
  %v551 = vpack.c.b16 %v395, %v392
  %v552 = vpack.c.b16 %v396, %v393
  %v553 = vpack.c.b16 %v397, %v394
  %v554 = vpack.c.b16 %v401, %v398
  %v555 = vpack.c.b16 %v402, %v399
  %v556 = vpack.c.b16 %v403, %v400
  %v557 = vpack.c.b16 %v407, %v404
  %v558 = vpack.c.b16 %v408, %v405
  %v559 = vpack.c.b16 %v409, %v406
  %v560 = vpack.c.b16 %v413, %v410
  %v561 = vpack.c.b16 %v414, %v411
  %v562 = vpack.c.b16 %v415, %v412
  %v563 = vpack.c.b16 %v419, %v416
  %v564 = vpack.c.b16 %v420, %v417
  %v565 = vpack.c.b16 %v421, %v418
  %v566 = vpack.c.b16 %v425, %v422
  %v567 = vpack.c.b16 %v426, %v423
  %v568 = vpack.c.b16 %v427, %v424
  %v569 = vpack.c.b16 %v431, %v428
  %v570 = vpack.c.b16 %v432, %v429
  %v571 = vpack.c.b16 %v433, %v430
  %v572 = vpack.c.b16 %v437, %v434
  %v573 = vpack.c.b16 %v438, %v435
  %v574 = vpack.c.b16 %v439, %v436
  %v575 = vpack.c.b16 %v443, %v440
  %v576 = vpack.c.b16 %v444, %v441
  %v577 = vpack.c.b16 %v445, %v442
  %v578 = vpack.c.b16 %v449, %v446
  %v579 = vpack.c.b16 %v450, %v447
  %v580 = vpack.c.b16 %v451, %v448
  %v581 = vpack.c.b16 %v455, %v452
  %v582 = vpack.c.b16 %v456, %v453
  %v583 = vpack.c.b16 %v457, %v454
  %v584 = vpack.c.b16 %v461, %v458
  %v585 = vpack.c.b16 %v462, %v459
  %v586 = vpack.c.b16 %v463, %v460
  %v587 = vpack.c.b16 %v467, %v464
  %v588 = vpack.c.b16 %v468, %v465
  %v589 = vpack.c.b16 %v469, %v466
  %v590 = vpack.c.b16 %v473, %v470
  %v591 = vpack.c.b16 %v474, %v471
  %v592 = vpack.c.b16 %v475, %v472
  %v593 = vpack.c.b16 %v479, %v476
  %v594 = vpack.c.b16 %v480, %v477
  %v595 = vpack.c.b16 %v481, %v478
  %v596 = vpack.c.b16 %v485, %v482
  %v597 = vpack.c.b16 %v486, %v483
  %v598 = vpack.c.b16 %v487, %v484
  %v599 = vpack.c.b16 %v491, %v488
  %v600 = vpack.c.b16 %v492, %v489
  %v601 = vpack.c.b16 %v493, %v490
  %v602 = vpack.c.b16 %v497, %v494
  %v603 = vpack.c.b16 %v498, %v495
  %v604 = vpack.c.b16 %v499, %v496
  %v605 = vpack.c.b16 %v503, %v500
  %v606 = vpack.c.b16 %v504, %v501
  %v607 = vpack.c.b16 %v505, %v502
  %v608 = vpack.c.b16 %v509, %v506
  %v609 = vpack.c.b16 %v510, %v507
  %v610 = vpack.c.b16 %v511, %v508
  %v611 = vpack.c.b16 %v515, %v512
  %v612 = vpack.c.b16 %v516, %v513
  %v613 = vpack.c.b16 %v517, %v514
  %v758 = vunpack.c.l.b16 %v150
  %v759 = vunpack.c.l.b16 %v151
  %v760 = vunpack.c.l.b16 %v152
  %v761 = vunpack.c.l.b16 %v153
  %v762 = vunpack.c.l.b16 %v154
  %v763 = vunpack.c.l.b16 %v155
  %v764 = vunpack.c.l.b16 %v156
  %v765 = vunpack.c.l.b16 %v157
  %v766 = vunpack.c.l.b16 %v158
  %v767 = vunpack.c.l.b16 %v159
  %v768 = vunpack.c.l.b16 %v160
  %v769 = vunpack.c.l.b16 %v161
  %v770 = vunpack.c.l.b16 %v162
  %v771 = vunpack.c.l.b16 %v163
  %v772 = vunpack.c.l.b16 %v164
  %v773 = vunpack.c.l.b16 %v165
  %v774 = vunpack.c.l.b16 %v166
  %v775 = vunpack.c.l.b16 %v167
  %v776 = vunpack.c.l.b16 %v168
  %v777 = vunpack.c.l.b16 %v169
  %v778 = vunpack.c.l.b16 %v170
  %v779 = vunpack.c.l.b16 %v171
  %v780 = vunpack.c.l.b16 %v172
  %v781 = vunpack.c.l.b16 %v173
  %v782 = vunpack.c.l.b16 %v174
  %v783 = vunpack.c.l.b16 %v175
  %v784 = vunpack.c.l.b16 %v176
  %v785 = vunpack.c.l.b16 %v177
  %v786 = vunpack.c.l.b16 %v178
  %v787 = vunpack.c.l.b16 %v179
  %v788 = vunpack.c.l.b16 %v180
  %v789 = vunpack.c.l.b16 %v181
  %v790 = vunpack.c.l.b16 %v182
  %v791 = vunpack.c.l.b16 %v183
  %v792 = vunpack.c.l.b16 %v184
  %v793 = vunpack.c.l.b16 %v185
  %v794 = vunpack.c.l.b16 %v186
  %v795 = vunpack.c.l.b16 %v187
  %v796 = vunpack.c.l.b16 %v188
  %v797 = vunpack.c.l.b16 %v189
  %v798 = vunpack.c.l.b16 %v190
  %v799 = vunpack.c.l.b16 %v191
  %v800 = vunpack.c.l.b16 %v192
  %v801 = vunpack.c.l.b16 %v193
  %v802 = vunpack.c.l.b16 %v194
  %v803 = vunpack.c.l.b16 %v195
  %v804 = vunpack.c.l.b16 %v196
  %v805 = vunpack.c.l.b16 %v197
  %v806 = vpack.c.b16 %v759, %v758
  %v807 = vpack.c.b16 %v761, %v760
  %v808 = vpack.c.b16 %v763, %v762
  %v809 = vpack.c.b16 %v765, %v764
  %v810 = vpack.c.b16 %v767, %v766
  %v811 = vpack.c.b16 %v769, %v768
  %v812 = vpack.c.b16 %v771, %v770
  %v813 = vpack.c.b16 %v773, %v772
  %v814 = vpack.c.b16 %v775, %v774
  %v815 = vpack.c.b16 %v777, %v776
  %v816 = vpack.c.b16 %v779, %v778
  %v817 = vpack.c.b16 %v781, %v780
  %v818 = vpack.c.b16 %v783, %v782
  %v819 = vpack.c.b16 %v785, %v784
  %v820 = vpack.c.b16 %v787, %v786
  %v821 = vpack.c.b16 %v789, %v788
  %v822 = vpack.c.b16 %v791, %v790
  %v823 = vpack.c.b16 %v793, %v792
  %v824 = vpack.c.b16 %v795, %v794
  %v825 = vpack.c.b16 %v797, %v796
  %v826 = vpack.c.b16 %v799, %v798
  %v827 = vpack.c.b16 %v801, %v800
  %v828 = vpack.c.b16 %v803, %v802
  %v829 = vpack.c.b16 %v805, %v804
  %854 = vmatprep.subr.bf16.mxu0 0
  %855 = vmatpush1.bf16.msra.mxu0 %v806
  %856 = vmatprep.subr.bf16.mxu0 0
  %857 = vmatpush1.bf16.msra.mxu0 %v807
  %858 = vmatprep.subr.bf16.mxu0 0
  %859 = vmatpush1.bf16.msra.mxu0 %v808
  %860 = vmatprep.subr.bf16.mxu0 0
  %861 = vmatpush1.bf16.msra.mxu0 %v809
  %862 = vmatprep.subr.bf16.mxu0 0
  %863 = vmatpush1.bf16.msra.mxu0 %v810
  %864 = vmatprep.subr.bf16.mxu0 0
  %865 = vmatpush1.bf16.msra.mxu0 %v811
  %866 = vmatprep.subr.bf16.mxu0 0
  %867 = vmatpush1.bf16.msra.mxu0 %v812
  %868 = vmatprep.subr.bf16.mxu0 0
  %869 = vmatpush1.bf16.msra.mxu0 %v813
  %870 = vmatprep.subr.bf16.mxu0 0
  %871 = vmatpush1.bf16.msra.mxu0 %v814
  %872 = vmatprep.subr.bf16.mxu0 0
  %873 = vmatpush1.bf16.msra.mxu0 %v815
  %874 = vmatprep.subr.bf16.mxu0 0
  %875 = vmatpush1.bf16.msra.mxu0 %v816
  %876 = vmatprep.subr.bf16.mxu0 0
  %877 = vmatpush1.bf16.msra.mxu0 %v817
  %878 = vmatprep.subr.bf16.mxu0 0
  %879 = vmatpush1.bf16.msra.mxu0 %v818
  %880 = vmatprep.subr.bf16.mxu0 0
  %881 = vmatpush1.bf16.msra.mxu0 %v819
  %882 = vmatprep.subr.bf16.mxu0 0
  %883 = vmatpush1.bf16.msra.mxu0 %v820
  %884 = vmatprep.subr.bf16.mxu0 0
  %885 = vmatpush1.bf16.msra.mxu0 %v821
  %886 = vmatprep.mubr.bf16.mxu0 %v519
  %887 = vmatmul.mubr.bf16.gmra.mrb[0].mxu0 %v518
  %v888 = vpop.f32.mrb[0].mxu0
  %v889 = vadd.f32 0.0, %v888
  %v890 = vpop.f32.mrb[0].mxu0
  %v891 = vpop.f32.mrb[0].mxu0
  %v892 = vadd.f32 0.0, %v891
  %v893 = vpop.f32.mrb[0].mxu0
  %894 = vmatprep.mubr.bf16.mxu0 %v522
  %895 = vmatmul.mubr.bf16.gmra.mrb[0].mxu0 %v521
  %v896 = vpop.f32.mrb[0].mxu0
  %v897 = vadd.f32 0.0, %v896
  %v898 = vpop.f32.mrb[0].mxu0
  %v899 = vpop.f32.mrb[0].mxu0
  %v900 = vadd.f32 0.0, %v899
  %v901 = vpop.f32.mrb[0].mxu0
  %902 = vmatprep.mubr.bf16.mxu0 %v525
  %903 = vmatmul.mubr.bf16.gmra.mrb[0].mxu0 %v524
  %v904 = vpop.f32.mrb[0].mxu0
  %v905 = vadd.f32 0.0, %v904
  %v906 = vpop.f32.mrb[0].mxu0
  %v907 = vpop.f32.mrb[0].mxu0
  %v908 = vadd.f32 0.0, %v907
  %v909 = vpop.f32.mrb[0].mxu0
  %910 = vmatprep.mubr.bf16.mxu0 %v528
  %911 = vmatmul.mubr.bf16.gmra.mrb[0].mxu0 %v527
  %v912 = vpop.f32.mrb[0].mxu0
  %v913 = vadd.f32 0.0, %v912
  %v914 = vpop.f32.mrb[0].mxu0
  %v915 = vpop.f32.mrb[0].mxu0
  %v916 = vadd.f32 0.0, %v915
  %v917 = vpop.f32.mrb[0].mxu0
  %918 = vmatprep.mubr.bf16.mxu0 %v531
  %919 = vmatmul.mubr.bf16.gmra.mrb[0].mxu0 %v530
  %v920 = vpop.f32.mrb[0].mxu0
  %v921 = vadd.f32 0.0, %v920
  %v922 = vpop.f32.mrb[0].mxu0
  %v923 = vpop.f32.mrb[0].mxu0
  %v924 = vadd.f32 0.0, %v923
  %v925 = vpop.f32.mrb[0].mxu0
  %926 = vmatprep.mubr.bf16.mxu0 %v534
  %927 = vmatmul.mubr.bf16.gmra.mrb[0].mxu0 %v533
  %v928 = vpop.f32.mrb[0].mxu0
  %v929 = vadd.f32 0.0, %v928
  %v930 = vpop.f32.mrb[0].mxu0
  %v931 = vpop.f32.mrb[0].mxu0
  %v932 = vadd.f32 0.0, %v931
  %v933 = vpop.f32.mrb[0].mxu0
  %934 = vmatprep.mubr.bf16.mxu0 %v537
  %935 = vmatmul.mubr.bf16.gmra.mrb[0].mxu0 %v536
  %v936 = vpop.f32.mrb[0].mxu0
  %v937 = vadd.f32 0.0, %v936
  %v938 = vpop.f32.mrb[0].mxu0
  %v939 = vpop.f32.mrb[0].mxu0
  %v940 = vadd.f32 0.0, %v939
  %v941 = vpop.f32.mrb[0].mxu0
  %942 = vmatprep.mubr.bf16.mxu0 %v540
  %943 = vmatmul.mubr.bf16.gmra.mrb[0].mxu0 %v539
  %v944 = vpop.f32.mrb[0].mxu0
  %v945 = vadd.f32 0.0, %v944
  %v946 = vpop.f32.mrb[0].mxu0
  %v947 = vpop.f32.mrb[0].mxu0
  %v948 = vadd.f32 0.0, %v947
  %v949 = vpop.f32.mrb[0].mxu0
  %950 = vmatprep.mubr.bf16.mxu0 %v543
  %951 = vmatmul.mubr.bf16.gmra.mrb[0].mxu0 %v542
  %v952 = vpop.f32.mrb[0].mxu0
  %v953 = vadd.f32 0.0, %v952
  %v954 = vpop.f32.mrb[0].mxu0
  %v955 = vpop.f32.mrb[0].mxu0
  %v956 = vadd.f32 0.0, %v955
  %v957 = vpop.f32.mrb[0].mxu0
  %958 = vmatprep.mubr.bf16.mxu0 %v546
  %959 = vmatmul.mubr.bf16.gmra.mrb[0].mxu0 %v545
  %v960 = vpop.f32.mrb[0].mxu0
  %v961 = vadd.f32 0.0, %v960
  %v962 = vpop.f32.mrb[0].mxu0
  %v963 = vpop.f32.mrb[0].mxu0
  %v964 = vadd.f32 0.0, %v963
  %v965 = vpop.f32.mrb[0].mxu0
  %966 = vmatprep.mubr.bf16.mxu0 %v549
  %967 = vmatmul.mubr.bf16.gmra.mrb[0].mxu0 %v548
  %v968 = vpop.f32.mrb[0].mxu0
  %v969 = vadd.f32 0.0, %v968
  %v970 = vpop.f32.mrb[0].mxu0
  %v971 = vpop.f32.mrb[0].mxu0
  %v972 = vadd.f32 0.0, %v971
  %v973 = vpop.f32.mrb[0].mxu0
  %974 = vmatprep.mubr.bf16.mxu0 %v552
  %975 = vmatmul.mubr.bf16.gmra.mrb[0].mxu0 %v551
  %v976 = vpop.f32.mrb[0].mxu0
  %v977 = vadd.f32 0.0, %v976
  %v978 = vpop.f32.mrb[0].mxu0
  %v979 = vpop.f32.mrb[0].mxu0
  %v980 = vadd.f32 0.0, %v979
  %v981 = vpop.f32.mrb[0].mxu0
  %982 = vmatprep.mubr.bf16.mxu0 %v555
  %983 = vmatmul.mubr.bf16.gmra.mrb[0].mxu0 %v554
  %v984 = vpop.f32.mrb[0].mxu0
  %v985 = vadd.f32 0.0, %v984
  %v986 = vpop.f32.mrb[0].mxu0
  %v987 = vpop.f32.mrb[0].mxu0
  %v988 = vadd.f32 0.0, %v987
  %v989 = vpop.f32.mrb[0].mxu0
  %990 = vmatprep.mubr.bf16.mxu0 %v558
  %991 = vmatmul.mubr.bf16.gmra.mrb[0].mxu0 %v557
  %v992 = vpop.f32.mrb[0].mxu0
  %v993 = vadd.f32 0.0, %v992
  %v994 = vpop.f32.mrb[0].mxu0
  %v995 = vpop.f32.mrb[0].mxu0
  %v996 = vadd.f32 0.0, %v995
  %v997 = vpop.f32.mrb[0].mxu0
  %998 = vmatprep.mubr.bf16.mxu0 %v561
  %999 = vmatmul.mubr.bf16.gmra.mrb[0].mxu0 %v560
  %v1000 = vpop.f32.mrb[0].mxu0
  %v1001 = vadd.f32 0.0, %v1000
  %v1002 = vpop.f32.mrb[0].mxu0
  %v1003 = vpop.f32.mrb[0].mxu0
  %v1004 = vadd.f32 0.0, %v1003
  %v1005 = vpop.f32.mrb[0].mxu0
  %1006 = vmatprep.mubr.bf16.mxu0 %v564
  %1007 = vmatmul.mubr.bf16.gmra.mrb[0].mxu0 %v563
  %v1008 = vpop.f32.mrb[0].mxu0
  %v1009 = vadd.f32 0.0, %v1008
  %v1010 = vpop.f32.mrb[0].mxu0
  %v1011 = vpop.f32.mrb[0].mxu0
  %v1012 = vadd.f32 0.0, %v1011
  %v1013 = vpop.f32.mrb[0].mxu0
  %1014 = vmatprep.mubr.bf16.mxu0 %v567
  %1015 = vmatmul.mubr.bf16.gmra.mrb[0].mxu0 %v566
  %v1016 = vpop.f32.mrb[0].mxu0
  %v1017 = vadd.f32 0.0, %v1016
  %v1018 = vpop.f32.mrb[0].mxu0
  %v1019 = vpop.f32.mrb[0].mxu0
  %v1020 = vadd.f32 0.0, %v1019
  %v1021 = vpop.f32.mrb[0].mxu0
  %1022 = vmatprep.mubr.bf16.mxu0 %v570
  %1023 = vmatmul.mubr.bf16.gmra.mrb[0].mxu0 %v569
  %v1024 = vpop.f32.mrb[0].mxu0
  %v1025 = vadd.f32 0.0, %v1024
  %v1026 = vpop.f32.mrb[0].mxu0
  %v1027 = vpop.f32.mrb[0].mxu0
  %v1028 = vadd.f32 0.0, %v1027
  %v1029 = vpop.f32.mrb[0].mxu0
  %1030 = vmatprep.mubr.bf16.mxu0 %v573
  %1031 = vmatmul.mubr.bf16.gmra.mrb[0].mxu0 %v572
  %v1032 = vpop.f32.mrb[0].mxu0
  %v1033 = vadd.f32 0.0, %v1032
  %v1034 = vpop.f32.mrb[0].mxu0
  %v1035 = vpop.f32.mrb[0].mxu0
  %v1036 = vadd.f32 0.0, %v1035
  %v1037 = vpop.f32.mrb[0].mxu0
  %1038 = vmatprep.mubr.bf16.mxu0 %v576
  %1039 = vmatmul.mubr.bf16.gmra.mrb[0].mxu0 %v575
  %v1040 = vpop.f32.mrb[0].mxu0
  %v1041 = vadd.f32 0.0, %v1040
  %v1042 = vpop.f32.mrb[0].mxu0
  %v1043 = vpop.f32.mrb[0].mxu0
  %v1044 = vadd.f32 0.0, %v1043
  %v1045 = vpop.f32.mrb[0].mxu0
  %1046 = vmatprep.mubr.bf16.mxu0 %v579
  %1047 = vmatmul.mubr.bf16.gmra.mrb[0].mxu0 %v578
  %v1048 = vpop.f32.mrb[0].mxu0
  %v1049 = vadd.f32 0.0, %v1048
  %v1050 = vpop.f32.mrb[0].mxu0
  %v1051 = vpop.f32.mrb[0].mxu0
  %v1052 = vadd.f32 0.0, %v1051
  %v1053 = vpop.f32.mrb[0].mxu0
  %1054 = vmatprep.mubr.bf16.mxu0 %v582
  %1055 = vmatmul.mubr.bf16.gmra.mrb[0].mxu0 %v581
  %v1056 = vpop.f32.mrb[0].mxu0
  %v1057 = vadd.f32 0.0, %v1056
  %v1058 = vpop.f32.mrb[0].mxu0
  %v1059 = vpop.f32.mrb[0].mxu0
  %v1060 = vadd.f32 0.0, %v1059
  %v1061 = vpop.f32.mrb[0].mxu0
  %1062 = vmatprep.mubr.bf16.mxu0 %v585
  %1063 = vmatmul.mubr.bf16.gmra.mrb[0].mxu0 %v584
  %v1064 = vpop.f32.mrb[0].mxu0
  %v1065 = vadd.f32 0.0, %v1064
  %v1066 = vpop.f32.mrb[0].mxu0
  %v1067 = vpop.f32.mrb[0].mxu0
  %v1068 = vadd.f32 0.0, %v1067
  %v1069 = vpop.f32.mrb[0].mxu0
  %1070 = vmatprep.mubr.bf16.mxu0 %v588
  %1071 = vmatmul.mubr.bf16.gmra.mrb[0].mxu0 %v587
  %v1072 = vpop.f32.mrb[0].mxu0
  %v1073 = vadd.f32 0.0, %v1072
  %v1074 = vpop.f32.mrb[0].mxu0
  %v1075 = vpop.f32.mrb[0].mxu0
  %v1076 = vadd.f32 0.0, %v1075
  %v1077 = vpop.f32.mrb[0].mxu0
  %1078 = vmatprep.mubr.bf16.mxu0 %v591
  %1079 = vmatmul.mubr.bf16.gmra.mrb[0].mxu0 %v590
  %v1080 = vpop.f32.mrb[0].mxu0
  %v1081 = vadd.f32 0.0, %v1080
  %v1082 = vpop.f32.mrb[0].mxu0
  %v1083 = vpop.f32.mrb[0].mxu0
  %v1084 = vadd.f32 0.0, %v1083
  %v1085 = vpop.f32.mrb[0].mxu0
  %1086 = vmatprep.mubr.bf16.mxu0 %v594
  %1087 = vmatmul.mubr.bf16.gmra.mrb[0].mxu0 %v593
  %v1088 = vpop.f32.mrb[0].mxu0
  %v1089 = vadd.f32 0.0, %v1088
  %v1090 = vpop.f32.mrb[0].mxu0
  %v1091 = vpop.f32.mrb[0].mxu0
  %v1092 = vadd.f32 0.0, %v1091
  %v1093 = vpop.f32.mrb[0].mxu0
  %1094 = vmatprep.mubr.bf16.mxu0 %v597
  %1095 = vmatmul.mubr.bf16.gmra.mrb[0].mxu0 %v596
  %v1096 = vpop.f32.mrb[0].mxu0
  %v1097 = vadd.f32 0.0, %v1096
  %v1098 = vpop.f32.mrb[0].mxu0
  %v1099 = vpop.f32.mrb[0].mxu0
  %v1100 = vadd.f32 0.0, %v1099
  %v1101 = vpop.f32.mrb[0].mxu0
  %1102 = vmatprep.mubr.bf16.mxu0 %v600
  %1103 = vmatmul.mubr.bf16.gmra.mrb[0].mxu0 %v599
  %v1104 = vpop.f32.mrb[0].mxu0
  %v1105 = vadd.f32 0.0, %v1104
  %v1106 = vpop.f32.mrb[0].mxu0
  %v1107 = vpop.f32.mrb[0].mxu0
  %v1108 = vadd.f32 0.0, %v1107
  %v1109 = vpop.f32.mrb[0].mxu0
  %1110 = vmatprep.mubr.bf16.mxu0 %v603
  %1111 = vmatmul.mubr.bf16.gmra.mrb[0].mxu0 %v602
  %v1112 = vpop.f32.mrb[0].mxu0
  %v1113 = vadd.f32 0.0, %v1112
  %v1114 = vpop.f32.mrb[0].mxu0
  %v1115 = vpop.f32.mrb[0].mxu0
  %v1116 = vadd.f32 0.0, %v1115
  %v1117 = vpop.f32.mrb[0].mxu0
  %1118 = vmatprep.mubr.bf16.mxu0 %v606
  %1119 = vmatmul.mubr.bf16.gmra.mrb[0].mxu0 %v605
  %v1120 = vpop.f32.mrb[0].mxu0
  %v1121 = vadd.f32 0.0, %v1120
  %v1122 = vpop.f32.mrb[0].mxu0
  %v1123 = vpop.f32.mrb[0].mxu0
  %v1124 = vadd.f32 0.0, %v1123
  %v1125 = vpop.f32.mrb[0].mxu0
  %1126 = vmatprep.mubr.bf16.mxu0 %v609
  %1127 = vmatmul.mubr.bf16.gmra.mrb[0].mxu0 %v608
  %v1128 = vpop.f32.mrb[0].mxu0
  %v1129 = vadd.f32 0.0, %v1128
  %v1130 = vpop.f32.mrb[0].mxu0
  %v1131 = vpop.f32.mrb[0].mxu0
  %v1132 = vadd.f32 0.0, %v1131
  %v1133 = vpop.f32.mrb[0].mxu0
  %1134 = vmatprep.mubr.bf16.mxu0 %v612
  %1135 = vmatmul.mubr.bf16.gmra.mrb[0].mxu0 %v611
  %v1136 = vpop.f32.mrb[0].mxu0
  %v1137 = vadd.f32 0.0, %v1136
  %v1138 = vpop.f32.mrb[0].mxu0
  %v1139 = vpop.f32.mrb[0].mxu0
  %v1140 = vadd.f32 0.0, %v1139
  %v1141 = vpop.f32.mrb[0].mxu0
  %1142 = vdwg.mxu0
  %1143 = vmatprep.subr.bf16.mxu0 0
  %1144 = vmatpush1.bf16.msra.mxu0 %v822
  %1145 = vmatprep.subr.bf16.mxu0 0
  %1146 = vmatpush1.bf16.msra.mxu0 %v823
  %1147 = vmatprep.subr.bf16.mxu0 0
  %1148 = vmatpush1.bf16.msra.mxu0 %v824
  %1149 = vmatprep.subr.bf16.mxu0 0
  %1150 = vmatpush1.bf16.msra.mxu0 %v825
  %1151 = vmatprep.subr.bf16.mxu0 0
  %1152 = vmatpush1.bf16.msra.mxu0 %v826
  %1153 = vmatprep.subr.bf16.mxu0 0
  %1154 = vmatpush1.bf16.msra.mxu0 %v827
  %1155 = vmatprep.subr.bf16.mxu0 0
  %1156 = vmatpush1.bf16.msra.mxu0 %v828
  %1157 = vmatprep.subr.bf16.mxu0 0
  %1158 = vmatpush1.bf16.msra.mxu0 %v829
  %1159 = vmatprep.subr.bf16.mxu0 0
  %1160 = vmatpush1.bf16.msra.mxu0 0
  %1161 = vmatprep.subr.bf16.mxu0 0
  %1162 = vmatpush1.bf16.msra.mxu0 0
  %1163 = vmatprep.subr.bf16.mxu0 0
  %1164 = vmatpush1.bf16.msra.mxu0 0
  %1165 = vmatprep.subr.bf16.mxu0 0
  %1166 = vmatpush1.bf16.msra.mxu0 0
  %1167 = vmatprep.subr.bf16.mxu0 0
  %1168 = vmatpush1.bf16.msra.mxu0 0
  %1169 = vmatprep.subr.bf16.mxu0 0
  %1170 = vmatpush1.bf16.msra.mxu0 0
  %1171 = vmatprep.subr.bf16.mxu0 0
  %1172 = vmatpush1.bf16.msra.mxu0 0
  %1173 = vmatprep.subr.bf16.mxu0 0
  %1174 = vmatpush1.bf16.msra.mxu0 0
  %1175 = vmatprep.mubr.bf16.mxu0 0
  %1176 = vmatmul.mubr.bf16.gmra.mrb[0].mxu0 %v520
  %v1177 = vpop.f32.mrb[0].mxu0
  %v1178 = vadd.f32 %v889, %v1177
  %v1179 = vpop.f32.mrb[0].mxu0
  %v1180 = vpop.f32.mrb[0].mxu0
  %v1181 = vadd.f32 %v892, %v1180
  %v1182 = vpop.f32.mrb[0].mxu0
  %1183 = vmatprep.mubr.bf16.mxu0 0
  %1184 = vmatmul.mubr.bf16.gmra.mrb[0].mxu0 %v523
  %v1185 = vpop.f32.mrb[0].mxu0
  %v1186 = vadd.f32 %v897, %v1185
  %v1187 = vpop.f32.mrb[0].mxu0
  %v1188 = vpop.f32.mrb[0].mxu0
  %v1189 = vadd.f32 %v900, %v1188
  %v1190 = vpop.f32.mrb[0].mxu0
  %1191 = vmatprep.mubr.bf16.mxu0 0
  %1192 = vmatmul.mubr.bf16.gmra.mrb[0].mxu0 %v526
  %v1193 = vpop.f32.mrb[0].mxu0
  %v1194 = vadd.f32 %v905, %v1193
  %v1195 = vpop.f32.mrb[0].mxu0
  %v1196 = vpop.f32.mrb[0].mxu0
  %v1197 = vadd.f32 %v908, %v1196
  %v1198 = vpop.f32.mrb[0].mxu0
  %1199 = vmatprep.mubr.bf16.mxu0 0
  %1200 = vmatmul.mubr.bf16.gmra.mrb[0].mxu0 %v529
  %v1201 = vpop.f32.mrb[0].mxu0
  %v1202 = vadd.f32 %v913, %v1201
  %v1203 = vpop.f32.mrb[0].mxu0
  %v1204 = vpop.f32.mrb[0].mxu0
  %v1205 = vadd.f32 %v916, %v1204
  %v1206 = vpop.f32.mrb[0].mxu0
  %1207 = vmatprep.mubr.bf16.mxu0 0
  %1208 = vmatmul.mubr.bf16.gmra.mrb[0].mxu0 %v532
  %v1209 = vpop.f32.mrb[0].mxu0
  %v1210 = vadd.f32 %v921, %v1209
  %v1211 = vpop.f32.mrb[0].mxu0
  %v1212 = vpop.f32.mrb[0].mxu0
  %v1213 = vadd.f32 %v924, %v1212
  %v1214 = vpop.f32.mrb[0].mxu0
  %1215 = vmatprep.mubr.bf16.mxu0 0
  %1216 = vmatmul.mubr.bf16.gmra.mrb[0].mxu0 %v535
  %v1217 = vpop.f32.mrb[0].mxu0
  %v1218 = vadd.f32 %v929, %v1217
  %v1219 = vpop.f32.mrb[0].mxu0
  %v1220 = vpop.f32.mrb[0].mxu0
  %v1221 = vadd.f32 %v932, %v1220
  %v1222 = vpop.f32.mrb[0].mxu0
  %1223 = vmatprep.mubr.bf16.mxu0 0
  %1224 = vmatmul.mubr.bf16.gmra.mrb[0].mxu0 %v538
  %v1225 = vpop.f32.mrb[0].mxu0
  %v1226 = vadd.f32 %v937, %v1225
  %v1227 = vpop.f32.mrb[0].mxu0
  %v1228 = vpop.f32.mrb[0].mxu0
  %v1229 = vadd.f32 %v940, %v1228
  %v1230 = vpop.f32.mrb[0].mxu0
  %1231 = vmatprep.mubr.bf16.mxu0 0
  %1232 = vmatmul.mubr.bf16.gmra.mrb[0].mxu0 %v541
  %v1233 = vpop.f32.mrb[0].mxu0
  %v1234 = vadd.f32 %v945, %v1233
  %v1235 = vpop.f32.mrb[0].mxu0
  %v1236 = vpop.f32.mrb[0].mxu0
  %v1237 = vadd.f32 %v948, %v1236
  %v1238 = vpop.f32.mrb[0].mxu0
  %1239 = vmatprep.mubr.bf16.mxu0 0
  %1240 = vmatmul.mubr.bf16.gmra.mrb[0].mxu0 %v544
  %v1241 = vpop.f32.mrb[0].mxu0
  %v1242 = vadd.f32 %v953, %v1241
  %v1243 = vpop.f32.mrb[0].mxu0
  %v1244 = vpop.f32.mrb[0].mxu0
  %v1245 = vadd.f32 %v956, %v1244
  %v1246 = vpop.f32.mrb[0].mxu0
  %1247 = vmatprep.mubr.bf16.mxu0 0
  %1248 = vmatmul.mubr.bf16.gmra.mrb[0].mxu0 %v547
  %v1249 = vpop.f32.mrb[0].mxu0
  %v1250 = vadd.f32 %v961, %v1249
  %v1251 = vpop.f32.mrb[0].mxu0
  %v1252 = vpop.f32.mrb[0].mxu0
  %v1253 = vadd.f32 %v964, %v1252
  %v1254 = vpop.f32.mrb[0].mxu0
  %1255 = vmatprep.mubr.bf16.mxu0 0
  %1256 = vmatmul.mubr.bf16.gmra.mrb[0].mxu0 %v550
  %v1257 = vpop.f32.mrb[0].mxu0
  %v1258 = vadd.f32 %v969, %v1257
  %v1259 = vpop.f32.mrb[0].mxu0
  %v1260 = vpop.f32.mrb[0].mxu0
  %v1261 = vadd.f32 %v972, %v1260
  %v1262 = vpop.f32.mrb[0].mxu0
  %1263 = vmatprep.mubr.bf16.mxu0 0
  %1264 = vmatmul.mubr.bf16.gmra.mrb[0].mxu0 %v553
  %v1265 = vpop.f32.mrb[0].mxu0
  %v1266 = vadd.f32 %v977, %v1265
  %v1267 = vpop.f32.mrb[0].mxu0
  %v1268 = vpop.f32.mrb[0].mxu0
  %v1269 = vadd.f32 %v980, %v1268
  %v1270 = vpop.f32.mrb[0].mxu0
  %1271 = vmatprep.mubr.bf16.mxu0 0
  %1272 = vmatmul.mubr.bf16.gmra.mrb[0].mxu0 %v556
  %v1273 = vpop.f32.mrb[0].mxu0
  %v1274 = vadd.f32 %v985, %v1273
  %v1275 = vpop.f32.mrb[0].mxu0
  %v1276 = vpop.f32.mrb[0].mxu0
  %v1277 = vadd.f32 %v988, %v1276
  %v1278 = vpop.f32.mrb[0].mxu0
  %1279 = vmatprep.mubr.bf16.mxu0 0
  %1280 = vmatmul.mubr.bf16.gmra.mrb[0].mxu0 %v559
  %v1281 = vpop.f32.mrb[0].mxu0
  %v1282 = vadd.f32 %v993, %v1281
  %v1283 = vpop.f32.mrb[0].mxu0
  %v1284 = vpop.f32.mrb[0].mxu0
  %v1285 = vadd.f32 %v996, %v1284
  %v1286 = vpop.f32.mrb[0].mxu0
  %1287 = vmatprep.mubr.bf16.mxu0 0
  %1288 = vmatmul.mubr.bf16.gmra.mrb[0].mxu0 %v562
  %v1289 = vpop.f32.mrb[0].mxu0
  %v1290 = vadd.f32 %v1001, %v1289
  %v1291 = vpop.f32.mrb[0].mxu0
  %v1292 = vpop.f32.mrb[0].mxu0
  %v1293 = vadd.f32 %v1004, %v1292
  %v1294 = vpop.f32.mrb[0].mxu0
  %1295 = vmatprep.mubr.bf16.mxu0 0
  %1296 = vmatmul.mubr.bf16.gmra.mrb[0].mxu0 %v565
  %v1297 = vpop.f32.mrb[0].mxu0
  %v1298 = vadd.f32 %v1009, %v1297
  %v1299 = vpop.f32.mrb[0].mxu0
  %v1300 = vpop.f32.mrb[0].mxu0
  %v1301 = vadd.f32 %v1012, %v1300
  %v1302 = vpop.f32.mrb[0].mxu0
  %1303 = vmatprep.mubr.bf16.mxu0 0
  %1304 = vmatmul.mubr.bf16.gmra.mrb[0].mxu0 %v568
  %v1305 = vpop.f32.mrb[0].mxu0
  %v1306 = vadd.f32 %v1017, %v1305
  %v1307 = vpop.f32.mrb[0].mxu0
  %v1308 = vpop.f32.mrb[0].mxu0
  %v1309 = vadd.f32 %v1020, %v1308
  %v1310 = vpop.f32.mrb[0].mxu0
  %1311 = vmatprep.mubr.bf16.mxu0 0
  %1312 = vmatmul.mubr.bf16.gmra.mrb[0].mxu0 %v571
  %v1313 = vpop.f32.mrb[0].mxu0
  %v1314 = vadd.f32 %v1025, %v1313
  %v1315 = vpop.f32.mrb[0].mxu0
  %v1316 = vpop.f32.mrb[0].mxu0
  %v1317 = vadd.f32 %v1028, %v1316
  %v1318 = vpop.f32.mrb[0].mxu0
  %1319 = vmatprep.mubr.bf16.mxu0 0
  %1320 = vmatmul.mubr.bf16.gmra.mrb[0].mxu0 %v574
  %v1321 = vpop.f32.mrb[0].mxu0
  %v1322 = vadd.f32 %v1033, %v1321
  %v1323 = vpop.f32.mrb[0].mxu0
  %v1324 = vpop.f32.mrb[0].mxu0
  %v1325 = vadd.f32 %v1036, %v1324
  %v1326 = vpop.f32.mrb[0].mxu0
  %1327 = vmatprep.mubr.bf16.mxu0 0
  %1328 = vmatmul.mubr.bf16.gmra.mrb[0].mxu0 %v577
  %v1329 = vpop.f32.mrb[0].mxu0
  %v1330 = vadd.f32 %v1041, %v1329
  %v1331 = vpop.f32.mrb[0].mxu0
  %v1332 = vpop.f32.mrb[0].mxu0
  %v1333 = vadd.f32 %v1044, %v1332
  %v1334 = vpop.f32.mrb[0].mxu0
  %1335 = vmatprep.mubr.bf16.mxu0 0
  %1336 = vmatmul.mubr.bf16.gmra.mrb[0].mxu0 %v580
  %v1337 = vpop.f32.mrb[0].mxu0
  %v1338 = vadd.f32 %v1049, %v1337
  %v1339 = vpop.f32.mrb[0].mxu0
  %v1340 = vpop.f32.mrb[0].mxu0
  %v1341 = vadd.f32 %v1052, %v1340
  %v1342 = vpop.f32.mrb[0].mxu0
  %1343 = vmatprep.mubr.bf16.mxu0 0
  %1344 = vmatmul.mubr.bf16.gmra.mrb[0].mxu0 %v583
  %v1345 = vpop.f32.mrb[0].mxu0
  %v1346 = vadd.f32 %v1057, %v1345
  %v1347 = vpop.f32.mrb[0].mxu0
  %v1348 = vpop.f32.mrb[0].mxu0
  %v1349 = vadd.f32 %v1060, %v1348
  %v1350 = vpop.f32.mrb[0].mxu0
  %1351 = vmatprep.mubr.bf16.mxu0 0
  %1352 = vmatmul.mubr.bf16.gmra.mrb[0].mxu0 %v586
  %v1353 = vpop.f32.mrb[0].mxu0
  %v1354 = vadd.f32 %v1065, %v1353
  %v1355 = vpop.f32.mrb[0].mxu0
  %v1356 = vpop.f32.mrb[0].mxu0
  %v1357 = vadd.f32 %v1068, %v1356
  %v1358 = vpop.f32.mrb[0].mxu0
  %1359 = vmatprep.mubr.bf16.mxu0 0
  %1360 = vmatmul.mubr.bf16.gmra.mrb[0].mxu0 %v589
  %v1361 = vpop.f32.mrb[0].mxu0
  %v1362 = vadd.f32 %v1073, %v1361
  %v1363 = vpop.f32.mrb[0].mxu0
  %v1364 = vpop.f32.mrb[0].mxu0
  %v1365 = vadd.f32 %v1076, %v1364
  %v1366 = vpop.f32.mrb[0].mxu0
  %1367 = vmatprep.mubr.bf16.mxu0 0
  %1368 = vmatmul.mubr.bf16.gmra.mrb[0].mxu0 %v592
  %v1369 = vpop.f32.mrb[0].mxu0
  %v1370 = vadd.f32 %v1081, %v1369
  %v1371 = vpop.f32.mrb[0].mxu0
  %v1372 = vpop.f32.mrb[0].mxu0
  %v1373 = vadd.f32 %v1084, %v1372
  %v1374 = vpop.f32.mrb[0].mxu0
  %1375 = vmatprep.mubr.bf16.mxu0 0
  %1376 = vmatmul.mubr.bf16.gmra.mrb[0].mxu0 %v595
  %v1377 = vpop.f32.mrb[0].mxu0
  %v1378 = vadd.f32 %v1089, %v1377
  %v1379 = vpop.f32.mrb[0].mxu0
  %v1380 = vpop.f32.mrb[0].mxu0
  %v1381 = vadd.f32 %v1092, %v1380
  %v1382 = vpop.f32.mrb[0].mxu0
  %1383 = vmatprep.mubr.bf16.mxu0 0
  %1384 = vmatmul.mubr.bf16.gmra.mrb[0].mxu0 %v598
  %v1385 = vpop.f32.mrb[0].mxu0
  %v1386 = vadd.f32 %v1097, %v1385
  %v1387 = vpop.f32.mrb[0].mxu0
  %v1388 = vpop.f32.mrb[0].mxu0
  %v1389 = vadd.f32 %v1100, %v1388
  %v1390 = vpop.f32.mrb[0].mxu0
  %1391 = vmatprep.mubr.bf16.mxu0 0
  %1392 = vmatmul.mubr.bf16.gmra.mrb[0].mxu0 %v601
  %v1393 = vpop.f32.mrb[0].mxu0
  %v1394 = vadd.f32 %v1105, %v1393
  %v1395 = vpop.f32.mrb[0].mxu0
  %v1396 = vpop.f32.mrb[0].mxu0
  %v1397 = vadd.f32 %v1108, %v1396
  %v1398 = vpop.f32.mrb[0].mxu0
  %1399 = vmatprep.mubr.bf16.mxu0 0
  %1400 = vmatmul.mubr.bf16.gmra.mrb[0].mxu0 %v604
  %v1401 = vpop.f32.mrb[0].mxu0
  %v1402 = vadd.f32 %v1113, %v1401
  %v1403 = vpop.f32.mrb[0].mxu0
  %v1404 = vpop.f32.mrb[0].mxu0
  %v1405 = vadd.f32 %v1116, %v1404
  %v1406 = vpop.f32.mrb[0].mxu0
  %1407 = vmatprep.mubr.bf16.mxu0 0
  %1408 = vmatmul.mubr.bf16.gmra.mrb[0].mxu0 %v607
  %v1409 = vpop.f32.mrb[0].mxu0
  %v1410 = vadd.f32 %v1121, %v1409
  %v1411 = vpop.f32.mrb[0].mxu0
  %v1412 = vpop.f32.mrb[0].mxu0
  %v1413 = vadd.f32 %v1124, %v1412
  %v1414 = vpop.f32.mrb[0].mxu0
  %1415 = vmatprep.mubr.bf16.mxu0 0
  %1416 = vmatmul.mubr.bf16.gmra.mrb[0].mxu0 %v610
  %v1417 = vpop.f32.mrb[0].mxu0
  %v1418 = vadd.f32 %v1129, %v1417
  %v1419 = vpop.f32.mrb[0].mxu0
  %v1420 = vpop.f32.mrb[0].mxu0
  %v1421 = vadd.f32 %v1132, %v1420
  %v1422 = vpop.f32.mrb[0].mxu0
  %1423 = vmatprep.mubr.bf16.mxu0 0
  %1424 = vmatmul.mubr.bf16.gmra.mrb[0].mxu0 %v613
  %v1425 = vpop.f32.mrb[0].mxu0
  %v1426 = vadd.f32 %v1137, %v1425
  %v1427 = vpop.f32.mrb[0].mxu0
  %v1428 = vpop.f32.mrb[0].mxu0
  %v1429 = vadd.f32 %v1140, %v1428
  %v1430 = vpop.f32.mrb[0].mxu0
  %1431 = vdwg.mxu0
  %s1432 = sld [smem:[#allocation2]]
  %v1433 = vadd.f32 %v1178, %v1181
  %v1434 = vadd.f32 %v1433, %v1186
  %v1435 = vadd.f32 %v1434, %v1189
  %v1436 = vadd.f32 %v1435, %v1194
  %v1437 = vadd.f32 %v1436, %v1197
  %v1438 = vadd.f32 %v1437, %v1202
  %v1439 = vadd.f32 %v1438, %v1205
  %v1440 = vadd.f32 %v1439, %v1210
  %v1441 = vadd.f32 %v1440, %v1213
  %v1442 = vadd.f32 %v1441, %v1218
  %v1443 = vadd.f32 %v1442, %v1221
  %v1444 = vadd.f32 %v1443, %v1226
  %v1445 = vadd.f32 %v1444, %v1229
  %v1446 = vadd.f32 %v1445, %v1234
  %v1447 = vadd.f32 %v1446, %v1237
  %v1448 = vadd.f32 %v1447, %v1242
  %v1449 = vadd.f32 %v1448, %v1245
  %v1450 = vadd.f32 %v1449, %v1250
  %v1451 = vadd.f32 %v1450, %v1253
  %v1452 = vadd.f32 %v1451, %v1258
  %v1453 = vadd.f32 %v1452, %v1261
  %v1454 = vadd.f32 %v1453, %v1266
  %v1455 = vadd.f32 %v1454, %v1269
  %v1456 = vadd.f32 %v1455, %v1274
  %v1457 = vadd.f32 %v1456, %v1277
  %v1458 = vadd.f32 %v1457, %v1282
  %v1459 = vadd.f32 %v1458, %v1285
  %v1460 = vadd.f32 %v1459, %v1290
  %v1461 = vadd.f32 %v1460, %v1293
  %v1462 = vadd.f32 %v1461, %v1298
  %v1463 = vadd.f32 %v1462, %v1301
  %v1464 = vadd.f32 %v1463, %v1306
  %v1465 = vadd.f32 %v1464, %v1309
  %v1466 = vadd.f32 %v1465, %v1314
  %v1467 = vadd.f32 %v1466, %v1317
  %v1468 = vadd.f32 %v1467, %v1322
  %v1469 = vadd.f32 %v1468, %v1325
  %v1470 = vadd.f32 %v1469, %v1330
  %v1471 = vadd.f32 %v1470, %v1333
  %v1472 = vadd.f32 %v1471, %v1338
  %v1473 = vadd.f32 %v1472, %v1341
  %v1474 = vadd.f32 %v1473, %v1346
  %v1475 = vadd.f32 %v1474, %v1349
  %v1476 = vadd.f32 %v1475, %v1354
  %v1477 = vadd.f32 %v1476, %v1357
  %v1478 = vadd.f32 %v1477, %v1362
  %v1479 = vadd.f32 %v1478, %v1365
  %v1480 = vadd.f32 %v1479, %v1370
  %v1481 = vadd.f32 %v1480, %v1373
  %v1482 = vadd.f32 %v1481, %v1378
  %v1483 = vadd.f32 %v1482, %v1381
  %v1484 = vadd.f32 %v1483, %v1386
  %v1485 = vadd.f32 %v1484, %v1389
  %v1486 = vadd.f32 %v1485, %v1394
  %v1487 = vadd.f32 %v1486, %v1397
  %v1488 = vadd.f32 %v1487, %v1402
  %v1489 = vadd.f32 %v1488, %v1405
  %v1490 = vadd.f32 %v1489, %v1410
  %v1491 = vadd.f32 %v1490, %v1413
  %v1492 = vadd.f32 %v1491, %v1418
  %v1493 = vadd.f32 %v1492, %v1421
  %v1494 = vadd.f32 %v1493, %v1426
  %v1495 = vadd.f32 %v1494, %v1429
  %v1496 = vrot.slane %v1495, 4
  %v1497 = vadd.f32 %v1495, %v1496
  %v1498 = vrot.slane %v1497, 2
  %v1499 = vadd.f32 %v1497, %v1498
  %v1500 = vrot.slane %v1499, 1
  %v1501 = vadd.f32 %v1499, %v1500
  %v1502 = vmul.f32 %v1178, %v1178
  %v1503 = vmul.f32 %v1181, %v1181
  %v1504 = vmul.f32 %v1186, %v1186
  %v1505 = vmul.f32 %v1189, %v1189
  %v1506 = vmul.f32 %v1194, %v1194
  %v1507 = vmul.f32 %v1197, %v1197
  %v1508 = vmul.f32 %v1202, %v1202
  %v1509 = vmul.f32 %v1205, %v1205
  %v1510 = vmul.f32 %v1210, %v1210
  %v1511 = vmul.f32 %v1213, %v1213
  %v1512 = vmul.f32 %v1218, %v1218
  %v1513 = vmul.f32 %v1221, %v1221
  %v1514 = vmul.f32 %v1226, %v1226
  %v1515 = vmul.f32 %v1229, %v1229
  %v1516 = vmul.f32 %v1234, %v1234
  %v1517 = vmul.f32 %v1237, %v1237
  %v1518 = vmul.f32 %v1242, %v1242
  %v1519 = vmul.f32 %v1245, %v1245
  %v1520 = vmul.f32 %v1250, %v1250
  %v1521 = vmul.f32 %v1253, %v1253
  %v1522 = vmul.f32 %v1258, %v1258
  %v1523 = vmul.f32 %v1261, %v1261
  %v1524 = vmul.f32 %v1266, %v1266
  %v1525 = vmul.f32 %v1269, %v1269
  %v1526 = vmul.f32 %v1274, %v1274
  %v1527 = vmul.f32 %v1277, %v1277
  %v1528 = vmul.f32 %v1282, %v1282
  %v1529 = vmul.f32 %v1285, %v1285
  %v1530 = vmul.f32 %v1290, %v1290
  %v1531 = vmul.f32 %v1293, %v1293
  %v1532 = vmul.f32 %v1298, %v1298
  %v1533 = vmul.f32 %v1301, %v1301
  %v1534 = vmul.f32 %v1306, %v1306
  %v1535 = vmul.f32 %v1309, %v1309
  %v1536 = vmul.f32 %v1314, %v1314
  %v1537 = vmul.f32 %v1317, %v1317
  %v1538 = vmul.f32 %v1322, %v1322
  %v1539 = vmul.f32 %v1325, %v1325
  %v1540 = vmul.f32 %v1330, %v1330
  %v1541 = vmul.f32 %v1333, %v1333
  %v1542 = vmul.f32 %v1338, %v1338
  %v1543 = vmul.f32 %v1341, %v1341
  %v1544 = vmul.f32 %v1346, %v1346
  %v1545 = vmul.f32 %v1349, %v1349
  %v1546 = vmul.f32 %v1354, %v1354
  %v1547 = vmul.f32 %v1357, %v1357
  %v1548 = vmul.f32 %v1362, %v1362
  %v1549 = vmul.f32 %v1365, %v1365
  %v1550 = vmul.f32 %v1370, %v1370
  %v1551 = vmul.f32 %v1373, %v1373
  %v1552 = vmul.f32 %v1378, %v1378
  %v1553 = vmul.f32 %v1381, %v1381
  %v1554 = vmul.f32 %v1386, %v1386
  %v1555 = vmul.f32 %v1389, %v1389
  %v1556 = vmul.f32 %v1394, %v1394
  %v1557 = vmul.f32 %v1397, %v1397
  %v1558 = vmul.f32 %v1402, %v1402
  %v1559 = vmul.f32 %v1405, %v1405
  %v1560 = vmul.f32 %v1410, %v1410
  %v1561 = vmul.f32 %v1413, %v1413
  %v1562 = vmul.f32 %v1418, %v1418
  %v1563 = vmul.f32 %v1421, %v1421
  %v1564 = vmul.f32 %v1426, %v1426
  %v1565 = vmul.f32 %v1429, %v1429
  %v1566 = vadd.f32 %v1502, %v1503
  %v1567 = vadd.f32 %v1566, %v1504
  %v1568 = vadd.f32 %v1567, %v1505
  %v1569 = vadd.f32 %v1568, %v1506
  %v1570 = vadd.f32 %v1569, %v1507
  %v1571 = vadd.f32 %v1570, %v1508
  %v1572 = vadd.f32 %v1571, %v1509
  %v1573 = vadd.f32 %v1572, %v1510
  %v1574 = vadd.f32 %v1573, %v1511
  %v1575 = vadd.f32 %v1574, %v1512
  %v1576 = vadd.f32 %v1575, %v1513
  %v1577 = vadd.f32 %v1576, %v1514
  %v1578 = vadd.f32 %v1577, %v1515
  %v1579 = vadd.f32 %v1578, %v1516
  %v1580 = vadd.f32 %v1579, %v1517
  %v1581 = vadd.f32 %v1580, %v1518
  %v1582 = vadd.f32 %v1581, %v1519
  %v1583 = vadd.f32 %v1582, %v1520
  %v1584 = vadd.f32 %v1583, %v1521
  %v1585 = vadd.f32 %v1584, %v1522
  %v1586 = vadd.f32 %v1585, %v1523
  %v1587 = vadd.f32 %v1586, %v1524
  %v1588 = vadd.f32 %v1587, %v1525
  %v1589 = vadd.f32 %v1588, %v1526
  %v1590 = vadd.f32 %v1589, %v1527
  %v1591 = vadd.f32 %v1590, %v1528
  %v1592 = vadd.f32 %v1591, %v1529
  %v1593 = vadd.f32 %v1592, %v1530
  %v1594 = vadd.f32 %v1593, %v1531
  %v1595 = vadd.f32 %v1594, %v1532
  %v1596 = vadd.f32 %v1595, %v1533
  %v1597 = vadd.f32 %v1596, %v1534
  %v1598 = vadd.f32 %v1597, %v1535
  %v1599 = vadd.f32 %v1598, %v1536
  %v1600 = vadd.f32 %v1599, %v1537
  %v1601 = vadd.f32 %v1600, %v1538
  %v1602 = vadd.f32 %v1601, %v1539
  %v1603 = vadd.f32 %v1602, %v1540
  %v1604 = vadd.f32 %v1603, %v1541
  %v1605 = vadd.f32 %v1604, %v1542
  %v1606 = vadd.f32 %v1605, %v1543
  %v1607 = vadd.f32 %v1606, %v1544
  %v1608 = vadd.f32 %v1607, %v1545
  %v1609 = vadd.f32 %v1608, %v1546
  %v1610 = vadd.f32 %v1609, %v1547
  %v1611 = vadd.f32 %v1610, %v1548
  %v1612 = vadd.f32 %v1611, %v1549
  %v1613 = vadd.f32 %v1612, %v1550
  %v1614 = vadd.f32 %v1613, %v1551
  %v1615 = vadd.f32 %v1614, %v1552
  %v1616 = vadd.f32 %v1615, %v1553
  %v1617 = vadd.f32 %v1616, %v1554
  %v1618 = vadd.f32 %v1617, %v1555
  %v1619 = vadd.f32 %v1618, %v1556
  %v1620 = vadd.f32 %v1619, %v1557
  %v1621 = vadd.f32 %v1620, %v1558
  %v1622 = vadd.f32 %v1621, %v1559
  %v1623 = vadd.f32 %v1622, %v1560
  %v1624 = vadd.f32 %v1623, %v1561
  %v1625 = vadd.f32 %v1624, %v1562
  %v1626 = vadd.f32 %v1625, %v1563
  %v1627 = vadd.f32 %v1626, %v1564
  %v1628 = vadd.f32 %v1627, %v1565
  %v1629 = vrot.slane %v1628, 4
  %v1630 = vadd.f32 %v1628, %v1629
  %v1631 = vrot.slane %v1630, 2
  %v1632 = vadd.f32 %v1630, %v1631
  %v1633 = vrot.slane %v1632, 1
  %v1634 = vadd.f32 %v1632, %v1633
  %1636 = vrot.lane.b32.xlu0 %v1501, 96
  %v1637 = vpop.permute.xlu0 %1636
  %v1639 = vadd.f32 %v1501, %v1637
  %1640 = vrot.lane.b32.xlu0 %v1501, 64
  %v1641 = vpop.permute.xlu0 %1640
  %v1643 = vadd.f32 %v1639, %v1641
  %1644 = vrot.lane.b32.xlu0 %v1501, 32
  %v1645 = vpop.permute.xlu0 %1644
  %v1647 = vadd.f32 %v1643, %v1645
  %1649 = vrot.lane.b32.xlu0 %v1634, 96
  %v1650 = vpop.permute.xlu0 %1649
  %v1652 = vadd.f32 %v1634, %v1650
  %1653 = vrot.lane.b32.xlu0 %v1634, 64
  %v1654 = vpop.permute.xlu0 %1653
  %v1656 = vadd.f32 %v1652, %v1654
  %1657 = vrot.lane.b32.xlu0 %v1634, 32
  %v1658 = vpop.permute.xlu0 %1657
  %v1660 = vadd.f32 %v1656, %v1658
  %v1661 = vld [vmem:[%s3] sm:$0x1]
  %v1662 = vld [vmem:[%s4] sm:$0x1]
  %v1663 = vstv %s1432
  %v1664 = vmul.f32 %v1647, %v1663
  %v1665 = vmul.f32 %v1660, %v1663
  %v1666 = vmul.f32 %v1664, %v1664
  %v1667 = vsub.f32 %v1665, %v1666
  %v1668 = vmax.f32 %v1667, 0.0
  %v1669 = vadd.f32 %v1668, 1e-05
  %v1670 = vrsqrt.pop %v1669
  %v1671 = vmul.f32 %v1661, %v1670
  %v1672 = vmul.f32 %v1664, %v1671
  %v1673 = vsub.f32 %v1662, %v1672
  %v1675 = vlaneseq
  %v1676 = vshrl.u32 %v1675, 7
  %v1677 = vsub.s32 0, %v1676
  %v1678 = vrot.slane %v1671, %v1677
  %1679 = vrot.lane.b32.xlu0 %v1678, 32
  %v1680 = vpop.permute.xlu0 %1679
  %1682 = vrot.lane.b32.xlu0 %v1678, 64
  %v1683 = vpop.permute.xlu0 %1682
  %1685 = vrot.lane.b32.xlu0 %v1678, 96
  %v1686 = vpop.permute.xlu0 %1685
  %vm1688 = vcmask 261120
  %v1689 = vsel %vm1688, %v1671, %v1680
  %vm1690 = vcmask 523264
  %v1691 = vsel %vm1690, %v1689, %v1683
  %vm1692 = vcmask 785408
  %v1693 = vsel %vm1692, %v1691, %v1686
  %v1695 = vlaneseq
  %v1696 = vshrl.u32 %v1695, 7
  %v1697 = vsub.s32 0, %v1696
  %v1698 = vrot.slane %v1673, %v1697
  %1699 = vrot.lane.b32.xlu0 %v1698, 32
  %v1700 = vpop.permute.xlu0 %1699
  %1702 = vrot.lane.b32.xlu0 %v1698, 64
  %v1703 = vpop.permute.xlu0 %1702
  %1705 = vrot.lane.b32.xlu0 %v1698, 96
  %v1706 = vpop.permute.xlu0 %1705
  %v1708 = vsel %vm1688, %v1673, %v1700
  %v1709 = vsel %vm1690, %v1708, %v1703
  %v1710 = vsel %vm1692, %v1709, %v1706
  %v1711 = vlaneseq
  %v1712 = vshrl.u32 %v1711, 7
  %v1713 = vsub.s32 0, %v1712
  %v1714 = vrot.slane %v1693, %v1713
  %v1715 = vmul.f32 %v1178, %v1714
  %v1716 = vmul.f32 %v1181, %v1714
  %v1717 = vmul.f32 %v1186, %v1714
  %v1718 = vmul.f32 %v1189, %v1714
  %v1719 = vmul.f32 %v1194, %v1714
  %v1720 = vmul.f32 %v1197, %v1714
  %v1721 = vmul.f32 %v1202, %v1714
  %v1722 = vmul.f32 %v1205, %v1714
  %v1723 = vmul.f32 %v1210, %v1714
  %v1724 = vmul.f32 %v1213, %v1714
  %v1725 = vmul.f32 %v1218, %v1714
  %v1726 = vmul.f32 %v1221, %v1714
  %v1727 = vmul.f32 %v1226, %v1714
  %v1728 = vmul.f32 %v1229, %v1714
  %v1729 = vmul.f32 %v1234, %v1714
  %v1730 = vmul.f32 %v1237, %v1714
  %v1731 = vmul.f32 %v1242, %v1714
  %v1732 = vmul.f32 %v1245, %v1714
  %v1733 = vmul.f32 %v1250, %v1714
  %v1734 = vmul.f32 %v1253, %v1714
  %v1735 = vmul.f32 %v1258, %v1714
  %v1736 = vmul.f32 %v1261, %v1714
  %v1737 = vmul.f32 %v1266, %v1714
  %v1738 = vmul.f32 %v1269, %v1714
  %v1739 = vmul.f32 %v1274, %v1714
  %v1740 = vmul.f32 %v1277, %v1714
  %v1741 = vmul.f32 %v1282, %v1714
  %v1742 = vmul.f32 %v1285, %v1714
  %v1743 = vmul.f32 %v1290, %v1714
  %v1744 = vmul.f32 %v1293, %v1714
  %v1745 = vmul.f32 %v1298, %v1714
  %v1746 = vmul.f32 %v1301, %v1714
  %v1747 = vmul.f32 %v1306, %v1714
  %v1748 = vmul.f32 %v1309, %v1714
  %v1749 = vmul.f32 %v1314, %v1714
  %v1750 = vmul.f32 %v1317, %v1714
  %v1751 = vmul.f32 %v1322, %v1714
  %v1752 = vmul.f32 %v1325, %v1714
  %v1753 = vmul.f32 %v1330, %v1714
  %v1754 = vmul.f32 %v1333, %v1714
  %v1755 = vmul.f32 %v1338, %v1714
  %v1756 = vmul.f32 %v1341, %v1714
  %v1757 = vmul.f32 %v1346, %v1714
  %v1758 = vmul.f32 %v1349, %v1714
  %v1759 = vmul.f32 %v1354, %v1714
  %v1760 = vmul.f32 %v1357, %v1714
  %v1761 = vmul.f32 %v1362, %v1714
  %v1762 = vmul.f32 %v1365, %v1714
  %v1763 = vmul.f32 %v1370, %v1714
  %v1764 = vmul.f32 %v1373, %v1714
  %v1765 = vmul.f32 %v1378, %v1714
  %v1766 = vmul.f32 %v1381, %v1714
  %v1767 = vmul.f32 %v1386, %v1714
  %v1768 = vmul.f32 %v1389, %v1714
  %v1769 = vmul.f32 %v1394, %v1714
  %v1770 = vmul.f32 %v1397, %v1714
  %v1771 = vmul.f32 %v1402, %v1714
  %v1772 = vmul.f32 %v1405, %v1714
  %v1773 = vmul.f32 %v1410, %v1714
  %v1774 = vmul.f32 %v1413, %v1714
  %v1775 = vmul.f32 %v1418, %v1714
  %v1776 = vmul.f32 %v1421, %v1714
  %v1777 = vmul.f32 %v1426, %v1714
  %v1778 = vmul.f32 %v1429, %v1714
  %v1779 = vlaneseq
  %v1780 = vshrl.u32 %v1779, 7
  %v1781 = vsub.s32 0, %v1780
  %v1782 = vrot.slane %v1710, %v1781
  %v1783 = vadd.f32 %v1715, %v1782
  %v1784 = vadd.f32 %v1716, %v1782
  %v1785 = vadd.f32 %v1717, %v1782
  %v1786 = vadd.f32 %v1718, %v1782
  %v1787 = vadd.f32 %v1719, %v1782
  %v1788 = vadd.f32 %v1720, %v1782
  %v1789 = vadd.f32 %v1721, %v1782
  %v1790 = vadd.f32 %v1722, %v1782
  %v1791 = vadd.f32 %v1723, %v1782
  %v1792 = vadd.f32 %v1724, %v1782
  %v1793 = vadd.f32 %v1725, %v1782
  %v1794 = vadd.f32 %v1726, %v1782
  %v1795 = vadd.f32 %v1727, %v1782
  %v1796 = vadd.f32 %v1728, %v1782
  %v1797 = vadd.f32 %v1729, %v1782
  %v1798 = vadd.f32 %v1730, %v1782
  %v1799 = vadd.f32 %v1731, %v1782
  %v1800 = vadd.f32 %v1732, %v1782
  %v1801 = vadd.f32 %v1733, %v1782
  %v1802 = vadd.f32 %v1734, %v1782
  %v1803 = vadd.f32 %v1735, %v1782
  %v1804 = vadd.f32 %v1736, %v1782
  %v1805 = vadd.f32 %v1737, %v1782
  %v1806 = vadd.f32 %v1738, %v1782
  %v1807 = vadd.f32 %v1739, %v1782
  %v1808 = vadd.f32 %v1740, %v1782
  %v1809 = vadd.f32 %v1741, %v1782
  %v1810 = vadd.f32 %v1742, %v1782
  %v1811 = vadd.f32 %v1743, %v1782
  %v1812 = vadd.f32 %v1744, %v1782
  %v1813 = vadd.f32 %v1745, %v1782
  %v1814 = vadd.f32 %v1746, %v1782
  %v1815 = vadd.f32 %v1747, %v1782
  %v1816 = vadd.f32 %v1748, %v1782
  %v1817 = vadd.f32 %v1749, %v1782
  %v1818 = vadd.f32 %v1750, %v1782
  %v1819 = vadd.f32 %v1751, %v1782
  %v1820 = vadd.f32 %v1752, %v1782
  %v1821 = vadd.f32 %v1753, %v1782
  %v1822 = vadd.f32 %v1754, %v1782
  %v1823 = vadd.f32 %v1755, %v1782
  %v1824 = vadd.f32 %v1756, %v1782
  %v1825 = vadd.f32 %v1757, %v1782
  %v1826 = vadd.f32 %v1758, %v1782
  %v1827 = vadd.f32 %v1759, %v1782
  %v1828 = vadd.f32 %v1760, %v1782
  %v1829 = vadd.f32 %v1761, %v1782
  %v1830 = vadd.f32 %v1762, %v1782
  %v1831 = vadd.f32 %v1763, %v1782
  %v1832 = vadd.f32 %v1764, %v1782
  %v1833 = vadd.f32 %v1765, %v1782
  %v1834 = vadd.f32 %v1766, %v1782
  %v1835 = vadd.f32 %v1767, %v1782
  %v1836 = vadd.f32 %v1768, %v1782
  %v1837 = vadd.f32 %v1769, %v1782
  %v1838 = vadd.f32 %v1770, %v1782
  %v1839 = vadd.f32 %v1771, %v1782
  %v1840 = vadd.f32 %v1772, %v1782
  %v1841 = vadd.f32 %v1773, %v1782
  %v1842 = vadd.f32 %v1774, %v1782
  %v1843 = vadd.f32 %v1775, %v1782
  %v1844 = vadd.f32 %v1776, %v1782
  %v1845 = vadd.f32 %v1777, %v1782
  %v1846 = vadd.f32 %v1778, %v1782
  %v1847 = vmax.f32 %v1783, 0.0
  %v1848 = vmax.f32 %v1784, 0.0
  %v1849 = vmax.f32 %v1785, 0.0
  %v1850 = vmax.f32 %v1786, 0.0
  %v1851 = vmax.f32 %v1787, 0.0
  %v1852 = vmax.f32 %v1788, 0.0
  %v1853 = vmax.f32 %v1789, 0.0
  %v1854 = vmax.f32 %v1790, 0.0
  %v1855 = vmax.f32 %v1791, 0.0
  %v1856 = vmax.f32 %v1792, 0.0
  %v1857 = vmax.f32 %v1793, 0.0
  %v1858 = vmax.f32 %v1794, 0.0
  %v1859 = vmax.f32 %v1795, 0.0
  %v1860 = vmax.f32 %v1796, 0.0
  %v1861 = vmax.f32 %v1797, 0.0
  %v1862 = vmax.f32 %v1798, 0.0
  %v1863 = vmax.f32 %v1799, 0.0
  %v1864 = vmax.f32 %v1800, 0.0
  %v1865 = vmax.f32 %v1801, 0.0
  %v1866 = vmax.f32 %v1802, 0.0
  %v1867 = vmax.f32 %v1803, 0.0
  %v1868 = vmax.f32 %v1804, 0.0
  %v1869 = vmax.f32 %v1805, 0.0
  %v1870 = vmax.f32 %v1806, 0.0
  %v1871 = vmax.f32 %v1807, 0.0
  %v1872 = vmax.f32 %v1808, 0.0
  %v1873 = vmax.f32 %v1809, 0.0
  %v1874 = vmax.f32 %v1810, 0.0
  %v1875 = vmax.f32 %v1811, 0.0
  %v1876 = vmax.f32 %v1812, 0.0
  %v1877 = vmax.f32 %v1813, 0.0
  %v1878 = vmax.f32 %v1814, 0.0
  %v1879 = vmax.f32 %v1815, 0.0
  %v1880 = vmax.f32 %v1816, 0.0
  %v1881 = vmax.f32 %v1817, 0.0
  %v1882 = vmax.f32 %v1818, 0.0
  %v1883 = vmax.f32 %v1819, 0.0
  %v1884 = vmax.f32 %v1820, 0.0
  %v1885 = vmax.f32 %v1821, 0.0
  %v1886 = vmax.f32 %v1822, 0.0
  %v1887 = vmax.f32 %v1823, 0.0
  %v1888 = vmax.f32 %v1824, 0.0
  %v1889 = vmax.f32 %v1825, 0.0
  %v1890 = vmax.f32 %v1826, 0.0
  %v1891 = vmax.f32 %v1827, 0.0
  %v1892 = vmax.f32 %v1828, 0.0
  %v1893 = vmax.f32 %v1829, 0.0
  %v1894 = vmax.f32 %v1830, 0.0
  %v1895 = vmax.f32 %v1831, 0.0
  %v1896 = vmax.f32 %v1832, 0.0
  %v1897 = vmax.f32 %v1833, 0.0
  %v1898 = vmax.f32 %v1834, 0.0
  %v1899 = vmax.f32 %v1835, 0.0
  %v1900 = vmax.f32 %v1836, 0.0
  %v1901 = vmax.f32 %v1837, 0.0
  %v1902 = vmax.f32 %v1838, 0.0
  %v1903 = vmax.f32 %v1839, 0.0
  %v1904 = vmax.f32 %v1840, 0.0
  %v1905 = vmax.f32 %v1841, 0.0
  %v1906 = vmax.f32 %v1842, 0.0
  %v1907 = vmax.f32 %v1843, 0.0
  %v1908 = vmax.f32 %v1844, 0.0
  %v1909 = vmax.f32 %v1845, 0.0
  %v1910 = vmax.f32 %v1846, 0.0
  %v1911 = vpack.c.bf16 %v1848, %v1847
  %v1912 = vpack.c.bf16 %v1850, %v1849
  %v1913 = vpack.c.bf16 %v1852, %v1851
  %v1914 = vpack.c.bf16 %v1854, %v1853
  %v1915 = vpack.c.bf16 %v1856, %v1855
  %v1916 = vpack.c.bf16 %v1858, %v1857
  %v1917 = vpack.c.bf16 %v1860, %v1859
  %v1918 = vpack.c.bf16 %v1862, %v1861
  %v1919 = vpack.c.bf16 %v1864, %v1863
  %v1920 = vpack.c.bf16 %v1866, %v1865
  %v1921 = vpack.c.bf16 %v1868, %v1867
  %v1922 = vpack.c.bf16 %v1870, %v1869
  %v1923 = vpack.c.bf16 %v1872, %v1871
  %v1924 = vpack.c.bf16 %v1874, %v1873
  %v1925 = vpack.c.bf16 %v1876, %v1875
  %v1926 = vpack.c.bf16 %v1878, %v1877
  %v1927 = vpack.c.bf16 %v1880, %v1879
  %v1928 = vpack.c.bf16 %v1882, %v1881
  %v1929 = vpack.c.bf16 %v1884, %v1883
  %v1930 = vpack.c.bf16 %v1886, %v1885
  %v1931 = vpack.c.bf16 %v1888, %v1887
  %v1932 = vpack.c.bf16 %v1890, %v1889
  %v1933 = vpack.c.bf16 %v1892, %v1891
  %v1934 = vpack.c.bf16 %v1894, %v1893
  %v1935 = vpack.c.bf16 %v1896, %v1895
  %v1936 = vpack.c.bf16 %v1898, %v1897
  %v1937 = vpack.c.bf16 %v1900, %v1899
  %v1938 = vpack.c.bf16 %v1902, %v1901
  %v1939 = vpack.c.bf16 %v1904, %v1903
  %v1940 = vpack.c.bf16 %v1906, %v1905
  %v1941 = vpack.c.bf16 %v1908, %v1907
  %v1942 = vpack.c.bf16 %v1910, %v1909
  %v1975 = vunpack.c.l.b16 %v1911
  %v1976 = vunpack.c.h.b16 %v1911
  %v1977 = vunpack.c.l.b16 %v1912
  %v1978 = vunpack.c.h.b16 %v1912
  %v1979 = vunpack.c.l.b16 %v1913
  %v1980 = vunpack.c.h.b16 %v1913
  %v1981 = vunpack.c.l.b16 %v1914
  %v1982 = vunpack.c.h.b16 %v1914
  %v1983 = vunpack.c.l.b16 %v1915
  %v1984 = vunpack.c.h.b16 %v1915
  %v1985 = vunpack.c.l.b16 %v1916
  %v1986 = vunpack.c.h.b16 %v1916
  %v1987 = vunpack.c.l.b16 %v1917
  %v1988 = vunpack.c.h.b16 %v1917
  %v1989 = vunpack.c.l.b16 %v1918
  %v1990 = vunpack.c.h.b16 %v1918
  %v1991 = vunpack.c.l.b16 %v1919
  %v1992 = vunpack.c.h.b16 %v1919
  %v1993 = vunpack.c.l.b16 %v1920
  %v1994 = vunpack.c.h.b16 %v1920
  %v1995 = vunpack.c.l.b16 %v1921
  %v1996 = vunpack.c.h.b16 %v1921
  %v1997 = vunpack.c.l.b16 %v1922
  %v1998 = vunpack.c.h.b16 %v1922
  %v1999 = vunpack.c.l.b16 %v1923
  %v2000 = vunpack.c.h.b16 %v1923
  %v2001 = vunpack.c.l.b16 %v1924
  %v2002 = vunpack.c.h.b16 %v1924
  %v2003 = vunpack.c.l.b16 %v1925
  %v2004 = vunpack.c.h.b16 %v1925
  %v2005 = vunpack.c.l.b16 %v1926
  %v2006 = vunpack.c.h.b16 %v1926
  %v2007 = vunpack.c.l.b16 %v1927
  %v2008 = vunpack.c.h.b16 %v1927
  %v2009 = vunpack.c.l.b16 %v1928
  %v2010 = vunpack.c.h.b16 %v1928
  %v2011 = vunpack.c.l.b16 %v1929
  %v2012 = vunpack.c.h.b16 %v1929
  %v2013 = vunpack.c.l.b16 %v1930
  %v2014 = vunpack.c.h.b16 %v1930
  %v2015 = vunpack.c.l.b16 %v1931
  %v2016 = vunpack.c.h.b16 %v1931
  %v2017 = vunpack.c.l.b16 %v1932
  %v2018 = vunpack.c.h.b16 %v1932
  %v2019 = vunpack.c.l.b16 %v1933
  %v2020 = vunpack.c.h.b16 %v1933
  %v2021 = vunpack.c.l.b16 %v1934
  %v2022 = vunpack.c.h.b16 %v1934
  %v2023 = vunpack.c.l.b16 %v1935
  %v2024 = vunpack.c.h.b16 %v1935
  %v2025 = vunpack.c.l.b16 %v1936
  %v2026 = vunpack.c.h.b16 %v1936
  %v2027 = vunpack.c.l.b16 %v1937
  %v2028 = vunpack.c.h.b16 %v1937
  %v2029 = vunpack.c.l.b16 %v1938
  %v2030 = vunpack.c.h.b16 %v1938
  %v2031 = vunpack.c.l.b16 %v1939
  %v2032 = vunpack.c.h.b16 %v1939
  %v2033 = vunpack.c.l.b16 %v1940
  %v2034 = vunpack.c.h.b16 %v1940
  %v2035 = vunpack.c.l.b16 %v1941
  %v2036 = vunpack.c.h.b16 %v1941
  %v2037 = vunpack.c.l.b16 %v1942
  %v2038 = vunpack.c.h.b16 %v1942
  %v2039 = vpack.c.b16 %v1975, %v1975
  %v2040 = vpack.c.b16 %v1976, %v1976
  %v2041 = vpack.c.b16 %v1977, %v1977
  %v2042 = vpack.c.b16 %v1978, %v1978
  %v2043 = vpack.c.b16 %v1979, %v1979
  %v2044 = vpack.c.b16 %v1980, %v1980
  %v2045 = vpack.c.b16 %v1981, %v1981
  %v2046 = vpack.c.b16 %v1982, %v1982
  %v2047 = vpack.c.b16 %v1983, %v1983
  %v2048 = vpack.c.b16 %v1984, %v1984
  %v2049 = vpack.c.b16 %v1985, %v1985
  %v2050 = vpack.c.b16 %v1986, %v1986
  %v2051 = vpack.c.b16 %v1987, %v1987
  %v2052 = vpack.c.b16 %v1988, %v1988
  %v2053 = vpack.c.b16 %v1989, %v1989
  %v2054 = vpack.c.b16 %v1990, %v1990
  %v2055 = vpack.c.b16 %v1991, %v1991
  %v2056 = vpack.c.b16 %v1992, %v1992
  %v2057 = vpack.c.b16 %v1993, %v1993
  %v2058 = vpack.c.b16 %v1994, %v1994
  %v2059 = vpack.c.b16 %v1995, %v1995
  %v2060 = vpack.c.b16 %v1996, %v1996
  %v2061 = vpack.c.b16 %v1997, %v1997
  %v2062 = vpack.c.b16 %v1998, %v1998
  %v2063 = vpack.c.b16 %v1999, %v1999
  %v2064 = vpack.c.b16 %v2000, %v2000
  %v2065 = vpack.c.b16 %v2001, %v2001
  %v2066 = vpack.c.b16 %v2002, %v2002
  %v2067 = vpack.c.b16 %v2003, %v2003
  %v2068 = vpack.c.b16 %v2004, %v2004
  %v2069 = vpack.c.b16 %v2005, %v2005
  %v2070 = vpack.c.b16 %v2006, %v2006
  %v2071 = vpack.c.b16 %v2007, %v2007
  %v2072 = vpack.c.b16 %v2008, %v2008
  %v2073 = vpack.c.b16 %v2009, %v2009
  %v2074 = vpack.c.b16 %v2010, %v2010
  %v2075 = vpack.c.b16 %v2011, %v2011
  %v2076 = vpack.c.b16 %v2012, %v2012
  %v2077 = vpack.c.b16 %v2013, %v2013
  %v2078 = vpack.c.b16 %v2014, %v2014
  %v2079 = vpack.c.b16 %v2015, %v2015
  %v2080 = vpack.c.b16 %v2016, %v2016
  %v2081 = vpack.c.b16 %v2017, %v2017
  %v2082 = vpack.c.b16 %v2018, %v2018
  %v2083 = vpack.c.b16 %v2019, %v2019
  %v2084 = vpack.c.b16 %v2020, %v2020
  %v2085 = vpack.c.b16 %v2021, %v2021
  %v2086 = vpack.c.b16 %v2022, %v2022
  %v2087 = vpack.c.b16 %v2023, %v2023
  %v2088 = vpack.c.b16 %v2024, %v2024
  %v2089 = vpack.c.b16 %v2025, %v2025
  %v2090 = vpack.c.b16 %v2026, %v2026
  %v2091 = vpack.c.b16 %v2027, %v2027
  %v2092 = vpack.c.b16 %v2028, %v2028
  %v2093 = vpack.c.b16 %v2029, %v2029
  %v2094 = vpack.c.b16 %v2030, %v2030
  %v2095 = vpack.c.b16 %v2031, %v2031
  %v2096 = vpack.c.b16 %v2032, %v2032
  %v2097 = vpack.c.b16 %v2033, %v2033
  %v2098 = vpack.c.b16 %v2034, %v2034
  %v2099 = vpack.c.b16 %v2035, %v2035
  %v2100 = vpack.c.b16 %v2036, %v2036
  %v2101 = vpack.c.b16 %v2037, %v2037
  %v2102 = vpack.c.b16 %v2038, %v2038
  %2167 = vst [vmem:[%s5] sm:$0xf] %v2039
  %2168 = vst [vmem:[%s5 + $0x4] sm:$0xf] %v2040
  %2169 = vst [vmem:[%s5 + $0x8] sm:$0xf] %v2041
  %2170 = vst [vmem:[%s5 + $0xc] sm:$0xf] %v2042
  %2171 = vst [vmem:[%s5 + $0x10] sm:$0xf] %v2043
  %2172 = vst [vmem:[%s5 + $0x14] sm:$0xf] %v2044
  %2173 = vst [vmem:[%s5 + $0x18] sm:$0xf] %v2045
  %2174 = vst [vmem:[%s5 + $0x1c] sm:$0xf] %v2046
  %2175 = vst [vmem:[%s5 + $0x20] sm:$0xf] %v2047
  %2176 = vst [vmem:[%s5 + $0x24] sm:$0xf] %v2048
  %2177 = vst [vmem:[%s5 + $0x28] sm:$0xf] %v2049
  %2178 = vst [vmem:[%s5 + $0x2c] sm:$0xf] %v2050
  %2179 = vst [vmem:[%s5 + $0x30] sm:$0xf] %v2051
  %2180 = vst [vmem:[%s5 + $0x34] sm:$0xf] %v2052
  %2181 = vst [vmem:[%s5 + $0x38] sm:$0xf] %v2053
  %2182 = vst [vmem:[%s5 + $0x3c] sm:$0xf] %v2054
  %2183 = vst [vmem:[%s5 + $0x40] sm:$0xf] %v2055
  %2184 = vst [vmem:[%s5 + $0x44] sm:$0xf] %v2056
  %2185 = vst [vmem:[%s5 + $0x48] sm:$0xf] %v2057
  %2186 = vst [vmem:[%s5 + $0x4c] sm:$0xf] %v2058
  %2187 = vst [vmem:[%s5 + $0x50] sm:$0xf] %v2059
  %2188 = vst [vmem:[%s5 + $0x54] sm:$0xf] %v2060
  %2189 = vst [vmem:[%s5 + $0x58] sm:$0xf] %v2061
  %2190 = vst [vmem:[%s5 + $0x5c] sm:$0xf] %v2062
  %2191 = vst [vmem:[%s5 + $0x60] sm:$0xf] %v2063
  %2192 = vst [vmem:[%s5 + $0x64] sm:$0xf] %v2064
  %2193 = vst [vmem:[%s5 + $0x68] sm:$0xf] %v2065
  %2194 = vst [vmem:[%s5 + $0x6c] sm:$0xf] %v2066
  %2195 = vst [vmem:[%s5 + $0x70] sm:$0xf] %v2067
  %2196 = vst [vmem:[%s5 + $0x74] sm:$0xf] %v2068
  %2197 = vst [vmem:[%s5 + $0x78] sm:$0xf] %v2069
  %2198 = vst [vmem:[%s5 + $0x7c] sm:$0xf] %v2070
  %2199 = vst [vmem:[%s5 + $0x80] sm:$0xf] %v2071
  %2200 = vst [vmem:[%s5 + $0x84] sm:$0xf] %v2072
  %2201 = vst [vmem:[%s5 + $0x88] sm:$0xf] %v2073
  %2202 = vst [vmem:[%s5 + $0x8c] sm:$0xf] %v2074
  %2203 = vst [vmem:[%s5 + $0x90] sm:$0xf] %v2075
  %2204 = vst [vmem:[%s5 + $0x94] sm:$0xf] %v2076
  %2205 = vst [vmem:[%s5 + $0x98] sm:$0xf] %v2077
  %2206 = vst [vmem:[%s5 + $0x9c] sm:$0xf] %v2078
  %2207 = vst [vmem:[%s5 + $0xa0] sm:$0xf] %v2079
  %2208 = vst [vmem:[%s5 + $0xa4] sm:$0xf] %v2080
  %2209 = vst [vmem:[%s5 + $0xa8] sm:$0xf] %v2081
  %2210 = vst [vmem:[%s5 + $0xac] sm:$0xf] %v2082
  %2211 = vst [vmem:[%s5 + $0xb0] sm:$0xf] %v2083
  %2212 = vst [vmem:[%s5 + $0xb4] sm:$0xf] %v2084
  %2213 = vst [vmem:[%s5 + $0xb8] sm:$0xf] %v2085
  %2214 = vst [vmem:[%s5 + $0xbc] sm:$0xf] %v2086
  %2215 = vst [vmem:[%s5 + $0xc0] sm:$0xf] %v2087
  %2216 = vst [vmem:[%s5 + $0xc4] sm:$0xf] %v2088
  %2217 = vst [vmem:[%s5 + $0xc8] sm:$0xf] %v2089
  %2218 = vst [vmem:[%s5 + $0xcc] sm:$0xf] %v2090
  %2219 = vst [vmem:[%s5 + $0xd0] sm:$0xf] %v2091
  %2220 = vst [vmem:[%s5 + $0xd4] sm:$0xf] %v2092
  %2221 = vst [vmem:[%s5 + $0xd8] sm:$0xf] %v2093
  %2222 = vst [vmem:[%s5 + $0xdc] sm:$0xf] %v2094
  %2223 = vst [vmem:[%s5 + $0xe0] sm:$0xf] %v2095
  %2224 = vst [vmem:[%s5 + $0xe4] sm:$0xf] %v2096
  %2225 = vst [vmem:[%s5 + $0xe8] sm:$0xf] %v2097
  %2226 = vst [vmem:[%s5 + $0xec] sm:$0xf] %v2098
  %2227 = vst [vmem:[%s5 + $0xf0] sm:$0xf] %v2099
  %2228 = vst [vmem:[%s5 + $0xf4] sm:$0xf] %v2100
  %2229 = vst [vmem:[%s5 + $0xf8] sm:$0xf] %v2101
  %2230 = vst [vmem:[%s5 + $0xfc] sm:$0xf] %v2102
  // Predicated region
  $region22: #{_lambda_.8} parent=0 // pred_check
    _
  $region23: #{_lambda_.8} parent=0 // pred_check_branch
    %2232 = sbr.rel (0) target = $region25
  $region24: #{_lambda_.8} parent=0 // pred_region
    _
  $region25: #{_lambda_.8} parent=0 // pred_fallthru
    _
  // Predicated region
  $region26: #{_lambda_.8} parent=0 // pred_check
    _
  $region27: #{_lambda_.8} parent=0 // pred_check_branch
    %2234 = sbr.rel (0) target = $region29
  $region28: #{_lambda_.8} parent=0 // pred_region
    _
  $region29: #{_lambda_.8} parent=0 // pred_fallthru
    _

// kernel: _lambda_.9
$region0: #{_lambda_.9}
  #allocation0 [shape = 'u32[]', space=smem, size = 0x4, offset = 0x4, fixed_abs, tag = 'smem constant byte address 0x4 - core index']
  #allocation1 [shape = 'u32[144,128]{1,0:T(1,128)}', space=vmem, size = 0x12000, scoped, tag = 'internal scratch']
  %s0 = inlined_call_operand.vmem [shape: bf16[2048,256], index: 0, kind: input, shape index: {}]
  %s1 = inlined_call_operand.vmem [shape: bf16[256,128], index: 1, kind: input, shape index: {}]
  %s2 = inlined_call_operand.vmem [shape: f32[1,128], index: 2, kind: input, shape index: {}]
  %s3 = inlined_call_operand.vmem [shape: bf16[2048,128], index: 3, kind: output, shape index: {}]
  %s4 = sld [smem:[#allocation0]]
  $region45: #{_lambda_.9} parent=0
    _
  %s6 = ssub.s32 1, %s4
  %s7 = scalar_select 0, %s6, %s4
  loop: start=0, step=1, limit=4
  $region2: #{_lambda_.9} parent=0 // loop_pre_header
    _
  $region3: #{_lambda_.9} parent=0 // loop_header
    %s9 = sphi 0, %s13
    %p10 = scmp.ge.s32.totalorder %s9, 4
    %s19 = sphi 0, %s21
    %s22 = sphi 0, %s19
    %s23 = sphi 0, %s22
    %s39 = sphi 0, %s23
    %s43 = sphi 0, %s43
    %s45 = sphi 0, %s43
    %s46 = sphi 0, %s45
    %s60 = sphi 0, %s46
    %s64 = sphi 0, %s64
    %s66 = sphi 0, %s64
    %s67 = sphi 0, %s66
    %s81 = sphi 0, %s67
    %s87 = sphi 0, %s89
    %s90 = sphi 0, %s87
    %s91 = sphi 0, %s90
    %s107 = sphi 0, %s91
  $region4: #{_lambda_.9} parent=0 // loop_header_branch
    %12 = sbr.rel (%p10) target = $region8
  $region5: #{_lambda_.9} parent=0 // loop_body
    %s14 = ssub.s32 %s9, 1
    %s15 = ssub.s32 %s9, 2
    %s16 = sadd.s32 %s9, 1
    %s17 = ssub.s32 %s9, %s16
    %p18 = scmp.eq.s32.totalorder %s17, 0
    %s20 = sadd.s32 %s19, 1
    %s21 = scalar_select %p18, %s19, %s20
    %p24 = pneg %p18
    %p25 = scmp.eq.s32.totalorder %s9, 1
    %p26 = por %p24, %p25
    %p27 = scmp.ne.s32.totalorder %s19, %s22
    %p28 = scmp.eq.s32.totalorder %s9, 0
    %p29 = por %p27, %p28
    %p30 = scmp.ne.s32.totalorder %s19, %s22
    %p31 = scmp.eq.s32.totalorder %s14, 1
    %p32 = por %p30, %p31
    %p33 = scmp.ne.s32.totalorder %s22, %s23
    %p34 = scmp.eq.s32.totalorder %s14, 0
    %p35 = por %p33, %p34
    %p36 = scmp.ne.s32.totalorder %s22, %s23
    %p37 = scmp.eq.s32.totalorder %s15, 1
    %p38 = por %p36, %p37
    %p40 = scmp.ne.s32.totalorder %s23, %s39
    %p41 = scmp.eq.s32.totalorder %s15, 0
    %p42 = por %p40, %p41
    %s44 = sadd.s32 %s43, 1
    %p47 = scmp.eq.s32.totalorder %s9, 1
    %p48 = scmp.ne.s32.totalorder %s43, %s45
    %p49 = scmp.eq.s32.totalorder %s9, 0
    %p50 = por %p48, %p49
    %p51 = scmp.ne.s32.totalorder %s43, %s45
    %p52 = scmp.eq.s32.totalorder %s14, 1
    %p53 = por %p51, %p52
    %p54 = scmp.ne.s32.totalorder %s45, %s46
    %p55 = scmp.eq.s32.totalorder %s14, 0
    %p56 = por %p54, %p55
    %p57 = scmp.ne.s32.totalorder %s45, %s46
    %p58 = scmp.eq.s32.totalorder %s15, 1
    %p59 = por %p57, %p58
    %p61 = scmp.ne.s32.totalorder %s46, %s60
    %p62 = scmp.eq.s32.totalorder %s15, 0
    %p63 = por %p61, %p62
    %s65 = sadd.s32 %s64, 1
    %p68 = scmp.eq.s32.totalorder %s9, 1
    %p69 = scmp.ne.s32.totalorder %s64, %s66
    %p70 = scmp.eq.s32.totalorder %s9, 0
    %p71 = por %p69, %p70
    %p72 = scmp.ne.s32.totalorder %s64, %s66
    %p73 = scmp.eq.s32.totalorder %s14, 1
    %p74 = por %p72, %p73
    %p75 = scmp.ne.s32.totalorder %s66, %s67
    %p76 = scmp.eq.s32.totalorder %s14, 0
    %p77 = por %p75, %p76
    %p78 = scmp.ne.s32.totalorder %s66, %s67
    %p79 = scmp.eq.s32.totalorder %s15, 1
    %p80 = por %p78, %p79
    %p82 = scmp.ne.s32.totalorder %s67, %s81
    %p83 = scmp.eq.s32.totalorder %s15, 0
    %p84 = por %p82, %p83
    %s85 = ssub.s32 %s9, %s16
    %p86 = scmp.eq.s32.totalorder %s85, 0
    %s88 = sadd.s32 %s87, 1
    %s89 = scalar_select %p86, %s87, %s88
    %p92 = pneg %p86
    %p93 = scmp.eq.s32.totalorder %s9, 1
    %p94 = por %p92, %p93
    %p95 = scmp.ne.s32.totalorder %s87, %s90
    %p96 = scmp.eq.s32.totalorder %s9, 0
    %p97 = por %p95, %p96
    %p98 = scmp.ne.s32.totalorder %s87, %s90
    %p99 = scmp.eq.s32.totalorder %s14, 1
    %p100 = por %p98, %p99
    %p101 = scmp.ne.s32.totalorder %s90, %s91
    %p102 = scmp.eq.s32.totalorder %s14, 0
    %p103 = por %p101, %p102
    %p104 = scmp.ne.s32.totalorder %s90, %s91
    %p105 = scmp.eq.s32.totalorder %s15, 1
    %p106 = por %p104, %p105
    %p108 = scmp.ne.s32.totalorder %s91, %s107
    %p109 = scmp.eq.s32.totalorder %s15, 0
    %p110 = por %p108, %p109
    %p111 = scmp.le.s32.totalorder 1, %s9
    %p112 = scmp.lt.s32.totalorder %s9, 3
    %p113 = pnand %p111, %p112
    %p114 = pneg %p113
    // Predicated region
    $region9: #{_lambda_.9} parent=5 // pred_check
      _
    $region10: #{_lambda_.9} parent=5 // pred_check_branch
      %116 = sbr.rel (%p113) target = $region12
    $region11: #{_lambda_.9} parent=5 // pred_region
      %s117 = ssub.s32 %s9, 1
      // Predicated region
      $region13: #{_lambda_.9} parent=11 // pred_check
        %p118 = pneg %p56
      $region14: #{_lambda_.9} parent=11 // pred_check_branch
        %120 = sbr.rel (%p118) target = $region16
      $region15: #{_lambda_.9} parent=11 // pred_region
        _
      $region16: #{_lambda_.9} parent=11 // pred_fallthru
        _
      // Predicated region
      $region17: #{_lambda_.9} parent=11 // pred_check
        %p121 = pneg %p77
      $region18: #{_lambda_.9} parent=11 // pred_check_branch
        %123 = sbr.rel (%p121) target = $region20
      $region19: #{_lambda_.9} parent=11 // pred_region
        _
      $region20: #{_lambda_.9} parent=11 // pred_fallthru
        _
    $region12: #{_lambda_.9} parent=5 // pred_fallthru
      _
    %p124 = scmp.lt.s32.totalorder %s9, 2
    // Predicated region
    $region21: #{_lambda_.9} parent=5 // pred_check
      %p125 = pneg %p124
    $region22: #{_lambda_.9} parent=5 // pred_check_branch
      %127 = sbr.rel (%p125) target = $region24
    $region23: #{_lambda_.9} parent=5 // pred_region
      // Predicated region
      $region25: #{_lambda_.9} parent=23 // pred_check
        %p128 = pneg %p29
      $region26: #{_lambda_.9} parent=23 // pred_check_branch
        %130 = sbr.rel (%p128) target = $region28
      $region27: #{_lambda_.9} parent=23 // pred_region
        %s131 = smul.u32 128, %s9
        %p132 = scmp.lt.s32.totalorder %s131, 255
        %s133 = scalar_select %p132, %s131, 255
        %s134 = smul.addr %s133, 2
        %s135 = smul.addr %s134, 4
        %s136 = scalar_lea.vmem %s0, %s135
        %s137 = smul.u32 128, %s9
      $region28: #{_lambda_.9} parent=23 // pred_fallthru
        _
    $region24: #{_lambda_.9} parent=5 // pred_fallthru
      _
    %p138 = scmp.le.s32.totalorder 1, %s9
    %p139 = scmp.lt.s32.totalorder %s9, 3
    %p140 = pnand %p138, %p139
    %p141 = pneg %p140
    // Predicated region
    $region29: #{_lambda_.9} parent=5 // pred_check
      _
    $region30: #{_lambda_.9} parent=5 // pred_check_branch
      %143 = sbr.rel (%p140) target = $region32
    $region31: #{_lambda_.9} parent=5 // pred_region
      %s144 = ssub.s32 %s9, 1
      %s145 = smul.u32 128, %s14
      %p146 = scmp.lt.s32.totalorder %s145, 255
      %s147 = scalar_select %p146, %s145, 255
      %s148 = smul.addr %s147, 2
      %s149 = smul.addr %s148, 4
      %s150 = scalar_lea.vmem %s0, %s149
      %p151 = pneg %p35
      %p152 = pneg %p32
      %p153 = pneg %p56
      %p154 = pneg %p53
      %p155 = pneg %p77
      %p156 = pneg %p74
      %p157 = pneg %p103
      %p158 = pneg %p100
      %s159 = smul.u32 128, %s14
      %p160 = scmp.lt.s32.totalorder %s159, 255
      %s161 = scalar_select %p160, %s159, 255
      %s162 = smul.addr %s161, 4
      %s163 = scalar_lea.vmem %s3, %s162
      %s164 = smul.u32 128, %s14
      %p165 = scmp.lt.s32.totalorder %s164, 255
      %s166 = scalar_select %p165, %s164, 255
      %s167 = smul.addr %s166, 2
      %s168 = smul.addr %s167, 4
      %s169 = scalar_lea.vmem %s0, %s168
      %s170 = smul.u32 128, %s14
      %s171 = smul.u32 128, %s14
      %p172 = scmp.lt.s32.totalorder %s171, 255
      %s173 = scalar_select %p172, %s171, 255
      %s174 = smul.addr %s173, 4
      %s175 = scalar_lea.vmem %s3, %s174
      %s176 = smul.u32 128, %s14
      %v178 = vld [vmem:[%s169] sm:$0xff]
      %v179 = vld [vmem:[%s169 + $0x8] sm:$0xff]
      %v180 = vld [vmem:[%s169 + $0x10] sm:$0xff]
      %v181 = vld [vmem:[%s169 + $0x18] sm:$0xff]
      %v182 = vld [vmem:[%s169 + $0x20] sm:$0xff]
      %v183 = vld [vmem:[%s169 + $0x28] sm:$0xff]
      %v184 = vld [vmem:[%s169 + $0x30] sm:$0xff]
      %v185 = vld [vmem:[%s169 + $0x38] sm:$0xff]
      %v186 = vld [vmem:[%s169 + $0x40] sm:$0xff]
      %v187 = vld [vmem:[%s169 + $0x48] sm:$0xff]
      %v188 = vld [vmem:[%s169 + $0x50] sm:$0xff]
      %v189 = vld [vmem:[%s169 + $0x58] sm:$0xff]
      %v190 = vld [vmem:[%s169 + $0x60] sm:$0xff]
      %v191 = vld [vmem:[%s169 + $0x68] sm:$0xff]
      %v192 = vld [vmem:[%s169 + $0x70] sm:$0xff]
      %v193 = vld [vmem:[%s169 + $0x78] sm:$0xff]
      %v194 = vld [vmem:[%s169 + $0x80] sm:$0xff]
      %v195 = vld [vmem:[%s169 + $0x88] sm:$0xff]
      %v196 = vld [vmem:[%s169 + $0x90] sm:$0xff]
      %v197 = vld [vmem:[%s169 + $0x98] sm:$0xff]
      %v198 = vld [vmem:[%s169 + $0xa0] sm:$0xff]
      %v199 = vld [vmem:[%s169 + $0xa8] sm:$0xff]
      %v200 = vld [vmem:[%s169 + $0xb0] sm:$0xff]
      %v201 = vld [vmem:[%s169 + $0xb8] sm:$0xff]
      %v202 = vld [vmem:[%s169 + $0xc0] sm:$0xff]
      %v203 = vld [vmem:[%s169 + $0xc8] sm:$0xff]
      %v204 = vld [vmem:[%s169 + $0xd0] sm:$0xff]
      %v205 = vld [vmem:[%s169 + $0xd8] sm:$0xff]
      %v206 = vld [vmem:[%s169 + $0xe0] sm:$0xff]
      %v207 = vld [vmem:[%s169 + $0xe8] sm:$0xff]
      %v208 = vld [vmem:[%s169 + $0xf0] sm:$0xff]
      %v209 = vld [vmem:[%s169 + $0xf8] sm:$0xff]
      %v210 = vld [vmem:[%s169 + $0x100] sm:$0xff]
      %v211 = vld [vmem:[%s169 + $0x108] sm:$0xff]
      %v212 = vld [vmem:[%s169 + $0x110] sm:$0xff]
      %v213 = vld [vmem:[%s169 + $0x118] sm:$0xff]
      %v214 = vld [vmem:[%s169 + $0x120] sm:$0xff]
      %v215 = vld [vmem:[%s169 + $0x128] sm:$0xff]
      %v216 = vld [vmem:[%s169 + $0x130] sm:$0xff]
      %v217 = vld [vmem:[%s169 + $0x138] sm:$0xff]
      %v218 = vld [vmem:[%s169 + $0x140] sm:$0xff]
      %v219 = vld [vmem:[%s169 + $0x148] sm:$0xff]
      %v220 = vld [vmem:[%s169 + $0x150] sm:$0xff]
      %v221 = vld [vmem:[%s169 + $0x158] sm:$0xff]
      %v222 = vld [vmem:[%s169 + $0x160] sm:$0xff]
      %v223 = vld [vmem:[%s169 + $0x168] sm:$0xff]
      %v224 = vld [vmem:[%s169 + $0x170] sm:$0xff]
      %v225 = vld [vmem:[%s169 + $0x178] sm:$0xff]
      %v226 = vld [vmem:[%s169 + $0x180] sm:$0xff]
      %v227 = vld [vmem:[%s169 + $0x188] sm:$0xff]
      %v228 = vld [vmem:[%s169 + $0x190] sm:$0xff]
      %v229 = vld [vmem:[%s169 + $0x198] sm:$0xff]
      %v230 = vld [vmem:[%s169 + $0x1a0] sm:$0xff]
      %v231 = vld [vmem:[%s169 + $0x1a8] sm:$0xff]
      %v232 = vld [vmem:[%s169 + $0x1b0] sm:$0xff]
      %v233 = vld [vmem:[%s169 + $0x1b8] sm:$0xff]
      %v234 = vld [vmem:[%s169 + $0x1c0] sm:$0xff]
      %v235 = vld [vmem:[%s169 + $0x1c8] sm:$0xff]
      %v236 = vld [vmem:[%s169 + $0x1d0] sm:$0xff]
      %v237 = vld [vmem:[%s169 + $0x1d8] sm:$0xff]
      %v238 = vld [vmem:[%s169 + $0x1e0] sm:$0xff]
      %v239 = vld [vmem:[%s169 + $0x1e8] sm:$0xff]
      %v240 = vld [vmem:[%s169 + $0x1f0] sm:$0xff]
      %v241 = vld [vmem:[%s169 + $0x1f8] sm:$0xff]
      %v242 = vld [vmem:[%s169 + $0x200] sm:$0xff]
      %v243 = vld [vmem:[%s169 + $0x208] sm:$0xff]
      %v244 = vld [vmem:[%s169 + $0x210] sm:$0xff]
      %v245 = vld [vmem:[%s169 + $0x218] sm:$0xff]
      %v246 = vld [vmem:[%s169 + $0x220] sm:$0xff]
      %v247 = vld [vmem:[%s169 + $0x228] sm:$0xff]
      %v248 = vld [vmem:[%s169 + $0x230] sm:$0xff]
      %v249 = vld [vmem:[%s169 + $0x238] sm:$0xff]
      %v250 = vld [vmem:[%s169 + $0x240] sm:$0xff]
      %v251 = vld [vmem:[%s169 + $0x248] sm:$0xff]
      %v252 = vld [vmem:[%s169 + $0x250] sm:$0xff]
      %v253 = vld [vmem:[%s169 + $0x258] sm:$0xff]
      %v254 = vld [vmem:[%s169 + $0x260] sm:$0xff]
      %v255 = vld [vmem:[%s169 + $0x268] sm:$0xff]
      %v256 = vld [vmem:[%s169 + $0x270] sm:$0xff]
      %v257 = vld [vmem:[%s169 + $0x278] sm:$0xff]
      %v258 = vld [vmem:[%s169 + $0x280] sm:$0xff]
      %v259 = vld [vmem:[%s169 + $0x288] sm:$0xff]
      %v260 = vld [vmem:[%s169 + $0x290] sm:$0xff]
      %v261 = vld [vmem:[%s169 + $0x298] sm:$0xff]
      %v262 = vld [vmem:[%s169 + $0x2a0] sm:$0xff]
      %v263 = vld [vmem:[%s169 + $0x2a8] sm:$0xff]
      %v264 = vld [vmem:[%s169 + $0x2b0] sm:$0xff]
      %v265 = vld [vmem:[%s169 + $0x2b8] sm:$0xff]
      %v266 = vld [vmem:[%s169 + $0x2c0] sm:$0xff]
      %v267 = vld [vmem:[%s169 + $0x2c8] sm:$0xff]
      %v268 = vld [vmem:[%s169 + $0x2d0] sm:$0xff]
      %v269 = vld [vmem:[%s169 + $0x2d8] sm:$0xff]
      %v270 = vld [vmem:[%s169 + $0x2e0] sm:$0xff]
      %v271 = vld [vmem:[%s169 + $0x2e8] sm:$0xff]
      %v272 = vld [vmem:[%s169 + $0x2f0] sm:$0xff]
      %v273 = vld [vmem:[%s169 + $0x2f8] sm:$0xff]
      %v274 = vld [vmem:[%s169 + $0x300] sm:$0xff]
      %v275 = vld [vmem:[%s169 + $0x308] sm:$0xff]
      %v276 = vld [vmem:[%s169 + $0x310] sm:$0xff]
      %v277 = vld [vmem:[%s169 + $0x318] sm:$0xff]
      %v278 = vld [vmem:[%s169 + $0x320] sm:$0xff]
      %v279 = vld [vmem:[%s169 + $0x328] sm:$0xff]
      %v280 = vld [vmem:[%s169 + $0x330] sm:$0xff]
      %v281 = vld [vmem:[%s169 + $0x338] sm:$0xff]
      %v282 = vld [vmem:[%s169 + $0x340] sm:$0xff]
      %v283 = vld [vmem:[%s169 + $0x348] sm:$0xff]
      %v284 = vld [vmem:[%s169 + $0x350] sm:$0xff]
      %v285 = vld [vmem:[%s169 + $0x358] sm:$0xff]
      %v286 = vld [vmem:[%s169 + $0x360] sm:$0xff]
      %v287 = vld [vmem:[%s169 + $0x368] sm:$0xff]
      %v288 = vld [vmem:[%s169 + $0x370] sm:$0xff]
      %v289 = vld [vmem:[%s169 + $0x378] sm:$0xff]
      %v290 = vld [vmem:[%s169 + $0x380] sm:$0xff]
      %v291 = vld [vmem:[%s169 + $0x388] sm:$0xff]
      %v292 = vld [vmem:[%s169 + $0x390] sm:$0xff]
      %v293 = vld [vmem:[%s169 + $0x398] sm:$0xff]
      %v294 = vld [vmem:[%s169 + $0x3a0] sm:$0xff]
      %v295 = vld [vmem:[%s169 + $0x3a8] sm:$0xff]
      %v296 = vld [vmem:[%s169 + $0x3b0] sm:$0xff]
      %v297 = vld [vmem:[%s169 + $0x3b8] sm:$0xff]
      %v298 = vld [vmem:[%s169 + $0x3c0] sm:$0xff]
      %v299 = vld [vmem:[%s169 + $0x3c8] sm:$0xff]
      %v300 = vld [vmem:[%s169 + $0x3d0] sm:$0xff]
      %v301 = vld [vmem:[%s169 + $0x3d8] sm:$0xff]
      %v302 = vld [vmem:[%s169 + $0x3e0] sm:$0xff]
      %v303 = vld [vmem:[%s169 + $0x3e8] sm:$0xff]
      %v304 = vld [vmem:[%s169 + $0x3f0] sm:$0xff]
      %v305 = vld [vmem:[%s169 + $0x3f8] sm:$0xff]
      %v306 = vld [vmem:[%s1] sm:$0xf]
      %v307 = vld [vmem:[%s1 + $0x4] sm:$0xf]
      %v308 = vld [vmem:[%s1 + $0x8] sm:$0xf]
      %v309 = vld [vmem:[%s1 + $0xc] sm:$0xf]
      %v310 = vld [vmem:[%s1 + $0x10] sm:$0xf]
      %v311 = vld [vmem:[%s1 + $0x14] sm:$0xf]
      %v312 = vld [vmem:[%s1 + $0x18] sm:$0xf]
      %v313 = vld [vmem:[%s1 + $0x1c] sm:$0xf]
      %v314 = vld [vmem:[%s1 + $0x20] sm:$0xf]
      %v315 = vld [vmem:[%s1 + $0x24] sm:$0xf]
      %v316 = vld [vmem:[%s1 + $0x28] sm:$0xf]
      %v317 = vld [vmem:[%s1 + $0x2c] sm:$0xf]
      %v318 = vld [vmem:[%s1 + $0x30] sm:$0xf]
      %v319 = vld [vmem:[%s1 + $0x34] sm:$0xf]
      %v320 = vld [vmem:[%s1 + $0x38] sm:$0xf]
      %v321 = vld [vmem:[%s1 + $0x3c] sm:$0xf]
      %v322 = vld [vmem:[%s1 + $0x40] sm:$0xf]
      %v323 = vld [vmem:[%s1 + $0x44] sm:$0xf]
      %v324 = vld [vmem:[%s1 + $0x48] sm:$0xf]
      %v325 = vld [vmem:[%s1 + $0x4c] sm:$0xf]
      %v326 = vld [vmem:[%s1 + $0x50] sm:$0xf]
      %v327 = vld [vmem:[%s1 + $0x54] sm:$0xf]
      %v328 = vld [vmem:[%s1 + $0x58] sm:$0xf]
      %v329 = vld [vmem:[%s1 + $0x5c] sm:$0xf]
      %v330 = vld [vmem:[%s1 + $0x60] sm:$0xf]
      %v331 = vld [vmem:[%s1 + $0x64] sm:$0xf]
      %v332 = vld [vmem:[%s1 + $0x68] sm:$0xf]
      %v333 = vld [vmem:[%s1 + $0x6c] sm:$0xf]
      %v334 = vld [vmem:[%s1 + $0x70] sm:$0xf]
      %v335 = vld [vmem:[%s1 + $0x74] sm:$0xf]
      %v336 = vld [vmem:[%s1 + $0x78] sm:$0xf]
      %v337 = vld [vmem:[%s1 + $0x7c] sm:$0xf]
      %v338 = vld [vmem:[%s2] sm:$0x1]
      %v340 = vlaneseq
      %v341 = vshrl.u32 %v340, 7
      %v342 = vsub.s32 0, %v341
      %v343 = vrot.slane %v338, %v342
      %v473 = vunpack.c.l.b16 %v178
      %v474 = vunpack.c.h.b16 %v178
      %v475 = vunpack.c.l.b16 %v179
      %v476 = vunpack.c.h.b16 %v179
      %v477 = vunpack.c.l.b16 %v180
      %v478 = vunpack.c.h.b16 %v180
      %v479 = vunpack.c.l.b16 %v181
      %v480 = vunpack.c.h.b16 %v181
      %v481 = vunpack.c.l.b16 %v182
      %v482 = vunpack.c.h.b16 %v182
      %v483 = vunpack.c.l.b16 %v183
      %v484 = vunpack.c.h.b16 %v183
      %v485 = vunpack.c.l.b16 %v184
      %v486 = vunpack.c.h.b16 %v184
      %v487 = vunpack.c.l.b16 %v185
      %v488 = vunpack.c.h.b16 %v185
      %v489 = vunpack.c.l.b16 %v186
      %v490 = vunpack.c.h.b16 %v186
      %v491 = vunpack.c.l.b16 %v187
      %v492 = vunpack.c.h.b16 %v187
      %v493 = vunpack.c.l.b16 %v188
      %v494 = vunpack.c.h.b16 %v188
      %v495 = vunpack.c.l.b16 %v189
      %v496 = vunpack.c.h.b16 %v189
      %v497 = vunpack.c.l.b16 %v190
      %v498 = vunpack.c.h.b16 %v190
      %v499 = vunpack.c.l.b16 %v191
      %v500 = vunpack.c.h.b16 %v191
      %v501 = vunpack.c.l.b16 %v192
      %v502 = vunpack.c.h.b16 %v192
      %v503 = vunpack.c.l.b16 %v193
      %v504 = vunpack.c.h.b16 %v193
      %v505 = vunpack.c.l.b16 %v194
      %v506 = vunpack.c.h.b16 %v194
      %v507 = vunpack.c.l.b16 %v195
      %v508 = vunpack.c.h.b16 %v195
      %v509 = vunpack.c.l.b16 %v196
      %v510 = vunpack.c.h.b16 %v196
      %v511 = vunpack.c.l.b16 %v197
      %v512 = vunpack.c.h.b16 %v197
      %v513 = vunpack.c.l.b16 %v198
      %v514 = vunpack.c.h.b16 %v198
      %v515 = vunpack.c.l.b16 %v199
      %v516 = vunpack.c.h.b16 %v199
      %v517 = vunpack.c.l.b16 %v200
      %v518 = vunpack.c.h.b16 %v200
      %v519 = vunpack.c.l.b16 %v201
      %v520 = vunpack.c.h.b16 %v201
      %v521 = vunpack.c.l.b16 %v202
      %v522 = vunpack.c.h.b16 %v202
      %v523 = vunpack.c.l.b16 %v203
      %v524 = vunpack.c.h.b16 %v203
      %v525 = vunpack.c.l.b16 %v204
      %v526 = vunpack.c.h.b16 %v204
      %v527 = vunpack.c.l.b16 %v205
      %v528 = vunpack.c.h.b16 %v205
      %v529 = vunpack.c.l.b16 %v206
      %v530 = vunpack.c.h.b16 %v206
      %v531 = vunpack.c.l.b16 %v207
      %v532 = vunpack.c.h.b16 %v207
      %v533 = vunpack.c.l.b16 %v208
      %v534 = vunpack.c.h.b16 %v208
      %v535 = vunpack.c.l.b16 %v209
      %v536 = vunpack.c.h.b16 %v209
      %v537 = vunpack.c.l.b16 %v210
      %v538 = vunpack.c.h.b16 %v210
      %v539 = vunpack.c.l.b16 %v211
      %v540 = vunpack.c.h.b16 %v211
      %v541 = vunpack.c.l.b16 %v212
      %v542 = vunpack.c.h.b16 %v212
      %v543 = vunpack.c.l.b16 %v213
      %v544 = vunpack.c.h.b16 %v213
      %v545 = vunpack.c.l.b16 %v214
      %v546 = vunpack.c.h.b16 %v214
      %v547 = vunpack.c.l.b16 %v215
      %v548 = vunpack.c.h.b16 %v215
      %v549 = vunpack.c.l.b16 %v216
      %v550 = vunpack.c.h.b16 %v216
      %v551 = vunpack.c.l.b16 %v217
      %v552 = vunpack.c.h.b16 %v217
      %v553 = vunpack.c.l.b16 %v218
      %v554 = vunpack.c.h.b16 %v218
      %v555 = vunpack.c.l.b16 %v219
      %v556 = vunpack.c.h.b16 %v219
      %v557 = vunpack.c.l.b16 %v220
      %v558 = vunpack.c.h.b16 %v220
      %v559 = vunpack.c.l.b16 %v221
      %v560 = vunpack.c.h.b16 %v221
      %v561 = vunpack.c.l.b16 %v222
      %v562 = vunpack.c.h.b16 %v222
      %v563 = vunpack.c.l.b16 %v223
      %v564 = vunpack.c.h.b16 %v223
      %v565 = vunpack.c.l.b16 %v224
      %v566 = vunpack.c.h.b16 %v224
      %v567 = vunpack.c.l.b16 %v225
      %v568 = vunpack.c.h.b16 %v225
      %v569 = vunpack.c.l.b16 %v226
      %v570 = vunpack.c.h.b16 %v226
      %v571 = vunpack.c.l.b16 %v227
      %v572 = vunpack.c.h.b16 %v227
      %v573 = vunpack.c.l.b16 %v228
      %v574 = vunpack.c.h.b16 %v228
      %v575 = vunpack.c.l.b16 %v229
      %v576 = vunpack.c.h.b16 %v229
      %v577 = vunpack.c.l.b16 %v230
      %v578 = vunpack.c.h.b16 %v230
      %v579 = vunpack.c.l.b16 %v231
      %v580 = vunpack.c.h.b16 %v231
      %v581 = vunpack.c.l.b16 %v232
      %v582 = vunpack.c.h.b16 %v232
      %v583 = vunpack.c.l.b16 %v233
      %v584 = vunpack.c.h.b16 %v233
      %v585 = vunpack.c.l.b16 %v234
      %v586 = vunpack.c.h.b16 %v234
      %v587 = vunpack.c.l.b16 %v235
      %v588 = vunpack.c.h.b16 %v235
      %v589 = vunpack.c.l.b16 %v236
      %v590 = vunpack.c.h.b16 %v236
      %v591 = vunpack.c.l.b16 %v237
      %v592 = vunpack.c.h.b16 %v237
      %v593 = vunpack.c.l.b16 %v238
      %v594 = vunpack.c.h.b16 %v238
      %v595 = vunpack.c.l.b16 %v239
      %v596 = vunpack.c.h.b16 %v239
      %v597 = vunpack.c.l.b16 %v240
      %v598 = vunpack.c.h.b16 %v240
      %v599 = vunpack.c.l.b16 %v241
      %v600 = vunpack.c.h.b16 %v241
      %v601 = vunpack.c.l.b16 %v242
      %v602 = vunpack.c.h.b16 %v242
      %v603 = vunpack.c.l.b16 %v243
      %v604 = vunpack.c.h.b16 %v243
      %v605 = vunpack.c.l.b16 %v244
      %v606 = vunpack.c.h.b16 %v244
      %v607 = vunpack.c.l.b16 %v245
      %v608 = vunpack.c.h.b16 %v245
      %v609 = vunpack.c.l.b16 %v246
      %v610 = vunpack.c.h.b16 %v246
      %v611 = vunpack.c.l.b16 %v247
      %v612 = vunpack.c.h.b16 %v247
      %v613 = vunpack.c.l.b16 %v248
      %v614 = vunpack.c.h.b16 %v248
      %v615 = vunpack.c.l.b16 %v249
      %v616 = vunpack.c.h.b16 %v249
      %v617 = vunpack.c.l.b16 %v250
      %v618 = vunpack.c.h.b16 %v250
      %v619 = vunpack.c.l.b16 %v251
      %v620 = vunpack.c.h.b16 %v251
      %v621 = vunpack.c.l.b16 %v252
      %v622 = vunpack.c.h.b16 %v252
      %v623 = vunpack.c.l.b16 %v253
      %v624 = vunpack.c.h.b16 %v253
      %v625 = vunpack.c.l.b16 %v254
      %v626 = vunpack.c.h.b16 %v254
      %v627 = vunpack.c.l.b16 %v255
      %v628 = vunpack.c.h.b16 %v255
      %v629 = vunpack.c.l.b16 %v256
      %v630 = vunpack.c.h.b16 %v256
      %v631 = vunpack.c.l.b16 %v257
      %v632 = vunpack.c.h.b16 %v257
      %v633 = vunpack.c.l.b16 %v258
      %v634 = vunpack.c.h.b16 %v258
      %v635 = vunpack.c.l.b16 %v259
      %v636 = vunpack.c.h.b16 %v259
      %v637 = vunpack.c.l.b16 %v260
      %v638 = vunpack.c.h.b16 %v260
      %v639 = vunpack.c.l.b16 %v261
      %v640 = vunpack.c.h.b16 %v261
      %v641 = vunpack.c.l.b16 %v262
      %v642 = vunpack.c.h.b16 %v262
      %v643 = vunpack.c.l.b16 %v263
      %v644 = vunpack.c.h.b16 %v263
      %v645 = vunpack.c.l.b16 %v264
      %v646 = vunpack.c.h.b16 %v264
      %v647 = vunpack.c.l.b16 %v265
      %v648 = vunpack.c.h.b16 %v265
      %v649 = vunpack.c.l.b16 %v266
      %v650 = vunpack.c.h.b16 %v266
      %v651 = vunpack.c.l.b16 %v267
      %v652 = vunpack.c.h.b16 %v267
      %v653 = vunpack.c.l.b16 %v268
      %v654 = vunpack.c.h.b16 %v268
      %v655 = vunpack.c.l.b16 %v269
      %v656 = vunpack.c.h.b16 %v269
      %v657 = vunpack.c.l.b16 %v270
      %v658 = vunpack.c.h.b16 %v270
      %v659 = vunpack.c.l.b16 %v271
      %v660 = vunpack.c.h.b16 %v271
      %v661 = vunpack.c.l.b16 %v272
      %v662 = vunpack.c.h.b16 %v272
      %v663 = vunpack.c.l.b16 %v273
      %v664 = vunpack.c.h.b16 %v273
      %v665 = vunpack.c.l.b16 %v274
      %v666 = vunpack.c.h.b16 %v274
      %v667 = vunpack.c.l.b16 %v275
      %v668 = vunpack.c.h.b16 %v275
      %v669 = vunpack.c.l.b16 %v276
      %v670 = vunpack.c.h.b16 %v276
      %v671 = vunpack.c.l.b16 %v277
      %v672 = vunpack.c.h.b16 %v277
      %v673 = vunpack.c.l.b16 %v278
      %v674 = vunpack.c.h.b16 %v278
      %v675 = vunpack.c.l.b16 %v279
      %v676 = vunpack.c.h.b16 %v279
      %v677 = vunpack.c.l.b16 %v280
      %v678 = vunpack.c.h.b16 %v280
      %v679 = vunpack.c.l.b16 %v281
      %v680 = vunpack.c.h.b16 %v281
      %v681 = vunpack.c.l.b16 %v282
      %v682 = vunpack.c.h.b16 %v282
      %v683 = vunpack.c.l.b16 %v283
      %v684 = vunpack.c.h.b16 %v283
      %v685 = vunpack.c.l.b16 %v284
      %v686 = vunpack.c.h.b16 %v284
      %v687 = vunpack.c.l.b16 %v285
      %v688 = vunpack.c.h.b16 %v285
      %v689 = vunpack.c.l.b16 %v286
      %v690 = vunpack.c.h.b16 %v286
      %v691 = vunpack.c.l.b16 %v287
      %v692 = vunpack.c.h.b16 %v287
      %v693 = vunpack.c.l.b16 %v288
      %v694 = vunpack.c.h.b16 %v288
      %v695 = vunpack.c.l.b16 %v289
      %v696 = vunpack.c.h.b16 %v289
      %v697 = vunpack.c.l.b16 %v290
      %v698 = vunpack.c.h.b16 %v290
      %v699 = vunpack.c.l.b16 %v291
      %v700 = vunpack.c.h.b16 %v291
      %v701 = vunpack.c.l.b16 %v292
      %v702 = vunpack.c.h.b16 %v292
      %v703 = vunpack.c.l.b16 %v293
      %v704 = vunpack.c.h.b16 %v293
      %v705 = vunpack.c.l.b16 %v294
      %v706 = vunpack.c.h.b16 %v294
      %v707 = vunpack.c.l.b16 %v295
      %v708 = vunpack.c.h.b16 %v295
      %v709 = vunpack.c.l.b16 %v296
      %v710 = vunpack.c.h.b16 %v296
      %v711 = vunpack.c.l.b16 %v297
      %v712 = vunpack.c.h.b16 %v297
      %v713 = vunpack.c.l.b16 %v298
      %v714 = vunpack.c.h.b16 %v298
      %v715 = vunpack.c.l.b16 %v299
      %v716 = vunpack.c.h.b16 %v299
      %v717 = vunpack.c.l.b16 %v300
      %v718 = vunpack.c.h.b16 %v300
      %v719 = vunpack.c.l.b16 %v301
      %v720 = vunpack.c.h.b16 %v301
      %v721 = vunpack.c.l.b16 %v302
      %v722 = vunpack.c.h.b16 %v302
      %v723 = vunpack.c.l.b16 %v303
      %v724 = vunpack.c.h.b16 %v303
      %v725 = vunpack.c.l.b16 %v304
      %v726 = vunpack.c.h.b16 %v304
      %v727 = vunpack.c.l.b16 %v305
      %v728 = vunpack.c.h.b16 %v305
      %v729 = vpack.c.b16 %v475, %v473
      %v730 = vpack.c.b16 %v476, %v474
      %v731 = vpack.c.b16 %v479, %v477
      %v732 = vpack.c.b16 %v480, %v478
      %v733 = vpack.c.b16 %v483, %v481
      %v734 = vpack.c.b16 %v484, %v482
      %v735 = vpack.c.b16 %v487, %v485
      %v736 = vpack.c.b16 %v488, %v486
      %v737 = vpack.c.b16 %v491, %v489
      %v738 = vpack.c.b16 %v492, %v490
      %v739 = vpack.c.b16 %v495, %v493
      %v740 = vpack.c.b16 %v496, %v494
      %v741 = vpack.c.b16 %v499, %v497
      %v742 = vpack.c.b16 %v500, %v498
      %v743 = vpack.c.b16 %v503, %v501
      %v744 = vpack.c.b16 %v504, %v502
      %v745 = vpack.c.b16 %v507, %v505
      %v746 = vpack.c.b16 %v508, %v506
      %v747 = vpack.c.b16 %v511, %v509
      %v748 = vpack.c.b16 %v512, %v510
      %v749 = vpack.c.b16 %v515, %v513
      %v750 = vpack.c.b16 %v516, %v514
      %v751 = vpack.c.b16 %v519, %v517
      %v752 = vpack.c.b16 %v520, %v518
      %v753 = vpack.c.b16 %v523, %v521
      %v754 = vpack.c.b16 %v524, %v522
      %v755 = vpack.c.b16 %v527, %v525
      %v756 = vpack.c.b16 %v528, %v526
      %v757 = vpack.c.b16 %v531, %v529
      %v758 = vpack.c.b16 %v532, %v530
      %v759 = vpack.c.b16 %v535, %v533
      %v760 = vpack.c.b16 %v536, %v534
      %v761 = vpack.c.b16 %v539, %v537
      %v762 = vpack.c.b16 %v540, %v538
      %v763 = vpack.c.b16 %v543, %v541
      %v764 = vpack.c.b16 %v544, %v542
      %v765 = vpack.c.b16 %v547, %v545
      %v766 = vpack.c.b16 %v548, %v546
      %v767 = vpack.c.b16 %v551, %v549
      %v768 = vpack.c.b16 %v552, %v550
      %v769 = vpack.c.b16 %v555, %v553
      %v770 = vpack.c.b16 %v556, %v554
      %v771 = vpack.c.b16 %v559, %v557
      %v772 = vpack.c.b16 %v560, %v558
      %v773 = vpack.c.b16 %v563, %v561
      %v774 = vpack.c.b16 %v564, %v562
      %v775 = vpack.c.b16 %v567, %v565
      %v776 = vpack.c.b16 %v568, %v566
      %v777 = vpack.c.b16 %v571, %v569
      %v778 = vpack.c.b16 %v572, %v570
      %v779 = vpack.c.b16 %v575, %v573
      %v780 = vpack.c.b16 %v576, %v574
      %v781 = vpack.c.b16 %v579, %v577
      %v782 = vpack.c.b16 %v580, %v578
      %v783 = vpack.c.b16 %v583, %v581
      %v784 = vpack.c.b16 %v584, %v582
      %v785 = vpack.c.b16 %v587, %v585
      %v786 = vpack.c.b16 %v588, %v586
      %v787 = vpack.c.b16 %v591, %v589
      %v788 = vpack.c.b16 %v592, %v590
      %v789 = vpack.c.b16 %v595, %v593
      %v790 = vpack.c.b16 %v596, %v594
      %v791 = vpack.c.b16 %v599, %v597
      %v792 = vpack.c.b16 %v600, %v598
      %v793 = vpack.c.b16 %v603, %v601
      %v794 = vpack.c.b16 %v604, %v602
      %v795 = vpack.c.b16 %v607, %v605
      %v796 = vpack.c.b16 %v608, %v606
      %v797 = vpack.c.b16 %v611, %v609
      %v798 = vpack.c.b16 %v612, %v610
      %v799 = vpack.c.b16 %v615, %v613
      %v800 = vpack.c.b16 %v616, %v614
      %v801 = vpack.c.b16 %v619, %v617
      %v802 = vpack.c.b16 %v620, %v618
      %v803 = vpack.c.b16 %v623, %v621
      %v804 = vpack.c.b16 %v624, %v622
      %v805 = vpack.c.b16 %v627, %v625
      %v806 = vpack.c.b16 %v628, %v626
      %v807 = vpack.c.b16 %v631, %v629
      %v808 = vpack.c.b16 %v632, %v630
      %v809 = vpack.c.b16 %v635, %v633
      %v810 = vpack.c.b16 %v636, %v634
      %v811 = vpack.c.b16 %v639, %v637
      %v812 = vpack.c.b16 %v640, %v638
      %v813 = vpack.c.b16 %v643, %v641
      %v814 = vpack.c.b16 %v644, %v642
      %v815 = vpack.c.b16 %v647, %v645
      %v816 = vpack.c.b16 %v648, %v646
      %v817 = vpack.c.b16 %v651, %v649
      %v818 = vpack.c.b16 %v652, %v650
      %v819 = vpack.c.b16 %v655, %v653
      %v820 = vpack.c.b16 %v656, %v654
      %v821 = vpack.c.b16 %v659, %v657
      %v822 = vpack.c.b16 %v660, %v658
      %v823 = vpack.c.b16 %v663, %v661
      %v824 = vpack.c.b16 %v664, %v662
      %v825 = vpack.c.b16 %v667, %v665
      %v826 = vpack.c.b16 %v668, %v666
      %v827 = vpack.c.b16 %v671, %v669
      %v828 = vpack.c.b16 %v672, %v670
      %v829 = vpack.c.b16 %v675, %v673
      %v830 = vpack.c.b16 %v676, %v674
      %v831 = vpack.c.b16 %v679, %v677
      %v832 = vpack.c.b16 %v680, %v678
      %v833 = vpack.c.b16 %v683, %v681
      %v834 = vpack.c.b16 %v684, %v682
      %v835 = vpack.c.b16 %v687, %v685
      %v836 = vpack.c.b16 %v688, %v686
      %v837 = vpack.c.b16 %v691, %v689
      %v838 = vpack.c.b16 %v692, %v690
      %v839 = vpack.c.b16 %v695, %v693
      %v840 = vpack.c.b16 %v696, %v694
      %v841 = vpack.c.b16 %v699, %v697
      %v842 = vpack.c.b16 %v700, %v698
      %v843 = vpack.c.b16 %v703, %v701
      %v844 = vpack.c.b16 %v704, %v702
      %v845 = vpack.c.b16 %v707, %v705
      %v846 = vpack.c.b16 %v708, %v706
      %v847 = vpack.c.b16 %v711, %v709
      %v848 = vpack.c.b16 %v712, %v710
      %v849 = vpack.c.b16 %v715, %v713
      %v850 = vpack.c.b16 %v716, %v714
      %v851 = vpack.c.b16 %v719, %v717
      %v852 = vpack.c.b16 %v720, %v718
      %v853 = vpack.c.b16 %v723, %v721
      %v854 = vpack.c.b16 %v724, %v722
      %v855 = vpack.c.b16 %v727, %v725
      %v856 = vpack.c.b16 %v728, %v726
      %v1017 = vunpack.c.l.b16 %v306
      %v1018 = vunpack.c.l.b16 %v307
      %v1019 = vunpack.c.l.b16 %v308
      %v1020 = vunpack.c.l.b16 %v309
      %v1021 = vunpack.c.l.b16 %v310
      %v1022 = vunpack.c.l.b16 %v311
      %v1023 = vunpack.c.l.b16 %v312
      %v1024 = vunpack.c.l.b16 %v313
      %v1025 = vunpack.c.l.b16 %v314
      %v1026 = vunpack.c.l.b16 %v315
      %v1027 = vunpack.c.l.b16 %v316
      %v1028 = vunpack.c.l.b16 %v317
      %v1029 = vunpack.c.l.b16 %v318
      %v1030 = vunpack.c.l.b16 %v319
      %v1031 = vunpack.c.l.b16 %v320
      %v1032 = vunpack.c.l.b16 %v321
      %v1033 = vunpack.c.l.b16 %v322
      %v1034 = vunpack.c.l.b16 %v323
      %v1035 = vunpack.c.l.b16 %v324
      %v1036 = vunpack.c.l.b16 %v325
      %v1037 = vunpack.c.l.b16 %v326
      %v1038 = vunpack.c.l.b16 %v327
      %v1039 = vunpack.c.l.b16 %v328
      %v1040 = vunpack.c.l.b16 %v329
      %v1041 = vunpack.c.l.b16 %v330
      %v1042 = vunpack.c.l.b16 %v331
      %v1043 = vunpack.c.l.b16 %v332
      %v1044 = vunpack.c.l.b16 %v333
      %v1045 = vunpack.c.l.b16 %v334
      %v1046 = vunpack.c.l.b16 %v335
      %v1047 = vunpack.c.l.b16 %v336
      %v1048 = vunpack.c.l.b16 %v337
      %v1049 = vpack.c.b16 %v1018, %v1017
      %v1050 = vpack.c.b16 %v1020, %v1019
      %v1051 = vpack.c.b16 %v1022, %v1021
      %v1052 = vpack.c.b16 %v1024, %v1023
      %v1053 = vpack.c.b16 %v1026, %v1025
      %v1054 = vpack.c.b16 %v1028, %v1027
      %v1055 = vpack.c.b16 %v1030, %v1029
      %v1056 = vpack.c.b16 %v1032, %v1031
      %v1057 = vpack.c.b16 %v1034, %v1033
      %v1058 = vpack.c.b16 %v1036, %v1035
      %v1059 = vpack.c.b16 %v1038, %v1037
      %v1060 = vpack.c.b16 %v1040, %v1039
      %v1061 = vpack.c.b16 %v1042, %v1041
      %v1062 = vpack.c.b16 %v1044, %v1043
      %v1063 = vpack.c.b16 %v1046, %v1045
      %v1064 = vpack.c.b16 %v1048, %v1047
      %1081 = vmatprep.subr.bf16.mxu0 0
      %1082 = vmatpush1.bf16.msra.mxu0 %v1049
      %1083 = vmatprep.subr.bf16.mxu0 0
      %1084 = vmatpush1.bf16.msra.mxu0 %v1050
      %1085 = vmatprep.subr.bf16.mxu0 0
      %1086 = vmatpush1.bf16.msra.mxu0 %v1051
      %1087 = vmatprep.subr.bf16.mxu0 0
      %1088 = vmatpush1.bf16.msra.mxu0 %v1052
      %1089 = vmatprep.subr.bf16.mxu0 0
      %1090 = vmatpush1.bf16.msra.mxu0 %v1053
      %1091 = vmatprep.subr.bf16.mxu0 0
      %1092 = vmatpush1.bf16.msra.mxu0 %v1054
      %1093 = vmatprep.subr.bf16.mxu0 0
      %1094 = vmatpush1.bf16.msra.mxu0 %v1055
      %1095 = vmatprep.subr.bf16.mxu0 0
      %1096 = vmatpush1.bf16.msra.mxu0 %v1056
      %1097 = vmatprep.subr.bf16.mxu0 0
      %1098 = vmatpush1.bf16.msra.mxu0 %v1057
      %1099 = vmatprep.subr.bf16.mxu0 0
      %1100 = vmatpush1.bf16.msra.mxu0 %v1058
      %1101 = vmatprep.subr.bf16.mxu0 0
      %1102 = vmatpush1.bf16.msra.mxu0 %v1059
      %1103 = vmatprep.subr.bf16.mxu0 0
      %1104 = vmatpush1.bf16.msra.mxu0 %v1060
      %1105 = vmatprep.subr.bf16.mxu0 0
      %1106 = vmatpush1.bf16.msra.mxu0 %v1061
      %1107 = vmatprep.subr.bf16.mxu0 0
      %1108 = vmatpush1.bf16.msra.mxu0 %v1062
      %1109 = vmatprep.subr.bf16.mxu0 0
      %1110 = vmatpush1.bf16.msra.mxu0 %v1063
      %1111 = vmatprep.subr.bf16.mxu0 0
      %1112 = vmatpush1.bf16.msra.mxu0 %v1064
      %1113 = vmatprep.mubr.bf16.mxu0 %v730
      %1114 = vmatmul.mubr.bf16.gmra.mrb[0].mxu0 %v729
      %v1115 = vpop.f32.mrb[0].mxu0
      %v1116 = vadd.f32 %v343, %v1115
      %v1117 = vpop.f32.mrb[0].mxu0
      %v1118 = vpop.f32.mrb[0].mxu0
      %v1119 = vadd.f32 %v343, %v1118
      %v1120 = vpop.f32.mrb[0].mxu0
      %1121 = vmatprep.mubr.bf16.mxu0 %v732
      %1122 = vmatmul.mubr.bf16.gmra.mrb[0].mxu0 %v731
      %v1123 = vpop.f32.mrb[0].mxu0
      %v1124 = vadd.f32 %v343, %v1123
      %v1125 = vpop.f32.mrb[0].mxu0
      %v1126 = vpop.f32.mrb[0].mxu0
      %v1127 = vadd.f32 %v343, %v1126
      %v1128 = vpop.f32.mrb[0].mxu0
      %1129 = vmatprep.mubr.bf16.mxu0 %v734
      %1130 = vmatmul.mubr.bf16.gmra.mrb[0].mxu0 %v733
      %v1131 = vpop.f32.mrb[0].mxu0
      %v1132 = vadd.f32 %v343, %v1131
      %v1133 = vpop.f32.mrb[0].mxu0
      %v1134 = vpop.f32.mrb[0].mxu0
      %v1135 = vadd.f32 %v343, %v1134
      %v1136 = vpop.f32.mrb[0].mxu0
      %1137 = vmatprep.mubr.bf16.mxu0 %v736
      %1138 = vmatmul.mubr.bf16.gmra.mrb[0].mxu0 %v735
      %v1139 = vpop.f32.mrb[0].mxu0
      %v1140 = vadd.f32 %v343, %v1139
      %v1141 = vpop.f32.mrb[0].mxu0
      %v1142 = vpop.f32.mrb[0].mxu0
      %v1143 = vadd.f32 %v343, %v1142
      %v1144 = vpop.f32.mrb[0].mxu0
      %1145 = vmatprep.mubr.bf16.mxu0 %v738
      %1146 = vmatmul.mubr.bf16.gmra.mrb[0].mxu0 %v737
      %v1147 = vpop.f32.mrb[0].mxu0
      %v1148 = vadd.f32 %v343, %v1147
      %v1149 = vpop.f32.mrb[0].mxu0
      %v1150 = vpop.f32.mrb[0].mxu0
      %v1151 = vadd.f32 %v343, %v1150
      %v1152 = vpop.f32.mrb[0].mxu0
      %1153 = vmatprep.mubr.bf16.mxu0 %v740
      %1154 = vmatmul.mubr.bf16.gmra.mrb[0].mxu0 %v739
      %v1155 = vpop.f32.mrb[0].mxu0
      %v1156 = vadd.f32 %v343, %v1155
      %v1157 = vpop.f32.mrb[0].mxu0
      %v1158 = vpop.f32.mrb[0].mxu0
      %v1159 = vadd.f32 %v343, %v1158
      %v1160 = vpop.f32.mrb[0].mxu0
      %1161 = vmatprep.mubr.bf16.mxu0 %v742
      %1162 = vmatmul.mubr.bf16.gmra.mrb[0].mxu0 %v741
      %v1163 = vpop.f32.mrb[0].mxu0
      %v1164 = vadd.f32 %v343, %v1163
      %v1165 = vpop.f32.mrb[0].mxu0
      %v1166 = vpop.f32.mrb[0].mxu0
      %v1167 = vadd.f32 %v343, %v1166
      %v1168 = vpop.f32.mrb[0].mxu0
      %1169 = vmatprep.mubr.bf16.mxu0 %v744
      %1170 = vmatmul.mubr.bf16.gmra.mrb[0].mxu0 %v743
      %v1171 = vpop.f32.mrb[0].mxu0
      %v1172 = vadd.f32 %v343, %v1171
      %v1173 = vpop.f32.mrb[0].mxu0
      %v1174 = vpop.f32.mrb[0].mxu0
      %v1175 = vadd.f32 %v343, %v1174
      %v1176 = vpop.f32.mrb[0].mxu0
      %1177 = vmatprep.mubr.bf16.mxu0 %v746
      %1178 = vmatmul.mubr.bf16.gmra.mrb[0].mxu0 %v745
      %v1179 = vpop.f32.mrb[0].mxu0
      %v1180 = vadd.f32 %v343, %v1179
      %v1181 = vpop.f32.mrb[0].mxu0
      %v1182 = vpop.f32.mrb[0].mxu0
      %v1183 = vadd.f32 %v343, %v1182
      %v1184 = vpop.f32.mrb[0].mxu0
      %1185 = vmatprep.mubr.bf16.mxu0 %v748
      %1186 = vmatmul.mubr.bf16.gmra.mrb[0].mxu0 %v747
      %v1187 = vpop.f32.mrb[0].mxu0
      %v1188 = vadd.f32 %v343, %v1187
      %v1189 = vpop.f32.mrb[0].mxu0
      %v1190 = vpop.f32.mrb[0].mxu0
      %v1191 = vadd.f32 %v343, %v1190
      %v1192 = vpop.f32.mrb[0].mxu0
      %1193 = vmatprep.mubr.bf16.mxu0 %v750
      %1194 = vmatmul.mubr.bf16.gmra.mrb[0].mxu0 %v749
      %v1195 = vpop.f32.mrb[0].mxu0
      %v1196 = vadd.f32 %v343, %v1195
      %v1197 = vpop.f32.mrb[0].mxu0
      %v1198 = vpop.f32.mrb[0].mxu0
      %v1199 = vadd.f32 %v343, %v1198
      %v1200 = vpop.f32.mrb[0].mxu0
      %1201 = vmatprep.mubr.bf16.mxu0 %v752
      %1202 = vmatmul.mubr.bf16.gmra.mrb[0].mxu0 %v751
      %v1203 = vpop.f32.mrb[0].mxu0
      %v1204 = vadd.f32 %v343, %v1203
      %v1205 = vpop.f32.mrb[0].mxu0
      %v1206 = vpop.f32.mrb[0].mxu0
      %v1207 = vadd.f32 %v343, %v1206
      %v1208 = vpop.f32.mrb[0].mxu0
      %1209 = vmatprep.mubr.bf16.mxu0 %v754
      %1210 = vmatmul.mubr.bf16.gmra.mrb[0].mxu0 %v753
      %v1211 = vpop.f32.mrb[0].mxu0
      %v1212 = vadd.f32 %v343, %v1211
      %v1213 = vpop.f32.mrb[0].mxu0
      %v1214 = vpop.f32.mrb[0].mxu0
      %v1215 = vadd.f32 %v343, %v1214
      %v1216 = vpop.f32.mrb[0].mxu0
      %1217 = vmatprep.mubr.bf16.mxu0 %v756
      %1218 = vmatmul.mubr.bf16.gmra.mrb[0].mxu0 %v755
      %v1219 = vpop.f32.mrb[0].mxu0
      %v1220 = vadd.f32 %v343, %v1219
      %v1221 = vpop.f32.mrb[0].mxu0
      %v1222 = vpop.f32.mrb[0].mxu0
      %v1223 = vadd.f32 %v343, %v1222
      %v1224 = vpop.f32.mrb[0].mxu0
      %1225 = vmatprep.mubr.bf16.mxu0 %v758
      %1226 = vmatmul.mubr.bf16.gmra.mrb[0].mxu0 %v757
      %v1227 = vpop.f32.mrb[0].mxu0
      %v1228 = vadd.f32 %v343, %v1227
      %v1229 = vpop.f32.mrb[0].mxu0
      %v1230 = vpop.f32.mrb[0].mxu0
      %v1231 = vadd.f32 %v343, %v1230
      %v1232 = vpop.f32.mrb[0].mxu0
      %1233 = vmatprep.mubr.bf16.mxu0 %v760
      %1234 = vmatmul.mubr.bf16.gmra.mrb[0].mxu0 %v759
      %v1235 = vpop.f32.mrb[0].mxu0
      %v1236 = vadd.f32 %v343, %v1235
      %v1237 = vpop.f32.mrb[0].mxu0
      %v1238 = vpop.f32.mrb[0].mxu0
      %v1239 = vadd.f32 %v343, %v1238
      %v1240 = vpop.f32.mrb[0].mxu0
      %1241 = vmatprep.mubr.bf16.mxu0 %v762
      %1242 = vmatmul.mubr.bf16.gmra.mrb[0].mxu0 %v761
      %v1243 = vpop.f32.mrb[0].mxu0
      %v1244 = vadd.f32 %v343, %v1243
      %v1245 = vpop.f32.mrb[0].mxu0
      %v1246 = vpop.f32.mrb[0].mxu0
      %v1247 = vadd.f32 %v343, %v1246
      %v1248 = vpop.f32.mrb[0].mxu0
      %1249 = vmatprep.mubr.bf16.mxu0 %v764
      %1250 = vmatmul.mubr.bf16.gmra.mrb[0].mxu0 %v763
      %v1251 = vpop.f32.mrb[0].mxu0
      %v1252 = vadd.f32 %v343, %v1251
      %v1253 = vpop.f32.mrb[0].mxu0
      %v1254 = vpop.f32.mrb[0].mxu0
      %v1255 = vadd.f32 %v343, %v1254
      %v1256 = vpop.f32.mrb[0].mxu0
      %1257 = vmatprep.mubr.bf16.mxu0 %v766
      %1258 = vmatmul.mubr.bf16.gmra.mrb[0].mxu0 %v765
      %v1259 = vpop.f32.mrb[0].mxu0
      %v1260 = vadd.f32 %v343, %v1259
      %v1261 = vpop.f32.mrb[0].mxu0
      %v1262 = vpop.f32.mrb[0].mxu0
      %v1263 = vadd.f32 %v343, %v1262
      %v1264 = vpop.f32.mrb[0].mxu0
      %1265 = vmatprep.mubr.bf16.mxu0 %v768
      %1266 = vmatmul.mubr.bf16.gmra.mrb[0].mxu0 %v767
      %v1267 = vpop.f32.mrb[0].mxu0
      %v1268 = vadd.f32 %v343, %v1267
      %v1269 = vpop.f32.mrb[0].mxu0
      %v1270 = vpop.f32.mrb[0].mxu0
      %v1271 = vadd.f32 %v343, %v1270
      %v1272 = vpop.f32.mrb[0].mxu0
      %1273 = vmatprep.mubr.bf16.mxu0 %v770
      %1274 = vmatmul.mubr.bf16.gmra.mrb[0].mxu0 %v769
      %v1275 = vpop.f32.mrb[0].mxu0
      %v1276 = vadd.f32 %v343, %v1275
      %v1277 = vpop.f32.mrb[0].mxu0
      %v1278 = vpop.f32.mrb[0].mxu0
      %v1279 = vadd.f32 %v343, %v1278
      %v1280 = vpop.f32.mrb[0].mxu0
      %1281 = vmatprep.mubr.bf16.mxu0 %v772
      %1282 = vmatmul.mubr.bf16.gmra.mrb[0].mxu0 %v771
      %v1283 = vpop.f32.mrb[0].mxu0
      %v1284 = vadd.f32 %v343, %v1283
      %v1285 = vpop.f32.mrb[0].mxu0
      %v1286 = vpop.f32.mrb[0].mxu0
      %v1287 = vadd.f32 %v343, %v1286
      %v1288 = vpop.f32.mrb[0].mxu0
      %1289 = vmatprep.mubr.bf16.mxu0 %v774
      %1290 = vmatmul.mubr.bf16.gmra.mrb[0].mxu0 %v773
      %v1291 = vpop.f32.mrb[0].mxu0
      %v1292 = vadd.f32 %v343, %v1291
      %v1293 = vpop.f32.mrb[0].mxu0
      %v1294 = vpop.f32.mrb[0].mxu0
      %v1295 = vadd.f32 %v343, %v1294
      %v1296 = vpop.f32.mrb[0].mxu0
      %1297 = vmatprep.mubr.bf16.mxu0 %v776
      %1298 = vmatmul.mubr.bf16.gmra.mrb[0].mxu0 %v775
      %v1299 = vpop.f32.mrb[0].mxu0
      %v1300 = vadd.f32 %v343, %v1299
      %v1301 = vpop.f32.mrb[0].mxu0
      %v1302 = vpop.f32.mrb[0].mxu0
      %v1303 = vadd.f32 %v343, %v1302
      %v1304 = vpop.f32.mrb[0].mxu0
      %1305 = vmatprep.mubr.bf16.mxu0 %v778
      %1306 = vmatmul.mubr.bf16.gmra.mrb[0].mxu0 %v777
      %v1307 = vpop.f32.mrb[0].mxu0
      %v1308 = vadd.f32 %v343, %v1307
      %v1309 = vpop.f32.mrb[0].mxu0
      %v1310 = vpop.f32.mrb[0].mxu0
      %v1311 = vadd.f32 %v343, %v1310
      %v1312 = vpop.f32.mrb[0].mxu0
      %1313 = vmatprep.mubr.bf16.mxu0 %v780
      %1314 = vmatmul.mubr.bf16.gmra.mrb[0].mxu0 %v779
      %v1315 = vpop.f32.mrb[0].mxu0
      %v1316 = vadd.f32 %v343, %v1315
      %v1317 = vpop.f32.mrb[0].mxu0
      %v1318 = vpop.f32.mrb[0].mxu0
      %v1319 = vadd.f32 %v343, %v1318
      %v1320 = vpop.f32.mrb[0].mxu0
      %1321 = vmatprep.mubr.bf16.mxu0 %v782
      %1322 = vmatmul.mubr.bf16.gmra.mrb[0].mxu0 %v781
      %v1323 = vpop.f32.mrb[0].mxu0
      %v1324 = vadd.f32 %v343, %v1323
      %v1325 = vpop.f32.mrb[0].mxu0
      %v1326 = vpop.f32.mrb[0].mxu0
      %v1327 = vadd.f32 %v343, %v1326
      %v1328 = vpop.f32.mrb[0].mxu0
      %1329 = vmatprep.mubr.bf16.mxu0 %v784
      %1330 = vmatmul.mubr.bf16.gmra.mrb[0].mxu0 %v783
      %v1331 = vpop.f32.mrb[0].mxu0
      %v1332 = vadd.f32 %v343, %v1331
      %v1333 = vpop.f32.mrb[0].mxu0
      %v1334 = vpop.f32.mrb[0].mxu0
      %v1335 = vadd.f32 %v343, %v1334
      %v1336 = vpop.f32.mrb[0].mxu0
      %1337 = vmatprep.mubr.bf16.mxu0 %v786
      %1338 = vmatmul.mubr.bf16.gmra.mrb[0].mxu0 %v785
      %v1339 = vpop.f32.mrb[0].mxu0
      %v1340 = vadd.f32 %v343, %v1339
      %v1341 = vpop.f32.mrb[0].mxu0
      %v1342 = vpop.f32.mrb[0].mxu0
      %v1343 = vadd.f32 %v343, %v1342
      %v1344 = vpop.f32.mrb[0].mxu0
      %1345 = vmatprep.mubr.bf16.mxu0 %v788
      %1346 = vmatmul.mubr.bf16.gmra.mrb[0].mxu0 %v787
      %v1347 = vpop.f32.mrb[0].mxu0
      %v1348 = vadd.f32 %v343, %v1347
      %v1349 = vpop.f32.mrb[0].mxu0
      %v1350 = vpop.f32.mrb[0].mxu0
      %v1351 = vadd.f32 %v343, %v1350
      %v1352 = vpop.f32.mrb[0].mxu0
      %1353 = vmatprep.mubr.bf16.mxu0 %v790
      %1354 = vmatmul.mubr.bf16.gmra.mrb[0].mxu0 %v789
      %v1355 = vpop.f32.mrb[0].mxu0
      %v1356 = vadd.f32 %v343, %v1355
      %v1357 = vpop.f32.mrb[0].mxu0
      %v1358 = vpop.f32.mrb[0].mxu0
      %v1359 = vadd.f32 %v343, %v1358
      %v1360 = vpop.f32.mrb[0].mxu0
      %1361 = vmatprep.mubr.bf16.mxu0 %v792
      %1362 = vmatmul.mubr.bf16.gmra.mrb[0].mxu0 %v791
      %v1363 = vpop.f32.mrb[0].mxu0
      %v1364 = vadd.f32 %v343, %v1363
      %v1365 = vpop.f32.mrb[0].mxu0
      %v1366 = vpop.f32.mrb[0].mxu0
      %v1367 = vadd.f32 %v343, %v1366
      %v1368 = vpop.f32.mrb[0].mxu0
      %1369 = vmatprep.mubr.bf16.mxu0 %v794
      %1370 = vmatmul.mubr.bf16.gmra.mrb[0].mxu0 %v793
      %v1371 = vpop.f32.mrb[0].mxu0
      %v1372 = vadd.f32 %v343, %v1371
      %v1373 = vpop.f32.mrb[0].mxu0
      %v1374 = vpop.f32.mrb[0].mxu0
      %v1375 = vadd.f32 %v343, %v1374
      %v1376 = vpop.f32.mrb[0].mxu0
      %1377 = vmatprep.mubr.bf16.mxu0 %v796
      %1378 = vmatmul.mubr.bf16.gmra.mrb[0].mxu0 %v795
      %v1379 = vpop.f32.mrb[0].mxu0
      %v1380 = vadd.f32 %v343, %v1379
      %v1381 = vpop.f32.mrb[0].mxu0
      %v1382 = vpop.f32.mrb[0].mxu0
      %v1383 = vadd.f32 %v343, %v1382
      %v1384 = vpop.f32.mrb[0].mxu0
      %1385 = vmatprep.mubr.bf16.mxu0 %v798
      %1386 = vmatmul.mubr.bf16.gmra.mrb[0].mxu0 %v797
      %v1387 = vpop.f32.mrb[0].mxu0
      %v1388 = vadd.f32 %v343, %v1387
      %v1389 = vpop.f32.mrb[0].mxu0
      %v1390 = vpop.f32.mrb[0].mxu0
      %v1391 = vadd.f32 %v343, %v1390
      %v1392 = vpop.f32.mrb[0].mxu0
      %1393 = vmatprep.mubr.bf16.mxu0 %v800
      %1394 = vmatmul.mubr.bf16.gmra.mrb[0].mxu0 %v799
      %v1395 = vpop.f32.mrb[0].mxu0
      %v1396 = vadd.f32 %v343, %v1395
      %v1397 = vpop.f32.mrb[0].mxu0
      %v1398 = vpop.f32.mrb[0].mxu0
      %v1399 = vadd.f32 %v343, %v1398
      %v1400 = vpop.f32.mrb[0].mxu0
      %1401 = vmatprep.mubr.bf16.mxu0 %v802
      %1402 = vmatmul.mubr.bf16.gmra.mrb[0].mxu0 %v801
      %v1403 = vpop.f32.mrb[0].mxu0
      %v1404 = vadd.f32 %v343, %v1403
      %v1405 = vpop.f32.mrb[0].mxu0
      %v1406 = vpop.f32.mrb[0].mxu0
      %v1407 = vadd.f32 %v343, %v1406
      %v1408 = vpop.f32.mrb[0].mxu0
      %1409 = vmatprep.mubr.bf16.mxu0 %v804
      %1410 = vmatmul.mubr.bf16.gmra.mrb[0].mxu0 %v803
      %v1411 = vpop.f32.mrb[0].mxu0
      %v1412 = vadd.f32 %v343, %v1411
      %v1413 = vpop.f32.mrb[0].mxu0
      %v1414 = vpop.f32.mrb[0].mxu0
      %v1415 = vadd.f32 %v343, %v1414
      %v1416 = vpop.f32.mrb[0].mxu0
      %1417 = vmatprep.mubr.bf16.mxu0 %v806
      %1418 = vmatmul.mubr.bf16.gmra.mrb[0].mxu0 %v805
      %v1419 = vpop.f32.mrb[0].mxu0
      %v1420 = vadd.f32 %v343, %v1419
      %v1421 = vpop.f32.mrb[0].mxu0
      %v1422 = vpop.f32.mrb[0].mxu0
      %v1423 = vadd.f32 %v343, %v1422
      %v1424 = vpop.f32.mrb[0].mxu0
      %1425 = vmatprep.mubr.bf16.mxu0 %v808
      %1426 = vmatmul.mubr.bf16.gmra.mrb[0].mxu0 %v807
      %v1427 = vpop.f32.mrb[0].mxu0
      %v1428 = vadd.f32 %v343, %v1427
      %v1429 = vpop.f32.mrb[0].mxu0
      %v1430 = vpop.f32.mrb[0].mxu0
      %v1431 = vadd.f32 %v343, %v1430
      %v1432 = vpop.f32.mrb[0].mxu0
      %1433 = vmatprep.mubr.bf16.mxu0 %v810
      %1434 = vmatmul.mubr.bf16.gmra.mrb[0].mxu0 %v809
      %v1435 = vpop.f32.mrb[0].mxu0
      %v1436 = vadd.f32 %v343, %v1435
      %v1437 = vpop.f32.mrb[0].mxu0
      %v1438 = vpop.f32.mrb[0].mxu0
      %v1439 = vadd.f32 %v343, %v1438
      %v1440 = vpop.f32.mrb[0].mxu0
      %1441 = vmatprep.mubr.bf16.mxu0 %v812
      %1442 = vmatmul.mubr.bf16.gmra.mrb[0].mxu0 %v811
      %v1443 = vpop.f32.mrb[0].mxu0
      %v1444 = vadd.f32 %v343, %v1443
      %v1445 = vpop.f32.mrb[0].mxu0
      %v1446 = vpop.f32.mrb[0].mxu0
      %v1447 = vadd.f32 %v343, %v1446
      %v1448 = vpop.f32.mrb[0].mxu0
      %1449 = vmatprep.mubr.bf16.mxu0 %v814
      %1450 = vmatmul.mubr.bf16.gmra.mrb[0].mxu0 %v813
      %v1451 = vpop.f32.mrb[0].mxu0
      %v1452 = vadd.f32 %v343, %v1451
      %v1453 = vpop.f32.mrb[0].mxu0
      %v1454 = vpop.f32.mrb[0].mxu0
      %v1455 = vadd.f32 %v343, %v1454
      %v1456 = vpop.f32.mrb[0].mxu0
      %1457 = vmatprep.mubr.bf16.mxu0 %v816
      %1458 = vmatmul.mubr.bf16.gmra.mrb[0].mxu0 %v815
      %v1459 = vpop.f32.mrb[0].mxu0
      %v1460 = vadd.f32 %v343, %v1459
      %v1461 = vpop.f32.mrb[0].mxu0
      %v1462 = vpop.f32.mrb[0].mxu0
      %v1463 = vadd.f32 %v343, %v1462
      %v1464 = vpop.f32.mrb[0].mxu0
      %1465 = vmatprep.mubr.bf16.mxu0 %v818
      %1466 = vmatmul.mubr.bf16.gmra.mrb[0].mxu0 %v817
      %v1467 = vpop.f32.mrb[0].mxu0
      %v1468 = vadd.f32 %v343, %v1467
      %v1469 = vpop.f32.mrb[0].mxu0
      %v1470 = vpop.f32.mrb[0].mxu0
      %v1471 = vadd.f32 %v343, %v1470
      %v1472 = vpop.f32.mrb[0].mxu0
      %1473 = vmatprep.mubr.bf16.mxu0 %v820
      %1474 = vmatmul.mubr.bf16.gmra.mrb[0].mxu0 %v819
      %v1475 = vpop.f32.mrb[0].mxu0
      %v1476 = vadd.f32 %v343, %v1475
      %v1477 = vpop.f32.mrb[0].mxu0
      %v1478 = vpop.f32.mrb[0].mxu0
      %v1479 = vadd.f32 %v343, %v1478
      %v1480 = vpop.f32.mrb[0].mxu0
      %1481 = vmatprep.mubr.bf16.mxu0 %v822
      %1482 = vmatmul.mubr.bf16.gmra.mrb[0].mxu0 %v821
      %v1483 = vpop.f32.mrb[0].mxu0
      %v1484 = vadd.f32 %v343, %v1483
      %v1485 = vpop.f32.mrb[0].mxu0
      %v1486 = vpop.f32.mrb[0].mxu0
      %v1487 = vadd.f32 %v343, %v1486
      %v1488 = vpop.f32.mrb[0].mxu0
      %1489 = vmatprep.mubr.bf16.mxu0 %v824
      %1490 = vmatmul.mubr.bf16.gmra.mrb[0].mxu0 %v823
      %v1491 = vpop.f32.mrb[0].mxu0
      %v1492 = vadd.f32 %v343, %v1491
      %v1493 = vpop.f32.mrb[0].mxu0
      %v1494 = vpop.f32.mrb[0].mxu0
      %v1495 = vadd.f32 %v343, %v1494
      %v1496 = vpop.f32.mrb[0].mxu0
      %1497 = vmatprep.mubr.bf16.mxu0 %v826
      %1498 = vmatmul.mubr.bf16.gmra.mrb[0].mxu0 %v825
      %v1499 = vpop.f32.mrb[0].mxu0
      %v1500 = vadd.f32 %v343, %v1499
      %v1501 = vpop.f32.mrb[0].mxu0
      %v1502 = vpop.f32.mrb[0].mxu0
      %v1503 = vadd.f32 %v343, %v1502
      %v1504 = vpop.f32.mrb[0].mxu0
      %1505 = vmatprep.mubr.bf16.mxu0 %v828
      %1506 = vmatmul.mubr.bf16.gmra.mrb[0].mxu0 %v827
      %v1507 = vpop.f32.mrb[0].mxu0
      %v1508 = vadd.f32 %v343, %v1507
      %v1509 = vpop.f32.mrb[0].mxu0
      %v1510 = vpop.f32.mrb[0].mxu0
      %v1511 = vadd.f32 %v343, %v1510
      %v1512 = vpop.f32.mrb[0].mxu0
      %1513 = vmatprep.mubr.bf16.mxu0 %v830
      %1514 = vmatmul.mubr.bf16.gmra.mrb[0].mxu0 %v829
      %v1515 = vpop.f32.mrb[0].mxu0
      %v1516 = vadd.f32 %v343, %v1515
      %v1517 = vpop.f32.mrb[0].mxu0
      %v1518 = vpop.f32.mrb[0].mxu0
      %v1519 = vadd.f32 %v343, %v1518
      %v1520 = vpop.f32.mrb[0].mxu0
      %1521 = vmatprep.mubr.bf16.mxu0 %v832
      %1522 = vmatmul.mubr.bf16.gmra.mrb[0].mxu0 %v831
      %v1523 = vpop.f32.mrb[0].mxu0
      %v1524 = vadd.f32 %v343, %v1523
      %v1525 = vpop.f32.mrb[0].mxu0
      %v1526 = vpop.f32.mrb[0].mxu0
      %v1527 = vadd.f32 %v343, %v1526
      %v1528 = vpop.f32.mrb[0].mxu0
      %1529 = vmatprep.mubr.bf16.mxu0 %v834
      %1530 = vmatmul.mubr.bf16.gmra.mrb[0].mxu0 %v833
      %v1531 = vpop.f32.mrb[0].mxu0
      %v1532 = vadd.f32 %v343, %v1531
      %v1533 = vpop.f32.mrb[0].mxu0
      %v1534 = vpop.f32.mrb[0].mxu0
      %v1535 = vadd.f32 %v343, %v1534
      %v1536 = vpop.f32.mrb[0].mxu0
      %1537 = vmatprep.mubr.bf16.mxu0 %v836
      %1538 = vmatmul.mubr.bf16.gmra.mrb[0].mxu0 %v835
      %v1539 = vpop.f32.mrb[0].mxu0
      %v1540 = vadd.f32 %v343, %v1539
      %v1541 = vpop.f32.mrb[0].mxu0
      %v1542 = vpop.f32.mrb[0].mxu0
      %v1543 = vadd.f32 %v343, %v1542
      %v1544 = vpop.f32.mrb[0].mxu0
      %1545 = vmatprep.mubr.bf16.mxu0 %v838
      %1546 = vmatmul.mubr.bf16.gmra.mrb[0].mxu0 %v837
      %v1547 = vpop.f32.mrb[0].mxu0
      %v1548 = vadd.f32 %v343, %v1547
      %v1549 = vpop.f32.mrb[0].mxu0
      %v1550 = vpop.f32.mrb[0].mxu0
      %v1551 = vadd.f32 %v343, %v1550
      %v1552 = vpop.f32.mrb[0].mxu0
      %1553 = vmatprep.mubr.bf16.mxu0 %v840
      %1554 = vmatmul.mubr.bf16.gmra.mrb[0].mxu0 %v839
      %v1555 = vpop.f32.mrb[0].mxu0
      %v1556 = vadd.f32 %v343, %v1555
      %v1557 = vpop.f32.mrb[0].mxu0
      %v1558 = vpop.f32.mrb[0].mxu0
      %v1559 = vadd.f32 %v343, %v1558
      %v1560 = vpop.f32.mrb[0].mxu0
      %1561 = vmatprep.mubr.bf16.mxu0 %v842
      %1562 = vmatmul.mubr.bf16.gmra.mrb[0].mxu0 %v841
      %v1563 = vpop.f32.mrb[0].mxu0
      %v1564 = vadd.f32 %v343, %v1563
      %v1565 = vpop.f32.mrb[0].mxu0
      %v1566 = vpop.f32.mrb[0].mxu0
      %v1567 = vadd.f32 %v343, %v1566
      %v1568 = vpop.f32.mrb[0].mxu0
      %1569 = vmatprep.mubr.bf16.mxu0 %v844
      %1570 = vmatmul.mubr.bf16.gmra.mrb[0].mxu0 %v843
      %v1571 = vpop.f32.mrb[0].mxu0
      %v1572 = vadd.f32 %v343, %v1571
      %v1573 = vpop.f32.mrb[0].mxu0
      %v1574 = vpop.f32.mrb[0].mxu0
      %v1575 = vadd.f32 %v343, %v1574
      %v1576 = vpop.f32.mrb[0].mxu0
      %1577 = vmatprep.mubr.bf16.mxu0 %v846
      %1578 = vmatmul.mubr.bf16.gmra.mrb[0].mxu0 %v845
      %v1579 = vpop.f32.mrb[0].mxu0
      %v1580 = vadd.f32 %v343, %v1579
      %v1581 = vpop.f32.mrb[0].mxu0
      %v1582 = vpop.f32.mrb[0].mxu0
      %v1583 = vadd.f32 %v343, %v1582
      %v1584 = vpop.f32.mrb[0].mxu0
      %1585 = vmatprep.mubr.bf16.mxu0 %v848
      %1586 = vmatmul.mubr.bf16.gmra.mrb[0].mxu0 %v847
      %v1587 = vpop.f32.mrb[0].mxu0
      %v1588 = vadd.f32 %v343, %v1587
      %v1589 = vpop.f32.mrb[0].mxu0
      %v1590 = vpop.f32.mrb[0].mxu0
      %v1591 = vadd.f32 %v343, %v1590
      %v1592 = vpop.f32.mrb[0].mxu0
      %1593 = vmatprep.mubr.bf16.mxu0 %v850
      %1594 = vmatmul.mubr.bf16.gmra.mrb[0].mxu0 %v849
      %v1595 = vpop.f32.mrb[0].mxu0
      %v1596 = vadd.f32 %v343, %v1595
      %v1597 = vpop.f32.mrb[0].mxu0
      %v1598 = vpop.f32.mrb[0].mxu0
      %v1599 = vadd.f32 %v343, %v1598
      %v1600 = vpop.f32.mrb[0].mxu0
      %1601 = vmatprep.mubr.bf16.mxu0 %v852
      %1602 = vmatmul.mubr.bf16.gmra.mrb[0].mxu0 %v851
      %v1603 = vpop.f32.mrb[0].mxu0
      %v1604 = vadd.f32 %v343, %v1603
      %v1605 = vpop.f32.mrb[0].mxu0
      %v1606 = vpop.f32.mrb[0].mxu0
      %v1607 = vadd.f32 %v343, %v1606
      %v1608 = vpop.f32.mrb[0].mxu0
      %1609 = vmatprep.mubr.bf16.mxu0 %v854
      %1610 = vmatmul.mubr.bf16.gmra.mrb[0].mxu0 %v853
      %v1611 = vpop.f32.mrb[0].mxu0
      %v1612 = vadd.f32 %v343, %v1611
      %v1613 = vpop.f32.mrb[0].mxu0
      %v1614 = vpop.f32.mrb[0].mxu0
      %v1615 = vadd.f32 %v343, %v1614
      %v1616 = vpop.f32.mrb[0].mxu0
      %1617 = vmatprep.mubr.bf16.mxu0 %v856
      %1618 = vmatmul.mubr.bf16.gmra.mrb[0].mxu0 %v855
      %v1619 = vpop.f32.mrb[0].mxu0
      %v1620 = vadd.f32 %v343, %v1619
      %v1621 = vpop.f32.mrb[0].mxu0
      %v1622 = vpop.f32.mrb[0].mxu0
      %v1623 = vadd.f32 %v343, %v1622
      %v1624 = vpop.f32.mrb[0].mxu0
      %1625 = vdwg.mxu0
      %v1626 = vpack.c.bf16 %v1119, %v1116
      %v1627 = vpack.c.bf16 %v1127, %v1124
      %v1628 = vpack.c.bf16 %v1135, %v1132
      %v1629 = vpack.c.bf16 %v1143, %v1140
      %v1630 = vpack.c.bf16 %v1151, %v1148
      %v1631 = vpack.c.bf16 %v1159, %v1156
      %v1632 = vpack.c.bf16 %v1167, %v1164
      %v1633 = vpack.c.bf16 %v1175, %v1172
      %v1634 = vpack.c.bf16 %v1183, %v1180
      %v1635 = vpack.c.bf16 %v1191, %v1188
      %v1636 = vpack.c.bf16 %v1199, %v1196
      %v1637 = vpack.c.bf16 %v1207, %v1204
      %v1638 = vpack.c.bf16 %v1215, %v1212
      %v1639 = vpack.c.bf16 %v1223, %v1220
      %v1640 = vpack.c.bf16 %v1231, %v1228
      %v1641 = vpack.c.bf16 %v1239, %v1236
      %v1642 = vpack.c.bf16 %v1247, %v1244
      %v1643 = vpack.c.bf16 %v1255, %v1252
      %v1644 = vpack.c.bf16 %v1263, %v1260
      %v1645 = vpack.c.bf16 %v1271, %v1268
      %v1646 = vpack.c.bf16 %v1279, %v1276
      %v1647 = vpack.c.bf16 %v1287, %v1284
      %v1648 = vpack.c.bf16 %v1295, %v1292
      %v1649 = vpack.c.bf16 %v1303, %v1300
      %v1650 = vpack.c.bf16 %v1311, %v1308
      %v1651 = vpack.c.bf16 %v1319, %v1316
      %v1652 = vpack.c.bf16 %v1327, %v1324
      %v1653 = vpack.c.bf16 %v1335, %v1332
      %v1654 = vpack.c.bf16 %v1343, %v1340
      %v1655 = vpack.c.bf16 %v1351, %v1348
      %v1656 = vpack.c.bf16 %v1359, %v1356
      %v1657 = vpack.c.bf16 %v1367, %v1364
      %v1658 = vpack.c.bf16 %v1375, %v1372
      %v1659 = vpack.c.bf16 %v1383, %v1380
      %v1660 = vpack.c.bf16 %v1391, %v1388
      %v1661 = vpack.c.bf16 %v1399, %v1396
      %v1662 = vpack.c.bf16 %v1407, %v1404
      %v1663 = vpack.c.bf16 %v1415, %v1412
      %v1664 = vpack.c.bf16 %v1423, %v1420
      %v1665 = vpack.c.bf16 %v1431, %v1428
      %v1666 = vpack.c.bf16 %v1439, %v1436
      %v1667 = vpack.c.bf16 %v1447, %v1444
      %v1668 = vpack.c.bf16 %v1455, %v1452
      %v1669 = vpack.c.bf16 %v1463, %v1460
      %v1670 = vpack.c.bf16 %v1471, %v1468
      %v1671 = vpack.c.bf16 %v1479, %v1476
      %v1672 = vpack.c.bf16 %v1487, %v1484
      %v1673 = vpack.c.bf16 %v1495, %v1492
      %v1674 = vpack.c.bf16 %v1503, %v1500
      %v1675 = vpack.c.bf16 %v1511, %v1508
      %v1676 = vpack.c.bf16 %v1519, %v1516
      %v1677 = vpack.c.bf16 %v1527, %v1524
      %v1678 = vpack.c.bf16 %v1535, %v1532
      %v1679 = vpack.c.bf16 %v1543, %v1540
      %v1680 = vpack.c.bf16 %v1551, %v1548
      %v1681 = vpack.c.bf16 %v1559, %v1556
      %v1682 = vpack.c.bf16 %v1567, %v1564
      %v1683 = vpack.c.bf16 %v1575, %v1572
      %v1684 = vpack.c.bf16 %v1583, %v1580
      %v1685 = vpack.c.bf16 %v1591, %v1588
      %v1686 = vpack.c.bf16 %v1599, %v1596
      %v1687 = vpack.c.bf16 %v1607, %v1604
      %v1688 = vpack.c.bf16 %v1615, %v1612
      %v1689 = vpack.c.bf16 %v1623, %v1620
      %v1690 = vtanh.bf16.pop %v1626
      %v1691 = vtanh.bf16.pop %v1627
      %v1692 = vtanh.bf16.pop %v1628
      %v1693 = vtanh.bf16.pop %v1629
      %v1694 = vtanh.bf16.pop %v1630
      %v1695 = vtanh.bf16.pop %v1631
      %v1696 = vtanh.bf16.pop %v1632
      %v1697 = vtanh.bf16.pop %v1633
      %v1698 = vtanh.bf16.pop %v1634
      %v1699 = vtanh.bf16.pop %v1635
      %v1700 = vtanh.bf16.pop %v1636
      %v1701 = vtanh.bf16.pop %v1637
      %v1702 = vtanh.bf16.pop %v1638
      %v1703 = vtanh.bf16.pop %v1639
      %v1704 = vtanh.bf16.pop %v1640
      %v1705 = vtanh.bf16.pop %v1641
      %v1706 = vtanh.bf16.pop %v1642
      %v1707 = vtanh.bf16.pop %v1643
      %v1708 = vtanh.bf16.pop %v1644
      %v1709 = vtanh.bf16.pop %v1645
      %v1710 = vtanh.bf16.pop %v1646
      %v1711 = vtanh.bf16.pop %v1647
      %v1712 = vtanh.bf16.pop %v1648
      %v1713 = vtanh.bf16.pop %v1649
      %v1714 = vtanh.bf16.pop %v1650
      %v1715 = vtanh.bf16.pop %v1651
      %v1716 = vtanh.bf16.pop %v1652
      %v1717 = vtanh.bf16.pop %v1653
      %v1718 = vtanh.bf16.pop %v1654
      %v1719 = vtanh.bf16.pop %v1655
      %v1720 = vtanh.bf16.pop %v1656
      %v1721 = vtanh.bf16.pop %v1657
      %v1722 = vtanh.bf16.pop %v1658
      %v1723 = vtanh.bf16.pop %v1659
      %v1724 = vtanh.bf16.pop %v1660
      %v1725 = vtanh.bf16.pop %v1661
      %v1726 = vtanh.bf16.pop %v1662
      %v1727 = vtanh.bf16.pop %v1663
      %v1728 = vtanh.bf16.pop %v1664
      %v1729 = vtanh.bf16.pop %v1665
      %v1730 = vtanh.bf16.pop %v1666
      %v1731 = vtanh.bf16.pop %v1667
      %v1732 = vtanh.bf16.pop %v1668
      %v1733 = vtanh.bf16.pop %v1669
      %v1734 = vtanh.bf16.pop %v1670
      %v1735 = vtanh.bf16.pop %v1671
      %v1736 = vtanh.bf16.pop %v1672
      %v1737 = vtanh.bf16.pop %v1673
      %v1738 = vtanh.bf16.pop %v1674
      %v1739 = vtanh.bf16.pop %v1675
      %v1740 = vtanh.bf16.pop %v1676
      %v1741 = vtanh.bf16.pop %v1677
      %v1742 = vtanh.bf16.pop %v1678
      %v1743 = vtanh.bf16.pop %v1679
      %v1744 = vtanh.bf16.pop %v1680
      %v1745 = vtanh.bf16.pop %v1681
      %v1746 = vtanh.bf16.pop %v1682
      %v1747 = vtanh.bf16.pop %v1683
      %v1748 = vtanh.bf16.pop %v1684
      %v1749 = vtanh.bf16.pop %v1685
      %v1750 = vtanh.bf16.pop %v1686
      %v1751 = vtanh.bf16.pop %v1687
      %v1752 = vtanh.bf16.pop %v1688
      %v1753 = vtanh.bf16.pop %v1689
      %v1818 = vunpack.c.l.b16 %v1690
      %v1819 = vunpack.c.h.b16 %v1690
      %v1820 = vunpack.c.l.b16 %v1691
      %v1821 = vunpack.c.h.b16 %v1691
      %v1822 = vunpack.c.l.b16 %v1692
      %v1823 = vunpack.c.h.b16 %v1692
      %v1824 = vunpack.c.l.b16 %v1693
      %v1825 = vunpack.c.h.b16 %v1693
      %v1826 = vunpack.c.l.b16 %v1694
      %v1827 = vunpack.c.h.b16 %v1694
      %v1828 = vunpack.c.l.b16 %v1695
      %v1829 = vunpack.c.h.b16 %v1695
      %v1830 = vunpack.c.l.b16 %v1696
      %v1831 = vunpack.c.h.b16 %v1696
      %v1832 = vunpack.c.l.b16 %v1697
      %v1833 = vunpack.c.h.b16 %v1697
      %v1834 = vunpack.c.l.b16 %v1698
      %v1835 = vunpack.c.h.b16 %v1698
      %v1836 = vunpack.c.l.b16 %v1699
      %v1837 = vunpack.c.h.b16 %v1699
      %v1838 = vunpack.c.l.b16 %v1700
      %v1839 = vunpack.c.h.b16 %v1700
      %v1840 = vunpack.c.l.b16 %v1701
      %v1841 = vunpack.c.h.b16 %v1701
      %v1842 = vunpack.c.l.b16 %v1702
      %v1843 = vunpack.c.h.b16 %v1702
      %v1844 = vunpack.c.l.b16 %v1703
      %v1845 = vunpack.c.h.b16 %v1703
      %v1846 = vunpack.c.l.b16 %v1704
      %v1847 = vunpack.c.h.b16 %v1704
      %v1848 = vunpack.c.l.b16 %v1705
      %v1849 = vunpack.c.h.b16 %v1705
      %v1850 = vunpack.c.l.b16 %v1706
      %v1851 = vunpack.c.h.b16 %v1706
      %v1852 = vunpack.c.l.b16 %v1707
      %v1853 = vunpack.c.h.b16 %v1707
      %v1854 = vunpack.c.l.b16 %v1708
      %v1855 = vunpack.c.h.b16 %v1708
      %v1856 = vunpack.c.l.b16 %v1709
      %v1857 = vunpack.c.h.b16 %v1709
      %v1858 = vunpack.c.l.b16 %v1710
      %v1859 = vunpack.c.h.b16 %v1710
      %v1860 = vunpack.c.l.b16 %v1711
      %v1861 = vunpack.c.h.b16 %v1711
      %v1862 = vunpack.c.l.b16 %v1712
      %v1863 = vunpack.c.h.b16 %v1712
      %v1864 = vunpack.c.l.b16 %v1713
      %v1865 = vunpack.c.h.b16 %v1713
      %v1866 = vunpack.c.l.b16 %v1714
      %v1867 = vunpack.c.h.b16 %v1714
      %v1868 = vunpack.c.l.b16 %v1715
      %v1869 = vunpack.c.h.b16 %v1715
      %v1870 = vunpack.c.l.b16 %v1716
      %v1871 = vunpack.c.h.b16 %v1716
      %v1872 = vunpack.c.l.b16 %v1717
      %v1873 = vunpack.c.h.b16 %v1717
      %v1874 = vunpack.c.l.b16 %v1718
      %v1875 = vunpack.c.h.b16 %v1718
      %v1876 = vunpack.c.l.b16 %v1719
      %v1877 = vunpack.c.h.b16 %v1719
      %v1878 = vunpack.c.l.b16 %v1720
      %v1879 = vunpack.c.h.b16 %v1720
      %v1880 = vunpack.c.l.b16 %v1721
      %v1881 = vunpack.c.h.b16 %v1721
      %v1882 = vunpack.c.l.b16 %v1722
      %v1883 = vunpack.c.h.b16 %v1722
      %v1884 = vunpack.c.l.b16 %v1723
      %v1885 = vunpack.c.h.b16 %v1723
      %v1886 = vunpack.c.l.b16 %v1724
      %v1887 = vunpack.c.h.b16 %v1724
      %v1888 = vunpack.c.l.b16 %v1725
      %v1889 = vunpack.c.h.b16 %v1725
      %v1890 = vunpack.c.l.b16 %v1726
      %v1891 = vunpack.c.h.b16 %v1726
      %v1892 = vunpack.c.l.b16 %v1727
      %v1893 = vunpack.c.h.b16 %v1727
      %v1894 = vunpack.c.l.b16 %v1728
      %v1895 = vunpack.c.h.b16 %v1728
      %v1896 = vunpack.c.l.b16 %v1729
      %v1897 = vunpack.c.h.b16 %v1729
      %v1898 = vunpack.c.l.b16 %v1730
      %v1899 = vunpack.c.h.b16 %v1730
      %v1900 = vunpack.c.l.b16 %v1731
      %v1901 = vunpack.c.h.b16 %v1731
      %v1902 = vunpack.c.l.b16 %v1732
      %v1903 = vunpack.c.h.b16 %v1732
      %v1904 = vunpack.c.l.b16 %v1733
      %v1905 = vunpack.c.h.b16 %v1733
      %v1906 = vunpack.c.l.b16 %v1734
      %v1907 = vunpack.c.h.b16 %v1734
      %v1908 = vunpack.c.l.b16 %v1735
      %v1909 = vunpack.c.h.b16 %v1735
      %v1910 = vunpack.c.l.b16 %v1736
      %v1911 = vunpack.c.h.b16 %v1736
      %v1912 = vunpack.c.l.b16 %v1737
      %v1913 = vunpack.c.h.b16 %v1737
      %v1914 = vunpack.c.l.b16 %v1738
      %v1915 = vunpack.c.h.b16 %v1738
      %v1916 = vunpack.c.l.b16 %v1739
      %v1917 = vunpack.c.h.b16 %v1739
      %v1918 = vunpack.c.l.b16 %v1740
      %v1919 = vunpack.c.h.b16 %v1740
      %v1920 = vunpack.c.l.b16 %v1741
      %v1921 = vunpack.c.h.b16 %v1741
      %v1922 = vunpack.c.l.b16 %v1742
      %v1923 = vunpack.c.h.b16 %v1742
      %v1924 = vunpack.c.l.b16 %v1743
      %v1925 = vunpack.c.h.b16 %v1743
      %v1926 = vunpack.c.l.b16 %v1744
      %v1927 = vunpack.c.h.b16 %v1744
      %v1928 = vunpack.c.l.b16 %v1745
      %v1929 = vunpack.c.h.b16 %v1745
      %v1930 = vunpack.c.l.b16 %v1746
      %v1931 = vunpack.c.h.b16 %v1746
      %v1932 = vunpack.c.l.b16 %v1747
      %v1933 = vunpack.c.h.b16 %v1747
      %v1934 = vunpack.c.l.b16 %v1748
      %v1935 = vunpack.c.h.b16 %v1748
      %v1936 = vunpack.c.l.b16 %v1749
      %v1937 = vunpack.c.h.b16 %v1749
      %v1938 = vunpack.c.l.b16 %v1750
      %v1939 = vunpack.c.h.b16 %v1750
      %v1940 = vunpack.c.l.b16 %v1751
      %v1941 = vunpack.c.h.b16 %v1751
      %v1942 = vunpack.c.l.b16 %v1752
      %v1943 = vunpack.c.h.b16 %v1752
      %v1944 = vunpack.c.l.b16 %v1753
      %v1945 = vunpack.c.h.b16 %v1753
      %v1946 = vpack.c.b16 %v1818, %v1818
      %v1947 = vpack.c.b16 %v1819, %v1819
      %v1948 = vpack.c.b16 %v1820, %v1820
      %v1949 = vpack.c.b16 %v1821, %v1821
      %v1950 = vpack.c.b16 %v1822, %v1822
      %v1951 = vpack.c.b16 %v1823, %v1823
      %v1952 = vpack.c.b16 %v1824, %v1824
      %v1953 = vpack.c.b16 %v1825, %v1825
      %v1954 = vpack.c.b16 %v1826, %v1826
      %v1955 = vpack.c.b16 %v1827, %v1827
      %v1956 = vpack.c.b16 %v1828, %v1828
      %v1957 = vpack.c.b16 %v1829, %v1829
      %v1958 = vpack.c.b16 %v1830, %v1830
      %v1959 = vpack.c.b16 %v1831, %v1831
      %v1960 = vpack.c.b16 %v1832, %v1832
      %v1961 = vpack.c.b16 %v1833, %v1833
      %v1962 = vpack.c.b16 %v1834, %v1834
      %v1963 = vpack.c.b16 %v1835, %v1835
      %v1964 = vpack.c.b16 %v1836, %v1836
      %v1965 = vpack.c.b16 %v1837, %v1837
      %v1966 = vpack.c.b16 %v1838, %v1838
      %v1967 = vpack.c.b16 %v1839, %v1839
      %v1968 = vpack.c.b16 %v1840, %v1840
      %v1969 = vpack.c.b16 %v1841, %v1841
      %v1970 = vpack.c.b16 %v1842, %v1842
      %v1971 = vpack.c.b16 %v1843, %v1843
      %v1972 = vpack.c.b16 %v1844, %v1844
      %v1973 = vpack.c.b16 %v1845, %v1845
      %v1974 = vpack.c.b16 %v1846, %v1846
      %v1975 = vpack.c.b16 %v1847, %v1847
      %v1976 = vpack.c.b16 %v1848, %v1848
      %v1977 = vpack.c.b16 %v1849, %v1849
      %v1978 = vpack.c.b16 %v1850, %v1850
      %v1979 = vpack.c.b16 %v1851, %v1851
      %v1980 = vpack.c.b16 %v1852, %v1852
      %v1981 = vpack.c.b16 %v1853, %v1853
      %v1982 = vpack.c.b16 %v1854, %v1854
      %v1983 = vpack.c.b16 %v1855, %v1855
      %v1984 = vpack.c.b16 %v1856, %v1856
      %v1985 = vpack.c.b16 %v1857, %v1857
      %v1986 = vpack.c.b16 %v1858, %v1858
      %v1987 = vpack.c.b16 %v1859, %v1859
      %v1988 = vpack.c.b16 %v1860, %v1860
      %v1989 = vpack.c.b16 %v1861, %v1861
      %v1990 = vpack.c.b16 %v1862, %v1862
      %v1991 = vpack.c.b16 %v1863, %v1863
      %v1992 = vpack.c.b16 %v1864, %v1864
      %v1993 = vpack.c.b16 %v1865, %v1865
      %v1994 = vpack.c.b16 %v1866, %v1866
      %v1995 = vpack.c.b16 %v1867, %v1867
      %v1996 = vpack.c.b16 %v1868, %v1868
      %v1997 = vpack.c.b16 %v1869, %v1869
      %v1998 = vpack.c.b16 %v1870, %v1870
      %v1999 = vpack.c.b16 %v1871, %v1871
      %v2000 = vpack.c.b16 %v1872, %v1872
      %v2001 = vpack.c.b16 %v1873, %v1873
      %v2002 = vpack.c.b16 %v1874, %v1874
      %v2003 = vpack.c.b16 %v1875, %v1875
      %v2004 = vpack.c.b16 %v1876, %v1876
      %v2005 = vpack.c.b16 %v1877, %v1877
      %v2006 = vpack.c.b16 %v1878, %v1878
      %v2007 = vpack.c.b16 %v1879, %v1879
      %v2008 = vpack.c.b16 %v1880, %v1880
      %v2009 = vpack.c.b16 %v1881, %v1881
      %v2010 = vpack.c.b16 %v1882, %v1882
      %v2011 = vpack.c.b16 %v1883, %v1883
      %v2012 = vpack.c.b16 %v1884, %v1884
      %v2013 = vpack.c.b16 %v1885, %v1885
      %v2014 = vpack.c.b16 %v1886, %v1886
      %v2015 = vpack.c.b16 %v1887, %v1887
      %v2016 = vpack.c.b16 %v1888, %v1888
      %v2017 = vpack.c.b16 %v1889, %v1889
      %v2018 = vpack.c.b16 %v1890, %v1890
      %v2019 = vpack.c.b16 %v1891, %v1891
      %v2020 = vpack.c.b16 %v1892, %v1892
      %v2021 = vpack.c.b16 %v1893, %v1893
      %v2022 = vpack.c.b16 %v1894, %v1894
      %v2023 = vpack.c.b16 %v1895, %v1895
      %v2024 = vpack.c.b16 %v1896, %v1896
      %v2025 = vpack.c.b16 %v1897, %v1897
      %v2026 = vpack.c.b16 %v1898, %v1898
      %v2027 = vpack.c.b16 %v1899, %v1899
      %v2028 = vpack.c.b16 %v1900, %v1900
      %v2029 = vpack.c.b16 %v1901, %v1901
      %v2030 = vpack.c.b16 %v1902, %v1902
      %v2031 = vpack.c.b16 %v1903, %v1903
      %v2032 = vpack.c.b16 %v1904, %v1904
      %v2033 = vpack.c.b16 %v1905, %v1905
      %v2034 = vpack.c.b16 %v1906, %v1906
      %v2035 = vpack.c.b16 %v1907, %v1907
      %v2036 = vpack.c.b16 %v1908, %v1908
      %v2037 = vpack.c.b16 %v1909, %v1909
      %v2038 = vpack.c.b16 %v1910, %v1910
      %v2039 = vpack.c.b16 %v1911, %v1911
      %v2040 = vpack.c.b16 %v1912, %v1912
      %v2041 = vpack.c.b16 %v1913, %v1913
      %v2042 = vpack.c.b16 %v1914, %v1914
      %v2043 = vpack.c.b16 %v1915, %v1915
      %v2044 = vpack.c.b16 %v1916, %v1916
      %v2045 = vpack.c.b16 %v1917, %v1917
      %v2046 = vpack.c.b16 %v1918, %v1918
      %v2047 = vpack.c.b16 %v1919, %v1919
      %v2048 = vpack.c.b16 %v1920, %v1920
      %v2049 = vpack.c.b16 %v1921, %v1921
      %v2050 = vpack.c.b16 %v1922, %v1922
      %v2051 = vpack.c.b16 %v1923, %v1923
      %v2052 = vpack.c.b16 %v1924, %v1924
      %v2053 = vpack.c.b16 %v1925, %v1925
      %v2054 = vpack.c.b16 %v1926, %v1926
      %v2055 = vpack.c.b16 %v1927, %v1927
      %v2056 = vpack.c.b16 %v1928, %v1928
      %v2057 = vpack.c.b16 %v1929, %v1929
      %v2058 = vpack.c.b16 %v1930, %v1930
      %v2059 = vpack.c.b16 %v1931, %v1931
      %v2060 = vpack.c.b16 %v1932, %v1932
      %v2061 = vpack.c.b16 %v1933, %v1933
      %v2062 = vpack.c.b16 %v1934, %v1934
      %v2063 = vpack.c.b16 %v1935, %v1935
      %v2064 = vpack.c.b16 %v1936, %v1936
      %v2065 = vpack.c.b16 %v1937, %v1937
      %v2066 = vpack.c.b16 %v1938, %v1938
      %v2067 = vpack.c.b16 %v1939, %v1939
      %v2068 = vpack.c.b16 %v1940, %v1940
      %v2069 = vpack.c.b16 %v1941, %v1941
      %v2070 = vpack.c.b16 %v1942, %v1942
      %v2071 = vpack.c.b16 %v1943, %v1943
      %v2072 = vpack.c.b16 %v1944, %v1944
      %v2073 = vpack.c.b16 %v1945, %v1945
      %2202 = vst [vmem:[%s175] sm:$0xf] %v1946
      %2203 = vst [vmem:[%s175 + $0x4] sm:$0xf] %v1947
      %2204 = vst [vmem:[%s175 + $0x8] sm:$0xf] %v1948
      %2205 = vst [vmem:[%s175 + $0xc] sm:$0xf] %v1949
      %2206 = vst [vmem:[%s175 + $0x10] sm:$0xf] %v1950
      %2207 = vst [vmem:[%s175 + $0x14] sm:$0xf] %v1951
      %2208 = vst [vmem:[%s175 + $0x18] sm:$0xf] %v1952
      %2209 = vst [vmem:[%s175 + $0x1c] sm:$0xf] %v1953
      %2210 = vst [vmem:[%s175 + $0x20] sm:$0xf] %v1954
      %2211 = vst [vmem:[%s175 + $0x24] sm:$0xf] %v1955
      %2212 = vst [vmem:[%s175 + $0x28] sm:$0xf] %v1956
      %2213 = vst [vmem:[%s175 + $0x2c] sm:$0xf] %v1957
      %2214 = vst [vmem:[%s175 + $0x30] sm:$0xf] %v1958
      %2215 = vst [vmem:[%s175 + $0x34] sm:$0xf] %v1959
      %2216 = vst [vmem:[%s175 + $0x38] sm:$0xf] %v1960
      %2217 = vst [vmem:[%s175 + $0x3c] sm:$0xf] %v1961
      %2218 = vst [vmem:[%s175 + $0x40] sm:$0xf] %v1962
      %2219 = vst [vmem:[%s175 + $0x44] sm:$0xf] %v1963
      %2220 = vst [vmem:[%s175 + $0x48] sm:$0xf] %v1964
      %2221 = vst [vmem:[%s175 + $0x4c] sm:$0xf] %v1965
      %2222 = vst [vmem:[%s175 + $0x50] sm:$0xf] %v1966
      %2223 = vst [vmem:[%s175 + $0x54] sm:$0xf] %v1967
      %2224 = vst [vmem:[%s175 + $0x58] sm:$0xf] %v1968
      %2225 = vst [vmem:[%s175 + $0x5c] sm:$0xf] %v1969
      %2226 = vst [vmem:[%s175 + $0x60] sm:$0xf] %v1970
      %2227 = vst [vmem:[%s175 + $0x64] sm:$0xf] %v1971
      %2228 = vst [vmem:[%s175 + $0x68] sm:$0xf] %v1972
      %2229 = vst [vmem:[%s175 + $0x6c] sm:$0xf] %v1973
      %2230 = vst [vmem:[%s175 + $0x70] sm:$0xf] %v1974
      %2231 = vst [vmem:[%s175 + $0x74] sm:$0xf] %v1975
      %2232 = vst [vmem:[%s175 + $0x78] sm:$0xf] %v1976
      %2233 = vst [vmem:[%s175 + $0x7c] sm:$0xf] %v1977
      %2234 = vst [vmem:[%s175 + $0x80] sm:$0xf] %v1978
      %2235 = vst [vmem:[%s175 + $0x84] sm:$0xf] %v1979
      %2236 = vst [vmem:[%s175 + $0x88] sm:$0xf] %v1980
      %2237 = vst [vmem:[%s175 + $0x8c] sm:$0xf] %v1981
      %2238 = vst [vmem:[%s175 + $0x90] sm:$0xf] %v1982
      %2239 = vst [vmem:[%s175 + $0x94] sm:$0xf] %v1983
      %2240 = vst [vmem:[%s175 + $0x98] sm:$0xf] %v1984
      %2241 = vst [vmem:[%s175 + $0x9c] sm:$0xf] %v1985
      %2242 = vst [vmem:[%s175 + $0xa0] sm:$0xf] %v1986
      %2243 = vst [vmem:[%s175 + $0xa4] sm:$0xf] %v1987
      %2244 = vst [vmem:[%s175 + $0xa8] sm:$0xf] %v1988
      %2245 = vst [vmem:[%s175 + $0xac] sm:$0xf] %v1989
      %2246 = vst [vmem:[%s175 + $0xb0] sm:$0xf] %v1990
      %2247 = vst [vmem:[%s175 + $0xb4] sm:$0xf] %v1991
      %2248 = vst [vmem:[%s175 + $0xb8] sm:$0xf] %v1992
      %2249 = vst [vmem:[%s175 + $0xbc] sm:$0xf] %v1993
      %2250 = vst [vmem:[%s175 + $0xc0] sm:$0xf] %v1994
      %2251 = vst [vmem:[%s175 + $0xc4] sm:$0xf] %v1995
      %2252 = vst [vmem:[%s175 + $0xc8] sm:$0xf] %v1996
      %2253 = vst [vmem:[%s175 + $0xcc] sm:$0xf] %v1997
      %2254 = vst [vmem:[%s175 + $0xd0] sm:$0xf] %v1998
      %2255 = vst [vmem:[%s175 + $0xd4] sm:$0xf] %v1999
      %2256 = vst [vmem:[%s175 + $0xd8] sm:$0xf] %v2000
      %2257 = vst [vmem:[%s175 + $0xdc] sm:$0xf] %v2001
      %2258 = vst [vmem:[%s175 + $0xe0] sm:$0xf] %v2002
      %2259 = vst [vmem:[%s175 + $0xe4] sm:$0xf] %v2003
      %2260 = vst [vmem:[%s175 + $0xe8] sm:$0xf] %v2004
      %2261 = vst [vmem:[%s175 + $0xec] sm:$0xf] %v2005
      %2262 = vst [vmem:[%s175 + $0xf0] sm:$0xf] %v2006
      %2263 = vst [vmem:[%s175 + $0xf4] sm:$0xf] %v2007
      %2264 = vst [vmem:[%s175 + $0xf8] sm:$0xf] %v2008
      %2265 = vst [vmem:[%s175 + $0xfc] sm:$0xf] %v2009
      %2266 = vst [vmem:[%s175 + $0x100] sm:$0xf] %v2010
      %2267 = vst [vmem:[%s175 + $0x104] sm:$0xf] %v2011
      %2268 = vst [vmem:[%s175 + $0x108] sm:$0xf] %v2012
      %2269 = vst [vmem:[%s175 + $0x10c] sm:$0xf] %v2013
      %2270 = vst [vmem:[%s175 + $0x110] sm:$0xf] %v2014
      %2271 = vst [vmem:[%s175 + $0x114] sm:$0xf] %v2015
      %2272 = vst [vmem:[%s175 + $0x118] sm:$0xf] %v2016
      %2273 = vst [vmem:[%s175 + $0x11c] sm:$0xf] %v2017
      %2274 = vst [vmem:[%s175 + $0x120] sm:$0xf] %v2018
      %2275 = vst [vmem:[%s175 + $0x124] sm:$0xf] %v2019
      %2276 = vst [vmem:[%s175 + $0x128] sm:$0xf] %v2020
      %2277 = vst [vmem:[%s175 + $0x12c] sm:$0xf] %v2021
      %2278 = vst [vmem:[%s175 + $0x130] sm:$0xf] %v2022
      %2279 = vst [vmem:[%s175 + $0x134] sm:$0xf] %v2023
      %2280 = vst [vmem:[%s175 + $0x138] sm:$0xf] %v2024
      %2281 = vst [vmem:[%s175 + $0x13c] sm:$0xf] %v2025
      %2282 = vst [vmem:[%s175 + $0x140] sm:$0xf] %v2026
      %2283 = vst [vmem:[%s175 + $0x144] sm:$0xf] %v2027
      %2284 = vst [vmem:[%s175 + $0x148] sm:$0xf] %v2028
      %2285 = vst [vmem:[%s175 + $0x14c] sm:$0xf] %v2029
      %2286 = vst [vmem:[%s175 + $0x150] sm:$0xf] %v2030
      %2287 = vst [vmem:[%s175 + $0x154] sm:$0xf] %v2031
      %2288 = vst [vmem:[%s175 + $0x158] sm:$0xf] %v2032
      %2289 = vst [vmem:[%s175 + $0x15c] sm:$0xf] %v2033
      %2290 = vst [vmem:[%s175 + $0x160] sm:$0xf] %v2034
      %2291 = vst [vmem:[%s175 + $0x164] sm:$0xf] %v2035
      %2292 = vst [vmem:[%s175 + $0x168] sm:$0xf] %v2036
      %2293 = vst [vmem:[%s175 + $0x16c] sm:$0xf] %v2037
      %2294 = vst [vmem:[%s175 + $0x170] sm:$0xf] %v2038
      %2295 = vst [vmem:[%s175 + $0x174] sm:$0xf] %v2039
      %2296 = vst [vmem:[%s175 + $0x178] sm:$0xf] %v2040
      %2297 = vst [vmem:[%s175 + $0x17c] sm:$0xf] %v2041
      %2298 = vst [vmem:[%s175 + $0x180] sm:$0xf] %v2042
      %2299 = vst [vmem:[%s175 + $0x184] sm:$0xf] %v2043
      %2300 = vst [vmem:[%s175 + $0x188] sm:$0xf] %v2044
      %2301 = vst [vmem:[%s175 + $0x18c] sm:$0xf] %v2045
      %2302 = vst [vmem:[%s175 + $0x190] sm:$0xf] %v2046
      %2303 = vst [vmem:[%s175 + $0x194] sm:$0xf] %v2047
      %2304 = vst [vmem:[%s175 + $0x198] sm:$0xf] %v2048
      %2305 = vst [vmem:[%s175 + $0x19c] sm:$0xf] %v2049
      %2306 = vst [vmem:[%s175 + $0x1a0] sm:$0xf] %v2050
      %2307 = vst [vmem:[%s175 + $0x1a4] sm:$0xf] %v2051
      %2308 = vst [vmem:[%s175 + $0x1a8] sm:$0xf] %v2052
      %2309 = vst [vmem:[%s175 + $0x1ac] sm:$0xf] %v2053
      %2310 = vst [vmem:[%s175 + $0x1b0] sm:$0xf] %v2054
      %2311 = vst [vmem:[%s175 + $0x1b4] sm:$0xf] %v2055
      %2312 = vst [vmem:[%s175 + $0x1b8] sm:$0xf] %v2056
      %2313 = vst [vmem:[%s175 + $0x1bc] sm:$0xf] %v2057
      %2314 = vst [vmem:[%s175 + $0x1c0] sm:$0xf] %v2058
      %2315 = vst [vmem:[%s175 + $0x1c4] sm:$0xf] %v2059
      %2316 = vst [vmem:[%s175 + $0x1c8] sm:$0xf] %v2060
      %2317 = vst [vmem:[%s175 + $0x1cc] sm:$0xf] %v2061
      %2318 = vst [vmem:[%s175 + $0x1d0] sm:$0xf] %v2062
      %2319 = vst [vmem:[%s175 + $0x1d4] sm:$0xf] %v2063
      %2320 = vst [vmem:[%s175 + $0x1d8] sm:$0xf] %v2064
      %2321 = vst [vmem:[%s175 + $0x1dc] sm:$0xf] %v2065
      %2322 = vst [vmem:[%s175 + $0x1e0] sm:$0xf] %v2066
      %2323 = vst [vmem:[%s175 + $0x1e4] sm:$0xf] %v2067
      %2324 = vst [vmem:[%s175 + $0x1e8] sm:$0xf] %v2068
      %2325 = vst [vmem:[%s175 + $0x1ec] sm:$0xf] %v2069
      %2326 = vst [vmem:[%s175 + $0x1f0] sm:$0xf] %v2070
      %2327 = vst [vmem:[%s175 + $0x1f4] sm:$0xf] %v2071
      %2328 = vst [vmem:[%s175 + $0x1f8] sm:$0xf] %v2072
      %2329 = vst [vmem:[%s175 + $0x1fc] sm:$0xf] %v2073
      %s2330 = smul.u32 128, %s14
      %p2331 = scmp.lt.s32.totalorder %s2330, 255
      %s2332 = scalar_select %p2331, %s2330, 255
      %s2333 = smul.addr %s2332, 4
      %s2334 = scalar_lea.vmem %s3, %s2333
      // Predicated region
      $region33: #{_lambda_.9} parent=31 // pred_check
        %p2335 = pneg %p100
      $region34: #{_lambda_.9} parent=31 // pred_check_branch
        %2337 = sbr.rel (%p2335) target = $region36
      $region35: #{_lambda_.9} parent=31 // pred_region
        %s2338 = smul.u32 128, %s14
      $region36: #{_lambda_.9} parent=31 // pred_fallthru
        _
    $region32: #{_lambda_.9} parent=5 // pred_fallthru
      _
    %p2339 = scmp.le.s32.totalorder 2, %s9
    // Predicated region
    $region37: #{_lambda_.9} parent=5 // pred_check
      %p2340 = pneg %p2339
    $region38: #{_lambda_.9} parent=5 // pred_check_branch
      %2342 = sbr.rel (%p2340) target = $region40
    $region39: #{_lambda_.9} parent=5 // pred_region
      %s2343 = ssub.s32 %s9, 2
      // Predicated region
      $region41: #{_lambda_.9} parent=39 // pred_check
        %p2344 = pneg %p106
      $region42: #{_lambda_.9} parent=39 // pred_check_branch
        %2346 = sbr.rel (%p2344) target = $region44
      $region43: #{_lambda_.9} parent=39 // pred_region
        %s2347 = smul.u32 128, %s15
        %p2348 = scmp.lt.s32.totalorder %s2347, 255
        %s2349 = scalar_select %p2348, %s2347, 255
        %s2350 = smul.addr %s2349, 4
        %s2351 = scalar_lea.vmem %s3, %s2350
      $region44: #{_lambda_.9} parent=39 // pred_fallthru
        _
    $region40: #{_lambda_.9} parent=5 // pred_fallthru
      _
  $region6: #{_lambda_.9} parent=0 // loop_footer
    %s13 = sadd.s32 1, %s9
  $region7: #{_lambda_.9} parent=0 // loop_footer_branch
    %8 = sbr.rel target = $region3
  $region8: #{_lambda_.9} parent=0 // loop_exit
    _

</llo_original>
